<compile_context>
chip_gen: v6e
topology: v6e:2x2x1
jax: 0.10.0
libtpu: 0.0.40
codegen_flags: <defaults>
</compile_context>

<pallas_src>
import functools

import jax
import jax.numpy as jnp
import numpy as np
from jax.experimental import pallas as pl
from jax.experimental.pallas import tpu as pltpu


def conv2d_size_out(size, kernel_size=5, stride=2):
    return (size - (kernel_size - 1) - 1) // stride + 1


# -----------------------------------------------------------------------------
# Fused Pallas kernel: whole DQN forward for ONE batch element (grid over batch)
# -----------------------------------------------------------------------------
def _dqn_fused_kernel(p1_ref, w1_ref, sh1_ref,
                      w2_ref, sh2_ref, s2_ref,
                      w3_ref, sh3_ref, s3_ref,
                      wh_ref, bh_ref, out_ref,
                      *, w_in2, w_in3, ksize):
    f32 = jnp.float32

    def dot(a, b):
        return jnp.dot(a, b, preferred_element_type=f32)

    # ---- conv1 + bn1 + relu: exact im2col GEMM (patches built in the wrapper)
    a1 = jnp.maximum(dot(p1_ref[0], w1_ref[...]) + sh1_ref[...], 0.0)   # [H1*W1, 16]

    # ---- stride-2 conv + bn + relu via shifted contiguous windows:
    #        inner = sum_k  act[off_k : off_k + win, :] @ W_k    (static slices)
    #        out   = relu(S @ inner + shift)                     (stride-2 subsample)
    #      with off_k = ki*W_in + kj; S is a tiny exact 0/1 matrix that picks
    #      row 2*y*W_in + 2*x for every output pixel (y, x).
    def conv_shifted(act, w_ref, s_ref, sh_ref, w_in):
        win = s_ref.shape[1]
        inner = None
        for k in range(w_ref.shape[0]):                        # 25 taps, unrolled
            off = (k // ksize) * w_in + (k % ksize)
            term = dot(act[off:off + win, :], w_ref[k])
            inner = term if inner is None else inner + term
        return jnp.maximum(dot(s_ref[...], inner) + sh_ref[...], 0.0)

    a2 = conv_shifted(a1, w2_ref, s2_ref, sh2_ref, w_in2)      # [H2*W2, 32]
    a3 = conv_shifted(a2, w3_ref, s3_ref, sh3_ref, w_in3)      # [H3*W3, 32]

    # ---- linear head on the torch-style (C, H, W) flattening ----------------
    res = bh_ref[...]                                          # [1, outputs]
    for r in range(wh_ref.shape[0]):                           # H3*W3 spatial rows
        res = res + dot(a3[r:r + 1, :], wh_ref[r])
    out_ref[0] = res


# -----------------------------------------------------------------------------
# Thin JAX glue: per-batch im2col of the raw input image only
# -----------------------------------------------------------------------------
def im2col_nchw(x, kh, kw, stride):
    """[N,C,H,W] -> per-batch patches [N, OH*OW, C*KH*KW] (column order (c,ki,kj))."""
    n, c, h, w = x.shape
    oh = (h - kh) // stride + 1
    ow = (w - kw) // stride + 1
    cols = []
    for i in range(kh):
        for j in range(kw):
            cols.append(x[:, :, i:i + stride * oh:stride, j:j + stride * ow:stride])
    p = jnp.stack(cols, axis=2)                  # [N, C, KH*KW, OH, OW]
    p = p.reshape(n, c * kh * kw, oh * ow)       # [N, 75, OH*OW]
    return p.transpose(0, 2, 1)                  # [N, OH*OW, 75]


def _resident_spec(arr):
    """Full-array block that stays VMEM-resident across the batch grid."""
    if arr.ndim == 2:
        return pl.BlockSpec(arr.shape, lambda b: (0, 0))
    if arr.ndim == 3:
        return pl.BlockSpec(arr.shape, lambda b: (0, 0, 0))
    raise ValueError(f"unexpected rank {arr.ndim}")


def dqn_forward(x, kp):
    """x: [N, 3, H, W] (NCHW, like PyTorch). kp: prepared kernel params."""
    n, _, h, w = x.shape
    patches = im2col_nchw(x, 5, 5, 2)            # [N, H1*W1, 75]
    w1s = conv2d_size_out(w)                     # conv2's input width
    w2s = conv2d_size_out(w1s)                   # conv3's input width
    outputs = kp["bh"].shape[-1]

    kernel = functools.partial(_dqn_fused_kernel, w_in2=w1s, w_in3=w2s, ksize=5)
    args = (patches, kp["w1"], kp["sh1"],
            kp["w2"], kp["sh2"], kp["s2"],
            kp["w3"], kp["sh3"], kp["s3"],
            kp["wh"], kp["bh"])
    in_specs = [pl.BlockSpec((1,) + patches.shape[1:], lambda b: (b, 0, 0))]
    in_specs += [_resident_spec(a) for a in args[1:]]

    out = pl.pallas_call(
        kernel,
        out_shape=jax.ShapeDtypeStruct((n, 1, outputs), jnp.float32),
        grid=(n,),
        in_specs=in_specs,
        out_specs=pl.BlockSpec((1, 1, outputs), lambda b: (b, 0, 0)),
        compiler_params=pltpu.CompilerParams(dimension_semantics=("parallel",)),
    )(*args)
    return out.reshape(n, outputs)


# -----------------------------------------------------------------------------
# Parameter prep: fold BN + bias, pre-transpose weights, build tiny subsamplers
# -----------------------------------------------------------------------------
def _subsample_onehot(oh, ow, in_w):
    """Exact 0/1 matrix [oh*ow, win] picking row 2*y*in_w + 2*x per output pixel."""
    win = 2 * (oh - 1) * in_w + 2 * (ow - 1) + 1
    s = np.zeros((oh * ow, win), dtype=np.float32)
    for y in range(oh):
        for x in range(ow):
            s[y * ow + x, 2 * y * in_w + 2 * x] = 1.0
    return jnp.asarray(s)


def prepare_kernel_params(p, h, w, eps=1e-5):
    h1, w1 = conv2d_size_out(h), conv2d_size_out(w)
    h2, w2 = conv2d_size_out(h1), conv2d_size_out(w1)
    h3, w3 = conv2d_size_out(h2), conv2d_size_out(w2)

    def fold(wt, b, gamma, beta, mean, var):
        scale = gamma / jnp.sqrt(var + eps)                   # [OC]
        shift = scale * b + beta - scale * mean               # conv bias folded in
        return wt * scale[:, None, None, None], shift.reshape(1, -1)

    wf1, sh1 = fold(p["w1"], p["b1"], p["g1"], p["beta1"], p["m1"], p["v1"])
    wf2, sh2 = fold(p["w2"], p["b2"], p["g2"], p["beta2"], p["m2"], p["v2"])
    wf3, sh3 = fold(p["w3"], p["b3"], p["g3"], p["beta3"], p["m3"], p["v3"])

    def tap_weights(wf):                                      # [OC,IC,5,5] -> [25, IC, OC]
        oc, ic, kh, kw = wf.shape
        return wf.transpose(2, 3, 1, 0).reshape(kh * kw, ic, oc)

    outputs = p["wh"].shape[0]
    oc3 = wf3.shape[0]
    # torch head flattens NCHW -> (c, h, w); regroup per spatial position (y, x).
    wh = (p["wh"].reshape(outputs, oc3, h3, w3)
                 .transpose(2, 3, 1, 0)
                 .reshape(h3 * w3, oc3, outputs))             # [H3*W3, 32, outputs]

    return {
        "w1": wf1.reshape(wf1.shape[0], -1).T.astype(jnp.float32),   # [75, 16]
        "sh1": sh1.astype(jnp.float32),
        "w2": tap_weights(wf2).astype(jnp.float32),                  # [25, 16, 32]
        "sh2": sh2.astype(jnp.float32),
        "s2": _subsample_onehot(h2, w2, w1),                         # [49, 229]
        "w3": tap_weights(wf3).astype(jnp.float32),                  # [25, 32, 32]
        "sh3": sh3.astype(jnp.float32),
        "s3": _subsample_onehot(h3, w3, w2),                         # [4, 17]
        "wh": wh.astype(jnp.float32),                                # [4, 32, outputs]
        "bh": p["bh"].reshape(1, -1).astype(jnp.float32),
    }


# -----------------------------------------------------------------------------
# Deterministic "torch-like" parameters + pure-JAX reference for validation
# -----------------------------------------------------------------------------
def init_params(key, h, w, outputs):
    convw = conv2d_size_out(conv2d_size_out(conv2d_size_out(w)))
    convh = conv2d_size_out(conv2d_size_out(conv2d_size_out(h)))
    linear_in = convw * convh * 32

    keys = iter(jax.random.split(key, 20))

    def nrm(shape, s=0.1):
        return (s * jax.random.normal(next(keys), shape)).astype(jnp.float32)

    p = {}
    for idx, (ic, oc) in enumerate([(3, 16), (16, 32), (32, 32)], start=1):
        p[f"w{idx}"] = nrm((oc, ic, 5, 5))
        p[f"b{idx}"] = nrm((oc,))
        p[f"g{idx}"] = 1.0 + 0.1 * jax.random.normal(next(keys), (oc,)).astype(jnp.float32)
        p[f"beta{idx}"] = nrm((oc,))
        p[f"m{idx}"] = nrm((oc,))
        p[f"v{idx}"] = 0.5 + jax.random.uniform(next(keys), (oc,)).astype(jnp.float32)
    p["wh"] = nrm((outputs, linear_in))
    p["bh"] = nrm((outputs,))
    return p


def reference_forward(x, p, eps=1e-5):
    def conv(x, w, b):
        y = jax.lax.conv_general_dilated(
            x, w, (2, 2), "VALID", dimension_numbers=("NCHW", "OIHW", "NCHW"))
        return y + b.reshape(1, -1, 1, 1)

    def bn(x, g, beta, m, v):
        r = lambda a: a.reshape(1, -1, 1, 1)
        return r(g) * (x - r(m)) / jnp.sqrt(r(v) + eps) + r(beta)

    x = jax.nn.relu(bn(conv(x, p["w1"], p["b1"]), p["g1"], p["beta1"], p["m1"], p["v1"]))
    x = jax.nn.relu(bn(conv(x, p["w2"], p["b2"]), p["g2"], p["beta2"], p["m2"], p["v2"]))
    x = jax.nn.relu(bn(conv(x, p["w3"], p["b3"]), p["g3"], p["beta3"], p["m3"], p["v3"]))
    x = x.reshape(x.shape[0], -1)
    return x @ p["wh"].T + p["bh"]


# -----------------------------------------------------------------------------
if __name__ == "__main__":
    H = W = 40          # 40 -> 18 -> 7 -> 2 through the three stride-2 convs
    BATCH = 2
    OUTPUTS = 3         # MountainCar action space

    key = jax.random.PRNGKey(0)
    kx, kparam = jax.random.split(key)
    x = jax.random.normal(kx, (BATCH, 3, H, W), dtype=jnp.float32)

    params = init_params(kparam, H, W, OUTPUTS)
    kernel_params = prepare_kernel_params(params, H, W)

    fwd = jax.jit(dqn_forward)
    out = jax.block_until_ready(fwd(x, kernel_params))

    ref = jax.block_until_ready(reference_forward(x, params))
    np.testing.assert_allclose(np.asarray(out), np.asarray(ref), rtol=1e-4, atol=1e-4)
    assert out.shape == (BATCH, OUTPUTS)
    print("KERNEL_OK")
</pallas_src>

<mosaic_0001>
module attributes {stable_mosaic.version = 11 : i64} {
  func.func @_dqn_fused_kernel(%arg0: i32, %arg1: memref<1x324x75xf32, #tpu.memory_space<vmem>>, %arg2: memref<75x16xf32, #tpu.memory_space<vmem>>, %arg3: memref<1x16xf32, #tpu.memory_space<vmem>>, %arg4: memref<25x16x32xf32, #tpu.memory_space<vmem>>, %arg5: memref<1x32xf32, #tpu.memory_space<vmem>>, %arg6: memref<49x229xf32, #tpu.memory_space<vmem>>, %arg7: memref<25x32x32xf32, #tpu.memory_space<vmem>>, %arg8: memref<1x32xf32, #tpu.memory_space<vmem>>, %arg9: memref<4x17xf32, #tpu.memory_space<vmem>>, %arg10: memref<4x32x3xf32, #tpu.memory_space<vmem>>, %arg11: memref<1x3xf32, #tpu.memory_space<vmem>>, %arg12: memref<1x1x3xf32, #tpu.memory_space<vmem>>) attributes {dimension_semantics = [#tpu.dimension_semantics<parallel>], iteration_bounds = array<i64: 2>, scalar_prefetch = 0 : i64, scratch_operands = 0 : i64, tpu.core_type = #tpu.core_type<tc>, window_params = [{transform_indices = @transform_0, window_bounds = array<i64: 1, 324, 75>}, {pipeline_mode = #tpu.pipeline_mode<synchronous>, transform_indices = @transform_1, window_bounds = array<i64: 75, 16>}, {pipeline_mode = #tpu.pipeline_mode<synchronous>, transform_indices = @transform_2, window_bounds = array<i64: 1, 16>}, {pipeline_mode = #tpu.pipeline_mode<synchronous>, transform_indices = @transform_3, window_bounds = array<i64: 25, 16, 32>}, {pipeline_mode = #tpu.pipeline_mode<synchronous>, transform_indices = @transform_4, window_bounds = array<i64: 1, 32>}, {pipeline_mode = #tpu.pipeline_mode<synchronous>, transform_indices = @transform_5, window_bounds = array<i64: 49, 229>}, {pipeline_mode = #tpu.pipeline_mode<synchronous>, transform_indices = @transform_6, window_bounds = array<i64: 25, 32, 32>}, {pipeline_mode = #tpu.pipeline_mode<synchronous>, transform_indices = @transform_7, window_bounds = array<i64: 1, 32>}, {pipeline_mode = #tpu.pipeline_mode<synchronous>, transform_indices = @transform_8, window_bounds = array<i64: 4, 17>}, {pipeline_mode = #tpu.pipeline_mode<synchronous>, transform_indices = @transform_9, window_bounds = array<i64: 4, 32, 3>}, {pipeline_mode = #tpu.pipeline_mode<synchronous>, transform_indices = @transform_10, window_bounds = array<i64: 1, 3>}, {transform_indices = @transform_11, window_bounds = array<i64: 1, 1, 3>}]} {
    %c0 = arith.constant 0 : index
    %c0_0 = arith.constant 0 : index
    %c0_1 = arith.constant 0 : index
    %0 = vector.load %arg1[%c0, %c0_0, %c0_1] : memref<1x324x75xf32, #tpu.memory_space<vmem>>, vector<1x324x75xf32>
    %1 = vector.shape_cast %0 : vector<1x324x75xf32> to vector<324x75xf32>
    %c0_2 = arith.constant 0 : index
    %c0_3 = arith.constant 0 : index
    %2 = vector.load %arg2[%c0_2, %c0_3] : memref<75x16xf32, #tpu.memory_space<vmem>>, vector<75x16xf32>
    %cst = arith.constant dense<0.000000e+00> : vector<324x16xf32>
    %3 = tpu.matmul %1, %2, %cst {dimension_numbers = #tpu.dot_dimension_numbers<[1], [0], [0], [1], [0, 0, 1, 1], [], []>} : vector<324x75xf32>, vector<75x16xf32>, vector<324x16xf32> -> vector<324x16xf32>
    %c0_4 = arith.constant 0 : index
    %c0_5 = arith.constant 0 : index
    %4 = vector.load %arg3[%c0_4, %c0_5] : memref<1x16xf32, #tpu.memory_space<vmem>>, vector<1x16xf32>
    %5 = vector.broadcast %4 : vector<1x16xf32> to vector<324x16xf32>
    %6 = arith.addf %3, %5 : vector<324x16xf32>
    %cst_6 = arith.constant 0.000000e+00 : f32
    %7 = vector.broadcast %cst_6 : f32 to vector<324x16xf32>
    %8 = arith.maximumf %6, %7 : vector<324x16xf32>
    %9 = vector.extract_strided_slice %8 {offsets = [0, 0], sizes = [229, 16], strides = [1, 1]} : vector<324x16xf32> to vector<229x16xf32>
    %c0_7 = arith.constant 0 : index
    %c0_8 = arith.constant 0 : index
    %c0_9 = arith.constant 0 : index
    %10 = vector.load %arg4[%c0_7, %c0_8, %c0_9] : memref<25x16x32xf32, #tpu.memory_space<vmem>>, vector<1x16x32xf32>
    %11 = vector.shape_cast %10 : vector<1x16x32xf32> to vector<16x32xf32>
    %cst_10 = arith.constant dense<0.000000e+00> : vector<229x32xf32>
    %12 = tpu.matmul %9, %11, %cst_10 {dimension_numbers = #tpu.dot_dimension_numbers<[1], [0], [0], [1], [0, 0, 1, 1], [], []>} : vector<229x16xf32>, vector<16x32xf32>, vector<229x32xf32> -> vector<229x32xf32>
    %13 = vector.extract_strided_slice %8 {offsets = [1, 0], sizes = [229, 16], strides = [1, 1]} : vector<324x16xf32> to vector<229x16xf32>
    %c1 = arith.constant 1 : index
    %c0_11 = arith.constant 0 : index
    %c0_12 = arith.constant 0 : index
    %14 = vector.load %arg4[%c1, %c0_11, %c0_12] : memref<25x16x32xf32, #tpu.memory_space<vmem>>, vector<1x16x32xf32>
    %15 = vector.shape_cast %14 : vector<1x16x32xf32> to vector<16x32xf32>
    %cst_13 = arith.constant dense<0.000000e+00> : vector<229x32xf32>
    %16 = tpu.matmul %13, %15, %cst_13 {dimension_numbers = #tpu.dot_dimension_numbers<[1], [0], [0], [1], [0, 0, 1, 1], [], []>} : vector<229x16xf32>, vector<16x32xf32>, vector<229x32xf32> -> vector<229x32xf32>
    %17 = arith.addf %12, %16 : vector<229x32xf32>
    %18 = vector.extract_strided_slice %8 {offsets = [2, 0], sizes = [229, 16], strides = [1, 1]} : vector<324x16xf32> to vector<229x16xf32>
    %c2 = arith.constant 2 : index
    %c0_14 = arith.constant 0 : index
    %c0_15 = arith.constant 0 : index
    %19 = vector.load %arg4[%c2, %c0_14, %c0_15] : memref<25x16x32xf32, #tpu.memory_space<vmem>>, vector<1x16x32xf32>
    %20 = vector.shape_cast %19 : vector<1x16x32xf32> to vector<16x32xf32>
    %cst_16 = arith.constant dense<0.000000e+00> : vector<229x32xf32>
    %21 = tpu.matmul %18, %20, %cst_16 {dimension_numbers = #tpu.dot_dimension_numbers<[1], [0], [0], [1], [0, 0, 1, 1], [], []>} : vector<229x16xf32>, vector<16x32xf32>, vector<229x32xf32> -> vector<229x32xf32>
    %22 = arith.addf %17, %21 : vector<229x32xf32>
    %23 = vector.extract_strided_slice %8 {offsets = [3, 0], sizes = [229, 16], strides = [1, 1]} : vector<324x16xf32> to vector<229x16xf32>
    %c3 = arith.constant 3 : index
    %c0_17 = arith.constant 0 : index
    %c0_18 = arith.constant 0 : index
    %24 = vector.load %arg4[%c3, %c0_17, %c0_18] : memref<25x16x32xf32, #tpu.memory_space<vmem>>, vector<1x16x32xf32>
    %25 = vector.shape_cast %24 : vector<1x16x32xf32> to vector<16x32xf32>
    %cst_19 = arith.constant dense<0.000000e+00> : vector<229x32xf32>
    %26 = tpu.matmul %23, %25, %cst_19 {dimension_numbers = #tpu.dot_dimension_numbers<[1], [0], [0], [1], [0, 0, 1, 1], [], []>} : vector<229x16xf32>, vector<16x32xf32>, vector<229x32xf32> -> vector<229x32xf32>
    %27 = arith.addf %22, %26 : vector<229x32xf32>
    %28 = vector.extract_strided_slice %8 {offsets = [4, 0], sizes = [229, 16], strides = [1, 1]} : vector<324x16xf32> to vector<229x16xf32>
    %c4 = arith.constant 4 : index
    %c0_20 = arith.constant 0 : index
    %c0_21 = arith.constant 0 : index
    %29 = vector.load %arg4[%c4, %c0_20, %c0_21] : memref<25x16x32xf32, #tpu.memory_space<vmem>>, vector<1x16x32xf32>
    %30 = vector.shape_cast %29 : vector<1x16x32xf32> to vector<16x32xf32>
    %cst_22 = arith.constant dense<0.000000e+00> : vector<229x32xf32>
    %31 = tpu.matmul %28, %30, %cst_22 {dimension_numbers = #tpu.dot_dimension_numbers<[1], [0], [0], [1], [0, 0, 1, 1], [], []>} : vector<229x16xf32>, vector<16x32xf32>, vector<229x32xf32> -> vector<229x32xf32>
    %32 = arith.addf %27, %31 : vector<229x32xf32>
    %33 = vector.extract_strided_slice %8 {offsets = [18, 0], sizes = [229, 16], strides = [1, 1]} : vector<324x16xf32> to vector<229x16xf32>
    %c5 = arith.constant 5 : index
    %c0_23 = arith.constant 0 : index
    %c0_24 = arith.constant 0 : index
    %34 = vector.load %arg4[%c5, %c0_23, %c0_24] : memref<25x16x32xf32, #tpu.memory_space<vmem>>, vector<1x16x32xf32>
    %35 = vector.shape_cast %34 : vector<1x16x32xf32> to vector<16x32xf32>
    %cst_25 = arith.constant dense<0.000000e+00> : vector<229x32xf32>
    %36 = tpu.matmul %33, %35, %cst_25 {dimension_numbers = #tpu.dot_dimension_numbers<[1], [0], [0], [1], [0, 0, 1, 1], [], []>} : vector<229x16xf32>, vector<16x32xf32>, vector<229x32xf32> -> vector<229x32xf32>
    %37 = arith.addf %32, %36 : vector<229x32xf32>
    %38 = vector.extract_strided_slice %8 {offsets = [19, 0], sizes = [229, 16], strides = [1, 1]} : vector<324x16xf32> to vector<229x16xf32>
    %c6 = arith.constant 6 : index
    %c0_26 = arith.constant 0 : index
    %c0_27 = arith.constant 0 : index
    %39 = vector.load %arg4[%c6, %c0_26, %c0_27] : memref<25x16x32xf32, #tpu.memory_space<vmem>>, vector<1x16x32xf32>
    %40 = vector.shape_cast %39 : vector<1x16x32xf32> to vector<16x32xf32>
    %cst_28 = arith.constant dense<0.000000e+00> : vector<229x32xf32>
    %41 = tpu.matmul %38, %40, %cst_28 {dimension_numbers = #tpu.dot_dimension_numbers<[1], [0], [0], [1], [0, 0, 1, 1], [], []>} : vector<229x16xf32>, vector<16x32xf32>, vector<229x32xf32> -> vector<229x32xf32>
    %42 = arith.addf %37, %41 : vector<229x32xf32>
    %43 = vector.extract_strided_slice %8 {offsets = [20, 0], sizes = [229, 16], strides = [1, 1]} : vector<324x16xf32> to vector<229x16xf32>
    %c7 = arith.constant 7 : index
    %c0_29 = arith.constant 0 : index
    %c0_30 = arith.constant 0 : index
    %44 = vector.load %arg4[%c7, %c0_29, %c0_30] : memref<25x16x32xf32, #tpu.memory_space<vmem>>, vector<1x16x32xf32>
    %45 = vector.shape_cast %44 : vector<1x16x32xf32> to vector<16x32xf32>
    %cst_31 = arith.constant dense<0.000000e+00> : vector<229x32xf32>
    %46 = tpu.matmul %43, %45, %cst_31 {dimension_numbers = #tpu.dot_dimension_numbers<[1], [0], [0], [1], [0, 0, 1, 1], [], []>} : vector<229x16xf32>, vector<16x32xf32>, vector<229x32xf32> -> vector<229x32xf32>
    %47 = arith.addf %42, %46 : vector<229x32xf32>
    %48 = vector.extract_strided_slice %8 {offsets = [21, 0], sizes = [229, 16], strides = [1, 1]} : vector<324x16xf32> to vector<229x16xf32>
    %c8 = arith.constant 8 : index
    %c0_32 = arith.constant 0 : index
    %c0_33 = arith.constant 0 : index
    %49 = vector.load %arg4[%c8, %c0_32, %c0_33] : memref<25x16x32xf32, #tpu.memory_space<vmem>>, vector<1x16x32xf32>
    %50 = vector.shape_cast %49 : vector<1x16x32xf32> to vector<16x32xf32>
    %cst_34 = arith.constant dense<0.000000e+00> : vector<229x32xf32>
    %51 = tpu.matmul %48, %50, %cst_34 {dimension_numbers = #tpu.dot_dimension_numbers<[1], [0], [0], [1], [0, 0, 1, 1], [], []>} : vector<229x16xf32>, vector<16x32xf32>, vector<229x32xf32> -> vector<229x32xf32>
    %52 = arith.addf %47, %51 : vector<229x32xf32>
    %53 = vector.extract_strided_slice %8 {offsets = [22, 0], sizes = [229, 16], strides = [1, 1]} : vector<324x16xf32> to vector<229x16xf32>
    %c9 = arith.constant 9 : index
    %c0_35 = arith.constant 0 : index
    %c0_36 = arith.constant 0 : index
    %54 = vector.load %arg4[%c9, %c0_35, %c0_36] : memref<25x16x32xf32, #tpu.memory_space<vmem>>, vector<1x16x32xf32>
    %55 = vector.shape_cast %54 : vector<1x16x32xf32> to vector<16x32xf32>
    %cst_37 = arith.constant dense<0.000000e+00> : vector<229x32xf32>
    %56 = tpu.matmul %53, %55, %cst_37 {dimension_numbers = #tpu.dot_dimension_numbers<[1], [0], [0], [1], [0, 0, 1, 1], [], []>} : vector<229x16xf32>, vector<16x32xf32>, vector<229x32xf32> -> vector<229x32xf32>
    %57 = arith.addf %52, %56 : vector<229x32xf32>
    %58 = vector.extract_strided_slice %8 {offsets = [36, 0], sizes = [229, 16], strides = [1, 1]} : vector<324x16xf32> to vector<229x16xf32>
    %c10 = arith.constant 10 : index
    %c0_38 = arith.constant 0 : index
    %c0_39 = arith.constant 0 : index
    %59 = vector.load %arg4[%c10, %c0_38, %c0_39] : memref<25x16x32xf32, #tpu.memory_space<vmem>>, vector<1x16x32xf32>
    %60 = vector.shape_cast %59 : vector<1x16x32xf32> to vector<16x32xf32>
    %cst_40 = arith.constant dense<0.000000e+00> : vector<229x32xf32>
    %61 = tpu.matmul %58, %60, %cst_40 {dimension_numbers = #tpu.dot_dimension_numbers<[1], [0], [0], [1], [0, 0, 1, 1], [], []>} : vector<229x16xf32>, vector<16x32xf32>, vector<229x32xf32> -> vector<229x32xf32>
    %62 = arith.addf %57, %61 : vector<229x32xf32>
    %63 = vector.extract_strided_slice %8 {offsets = [37, 0], sizes = [229, 16], strides = [1, 1]} : vector<324x16xf32> to vector<229x16xf32>
    %c11 = arith.constant 11 : index
    %c0_41 = arith.constant 0 : index
    %c0_42 = arith.constant 0 : index
    %64 = vector.load %arg4[%c11, %c0_41, %c0_42] : memref<25x16x32xf32, #tpu.memory_space<vmem>>, vector<1x16x32xf32>
    %65 = vector.shape_cast %64 : vector<1x16x32xf32> to vector<16x32xf32>
    %cst_43 = arith.constant dense<0.000000e+00> : vector<229x32xf32>
    %66 = tpu.matmul %63, %65, %cst_43 {dimension_numbers = #tpu.dot_dimension_numbers<[1], [0], [0], [1], [0, 0, 1, 1], [], []>} : vector<229x16xf32>, vector<16x32xf32>, vector<229x32xf32> -> vector<229x32xf32>
    %67 = arith.addf %62, %66 : vector<229x32xf32>
    %68 = vector.extract_strided_slice %8 {offsets = [38, 0], sizes = [229, 16], strides = [1, 1]} : vector<324x16xf32> to vector<229x16xf32>
    %c12 = arith.constant 12 : index
    %c0_44 = arith.constant 0 : index
    %c0_45 = arith.constant 0 : index
    %69 = vector.load %arg4[%c12, %c0_44, %c0_45] : memref<25x16x32xf32, #tpu.memory_space<vmem>>, vector<1x16x32xf32>
    %70 = vector.shape_cast %69 : vector<1x16x32xf32> to vector<16x32xf32>
    %cst_46 = arith.constant dense<0.000000e+00> : vector<229x32xf32>
    %71 = tpu.matmul %68, %70, %cst_46 {dimension_numbers = #tpu.dot_dimension_numbers<[1], [0], [0], [1], [0, 0, 1, 1], [], []>} : vector<229x16xf32>, vector<16x32xf32>, vector<229x32xf32> -> vector<229x32xf32>
    %72 = arith.addf %67, %71 : vector<229x32xf32>
    %73 = vector.extract_strided_slice %8 {offsets = [39, 0], sizes = [229, 16], strides = [1, 1]} : vector<324x16xf32> to vector<229x16xf32>
    %c13 = arith.constant 13 : index
    %c0_47 = arith.constant 0 : index
    %c0_48 = arith.constant 0 : index
    %74 = vector.load %arg4[%c13, %c0_47, %c0_48] : memref<25x16x32xf32, #tpu.memory_space<vmem>>, vector<1x16x32xf32>
    %75 = vector.shape_cast %74 : vector<1x16x32xf32> to vector<16x32xf32>
    %cst_49 = arith.constant dense<0.000000e+00> : vector<229x32xf32>
    %76 = tpu.matmul %73, %75, %cst_49 {dimension_numbers = #tpu.dot_dimension_numbers<[1], [0], [0], [1], [0, 0, 1, 1], [], []>} : vector<229x16xf32>, vector<16x32xf32>, vector<229x32xf32> -> vector<229x32xf32>
    %77 = arith.addf %72, %76 : vector<229x32xf32>
    %78 = vector.extract_strided_slice %8 {offsets = [40, 0], sizes = [229, 16], strides = [1, 1]} : vector<324x16xf32> to vector<229x16xf32>
    %c14 = arith.constant 14 : index
    %c0_50 = arith.constant 0 : index
    %c0_51 = arith.constant 0 : index
    %79 = vector.load %arg4[%c14, %c0_50, %c0_51] : memref<25x16x32xf32, #tpu.memory_space<vmem>>, vector<1x16x32xf32>
    %80 = vector.shape_cast %79 : vector<1x16x32xf32> to vector<16x32xf32>
    %cst_52 = arith.constant dense<0.000000e+00> : vector<229x32xf32>
    %81 = tpu.matmul %78, %80, %cst_52 {dimension_numbers = #tpu.dot_dimension_numbers<[1], [0], [0], [1], [0, 0, 1, 1], [], []>} : vector<229x16xf32>, vector<16x32xf32>, vector<229x32xf32> -> vector<229x32xf32>
    %82 = arith.addf %77, %81 : vector<229x32xf32>
    %83 = vector.extract_strided_slice %8 {offsets = [54, 0], sizes = [229, 16], strides = [1, 1]} : vector<324x16xf32> to vector<229x16xf32>
    %c15 = arith.constant 15 : index
    %c0_53 = arith.constant 0 : index
    %c0_54 = arith.constant 0 : index
    %84 = vector.load %arg4[%c15, %c0_53, %c0_54] : memref<25x16x32xf32, #tpu.memory_space<vmem>>, vector<1x16x32xf32>
    %85 = vector.shape_cast %84 : vector<1x16x32xf32> to vector<16x32xf32>
    %cst_55 = arith.constant dense<0.000000e+00> : vector<229x32xf32>
    %86 = tpu.matmul %83, %85, %cst_55 {dimension_numbers = #tpu.dot_dimension_numbers<[1], [0], [0], [1], [0, 0, 1, 1], [], []>} : vector<229x16xf32>, vector<16x32xf32>, vector<229x32xf32> -> vector<229x32xf32>
    %87 = arith.addf %82, %86 : vector<229x32xf32>
    %88 = vector.extract_strided_slice %8 {offsets = [55, 0], sizes = [229, 16], strides = [1, 1]} : vector<324x16xf32> to vector<229x16xf32>
    %c16 = arith.constant 16 : index
    %c0_56 = arith.constant 0 : index
    %c0_57 = arith.constant 0 : index
    %89 = vector.load %arg4[%c16, %c0_56, %c0_57] : memref<25x16x32xf32, #tpu.memory_space<vmem>>, vector<1x16x32xf32>
    %90 = vector.shape_cast %89 : vector<1x16x32xf32> to vector<16x32xf32>
    %cst_58 = arith.constant dense<0.000000e+00> : vector<229x32xf32>
    %91 = tpu.matmul %88, %90, %cst_58 {dimension_numbers = #tpu.dot_dimension_numbers<[1], [0], [0], [1], [0, 0, 1, 1], [], []>} : vector<229x16xf32>, vector<16x32xf32>, vector<229x32xf32> -> vector<229x32xf32>
    %92 = arith.addf %87, %91 : vector<229x32xf32>
    %93 = vector.extract_strided_slice %8 {offsets = [56, 0], sizes = [229, 16], strides = [1, 1]} : vector<324x16xf32> to vector<229x16xf32>
    %c17 = arith.constant 17 : index
    %c0_59 = arith.constant 0 : index
    %c0_60 = arith.constant 0 : index
    %94 = vector.load %arg4[%c17, %c0_59, %c0_60] : memref<25x16x32xf32, #tpu.memory_space<vmem>>, vector<1x16x32xf32>
    %95 = vector.shape_cast %94 : vector<1x16x32xf32> to vector<16x32xf32>
    %cst_61 = arith.constant dense<0.000000e+00> : vector<229x32xf32>
    %96 = tpu.matmul %93, %95, %cst_61 {dimension_numbers = #tpu.dot_dimension_numbers<[1], [0], [0], [1], [0, 0, 1, 1], [], []>} : vector<229x16xf32>, vector<16x32xf32>, vector<229x32xf32> -> vector<229x32xf32>
    %97 = arith.addf %92, %96 : vector<229x32xf32>
    %98 = vector.extract_strided_slice %8 {offsets = [57, 0], sizes = [229, 16], strides = [1, 1]} : vector<324x16xf32> to vector<229x16xf32>
    %c18 = arith.constant 18 : index
    %c0_62 = arith.constant 0 : index
    %c0_63 = arith.constant 0 : index
    %99 = vector.load %arg4[%c18, %c0_62, %c0_63] : memref<25x16x32xf32, #tpu.memory_space<vmem>>, vector<1x16x32xf32>
    %100 = vector.shape_cast %99 : vector<1x16x32xf32> to vector<16x32xf32>
    %cst_64 = arith.constant dense<0.000000e+00> : vector<229x32xf32>
    %101 = tpu.matmul %98, %100, %cst_64 {dimension_numbers = #tpu.dot_dimension_numbers<[1], [0], [0], [1], [0, 0, 1, 1], [], []>} : vector<229x16xf32>, vector<16x32xf32>, vector<229x32xf32> -> vector<229x32xf32>
    %102 = arith.addf %97, %101 : vector<229x32xf32>
    %103 = vector.extract_strided_slice %8 {offsets = [58, 0], sizes = [229, 16], strides = [1, 1]} : vector<324x16xf32> to vector<229x16xf32>
    %c19 = arith.constant 19 : index
    %c0_65 = arith.constant 0 : index
    %c0_66 = arith.constant 0 : index
    %104 = vector.load %arg4[%c19, %c0_65, %c0_66] : memref<25x16x32xf32, #tpu.memory_space<vmem>>, vector<1x16x32xf32>
    %105 = vector.shape_cast %104 : vector<1x16x32xf32> to vector<16x32xf32>
    %cst_67 = arith.constant dense<0.000000e+00> : vector<229x32xf32>
    %106 = tpu.matmul %103, %105, %cst_67 {dimension_numbers = #tpu.dot_dimension_numbers<[1], [0], [0], [1], [0, 0, 1, 1], [], []>} : vector<229x16xf32>, vector<16x32xf32>, vector<229x32xf32> -> vector<229x32xf32>
    %107 = arith.addf %102, %106 : vector<229x32xf32>
    %108 = vector.extract_strided_slice %8 {offsets = [72, 0], sizes = [229, 16], strides = [1, 1]} : vector<324x16xf32> to vector<229x16xf32>
    %c20 = arith.constant 20 : index
    %c0_68 = arith.constant 0 : index
    %c0_69 = arith.constant 0 : index
    %109 = vector.load %arg4[%c20, %c0_68, %c0_69] : memref<25x16x32xf32, #tpu.memory_space<vmem>>, vector<1x16x32xf32>
    %110 = vector.shape_cast %109 : vector<1x16x32xf32> to vector<16x32xf32>
    %cst_70 = arith.constant dense<0.000000e+00> : vector<229x32xf32>
    %111 = tpu.matmul %108, %110, %cst_70 {dimension_numbers = #tpu.dot_dimension_numbers<[1], [0], [0], [1], [0, 0, 1, 1], [], []>} : vector<229x16xf32>, vector<16x32xf32>, vector<229x32xf32> -> vector<229x32xf32>
    %112 = arith.addf %107, %111 : vector<229x32xf32>
    %113 = vector.extract_strided_slice %8 {offsets = [73, 0], sizes = [229, 16], strides = [1, 1]} : vector<324x16xf32> to vector<229x16xf32>
    %c21 = arith.constant 21 : index
    %c0_71 = arith.constant 0 : index
    %c0_72 = arith.constant 0 : index
    %114 = vector.load %arg4[%c21, %c0_71, %c0_72] : memref<25x16x32xf32, #tpu.memory_space<vmem>>, vector<1x16x32xf32>
    %115 = vector.shape_cast %114 : vector<1x16x32xf32> to vector<16x32xf32>
    %cst_73 = arith.constant dense<0.000000e+00> : vector<229x32xf32>
    %116 = tpu.matmul %113, %115, %cst_73 {dimension_numbers = #tpu.dot_dimension_numbers<[1], [0], [0], [1], [0, 0, 1, 1], [], []>} : vector<229x16xf32>, vector<16x32xf32>, vector<229x32xf32> -> vector<229x32xf32>
    %117 = arith.addf %112, %116 : vector<229x32xf32>
    %118 = vector.extract_strided_slice %8 {offsets = [74, 0], sizes = [229, 16], strides = [1, 1]} : vector<324x16xf32> to vector<229x16xf32>
    %c22 = arith.constant 22 : index
    %c0_74 = arith.constant 0 : index
    %c0_75 = arith.constant 0 : index
    %119 = vector.load %arg4[%c22, %c0_74, %c0_75] : memref<25x16x32xf32, #tpu.memory_space<vmem>>, vector<1x16x32xf32>
    %120 = vector.shape_cast %119 : vector<1x16x32xf32> to vector<16x32xf32>
    %cst_76 = arith.constant dense<0.000000e+00> : vector<229x32xf32>
    %121 = tpu.matmul %118, %120, %cst_76 {dimension_numbers = #tpu.dot_dimension_numbers<[1], [0], [0], [1], [0, 0, 1, 1], [], []>} : vector<229x16xf32>, vector<16x32xf32>, vector<229x32xf32> -> vector<229x32xf32>
    %122 = arith.addf %117, %121 : vector<229x32xf32>
    %123 = vector.extract_strided_slice %8 {offsets = [75, 0], sizes = [229, 16], strides = [1, 1]} : vector<324x16xf32> to vector<229x16xf32>
    %c23 = arith.constant 23 : index
    %c0_77 = arith.constant 0 : index
    %c0_78 = arith.constant 0 : index
    %124 = vector.load %arg4[%c23, %c0_77, %c0_78] : memref<25x16x32xf32, #tpu.memory_space<vmem>>, vector<1x16x32xf32>
    %125 = vector.shape_cast %124 : vector<1x16x32xf32> to vector<16x32xf32>
    %cst_79 = arith.constant dense<0.000000e+00> : vector<229x32xf32>
    %126 = tpu.matmul %123, %125, %cst_79 {dimension_numbers = #tpu.dot_dimension_numbers<[1], [0], [0], [1], [0, 0, 1, 1], [], []>} : vector<229x16xf32>, vector<16x32xf32>, vector<229x32xf32> -> vector<229x32xf32>
    %127 = arith.addf %122, %126 : vector<229x32xf32>
    %128 = vector.extract_strided_slice %8 {offsets = [76, 0], sizes = [229, 16], strides = [1, 1]} : vector<324x16xf32> to vector<229x16xf32>
    %c24 = arith.constant 24 : index
    %c0_80 = arith.constant 0 : index
    %c0_81 = arith.constant 0 : index
    %129 = vector.load %arg4[%c24, %c0_80, %c0_81] : memref<25x16x32xf32, #tpu.memory_space<vmem>>, vector<1x16x32xf32>
    %130 = vector.shape_cast %129 : vector<1x16x32xf32> to vector<16x32xf32>
    %cst_82 = arith.constant dense<0.000000e+00> : vector<229x32xf32>
    %131 = tpu.matmul %128, %130, %cst_82 {dimension_numbers = #tpu.dot_dimension_numbers<[1], [0], [0], [1], [0, 0, 1, 1], [], []>} : vector<229x16xf32>, vector<16x32xf32>, vector<229x32xf32> -> vector<229x32xf32>
    %132 = arith.addf %127, %131 : vector<229x32xf32>
    %c0_83 = arith.constant 0 : index
    %c0_84 = arith.constant 0 : index
    %133 = vector.load %arg6[%c0_83, %c0_84] : memref<49x229xf32, #tpu.memory_space<vmem>>, vector<49x229xf32>
    %cst_85 = arith.constant dense<0.000000e+00> : vector<49x32xf32>
    %134 = tpu.matmul %133, %132, %cst_85 {dimension_numbers = #tpu.dot_dimension_numbers<[1], [0], [0], [1], [0, 0, 1, 1], [], []>} : vector<49x229xf32>, vector<229x32xf32>, vector<49x32xf32> -> vector<49x32xf32>
    %c0_86 = arith.constant 0 : index
    %c0_87 = arith.constant 0 : index
    %135 = vector.load %arg5[%c0_86, %c0_87] : memref<1x32xf32, #tpu.memory_space<vmem>>, vector<1x32xf32>
    %136 = vector.broadcast %135 : vector<1x32xf32> to vector<49x32xf32>
    %137 = arith.addf %134, %136 : vector<49x32xf32>
    %cst_88 = arith.constant 0.000000e+00 : f32
    %138 = vector.broadcast %cst_88 : f32 to vector<49x32xf32>
    %139 = arith.maximumf %137, %138 : vector<49x32xf32>
    %140 = vector.extract_strided_slice %139 {offsets = [0, 0], sizes = [17, 32], strides = [1, 1]} : vector<49x32xf32> to vector<17x32xf32>
    %c0_89 = arith.constant 0 : index
    %c0_90 = arith.constant 0 : index
    %c0_91 = arith.constant 0 : index
    %141 = vector.load %arg7[%c0_89, %c0_90, %c0_91] : memref<25x32x32xf32, #tpu.memory_space<vmem>>, vector<1x32x32xf32>
    %142 = vector.shape_cast %141 : vector<1x32x32xf32> to vector<32x32xf32>
    %cst_92 = arith.constant dense<0.000000e+00> : vector<17x32xf32>
    %143 = tpu.matmul %140, %142, %cst_92 {dimension_numbers = #tpu.dot_dimension_numbers<[1], [0], [0], [1], [0, 0, 1, 1], [], []>} : vector<17x32xf32>, vector<32x32xf32>, vector<17x32xf32> -> vector<17x32xf32>
    %144 = vector.extract_strided_slice %139 {offsets = [1, 0], sizes = [17, 32], strides = [1, 1]} : vector<49x32xf32> to vector<17x32xf32>
    %c1_93 = arith.constant 1 : index
    %c0_94 = arith.constant 0 : index
    %c0_95 = arith.constant 0 : index
    %145 = vector.load %arg7[%c1_93, %c0_94, %c0_95] : memref<25x32x32xf32, #tpu.memory_space<vmem>>, vector<1x32x32xf32>
    %146 = vector.shape_cast %145 : vector<1x32x32xf32> to vector<32x32xf32>
    %cst_96 = arith.constant dense<0.000000e+00> : vector<17x32xf32>
    %147 = tpu.matmul %144, %146, %cst_96 {dimension_numbers = #tpu.dot_dimension_numbers<[1], [0], [0], [1], [0, 0, 1, 1], [], []>} : vector<17x32xf32>, vector<32x32xf32>, vector<17x32xf32> -> vector<17x32xf32>
    %148 = arith.addf %143, %147 : vector<17x32xf32>
    %149 = vector.extract_strided_slice %139 {offsets = [2, 0], sizes = [17, 32], strides = [1, 1]} : vector<49x32xf32> to vector<17x32xf32>
    %c2_97 = arith.constant 2 : index
    %c0_98 = arith.constant 0 : index
    %c0_99 = arith.constant 0 : index
    %150 = vector.load %arg7[%c2_97, %c0_98, %c0_99] : memref<25x32x32xf32, #tpu.memory_space<vmem>>, vector<1x32x32xf32>
    %151 = vector.shape_cast %150 : vector<1x32x32xf32> to vector<32x32xf32>
    %cst_100 = arith.constant dense<0.000000e+00> : vector<17x32xf32>
    %152 = tpu.matmul %149, %151, %cst_100 {dimension_numbers = #tpu.dot_dimension_numbers<[1], [0], [0], [1], [0, 0, 1, 1], [], []>} : vector<17x32xf32>, vector<32x32xf32>, vector<17x32xf32> -> vector<17x32xf32>
    %153 = arith.addf %148, %152 : vector<17x32xf32>
    %154 = vector.extract_strided_slice %139 {offsets = [3, 0], sizes = [17, 32], strides = [1, 1]} : vector<49x32xf32> to vector<17x32xf32>
    %c3_101 = arith.constant 3 : index
    %c0_102 = arith.constant 0 : index
    %c0_103 = arith.constant 0 : index
    %155 = vector.load %arg7[%c3_101, %c0_102, %c0_103] : memref<25x32x32xf32, #tpu.memory_space<vmem>>, vector<1x32x32xf32>
    %156 = vector.shape_cast %155 : vector<1x32x32xf32> to vector<32x32xf32>
    %cst_104 = arith.constant dense<0.000000e+00> : vector<17x32xf32>
    %157 = tpu.matmul %154, %156, %cst_104 {dimension_numbers = #tpu.dot_dimension_numbers<[1], [0], [0], [1], [0, 0, 1, 1], [], []>} : vector<17x32xf32>, vector<32x32xf32>, vector<17x32xf32> -> vector<17x32xf32>
    %158 = arith.addf %153, %157 : vector<17x32xf32>
    %159 = vector.extract_strided_slice %139 {offsets = [4, 0], sizes = [17, 32], strides = [1, 1]} : vector<49x32xf32> to vector<17x32xf32>
    %c4_105 = arith.constant 4 : index
    %c0_106 = arith.constant 0 : index
    %c0_107 = arith.constant 0 : index
    %160 = vector.load %arg7[%c4_105, %c0_106, %c0_107] : memref<25x32x32xf32, #tpu.memory_space<vmem>>, vector<1x32x32xf32>
    %161 = vector.shape_cast %160 : vector<1x32x32xf32> to vector<32x32xf32>
    %cst_108 = arith.constant dense<0.000000e+00> : vector<17x32xf32>
    %162 = tpu.matmul %159, %161, %cst_108 {dimension_numbers = #tpu.dot_dimension_numbers<[1], [0], [0], [1], [0, 0, 1, 1], [], []>} : vector<17x32xf32>, vector<32x32xf32>, vector<17x32xf32> -> vector<17x32xf32>
    %163 = arith.addf %158, %162 : vector<17x32xf32>
    %164 = vector.extract_strided_slice %139 {offsets = [7, 0], sizes = [17, 32], strides = [1, 1]} : vector<49x32xf32> to vector<17x32xf32>
    %c5_109 = arith.constant 5 : index
    %c0_110 = arith.constant 0 : index
    %c0_111 = arith.constant 0 : index
    %165 = vector.load %arg7[%c5_109, %c0_110, %c0_111] : memref<25x32x32xf32, #tpu.memory_space<vmem>>, vector<1x32x32xf32>
    %166 = vector.shape_cast %165 : vector<1x32x32xf32> to vector<32x32xf32>
    %cst_112 = arith.constant dense<0.000000e+00> : vector<17x32xf32>
    %167 = tpu.matmul %164, %166, %cst_112 {dimension_numbers = #tpu.dot_dimension_numbers<[1], [0], [0], [1], [0, 0, 1, 1], [], []>} : vector<17x32xf32>, vector<32x32xf32>, vector<17x32xf32> -> vector<17x32xf32>
    %168 = arith.addf %163, %167 : vector<17x32xf32>
    %169 = vector.extract_strided_slice %139 {offsets = [8, 0], sizes = [17, 32], strides = [1, 1]} : vector<49x32xf32> to vector<17x32xf32>
    %c6_113 = arith.constant 6 : index
    %c0_114 = arith.constant 0 : index
    %c0_115 = arith.constant 0 : index
    %170 = vector.load %arg7[%c6_113, %c0_114, %c0_115] : memref<25x32x32xf32, #tpu.memory_space<vmem>>, vector<1x32x32xf32>
    %171 = vector.shape_cast %170 : vector<1x32x32xf32> to vector<32x32xf32>
    %cst_116 = arith.constant dense<0.000000e+00> : vector<17x32xf32>
    %172 = tpu.matmul %169, %171, %cst_116 {dimension_numbers = #tpu.dot_dimension_numbers<[1], [0], [0], [1], [0, 0, 1, 1], [], []>} : vector<17x32xf32>, vector<32x32xf32>, vector<17x32xf32> -> vector<17x32xf32>
    %173 = arith.addf %168, %172 : vector<17x32xf32>
    %174 = vector.extract_strided_slice %139 {offsets = [9, 0], sizes = [17, 32], strides = [1, 1]} : vector<49x32xf32> to vector<17x32xf32>
    %c7_117 = arith.constant 7 : index
    %c0_118 = arith.constant 0 : index
    %c0_119 = arith.constant 0 : index
    %175 = vector.load %arg7[%c7_117, %c0_118, %c0_119] : memref<25x32x32xf32, #tpu.memory_space<vmem>>, vector<1x32x32xf32>
    %176 = vector.shape_cast %175 : vector<1x32x32xf32> to vector<32x32xf32>
    %cst_120 = arith.constant dense<0.000000e+00> : vector<17x32xf32>
    %177 = tpu.matmul %174, %176, %cst_120 {dimension_numbers = #tpu.dot_dimension_numbers<[1], [0], [0], [1], [0, 0, 1, 1], [], []>} : vector<17x32xf32>, vector<32x32xf32>, vector<17x32xf32> -> vector<17x32xf32>
    %178 = arith.addf %173, %177 : vector<17x32xf32>
    %179 = vector.extract_strided_slice %139 {offsets = [10, 0], sizes = [17, 32], strides = [1, 1]} : vector<49x32xf32> to vector<17x32xf32>
    %c8_121 = arith.constant 8 : index
    %c0_122 = arith.constant 0 : index
    %c0_123 = arith.constant 0 : index
    %180 = vector.load %arg7[%c8_121, %c0_122, %c0_123] : memref<25x32x32xf32, #tpu.memory_space<vmem>>, vector<1x32x32xf32>
    %181 = vector.shape_cast %180 : vector<1x32x32xf32> to vector<32x32xf32>
    %cst_124 = arith.constant dense<0.000000e+00> : vector<17x32xf32>
    %182 = tpu.matmul %179, %181, %cst_124 {dimension_numbers = #tpu.dot_dimension_numbers<[1], [0], [0], [1], [0, 0, 1, 1], [], []>} : vector<17x32xf32>, vector<32x32xf32>, vector<17x32xf32> -> vector<17x32xf32>
    %183 = arith.addf %178, %182 : vector<17x32xf32>
    %184 = vector.extract_strided_slice %139 {offsets = [11, 0], sizes = [17, 32], strides = [1, 1]} : vector<49x32xf32> to vector<17x32xf32>
    %c9_125 = arith.constant 9 : index
    %c0_126 = arith.constant 0 : index
    %c0_127 = arith.constant 0 : index
    %185 = vector.load %arg7[%c9_125, %c0_126, %c0_127] : memref<25x32x32xf32, #tpu.memory_space<vmem>>, vector<1x32x32xf32>
    %186 = vector.shape_cast %185 : vector<1x32x32xf32> to vector<32x32xf32>
    %cst_128 = arith.constant dense<0.000000e+00> : vector<17x32xf32>
    %187 = tpu.matmul %184, %186, %cst_128 {dimension_numbers = #tpu.dot_dimension_numbers<[1], [0], [0], [1], [0, 0, 1, 1], [], []>} : vector<17x32xf32>, vector<32x32xf32>, vector<17x32xf32> -> vector<17x32xf32>
    %188 = arith.addf %183, %187 : vector<17x32xf32>
    %189 = vector.extract_strided_slice %139 {offsets = [14, 0], sizes = [17, 32], strides = [1, 1]} : vector<49x32xf32> to vector<17x32xf32>
    %c10_129 = arith.constant 10 : index
    %c0_130 = arith.constant 0 : index
    %c0_131 = arith.constant 0 : index
    %190 = vector.load %arg7[%c10_129, %c0_130, %c0_131] : memref<25x32x32xf32, #tpu.memory_space<vmem>>, vector<1x32x32xf32>
    %191 = vector.shape_cast %190 : vector<1x32x32xf32> to vector<32x32xf32>
    %cst_132 = arith.constant dense<0.000000e+00> : vector<17x32xf32>
    %192 = tpu.matmul %189, %191, %cst_132 {dimension_numbers = #tpu.dot_dimension_numbers<[1], [0], [0], [1], [0, 0, 1, 1], [], []>} : vector<17x32xf32>, vector<32x32xf32>, vector<17x32xf32> -> vector<17x32xf32>
    %193 = arith.addf %188, %192 : vector<17x32xf32>
    %194 = vector.extract_strided_slice %139 {offsets = [15, 0], sizes = [17, 32], strides = [1, 1]} : vector<49x32xf32> to vector<17x32xf32>
    %c11_133 = arith.constant 11 : index
    %c0_134 = arith.constant 0 : index
    %c0_135 = arith.constant 0 : index
    %195 = vector.load %arg7[%c11_133, %c0_134, %c0_135] : memref<25x32x32xf32, #tpu.memory_space<vmem>>, vector<1x32x32xf32>
    %196 = vector.shape_cast %195 : vector<1x32x32xf32> to vector<32x32xf32>
    %cst_136 = arith.constant dense<0.000000e+00> : vector<17x32xf32>
    %197 = tpu.matmul %194, %196, %cst_136 {dimension_numbers = #tpu.dot_dimension_numbers<[1], [0], [0], [1], [0, 0, 1, 1], [], []>} : vector<17x32xf32>, vector<32x32xf32>, vector<17x32xf32> -> vector<17x32xf32>
    %198 = arith.addf %193, %197 : vector<17x32xf32>
    %199 = vector.extract_strided_slice %139 {offsets = [16, 0], sizes = [17, 32], strides = [1, 1]} : vector<49x32xf32> to vector<17x32xf32>
    %c12_137 = arith.constant 12 : index
    %c0_138 = arith.constant 0 : index
    %c0_139 = arith.constant 0 : index
    %200 = vector.load %arg7[%c12_137, %c0_138, %c0_139] : memref<25x32x32xf32, #tpu.memory_space<vmem>>, vector<1x32x32xf32>
    %201 = vector.shape_cast %200 : vector<1x32x32xf32> to vector<32x32xf32>
    %cst_140 = arith.constant dense<0.000000e+00> : vector<17x32xf32>
    %202 = tpu.matmul %199, %201, %cst_140 {dimension_numbers = #tpu.dot_dimension_numbers<[1], [0], [0], [1], [0, 0, 1, 1], [], []>} : vector<17x32xf32>, vector<32x32xf32>, vector<17x32xf32> -> vector<17x32xf32>
    %203 = arith.addf %198, %202 : vector<17x32xf32>
    %204 = vector.extract_strided_slice %139 {offsets = [17, 0], sizes = [17, 32], strides = [1, 1]} : vector<49x32xf32> to vector<17x32xf32>
    %c13_141 = arith.constant 13 : index
    %c0_142 = arith.constant 0 : index
    %c0_143 = arith.constant 0 : index
    %205 = vector.load %arg7[%c13_141, %c0_142, %c0_143] : memref<25x32x32xf32, #tpu.memory_space<vmem>>, vector<1x32x32xf32>
    %206 = vector.shape_cast %205 : vector<1x32x32xf32> to vector<32x32xf32>
    %cst_144 = arith.constant dense<0.000000e+00> : vector<17x32xf32>
    %207 = tpu.matmul %204, %206, %cst_144 {dimension_numbers = #tpu.dot_dimension_numbers<[1], [0], [0], [1], [0, 0, 1, 1], [], []>} : vector<17x32xf32>, vector<32x32xf32>, vector<17x32xf32> -> vector<17x32xf32>
    %208 = arith.addf %203, %207 : vector<17x32xf32>
    %209 = vector.extract_strided_slice %139 {offsets = [18, 0], sizes = [17, 32], strides = [1, 1]} : vector<49x32xf32> to vector<17x32xf32>
    %c14_145 = arith.constant 14 : index
    %c0_146 = arith.constant 0 : index
    %c0_147 = arith.constant 0 : index
    %210 = vector.load %arg7[%c14_145, %c0_146, %c0_147] : memref<25x32x32xf32, #tpu.memory_space<vmem>>, vector<1x32x32xf32>
    %211 = vector.shape_cast %210 : vector<1x32x32xf32> to vector<32x32xf32>
    %cst_148 = arith.constant dense<0.000000e+00> : vector<17x32xf32>
    %212 = tpu.matmul %209, %211, %cst_148 {dimension_numbers = #tpu.dot_dimension_numbers<[1], [0], [0], [1], [0, 0, 1, 1], [], []>} : vector<17x32xf32>, vector<32x32xf32>, vector<17x32xf32> -> vector<17x32xf32>
    %213 = arith.addf %208, %212 : vector<17x32xf32>
    %214 = vector.extract_strided_slice %139 {offsets = [21, 0], sizes = [17, 32], strides = [1, 1]} : vector<49x32xf32> to vector<17x32xf32>
    %c15_149 = arith.constant 15 : index
    %c0_150 = arith.constant 0 : index
    %c0_151 = arith.constant 0 : index
    %215 = vector.load %arg7[%c15_149, %c0_150, %c0_151] : memref<25x32x32xf32, #tpu.memory_space<vmem>>, vector<1x32x32xf32>
    %216 = vector.shape_cast %215 : vector<1x32x32xf32> to vector<32x32xf32>
    %cst_152 = arith.constant dense<0.000000e+00> : vector<17x32xf32>
    %217 = tpu.matmul %214, %216, %cst_152 {dimension_numbers = #tpu.dot_dimension_numbers<[1], [0], [0], [1], [0, 0, 1, 1], [], []>} : vector<17x32xf32>, vector<32x32xf32>, vector<17x32xf32> -> vector<17x32xf32>
    %218 = arith.addf %213, %217 : vector<17x32xf32>
    %219 = vector.extract_strided_slice %139 {offsets = [22, 0], sizes = [17, 32], strides = [1, 1]} : vector<49x32xf32> to vector<17x32xf32>
    %c16_153 = arith.constant 16 : index
    %c0_154 = arith.constant 0 : index
    %c0_155 = arith.constant 0 : index
    %220 = vector.load %arg7[%c16_153, %c0_154, %c0_155] : memref<25x32x32xf32, #tpu.memory_space<vmem>>, vector<1x32x32xf32>
    %221 = vector.shape_cast %220 : vector<1x32x32xf32> to vector<32x32xf32>
    %cst_156 = arith.constant dense<0.000000e+00> : vector<17x32xf32>
    %222 = tpu.matmul %219, %221, %cst_156 {dimension_numbers = #tpu.dot_dimension_numbers<[1], [0], [0], [1], [0, 0, 1, 1], [], []>} : vector<17x32xf32>, vector<32x32xf32>, vector<17x32xf32> -> vector<17x32xf32>
    %223 = arith.addf %218, %222 : vector<17x32xf32>
    %224 = vector.extract_strided_slice %139 {offsets = [23, 0], sizes = [17, 32], strides = [1, 1]} : vector<49x32xf32> to vector<17x32xf32>
    %c17_157 = arith.constant 17 : index
    %c0_158 = arith.constant 0 : index
    %c0_159 = arith.constant 0 : index
    %225 = vector.load %arg7[%c17_157, %c0_158, %c0_159] : memref<25x32x32xf32, #tpu.memory_space<vmem>>, vector<1x32x32xf32>
    %226 = vector.shape_cast %225 : vector<1x32x32xf32> to vector<32x32xf32>
    %cst_160 = arith.constant dense<0.000000e+00> : vector<17x32xf32>
    %227 = tpu.matmul %224, %226, %cst_160 {dimension_numbers = #tpu.dot_dimension_numbers<[1], [0], [0], [1], [0, 0, 1, 1], [], []>} : vector<17x32xf32>, vector<32x32xf32>, vector<17x32xf32> -> vector<17x32xf32>
    %228 = arith.addf %223, %227 : vector<17x32xf32>
    %229 = vector.extract_strided_slice %139 {offsets = [24, 0], sizes = [17, 32], strides = [1, 1]} : vector<49x32xf32> to vector<17x32xf32>
    %c18_161 = arith.constant 18 : index
    %c0_162 = arith.constant 0 : index
    %c0_163 = arith.constant 0 : index
    %230 = vector.load %arg7[%c18_161, %c0_162, %c0_163] : memref<25x32x32xf32, #tpu.memory_space<vmem>>, vector<1x32x32xf32>
    %231 = vector.shape_cast %230 : vector<1x32x32xf32> to vector<32x32xf32>
    %cst_164 = arith.constant dense<0.000000e+00> : vector<17x32xf32>
    %232 = tpu.matmul %229, %231, %cst_164 {dimension_numbers = #tpu.dot_dimension_numbers<[1], [0], [0], [1], [0, 0, 1, 1], [], []>} : vector<17x32xf32>, vector<32x32xf32>, vector<17x32xf32> -> vector<17x32xf32>
    %233 = arith.addf %228, %232 : vector<17x32xf32>
    %234 = vector.extract_strided_slice %139 {offsets = [25, 0], sizes = [17, 32], strides = [1, 1]} : vector<49x32xf32> to vector<17x32xf32>
    %c19_165 = arith.constant 19 : index
    %c0_166 = arith.constant 0 : index
    %c0_167 = arith.constant 0 : index
    %235 = vector.load %arg7[%c19_165, %c0_166, %c0_167] : memref<25x32x32xf32, #tpu.memory_space<vmem>>, vector<1x32x32xf32>
    %236 = vector.shape_cast %235 : vector<1x32x32xf32> to vector<32x32xf32>
    %cst_168 = arith.constant dense<0.000000e+00> : vector<17x32xf32>
    %237 = tpu.matmul %234, %236, %cst_168 {dimension_numbers = #tpu.dot_dimension_numbers<[1], [0], [0], [1], [0, 0, 1, 1], [], []>} : vector<17x32xf32>, vector<32x32xf32>, vector<17x32xf32> -> vector<17x32xf32>
    %238 = arith.addf %233, %237 : vector<17x32xf32>
    %239 = vector.extract_strided_slice %139 {offsets = [28, 0], sizes = [17, 32], strides = [1, 1]} : vector<49x32xf32> to vector<17x32xf32>
    %c20_169 = arith.constant 20 : index
    %c0_170 = arith.constant 0 : index
    %c0_171 = arith.constant 0 : index
    %240 = vector.load %arg7[%c20_169, %c0_170, %c0_171] : memref<25x32x32xf32, #tpu.memory_space<vmem>>, vector<1x32x32xf32>
    %241 = vector.shape_cast %240 : vector<1x32x32xf32> to vector<32x32xf32>
    %cst_172 = arith.constant dense<0.000000e+00> : vector<17x32xf32>
    %242 = tpu.matmul %239, %241, %cst_172 {dimension_numbers = #tpu.dot_dimension_numbers<[1], [0], [0], [1], [0, 0, 1, 1], [], []>} : vector<17x32xf32>, vector<32x32xf32>, vector<17x32xf32> -> vector<17x32xf32>
    %243 = arith.addf %238, %242 : vector<17x32xf32>
    %244 = vector.extract_strided_slice %139 {offsets = [29, 0], sizes = [17, 32], strides = [1, 1]} : vector<49x32xf32> to vector<17x32xf32>
    %c21_173 = arith.constant 21 : index
    %c0_174 = arith.constant 0 : index
    %c0_175 = arith.constant 0 : index
    %245 = vector.load %arg7[%c21_173, %c0_174, %c0_175] : memref<25x32x32xf32, #tpu.memory_space<vmem>>, vector<1x32x32xf32>
    %246 = vector.shape_cast %245 : vector<1x32x32xf32> to vector<32x32xf32>
    %cst_176 = arith.constant dense<0.000000e+00> : vector<17x32xf32>
    %247 = tpu.matmul %244, %246, %cst_176 {dimension_numbers = #tpu.dot_dimension_numbers<[1], [0], [0], [1], [0, 0, 1, 1], [], []>} : vector<17x32xf32>, vector<32x32xf32>, vector<17x32xf32> -> vector<17x32xf32>
    %248 = arith.addf %243, %247 : vector<17x32xf32>
    %249 = vector.extract_strided_slice %139 {offsets = [30, 0], sizes = [17, 32], strides = [1, 1]} : vector<49x32xf32> to vector<17x32xf32>
    %c22_177 = arith.constant 22 : index
    %c0_178 = arith.constant 0 : index
    %c0_179 = arith.constant 0 : index
    %250 = vector.load %arg7[%c22_177, %c0_178, %c0_179] : memref<25x32x32xf32, #tpu.memory_space<vmem>>, vector<1x32x32xf32>
    %251 = vector.shape_cast %250 : vector<1x32x32xf32> to vector<32x32xf32>
    %cst_180 = arith.constant dense<0.000000e+00> : vector<17x32xf32>
    %252 = tpu.matmul %249, %251, %cst_180 {dimension_numbers = #tpu.dot_dimension_numbers<[1], [0], [0], [1], [0, 0, 1, 1], [], []>} : vector<17x32xf32>, vector<32x32xf32>, vector<17x32xf32> -> vector<17x32xf32>
    %253 = arith.addf %248, %252 : vector<17x32xf32>
    %254 = vector.extract_strided_slice %139 {offsets = [31, 0], sizes = [17, 32], strides = [1, 1]} : vector<49x32xf32> to vector<17x32xf32>
    %c23_181 = arith.constant 23 : index
    %c0_182 = arith.constant 0 : index
    %c0_183 = arith.constant 0 : index
    %255 = vector.load %arg7[%c23_181, %c0_182, %c0_183] : memref<25x32x32xf32, #tpu.memory_space<vmem>>, vector<1x32x32xf32>
    %256 = vector.shape_cast %255 : vector<1x32x32xf32> to vector<32x32xf32>
    %cst_184 = arith.constant dense<0.000000e+00> : vector<17x32xf32>
    %257 = tpu.matmul %254, %256, %cst_184 {dimension_numbers = #tpu.dot_dimension_numbers<[1], [0], [0], [1], [0, 0, 1, 1], [], []>} : vector<17x32xf32>, vector<32x32xf32>, vector<17x32xf32> -> vector<17x32xf32>
    %258 = arith.addf %253, %257 : vector<17x32xf32>
    %259 = vector.extract_strided_slice %139 {offsets = [32, 0], sizes = [17, 32], strides = [1, 1]} : vector<49x32xf32> to vector<17x32xf32>
    %c24_185 = arith.constant 24 : index
    %c0_186 = arith.constant 0 : index
    %c0_187 = arith.constant 0 : index
    %260 = vector.load %arg7[%c24_185, %c0_186, %c0_187] : memref<25x32x32xf32, #tpu.memory_space<vmem>>, vector<1x32x32xf32>
    %261 = vector.shape_cast %260 : vector<1x32x32xf32> to vector<32x32xf32>
    %cst_188 = arith.constant dense<0.000000e+00> : vector<17x32xf32>
    %262 = tpu.matmul %259, %261, %cst_188 {dimension_numbers = #tpu.dot_dimension_numbers<[1], [0], [0], [1], [0, 0, 1, 1], [], []>} : vector<17x32xf32>, vector<32x32xf32>, vector<17x32xf32> -> vector<17x32xf32>
    %263 = arith.addf %258, %262 : vector<17x32xf32>
    %c0_189 = arith.constant 0 : index
    %c0_190 = arith.constant 0 : index
    %264 = vector.load %arg9[%c0_189, %c0_190] : memref<4x17xf32, #tpu.memory_space<vmem>>, vector<4x17xf32>
    %cst_191 = arith.constant dense<0.000000e+00> : vector<4x32xf32>
    %265 = tpu.matmul %264, %263, %cst_191 {dimension_numbers = #tpu.dot_dimension_numbers<[1], [0], [0], [1], [0, 0, 1, 1], [], []>} : vector<4x17xf32>, vector<17x32xf32>, vector<4x32xf32> -> vector<4x32xf32>
    %c0_192 = arith.constant 0 : index
    %c0_193 = arith.constant 0 : index
    %266 = vector.load %arg8[%c0_192, %c0_193] : memref<1x32xf32, #tpu.memory_space<vmem>>, vector<1x32xf32>
    %267 = vector.broadcast %266 : vector<1x32xf32> to vector<4x32xf32>
    %268 = arith.addf %265, %267 : vector<4x32xf32>
    %cst_194 = arith.constant 0.000000e+00 : f32
    %269 = vector.broadcast %cst_194 : f32 to vector<4x32xf32>
    %270 = arith.maximumf %268, %269 : vector<4x32xf32>
    %c0_195 = arith.constant 0 : index
    %c0_196 = arith.constant 0 : index
    %271 = vector.load %arg11[%c0_195, %c0_196] : memref<1x3xf32, #tpu.memory_space<vmem>>, vector<1x3xf32>
    %272 = vector.extract_strided_slice %270 {offsets = [0, 0], sizes = [1, 32], strides = [1, 1]} : vector<4x32xf32> to vector<1x32xf32>
    %c0_197 = arith.constant 0 : index
    %c0_198 = arith.constant 0 : index
    %c0_199 = arith.constant 0 : index
    %273 = vector.load %arg10[%c0_197, %c0_198, %c0_199] : memref<4x32x3xf32, #tpu.memory_space<vmem>>, vector<1x32x3xf32>
    %274 = vector.shape_cast %273 : vector<1x32x3xf32> to vector<32x3xf32>
    %cst_200 = arith.constant dense<0.000000e+00> : vector<1x3xf32>
    %275 = tpu.matmul %272, %274, %cst_200 {dimension_numbers = #tpu.dot_dimension_numbers<[1], [0], [0], [1], [0, 0, 1, 1], [], []>} : vector<1x32xf32>, vector<32x3xf32>, vector<1x3xf32> -> vector<1x3xf32>
    %276 = arith.addf %271, %275 : vector<1x3xf32>
    %277 = vector.extract_strided_slice %270 {offsets = [1, 0], sizes = [1, 32], strides = [1, 1]} : vector<4x32xf32> to vector<1x32xf32>
    %c1_201 = arith.constant 1 : index
    %c0_202 = arith.constant 0 : index
    %c0_203 = arith.constant 0 : index
    %278 = vector.load %arg10[%c1_201, %c0_202, %c0_203] : memref<4x32x3xf32, #tpu.memory_space<vmem>>, vector<1x32x3xf32>
    %279 = vector.shape_cast %278 : vector<1x32x3xf32> to vector<32x3xf32>
    %cst_204 = arith.constant dense<0.000000e+00> : vector<1x3xf32>
    %280 = tpu.matmul %277, %279, %cst_204 {dimension_numbers = #tpu.dot_dimension_numbers<[1], [0], [0], [1], [0, 0, 1, 1], [], []>} : vector<1x32xf32>, vector<32x3xf32>, vector<1x3xf32> -> vector<1x3xf32>
    %281 = arith.addf %276, %280 : vector<1x3xf32>
    %282 = vector.extract_strided_slice %270 {offsets = [2, 0], sizes = [1, 32], strides = [1, 1]} : vector<4x32xf32> to vector<1x32xf32>
    %c2_205 = arith.constant 2 : index
    %c0_206 = arith.constant 0 : index
    %c0_207 = arith.constant 0 : index
    %283 = vector.load %arg10[%c2_205, %c0_206, %c0_207] : memref<4x32x3xf32, #tpu.memory_space<vmem>>, vector<1x32x3xf32>
    %284 = vector.shape_cast %283 : vector<1x32x3xf32> to vector<32x3xf32>
    %cst_208 = arith.constant dense<0.000000e+00> : vector<1x3xf32>
    %285 = tpu.matmul %282, %284, %cst_208 {dimension_numbers = #tpu.dot_dimension_numbers<[1], [0], [0], [1], [0, 0, 1, 1], [], []>} : vector<1x32xf32>, vector<32x3xf32>, vector<1x3xf32> -> vector<1x3xf32>
    %286 = arith.addf %281, %285 : vector<1x3xf32>
    %287 = vector.extract_strided_slice %270 {offsets = [3, 0], sizes = [1, 32], strides = [1, 1]} : vector<4x32xf32> to vector<1x32xf32>
    %c3_209 = arith.constant 3 : index
    %c0_210 = arith.constant 0 : index
    %c0_211 = arith.constant 0 : index
    %288 = vector.load %arg10[%c3_209, %c0_210, %c0_211] : memref<4x32x3xf32, #tpu.memory_space<vmem>>, vector<1x32x3xf32>
    %289 = vector.shape_cast %288 : vector<1x32x3xf32> to vector<32x3xf32>
    %cst_212 = arith.constant dense<0.000000e+00> : vector<1x3xf32>
    %290 = tpu.matmul %287, %289, %cst_212 {dimension_numbers = #tpu.dot_dimension_numbers<[1], [0], [0], [1], [0, 0, 1, 1], [], []>} : vector<1x32xf32>, vector<32x3xf32>, vector<1x3xf32> -> vector<1x3xf32>
    %291 = arith.addf %286, %290 : vector<1x3xf32>
    %c0_213 = arith.constant 0 : index
    %c0_214 = arith.constant 0 : index
    %c0_215 = arith.constant 0 : index
    %292 = vector.load %arg12[%c0_213, %c0_214, %c0_215] : memref<1x1x3xf32, #tpu.memory_space<vmem>>, vector<1x1x3xf32>
    %293 = vector.shape_cast %292 : vector<1x1x3xf32> to vector<1x3xf32>
    %294 = vector.shape_cast %291 : vector<1x3xf32> to vector<1x1x3xf32>
    tpu.vector_store %arg12[%c0_213, %c0_214, %c0_215], %294 {strides = array<i32>} : memref<1x1x3xf32, #tpu.memory_space<vmem>>, vector<1x1x3xf32>,
    return
  }
  func.func @transform_0(%arg0: i32) -> (i32, i32, i32) {
    %c0_i32 = arith.constant 0 : i32
    %c0_i32_0 = arith.constant 0 : i32
    %c0_i32_1 = arith.constant 0 : i32
    return %arg0, %c0_i32, %c0_i32_0 : i32, i32, i32
  }
  func.func @transform_1(%arg0: i32) -> (i32, i32) {
    %c0_i32 = arith.constant 0 : i32
    %c0_i32_0 = arith.constant 0 : i32
    %c0_i32_1 = arith.constant 0 : i32
    return %c0_i32, %c0_i32_0 : i32, i32
  }
  func.func @transform_2(%arg0: i32) -> (i32, i32) {
    %c0_i32 = arith.constant 0 : i32
    %c0_i32_0 = arith.constant 0 : i32
    %c0_i32_1 = arith.constant 0 : i32
    return %c0_i32, %c0_i32_0 : i32, i32
  }
  func.func @transform_3(%arg0: i32) -> (i32, i32, i32) {
    %c0_i32 = arith.constant 0 : i32
    %c0_i32_0 = arith.constant 0 : i32
    %c0_i32_1 = arith.constant 0 : i32
    %c0_i32_2 = arith.constant 0 : i32
    return %c0_i32, %c0_i32_0, %c0_i32_1 : i32, i32, i32
  }
  func.func @transform_4(%arg0: i32) -> (i32, i32) {
    %c0_i32 = arith.constant 0 : i32
    %c0_i32_0 = arith.constant 0 : i32
    %c0_i32_1 = arith.constant 0 : i32
    return %c0_i32, %c0_i32_0 : i32, i32
  }
  func.func @transform_5(%arg0: i32) -> (i32, i32) {
    %c0_i32 = arith.constant 0 : i32
    %c0_i32_0 = arith.constant 0 : i32
    %c0_i32_1 = arith.constant 0 : i32
    return %c0_i32, %c0_i32_0 : i32, i32
  }
  func.func @transform_6(%arg0: i32) -> (i32, i32, i32) {
    %c0_i32 = arith.constant 0 : i32
    %c0_i32_0 = arith.constant 0 : i32
    %c0_i32_1 = arith.constant 0 : i32
    %c0_i32_2 = arith.constant 0 : i32
    return %c0_i32, %c0_i32_0, %c0_i32_1 : i32, i32, i32
  }
  func.func @transform_7(%arg0: i32) -> (i32, i32) {
    %c0_i32 = arith.constant 0 : i32
    %c0_i32_0 = arith.constant 0 : i32
    %c0_i32_1 = arith.constant 0 : i32
    return %c0_i32, %c0_i32_0 : i32, i32
  }
  func.func @transform_8(%arg0: i32) -> (i32, i32) {
    %c0_i32 = arith.constant 0 : i32
    %c0_i32_0 = arith.constant 0 : i32
    %c0_i32_1 = arith.constant 0 : i32
    return %c0_i32, %c0_i32_0 : i32, i32
  }
  func.func @transform_9(%arg0: i32) -> (i32, i32, i32) {
    %c0_i32 = arith.constant 0 : i32
    %c0_i32_0 = arith.constant 0 : i32
    %c0_i32_1 = arith.constant 0 : i32
    %c0_i32_2 = arith.constant 0 : i32
    return %c0_i32, %c0_i32_0, %c0_i32_1 : i32, i32, i32
  }
  func.func @transform_10(%arg0: i32) -> (i32, i32) {
    %c0_i32 = arith.constant 0 : i32
    %c0_i32_0 = arith.constant 0 : i32
    %c0_i32_1 = arith.constant 0 : i32
    return %c0_i32, %c0_i32_0 : i32, i32
  }
  func.func @transform_11(%arg0: i32) -> (i32, i32, i32) {
    %c0_i32 = arith.constant 0 : i32
    %c0_i32_0 = arith.constant 0 : i32
    %c0_i32_1 = arith.constant 0 : i32
    return %arg0, %c0_i32, %c0_i32_0 : i32, i32, i32
  }
}

</mosaic_0001>

<llo_original>
// kernel: dqn_forward.1
$region0: #{dqn_forward.1}
  #allocation0 [shape = 'u32[]', space=smem, size = 0x4, offset = 0x4, fixed_abs, tag = 'smem constant byte address 0x4 - core index']
  #allocation1 [shape = 'u32[144,128]{1,0:T(1,128)}', space=vmem, size = 0x12000, scoped, tag = 'internal scratch']
  %s0 = inlined_call_operand.vmem [shape: f32[2,324,75], index: 0, kind: input, shape index: {}]
  %s1 = inlined_call_operand.vmem [shape: f32[75,16], index: 1, kind: input, shape index: {}]
  %s2 = inlined_call_operand.vmem [shape: f32[1,16], index: 2, kind: input, shape index: {}]
  %s3 = inlined_call_operand.vmem [shape: f32[25,16,32], index: 3, kind: input, shape index: {}]
  %s4 = inlined_call_operand.vmem [shape: f32[1,32], index: 4, kind: input, shape index: {}]
  %s5 = inlined_call_operand.vmem [shape: f32[49,229], index: 5, kind: input, shape index: {}]
  %s6 = inlined_call_operand.vmem [shape: f32[25,32,32], index: 6, kind: input, shape index: {}]
  %s7 = inlined_call_operand.vmem [shape: f32[1,32], index: 7, kind: input, shape index: {}]
  %s8 = inlined_call_operand.vmem [shape: f32[4,17], index: 8, kind: input, shape index: {}]
  %s9 = inlined_call_operand.vmem [shape: f32[4,32,3], index: 9, kind: input, shape index: {}]
  %s10 = inlined_call_operand.vmem [shape: f32[1,3], index: 10, kind: input, shape index: {}]
  %s11 = inlined_call_operand.hbm [shape: f32[2,1,3], index: 11, kind: output, shape index: {}]
  %s12 = sld [smem:[#allocation0]]
  $region77: #{dqn_forward.1} parent=0
    _
  %s14 = ssub.s32 1, %s12
  %s15 = scalar_select 0, %s14, %s12
  $region1: #{dqn_forward.1} parent=0
    #allocation2 [shape = 'u8[1024]{0}', space=vmem, size = 0x400, scoped, tag = 'output window, operand 0']
    #allocation3 [shape = 's32[2]{0}', space=sflag, size = 0x8, scoped, tag = 'scoped memory for dqn_forward.1']
    %16 = vsyncpa [#allocation3], 0
    %s17 = scalar_lea.sflag [#allocation3], 1
    %18 = vsyncpa %s17, 0
    loop: start=0, step=1, limit=4
    $region2: #{dqn_forward.1} parent=1 // loop_pre_header
      _
    $region3: #{dqn_forward.1} parent=1 // loop_header
      %s20 = sphi 0, %s24
      %p21 = scmp.ge.s32.totalorder %s20, 4
      %s30 = sphi 0, %s32
      %s33 = sphi 0, %s30
      %s34 = sphi 0, %s33
      %s50 = sphi 0, %s34
      %s54 = sphi 0, %s54
      %s56 = sphi 0, %s54
      %s57 = sphi 0, %s56
      %s71 = sphi 0, %s57
      %s75 = sphi 0, %s75
      %s77 = sphi 0, %s75
      %s78 = sphi 0, %s77
      %s92 = sphi 0, %s78
      %s96 = sphi 0, %s96
      %s98 = sphi 0, %s96
      %s99 = sphi 0, %s98
      %s113 = sphi 0, %s99
      %s117 = sphi 0, %s117
      %s119 = sphi 0, %s117
      %s120 = sphi 0, %s119
      %s134 = sphi 0, %s120
      %s138 = sphi 0, %s138
      %s140 = sphi 0, %s138
      %s141 = sphi 0, %s140
      %s155 = sphi 0, %s141
      %s159 = sphi 0, %s159
      %s161 = sphi 0, %s159
      %s162 = sphi 0, %s161
      %s176 = sphi 0, %s162
      %s180 = sphi 0, %s180
      %s182 = sphi 0, %s180
      %s183 = sphi 0, %s182
      %s197 = sphi 0, %s183
      %s201 = sphi 0, %s201
      %s203 = sphi 0, %s201
      %s204 = sphi 0, %s203
      %s218 = sphi 0, %s204
      %s222 = sphi 0, %s222
      %s224 = sphi 0, %s222
      %s225 = sphi 0, %s224
      %s239 = sphi 0, %s225
      %s243 = sphi 0, %s243
      %s245 = sphi 0, %s243
      %s246 = sphi 0, %s245
      %s260 = sphi 0, %s246
      %s266 = sphi 0, %s268
      %s269 = sphi 0, %s266
      %s270 = sphi 0, %s269
      %s286 = sphi 0, %s270
    $region4: #{dqn_forward.1} parent=1 // loop_header_branch
      %23 = sbr.rel (%p21) target = $region8
    $region5: #{dqn_forward.1} parent=1 // loop_body
      %s25 = ssub.s32 %s20, 1
      %s26 = ssub.s32 %s20, 2
      %s27 = sadd.s32 %s20, 1
      %s28 = ssub.s32 %s20, %s27
      %p29 = scmp.eq.s32.totalorder %s28, 0
      %s31 = sadd.s32 %s30, 1
      %s32 = scalar_select %p29, %s30, %s31
      %p35 = pneg %p29
      %p36 = scmp.eq.s32.totalorder %s20, 1
      %p37 = por %p35, %p36
      %p38 = scmp.ne.s32.totalorder %s30, %s33
      %p39 = scmp.eq.s32.totalorder %s20, 0
      %p40 = por %p38, %p39
      %p41 = scmp.ne.s32.totalorder %s30, %s33
      %p42 = scmp.eq.s32.totalorder %s25, 1
      %p43 = por %p41, %p42
      %p44 = scmp.ne.s32.totalorder %s33, %s34
      %p45 = scmp.eq.s32.totalorder %s25, 0
      %p46 = por %p44, %p45
      %p47 = scmp.ne.s32.totalorder %s33, %s34
      %p48 = scmp.eq.s32.totalorder %s26, 1
      %p49 = por %p47, %p48
      %p51 = scmp.ne.s32.totalorder %s34, %s50
      %p52 = scmp.eq.s32.totalorder %s26, 0
      %p53 = por %p51, %p52
      %s55 = sadd.s32 %s54, 1
      %p58 = scmp.eq.s32.totalorder %s20, 1
      %p59 = scmp.ne.s32.totalorder %s54, %s56
      %p60 = scmp.eq.s32.totalorder %s20, 0
      %p61 = por %p59, %p60
      %p62 = scmp.ne.s32.totalorder %s54, %s56
      %p63 = scmp.eq.s32.totalorder %s25, 1
      %p64 = por %p62, %p63
      %p65 = scmp.ne.s32.totalorder %s56, %s57
      %p66 = scmp.eq.s32.totalorder %s25, 0
      %p67 = por %p65, %p66
      %p68 = scmp.ne.s32.totalorder %s56, %s57
      %p69 = scmp.eq.s32.totalorder %s26, 1
      %p70 = por %p68, %p69
      %p72 = scmp.ne.s32.totalorder %s57, %s71
      %p73 = scmp.eq.s32.totalorder %s26, 0
      %p74 = por %p72, %p73
      %s76 = sadd.s32 %s75, 1
      %p79 = scmp.eq.s32.totalorder %s20, 1
      %p80 = scmp.ne.s32.totalorder %s75, %s77
      %p81 = scmp.eq.s32.totalorder %s20, 0
      %p82 = por %p80, %p81
      %p83 = scmp.ne.s32.totalorder %s75, %s77
      %p84 = scmp.eq.s32.totalorder %s25, 1
      %p85 = por %p83, %p84
      %p86 = scmp.ne.s32.totalorder %s77, %s78
      %p87 = scmp.eq.s32.totalorder %s25, 0
      %p88 = por %p86, %p87
      %p89 = scmp.ne.s32.totalorder %s77, %s78
      %p90 = scmp.eq.s32.totalorder %s26, 1
      %p91 = por %p89, %p90
      %p93 = scmp.ne.s32.totalorder %s78, %s92
      %p94 = scmp.eq.s32.totalorder %s26, 0
      %p95 = por %p93, %p94
      %s97 = sadd.s32 %s96, 1
      %p100 = scmp.eq.s32.totalorder %s20, 1
      %p101 = scmp.ne.s32.totalorder %s96, %s98
      %p102 = scmp.eq.s32.totalorder %s20, 0
      %p103 = por %p101, %p102
      %p104 = scmp.ne.s32.totalorder %s96, %s98
      %p105 = scmp.eq.s32.totalorder %s25, 1
      %p106 = por %p104, %p105
      %p107 = scmp.ne.s32.totalorder %s98, %s99
      %p108 = scmp.eq.s32.totalorder %s25, 0
      %p109 = por %p107, %p108
      %p110 = scmp.ne.s32.totalorder %s98, %s99
      %p111 = scmp.eq.s32.totalorder %s26, 1
      %p112 = por %p110, %p111
      %p114 = scmp.ne.s32.totalorder %s99, %s113
      %p115 = scmp.eq.s32.totalorder %s26, 0
      %p116 = por %p114, %p115
      %s118 = sadd.s32 %s117, 1
      %p121 = scmp.eq.s32.totalorder %s20, 1
      %p122 = scmp.ne.s32.totalorder %s117, %s119
      %p123 = scmp.eq.s32.totalorder %s20, 0
      %p124 = por %p122, %p123
      %p125 = scmp.ne.s32.totalorder %s117, %s119
      %p126 = scmp.eq.s32.totalorder %s25, 1
      %p127 = por %p125, %p126
      %p128 = scmp.ne.s32.totalorder %s119, %s120
      %p129 = scmp.eq.s32.totalorder %s25, 0
      %p130 = por %p128, %p129
      %p131 = scmp.ne.s32.totalorder %s119, %s120
      %p132 = scmp.eq.s32.totalorder %s26, 1
      %p133 = por %p131, %p132
      %p135 = scmp.ne.s32.totalorder %s120, %s134
      %p136 = scmp.eq.s32.totalorder %s26, 0
      %p137 = por %p135, %p136
      %s139 = sadd.s32 %s138, 1
      %p142 = scmp.eq.s32.totalorder %s20, 1
      %p143 = scmp.ne.s32.totalorder %s138, %s140
      %p144 = scmp.eq.s32.totalorder %s20, 0
      %p145 = por %p143, %p144
      %p146 = scmp.ne.s32.totalorder %s138, %s140
      %p147 = scmp.eq.s32.totalorder %s25, 1
      %p148 = por %p146, %p147
      %p149 = scmp.ne.s32.totalorder %s140, %s141
      %p150 = scmp.eq.s32.totalorder %s25, 0
      %p151 = por %p149, %p150
      %p152 = scmp.ne.s32.totalorder %s140, %s141
      %p153 = scmp.eq.s32.totalorder %s26, 1
      %p154 = por %p152, %p153
      %p156 = scmp.ne.s32.totalorder %s141, %s155
      %p157 = scmp.eq.s32.totalorder %s26, 0
      %p158 = por %p156, %p157
      %s160 = sadd.s32 %s159, 1
      %p163 = scmp.eq.s32.totalorder %s20, 1
      %p164 = scmp.ne.s32.totalorder %s159, %s161
      %p165 = scmp.eq.s32.totalorder %s20, 0
      %p166 = por %p164, %p165
      %p167 = scmp.ne.s32.totalorder %s159, %s161
      %p168 = scmp.eq.s32.totalorder %s25, 1
      %p169 = por %p167, %p168
      %p170 = scmp.ne.s32.totalorder %s161, %s162
      %p171 = scmp.eq.s32.totalorder %s25, 0
      %p172 = por %p170, %p171
      %p173 = scmp.ne.s32.totalorder %s161, %s162
      %p174 = scmp.eq.s32.totalorder %s26, 1
      %p175 = por %p173, %p174
      %p177 = scmp.ne.s32.totalorder %s162, %s176
      %p178 = scmp.eq.s32.totalorder %s26, 0
      %p179 = por %p177, %p178
      %s181 = sadd.s32 %s180, 1
      %p184 = scmp.eq.s32.totalorder %s20, 1
      %p185 = scmp.ne.s32.totalorder %s180, %s182
      %p186 = scmp.eq.s32.totalorder %s20, 0
      %p187 = por %p185, %p186
      %p188 = scmp.ne.s32.totalorder %s180, %s182
      %p189 = scmp.eq.s32.totalorder %s25, 1
      %p190 = por %p188, %p189
      %p191 = scmp.ne.s32.totalorder %s182, %s183
      %p192 = scmp.eq.s32.totalorder %s25, 0
      %p193 = por %p191, %p192
      %p194 = scmp.ne.s32.totalorder %s182, %s183
      %p195 = scmp.eq.s32.totalorder %s26, 1
      %p196 = por %p194, %p195
      %p198 = scmp.ne.s32.totalorder %s183, %s197
      %p199 = scmp.eq.s32.totalorder %s26, 0
      %p200 = por %p198, %p199
      %s202 = sadd.s32 %s201, 1
      %p205 = scmp.eq.s32.totalorder %s20, 1
      %p206 = scmp.ne.s32.totalorder %s201, %s203
      %p207 = scmp.eq.s32.totalorder %s20, 0
      %p208 = por %p206, %p207
      %p209 = scmp.ne.s32.totalorder %s201, %s203
      %p210 = scmp.eq.s32.totalorder %s25, 1
      %p211 = por %p209, %p210
      %p212 = scmp.ne.s32.totalorder %s203, %s204
      %p213 = scmp.eq.s32.totalorder %s25, 0
      %p214 = por %p212, %p213
      %p215 = scmp.ne.s32.totalorder %s203, %s204
      %p216 = scmp.eq.s32.totalorder %s26, 1
      %p217 = por %p215, %p216
      %p219 = scmp.ne.s32.totalorder %s204, %s218
      %p220 = scmp.eq.s32.totalorder %s26, 0
      %p221 = por %p219, %p220
      %s223 = sadd.s32 %s222, 1
      %p226 = scmp.eq.s32.totalorder %s20, 1
      %p227 = scmp.ne.s32.totalorder %s222, %s224
      %p228 = scmp.eq.s32.totalorder %s20, 0
      %p229 = por %p227, %p228
      %p230 = scmp.ne.s32.totalorder %s222, %s224
      %p231 = scmp.eq.s32.totalorder %s25, 1
      %p232 = por %p230, %p231
      %p233 = scmp.ne.s32.totalorder %s224, %s225
      %p234 = scmp.eq.s32.totalorder %s25, 0
      %p235 = por %p233, %p234
      %p236 = scmp.ne.s32.totalorder %s224, %s225
      %p237 = scmp.eq.s32.totalorder %s26, 1
      %p238 = por %p236, %p237
      %p240 = scmp.ne.s32.totalorder %s225, %s239
      %p241 = scmp.eq.s32.totalorder %s26, 0
      %p242 = por %p240, %p241
      %s244 = sadd.s32 %s243, 1
      %p247 = scmp.eq.s32.totalorder %s20, 1
      %p248 = scmp.ne.s32.totalorder %s243, %s245
      %p249 = scmp.eq.s32.totalorder %s20, 0
      %p250 = por %p248, %p249
      %p251 = scmp.ne.s32.totalorder %s243, %s245
      %p252 = scmp.eq.s32.totalorder %s25, 1
      %p253 = por %p251, %p252
      %p254 = scmp.ne.s32.totalorder %s245, %s246
      %p255 = scmp.eq.s32.totalorder %s25, 0
      %p256 = por %p254, %p255
      %p257 = scmp.ne.s32.totalorder %s245, %s246
      %p258 = scmp.eq.s32.totalorder %s26, 1
      %p259 = por %p257, %p258
      %p261 = scmp.ne.s32.totalorder %s246, %s260
      %p262 = scmp.eq.s32.totalorder %s26, 0
      %p263 = por %p261, %p262
      %s264 = ssub.s32 %s20, %s27
      %p265 = scmp.eq.s32.totalorder %s264, 0
      %s267 = sadd.s32 %s266, 1
      %s268 = scalar_select %p265, %s266, %s267
      %p271 = pneg %p265
      %p272 = scmp.eq.s32.totalorder %s20, 1
      %p273 = por %p271, %p272
      %p274 = scmp.ne.s32.totalorder %s266, %s269
      %p275 = scmp.eq.s32.totalorder %s20, 0
      %p276 = por %p274, %p275
      %p277 = scmp.ne.s32.totalorder %s266, %s269
      %p278 = scmp.eq.s32.totalorder %s25, 1
      %p279 = por %p277, %p278
      %p280 = scmp.ne.s32.totalorder %s269, %s270
      %p281 = scmp.eq.s32.totalorder %s25, 0
      %p282 = por %p280, %p281
      %p283 = scmp.ne.s32.totalorder %s269, %s270
      %p284 = scmp.eq.s32.totalorder %s26, 1
      %p285 = por %p283, %p284
      %p287 = scmp.ne.s32.totalorder %s270, %s286
      %p288 = scmp.eq.s32.totalorder %s26, 0
      %p289 = por %p287, %p288
      %p290 = scmp.le.s32.totalorder 1, %s20
      %p291 = scmp.lt.s32.totalorder %s20, 3
      %p292 = pnand %p290, %p291
      %p293 = pneg %p292
      // Predicated region
      $region9: #{dqn_forward.1} parent=5 // pred_check
        _
      $region10: #{dqn_forward.1} parent=5 // pred_check_branch
        %295 = sbr.rel (%p292) target = $region12
      $region11: #{dqn_forward.1} parent=5 // pred_region
        %s296 = ssub.s32 %s20, 1
        // Predicated region
        $region13: #{dqn_forward.1} parent=11 // pred_check
          %p297 = pneg %p67
        $region14: #{dqn_forward.1} parent=11 // pred_check_branch
          %299 = sbr.rel (%p297) target = $region16
        $region15: #{dqn_forward.1} parent=11 // pred_region
          _
        $region16: #{dqn_forward.1} parent=11 // pred_fallthru
          _
        // Predicated region
        $region17: #{dqn_forward.1} parent=11 // pred_check
          %p300 = pneg %p88
        $region18: #{dqn_forward.1} parent=11 // pred_check_branch
          %302 = sbr.rel (%p300) target = $region20
        $region19: #{dqn_forward.1} parent=11 // pred_region
          _
        $region20: #{dqn_forward.1} parent=11 // pred_fallthru
          _
        // Predicated region
        $region21: #{dqn_forward.1} parent=11 // pred_check
          %p303 = pneg %p109
        $region22: #{dqn_forward.1} parent=11 // pred_check_branch
          %305 = sbr.rel (%p303) target = $region24
        $region23: #{dqn_forward.1} parent=11 // pred_region
          _
        $region24: #{dqn_forward.1} parent=11 // pred_fallthru
          _
        // Predicated region
        $region25: #{dqn_forward.1} parent=11 // pred_check
          %p306 = pneg %p130
        $region26: #{dqn_forward.1} parent=11 // pred_check_branch
          %308 = sbr.rel (%p306) target = $region28
        $region27: #{dqn_forward.1} parent=11 // pred_region
          _
        $region28: #{dqn_forward.1} parent=11 // pred_fallthru
          _
        // Predicated region
        $region29: #{dqn_forward.1} parent=11 // pred_check
          %p309 = pneg %p151
        $region30: #{dqn_forward.1} parent=11 // pred_check_branch
          %311 = sbr.rel (%p309) target = $region32
        $region31: #{dqn_forward.1} parent=11 // pred_region
          _
        $region32: #{dqn_forward.1} parent=11 // pred_fallthru
          _
        // Predicated region
        $region33: #{dqn_forward.1} parent=11 // pred_check
          %p312 = pneg %p172
        $region34: #{dqn_forward.1} parent=11 // pred_check_branch
          %314 = sbr.rel (%p312) target = $region36
        $region35: #{dqn_forward.1} parent=11 // pred_region
          _
        $region36: #{dqn_forward.1} parent=11 // pred_fallthru
          _
        // Predicated region
        $region37: #{dqn_forward.1} parent=11 // pred_check
          %p315 = pneg %p193
        $region38: #{dqn_forward.1} parent=11 // pred_check_branch
          %317 = sbr.rel (%p315) target = $region40
        $region39: #{dqn_forward.1} parent=11 // pred_region
          _
        $region40: #{dqn_forward.1} parent=11 // pred_fallthru
          _
        // Predicated region
        $region41: #{dqn_forward.1} parent=11 // pred_check
          %p318 = pneg %p214
        $region42: #{dqn_forward.1} parent=11 // pred_check_branch
          %320 = sbr.rel (%p318) target = $region44
        $region43: #{dqn_forward.1} parent=11 // pred_region
          _
        $region44: #{dqn_forward.1} parent=11 // pred_fallthru
          _
        // Predicated region
        $region45: #{dqn_forward.1} parent=11 // pred_check
          %p321 = pneg %p235
        $region46: #{dqn_forward.1} parent=11 // pred_check_branch
          %323 = sbr.rel (%p321) target = $region48
        $region47: #{dqn_forward.1} parent=11 // pred_region
          _
        $region48: #{dqn_forward.1} parent=11 // pred_fallthru
          _
        // Predicated region
        $region49: #{dqn_forward.1} parent=11 // pred_check
          %p324 = pneg %p256
        $region50: #{dqn_forward.1} parent=11 // pred_check_branch
          %326 = sbr.rel (%p324) target = $region52
        $region51: #{dqn_forward.1} parent=11 // pred_region
          _
        $region52: #{dqn_forward.1} parent=11 // pred_fallthru
          _
      $region12: #{dqn_forward.1} parent=5 // pred_fallthru
        _
      %p327 = scmp.lt.s32.totalorder %s20, 2
      // Predicated region
      $region53: #{dqn_forward.1} parent=5 // pred_check
        %p328 = pneg %p327
      $region54: #{dqn_forward.1} parent=5 // pred_check_branch
        %330 = sbr.rel (%p328) target = $region56
      $region55: #{dqn_forward.1} parent=5 // pred_region
        // Predicated region
        $region57: #{dqn_forward.1} parent=55 // pred_check
          %p331 = pneg %p40
        $region58: #{dqn_forward.1} parent=55 // pred_check_branch
          %333 = sbr.rel (%p331) target = $region60
        $region59: #{dqn_forward.1} parent=55 // pred_region
          %p334 = scmp.lt.s32.totalorder %s20, 1
          %s335 = scalar_select %p334, %s20, 1
          %s336 = smul.addr %s335, 41
          %s337 = smul.addr %s336, 8
          %s338 = scalar_lea.vmem %s0, %s337
        $region60: #{dqn_forward.1} parent=55 // pred_fallthru
          _
      $region56: #{dqn_forward.1} parent=5 // pred_fallthru
        _
      %p339 = scmp.le.s32.totalorder 1, %s20
      %p340 = scmp.lt.s32.totalorder %s20, 3
      %p341 = pnand %p339, %p340
      %p342 = pneg %p341
      // Predicated region
      $region61: #{dqn_forward.1} parent=5 // pred_check
        _
      $region62: #{dqn_forward.1} parent=5 // pred_check_branch
        %344 = sbr.rel (%p341) target = $region64
      $region63: #{dqn_forward.1} parent=5 // pred_region
        %s345 = ssub.s32 %s20, 1
        %p346 = scmp.lt.s32.totalorder %s25, 1
        %s347 = scalar_select %p346, %s25, 1
        %s348 = smul.addr %s347, 41
        %s349 = smul.addr %s348, 8
        %s350 = scalar_lea.vmem %s0, %s349
        %p351 = pneg %p46
        %p352 = pneg %p43
        %p353 = pneg %p67
        %p354 = pneg %p64
        %p355 = pneg %p88
        %p356 = pneg %p85
        %p357 = pneg %p109
        %p358 = pneg %p106
        %p359 = pneg %p130
        %p360 = pneg %p127
        %p361 = pneg %p151
        %p362 = pneg %p148
        %p363 = pneg %p172
        %p364 = pneg %p169
        %p365 = pneg %p193
        %p366 = pneg %p190
        %p367 = pneg %p214
        %p368 = pneg %p211
        %p369 = pneg %p235
        %p370 = pneg %p232
        %p371 = pneg %p256
        %p372 = pneg %p253
        %p373 = pneg %p282
        %p374 = pneg %p279
        %s375 = sand.u32 %s269, 1
        %s376 = scalar_lea.sflag [#allocation3], %s375
        %s377 = sand.u32 %s269, 1
        %s378 = scalar_lea.vmem [#allocation2], %s377
        %p379 = scmp.lt.s32.totalorder %s25, 1
        %s380 = scalar_select %p379, %s25, 1
        %s381 = smul.addr %s380, 41
        %s382 = smul.addr %s381, 8
        %s383 = scalar_lea.vmem %s0, %s382
        %v384 = vld [vmem:[%s383] sm:$0xff]
        %v385 = vld [vmem:[%s383 + $0x8] sm:$0xff]
        %v386 = vld [vmem:[%s383 + $0x10] sm:$0xff]
        %v387 = vld [vmem:[%s383 + $0x18] sm:$0xff]
        %v388 = vld [vmem:[%s383 + $0x20] sm:$0xff]
        %v389 = vld [vmem:[%s383 + $0x28] sm:$0xff]
        %v390 = vld [vmem:[%s383 + $0x30] sm:$0xff]
        %v391 = vld [vmem:[%s383 + $0x38] sm:$0xff]
        %v392 = vld [vmem:[%s383 + $0x40] sm:$0xff]
        %v393 = vld [vmem:[%s383 + $0x48] sm:$0xff]
        %v394 = vld [vmem:[%s383 + $0x50] sm:$0xff]
        %v395 = vld [vmem:[%s383 + $0x58] sm:$0xff]
        %v396 = vld [vmem:[%s383 + $0x60] sm:$0xff]
        %v397 = vld [vmem:[%s383 + $0x68] sm:$0xff]
        %v398 = vld [vmem:[%s383 + $0x70] sm:$0xff]
        %v399 = vld [vmem:[%s383 + $0x78] sm:$0xff]
        %v400 = vld [vmem:[%s383 + $0x80] sm:$0xff]
        %v401 = vld [vmem:[%s383 + $0x88] sm:$0xff]
        %v402 = vld [vmem:[%s383 + $0x90] sm:$0xff]
        %v403 = vld [vmem:[%s383 + $0x98] sm:$0xff]
        %v404 = vld [vmem:[%s383 + $0xa0] sm:$0xff]
        %v405 = vld [vmem:[%s383 + $0xa8] sm:$0xff]
        %v406 = vld [vmem:[%s383 + $0xb0] sm:$0xff]
        %v407 = vld [vmem:[%s383 + $0xb8] sm:$0xff]
        %v408 = vld [vmem:[%s383 + $0xc0] sm:$0xff]
        %v409 = vld [vmem:[%s383 + $0xc8] sm:$0xff]
        %v410 = vld [vmem:[%s383 + $0xd0] sm:$0xff]
        %v411 = vld [vmem:[%s383 + $0xd8] sm:$0xff]
        %v412 = vld [vmem:[%s383 + $0xe0] sm:$0xff]
        %v413 = vld [vmem:[%s383 + $0xe8] sm:$0xff]
        %v414 = vld [vmem:[%s383 + $0xf0] sm:$0xff]
        %v415 = vld [vmem:[%s383 + $0xf8] sm:$0xff]
        %v416 = vld [vmem:[%s383 + $0x100] sm:$0xff]
        %v417 = vld [vmem:[%s383 + $0x108] sm:$0xff]
        %v418 = vld [vmem:[%s383 + $0x110] sm:$0xff]
        %v419 = vld [vmem:[%s383 + $0x118] sm:$0xff]
        %v420 = vld [vmem:[%s383 + $0x120] sm:$0xff]
        %v421 = vld [vmem:[%s383 + $0x128] sm:$0xff]
        %v422 = vld [vmem:[%s383 + $0x130] sm:$0xff]
        %v423 = vld [vmem:[%s383 + $0x138] sm:$0xff]
        %v424 = vld [vmem:[%s383 + $0x140] sm:$0xf]
        %v425 = vld [vmem:[%s1] sm:$0xff]
        %v426 = vld [vmem:[%s1 + $0x8] sm:$0xff]
        %v427 = vld [vmem:[%s1 + $0x10] sm:$0xff]
        %v428 = vld [vmem:[%s1 + $0x18] sm:$0xff]
        %v429 = vld [vmem:[%s1 + $0x20] sm:$0xff]
        %v430 = vld [vmem:[%s1 + $0x28] sm:$0xff]
        %v431 = vld [vmem:[%s1 + $0x30] sm:$0xff]
        %v432 = vld [vmem:[%s1 + $0x38] sm:$0xff]
        %v433 = vld [vmem:[%s1 + $0x40] sm:$0xff]
        %v434 = vld [vmem:[%s1 + $0x48] sm:$0x7]
        %v435 = vld [vmem:[%s2] sm:$0x1]
        %v437 = vlaneseq
        %v438 = vshrl.u32 %v437, 7
        %v439 = vsub.s32 0, %v438
        %v440 = vrot.slane %v435, %v439
        %vm442 = vcmask 613376
        %v444 = vsel %vm442, %v384, 0
        %v447 = vsel %vm442, %v385, 0
        %v450 = vsel %vm442, %v386, 0
        %v453 = vsel %vm442, %v387, 0
        %v456 = vsel %vm442, %v388, 0
        %v459 = vsel %vm442, %v389, 0
        %v462 = vsel %vm442, %v390, 0
        %v465 = vsel %vm442, %v391, 0
        %v468 = vsel %vm442, %v392, 0
        %v471 = vsel %vm442, %v393, 0
        %v474 = vsel %vm442, %v394, 0
        %v477 = vsel %vm442, %v395, 0
        %v480 = vsel %vm442, %v396, 0
        %v483 = vsel %vm442, %v397, 0
        %v486 = vsel %vm442, %v398, 0
        %v489 = vsel %vm442, %v399, 0
        %v492 = vsel %vm442, %v400, 0
        %v495 = vsel %vm442, %v401, 0
        %v498 = vsel %vm442, %v402, 0
        %v501 = vsel %vm442, %v403, 0
        %v504 = vsel %vm442, %v404, 0
        %v507 = vsel %vm442, %v405, 0
        %v510 = vsel %vm442, %v406, 0
        %v513 = vsel %vm442, %v407, 0
        %v516 = vsel %vm442, %v408, 0
        %v519 = vsel %vm442, %v409, 0
        %v522 = vsel %vm442, %v410, 0
        %v525 = vsel %vm442, %v411, 0
        %v528 = vsel %vm442, %v412, 0
        %v531 = vsel %vm442, %v413, 0
        %v534 = vsel %vm442, %v414, 0
        %v537 = vsel %vm442, %v415, 0
        %v540 = vsel %vm442, %v416, 0
        %v543 = vsel %vm442, %v417, 0
        %v546 = vsel %vm442, %v418, 0
        %v549 = vsel %vm442, %v419, 0
        %v552 = vsel %vm442, %v420, 0
        %v555 = vsel %vm442, %v421, 0
        %v558 = vsel %vm442, %v422, 0
        %v561 = vsel %vm442, %v423, 0
        %v564 = vsel %vm442, %v424, 0
        %vm566 = vcmask 1042432
        %v568 = vsel %vm566, %v434, 0
        %570 = vmatprep.subr.mxu0 0.0
        %571 = vmatpush1.msra.mxu0 0.0
        %572 = vmatprep.subr.mxu0 0.0
        %573 = vmatpush1.msra.mxu0 0.0
        %574 = vmatprep.subr.mxu0 0.0
        %575 = vmatpush1.msra.mxu0 0.0
        %576 = vmatprep.subr.mxu0 0.0
        %577 = vmatpush1.msra.mxu0 0.0
        %578 = vmatprep.subr.mxu0 0.0
        %579 = vmatpush1.msra.mxu0 0.0
        %580 = vmatprep.subr.mxu0 0.0
        %581 = vmatpush1.msra.mxu0 0.0
        %582 = vmatprep.subr.mxu0 0.0
        %583 = vmatpush1.msra.mxu0 %v568
        %584 = vmatprep.subr.mxu0 0.0
        %585 = vmatpush1.msra.mxu0 %v433
        %586 = vmatprep.subr.mxu0 0.0
        %587 = vmatpush1.msra.mxu0 %v432
        %588 = vmatprep.subr.mxu0 0.0
        %589 = vmatpush1.msra.mxu0 %v431
        %590 = vmatprep.subr.mxu0 0.0
        %591 = vmatpush1.msra.mxu0 %v430
        %592 = vmatprep.subr.mxu0 0.0
        %593 = vmatpush1.msra.mxu0 %v429
        %594 = vmatprep.subr.mxu0 0.0
        %595 = vmatpush1.msra.mxu0 %v428
        %596 = vmatprep.subr.mxu0 0.0
        %597 = vmatpush1.msra.mxu0 %v427
        %598 = vmatprep.subr.mxu0 0.0
        %599 = vmatpush1.msra.mxu0 %v426
        %600 = vmatprep.subr.mxu0 0.0
        %601 = vmatpush1.msra.mxu0 %v425
        %602 = vmatprep.subr.mxu0 0.0
        %603 = vmatpush2.msra.mxu0 0.0
        %604 = vmatprep.subr.mxu0 0.0
        %605 = vmatpush2.msra.mxu0 0.0
        %606 = vmatprep.subr.mxu0 0.0
        %607 = vmatpush2.msra.mxu0 0.0
        %608 = vmatprep.subr.mxu0 0.0
        %609 = vmatpush2.msra.mxu0 0.0
        %610 = vmatprep.subr.mxu0 0.0
        %611 = vmatpush2.msra.mxu0 0.0
        %612 = vmatprep.subr.mxu0 0.0
        %613 = vmatpush2.msra.mxu0 0.0
        %614 = vmatprep.subr.mxu0 0.0
        %615 = vmatpush2.msra.mxu0 0.0
        %616 = vmatprep.subr.mxu0 0.0
        %617 = vmatpush2.msra.mxu0 0.0
        %618 = vmatprep.subr.mxu0 0.0
        %619 = vmatpush2.msra.mxu0 0.0
        %620 = vmatprep.subr.mxu0 0.0
        %621 = vmatpush2.msra.mxu0 0.0
        %622 = vmatprep.subr.mxu0 0.0
        %623 = vmatpush2.msra.mxu0 0.0
        %624 = vmatprep.subr.mxu0 0.0
        %625 = vmatpush2.msra.mxu0 0.0
        %626 = vmatprep.subr.mxu0 0.0
        %627 = vmatpush2.msra.mxu0 0.0
        %628 = vmatprep.subr.mxu0 0.0
        %629 = vmatpush2.msra.mxu0 0.0
        %630 = vmatprep.subr.mxu0 0.0
        %631 = vmatpush2.msra.mxu0 0.0
        %632 = vmatprep.subr.mxu0 0.0
        %633 = vmatpush2.msra.mxu0 0.0
        %634 = vmatprep.mubr.f32.mxu0 0.0
        %635 = vmatmul.mubr.f32.gmra.mxu0 %v444
        %v636 = vpop.f32.mrf.mxu0
        %v637 = vadd.f32 %v440, %v636
        %v638 = vpop.f32.mrf.mxu0
        %639 = vmatprep.mubr.f32.mxu0 0.0
        %640 = vmatmul.mubr.f32.gmra.mxu0 %v447
        %v641 = vpop.f32.mrf.mxu0
        %v642 = vadd.f32 %v440, %v641
        %v643 = vpop.f32.mrf.mxu0
        %644 = vmatprep.mubr.f32.mxu0 0.0
        %645 = vmatmul.mubr.f32.gmra.mxu0 %v450
        %v646 = vpop.f32.mrf.mxu0
        %v647 = vadd.f32 %v440, %v646
        %v648 = vpop.f32.mrf.mxu0
        %649 = vmatprep.mubr.f32.mxu0 0.0
        %650 = vmatmul.mubr.f32.gmra.mxu0 %v453
        %v651 = vpop.f32.mrf.mxu0
        %v652 = vadd.f32 %v440, %v651
        %v653 = vpop.f32.mrf.mxu0
        %654 = vmatprep.mubr.f32.mxu0 0.0
        %655 = vmatmul.mubr.f32.gmra.mxu0 %v456
        %v656 = vpop.f32.mrf.mxu0
        %v657 = vadd.f32 %v440, %v656
        %v658 = vpop.f32.mrf.mxu0
        %659 = vmatprep.mubr.f32.mxu0 0.0
        %660 = vmatmul.mubr.f32.gmra.mxu0 %v459
        %v661 = vpop.f32.mrf.mxu0
        %v662 = vadd.f32 %v440, %v661
        %v663 = vpop.f32.mrf.mxu0
        %664 = vmatprep.mubr.f32.mxu0 0.0
        %665 = vmatmul.mubr.f32.gmra.mxu0 %v462
        %v666 = vpop.f32.mrf.mxu0
        %v667 = vadd.f32 %v440, %v666
        %v668 = vpop.f32.mrf.mxu0
        %669 = vmatprep.mubr.f32.mxu0 0.0
        %670 = vmatmul.mubr.f32.gmra.mxu0 %v465
        %v671 = vpop.f32.mrf.mxu0
        %v672 = vadd.f32 %v440, %v671
        %v673 = vpop.f32.mrf.mxu0
        %674 = vmatprep.mubr.f32.mxu0 0.0
        %675 = vmatmul.mubr.f32.gmra.mxu0 %v468
        %v676 = vpop.f32.mrf.mxu0
        %v677 = vadd.f32 %v440, %v676
        %v678 = vpop.f32.mrf.mxu0
        %679 = vmatprep.mubr.f32.mxu0 0.0
        %680 = vmatmul.mubr.f32.gmra.mxu0 %v471
        %v681 = vpop.f32.mrf.mxu0
        %v682 = vadd.f32 %v440, %v681
        %v683 = vpop.f32.mrf.mxu0
        %684 = vmatprep.mubr.f32.mxu0 0.0
        %685 = vmatmul.mubr.f32.gmra.mxu0 %v474
        %v686 = vpop.f32.mrf.mxu0
        %v687 = vadd.f32 %v440, %v686
        %v688 = vpop.f32.mrf.mxu0
        %689 = vmatprep.mubr.f32.mxu0 0.0
        %690 = vmatmul.mubr.f32.gmra.mxu0 %v477
        %v691 = vpop.f32.mrf.mxu0
        %v692 = vadd.f32 %v440, %v691
        %v693 = vpop.f32.mrf.mxu0
        %694 = vmatprep.mubr.f32.mxu0 0.0
        %695 = vmatmul.mubr.f32.gmra.mxu0 %v480
        %v696 = vpop.f32.mrf.mxu0
        %v697 = vadd.f32 %v440, %v696
        %v698 = vpop.f32.mrf.mxu0
        %699 = vmatprep.mubr.f32.mxu0 0.0
        %700 = vmatmul.mubr.f32.gmra.mxu0 %v483
        %v701 = vpop.f32.mrf.mxu0
        %v702 = vadd.f32 %v440, %v701
        %v703 = vpop.f32.mrf.mxu0
        %704 = vmatprep.mubr.f32.mxu0 0.0
        %705 = vmatmul.mubr.f32.gmra.mxu0 %v486
        %v706 = vpop.f32.mrf.mxu0
        %v707 = vadd.f32 %v440, %v706
        %v708 = vpop.f32.mrf.mxu0
        %709 = vmatprep.mubr.f32.mxu0 0.0
        %710 = vmatmul.mubr.f32.gmra.mxu0 %v489
        %v711 = vpop.f32.mrf.mxu0
        %v712 = vadd.f32 %v440, %v711
        %v713 = vpop.f32.mrf.mxu0
        %714 = vmatprep.mubr.f32.mxu0 0.0
        %715 = vmatmul.mubr.f32.gmra.mxu0 %v492
        %v716 = vpop.f32.mrf.mxu0
        %v717 = vadd.f32 %v440, %v716
        %v718 = vpop.f32.mrf.mxu0
        %719 = vmatprep.mubr.f32.mxu0 0.0
        %720 = vmatmul.mubr.f32.gmra.mxu0 %v495
        %v721 = vpop.f32.mrf.mxu0
        %v722 = vadd.f32 %v440, %v721
        %v723 = vpop.f32.mrf.mxu0
        %724 = vmatprep.mubr.f32.mxu0 0.0
        %725 = vmatmul.mubr.f32.gmra.mxu0 %v498
        %v726 = vpop.f32.mrf.mxu0
        %v727 = vadd.f32 %v440, %v726
        %v728 = vpop.f32.mrf.mxu0
        %729 = vmatprep.mubr.f32.mxu0 0.0
        %730 = vmatmul.mubr.f32.gmra.mxu0 %v501
        %v731 = vpop.f32.mrf.mxu0
        %v732 = vadd.f32 %v440, %v731
        %v733 = vpop.f32.mrf.mxu0
        %734 = vmatprep.mubr.f32.mxu0 0.0
        %735 = vmatmul.mubr.f32.gmra.mxu0 %v504
        %v736 = vpop.f32.mrf.mxu0
        %v737 = vadd.f32 %v440, %v736
        %v738 = vpop.f32.mrf.mxu0
        %739 = vmatprep.mubr.f32.mxu0 0.0
        %740 = vmatmul.mubr.f32.gmra.mxu0 %v507
        %v741 = vpop.f32.mrf.mxu0
        %v742 = vadd.f32 %v440, %v741
        %v743 = vpop.f32.mrf.mxu0
        %744 = vmatprep.mubr.f32.mxu0 0.0
        %745 = vmatmul.mubr.f32.gmra.mxu0 %v510
        %v746 = vpop.f32.mrf.mxu0
        %v747 = vadd.f32 %v440, %v746
        %v748 = vpop.f32.mrf.mxu0
        %749 = vmatprep.mubr.f32.mxu0 0.0
        %750 = vmatmul.mubr.f32.gmra.mxu0 %v513
        %v751 = vpop.f32.mrf.mxu0
        %v752 = vadd.f32 %v440, %v751
        %v753 = vpop.f32.mrf.mxu0
        %754 = vmatprep.mubr.f32.mxu0 0.0
        %755 = vmatmul.mubr.f32.gmra.mxu0 %v516
        %v756 = vpop.f32.mrf.mxu0
        %v757 = vadd.f32 %v440, %v756
        %v758 = vpop.f32.mrf.mxu0
        %759 = vmatprep.mubr.f32.mxu0 0.0
        %760 = vmatmul.mubr.f32.gmra.mxu0 %v519
        %v761 = vpop.f32.mrf.mxu0
        %v762 = vadd.f32 %v440, %v761
        %v763 = vpop.f32.mrf.mxu0
        %764 = vmatprep.mubr.f32.mxu0 0.0
        %765 = vmatmul.mubr.f32.gmra.mxu0 %v522
        %v766 = vpop.f32.mrf.mxu0
        %v767 = vadd.f32 %v440, %v766
        %v768 = vpop.f32.mrf.mxu0
        %769 = vmatprep.mubr.f32.mxu0 0.0
        %770 = vmatmul.mubr.f32.gmra.mxu0 %v525
        %v771 = vpop.f32.mrf.mxu0
        %v772 = vadd.f32 %v440, %v771
        %v773 = vpop.f32.mrf.mxu0
        %774 = vmatprep.mubr.f32.mxu0 0.0
        %775 = vmatmul.mubr.f32.gmra.mxu0 %v528
        %v776 = vpop.f32.mrf.mxu0
        %v777 = vadd.f32 %v440, %v776
        %v778 = vpop.f32.mrf.mxu0
        %779 = vmatprep.mubr.f32.mxu0 0.0
        %780 = vmatmul.mubr.f32.gmra.mxu0 %v531
        %v781 = vpop.f32.mrf.mxu0
        %v782 = vadd.f32 %v440, %v781
        %v783 = vpop.f32.mrf.mxu0
        %784 = vmatprep.mubr.f32.mxu0 0.0
        %785 = vmatmul.mubr.f32.gmra.mxu0 %v534
        %v786 = vpop.f32.mrf.mxu0
        %v787 = vadd.f32 %v440, %v786
        %v788 = vpop.f32.mrf.mxu0
        %789 = vmatprep.mubr.f32.mxu0 0.0
        %790 = vmatmul.mubr.f32.gmra.mxu0 %v537
        %v791 = vpop.f32.mrf.mxu0
        %v792 = vadd.f32 %v440, %v791
        %v793 = vpop.f32.mrf.mxu0
        %794 = vmatprep.mubr.f32.mxu0 0.0
        %795 = vmatmul.mubr.f32.gmra.mxu0 %v540
        %v796 = vpop.f32.mrf.mxu0
        %v797 = vadd.f32 %v440, %v796
        %v798 = vpop.f32.mrf.mxu0
        %799 = vmatprep.mubr.f32.mxu0 0.0
        %800 = vmatmul.mubr.f32.gmra.mxu0 %v543
        %v801 = vpop.f32.mrf.mxu0
        %v802 = vadd.f32 %v440, %v801
        %v803 = vpop.f32.mrf.mxu0
        %804 = vmatprep.mubr.f32.mxu0 0.0
        %805 = vmatmul.mubr.f32.gmra.mxu0 %v546
        %v806 = vpop.f32.mrf.mxu0
        %v807 = vadd.f32 %v440, %v806
        %v808 = vpop.f32.mrf.mxu0
        %809 = vmatprep.mubr.f32.mxu0 0.0
        %810 = vmatmul.mubr.f32.gmra.mxu0 %v549
        %v811 = vpop.f32.mrf.mxu0
        %v812 = vadd.f32 %v440, %v811
        %v813 = vpop.f32.mrf.mxu0
        %814 = vmatprep.mubr.f32.mxu0 0.0
        %815 = vmatmul.mubr.f32.gmra.mxu0 %v552
        %v816 = vpop.f32.mrf.mxu0
        %v817 = vadd.f32 %v440, %v816
        %v818 = vpop.f32.mrf.mxu0
        %819 = vmatprep.mubr.f32.mxu0 0.0
        %820 = vmatmul.mubr.f32.gmra.mxu0 %v555
        %v821 = vpop.f32.mrf.mxu0
        %v822 = vadd.f32 %v440, %v821
        %v823 = vpop.f32.mrf.mxu0
        %824 = vmatprep.mubr.f32.mxu0 0.0
        %825 = vmatmul.mubr.f32.gmra.mxu0 %v558
        %v826 = vpop.f32.mrf.mxu0
        %v827 = vadd.f32 %v440, %v826
        %v828 = vpop.f32.mrf.mxu0
        %829 = vmatprep.mubr.f32.mxu0 0.0
        %830 = vmatmul.mubr.f32.gmra.mxu0 %v561
        %v831 = vpop.f32.mrf.mxu0
        %v832 = vpop.f32.mrf.mxu0
        %833 = vmatprep.mubr.f32.mxu0 0.0
        %834 = vmatmul.mubr.f32.gmra.mxu0 %v564
        %v835 = vpop.f32.mrf.mxu0
        %v836 = vpop.f32.mrf.mxu0
        %837 = vdwg.mxu0
        %v838 = vmax.f32 %v637, 0.0
        %v839 = vmax.f32 %v642, 0.0
        %v840 = vmax.f32 %v647, 0.0
        %v841 = vmax.f32 %v652, 0.0
        %v842 = vmax.f32 %v657, 0.0
        %v843 = vmax.f32 %v662, 0.0
        %v844 = vmax.f32 %v667, 0.0
        %v845 = vmax.f32 %v672, 0.0
        %v846 = vmax.f32 %v677, 0.0
        %v847 = vmax.f32 %v682, 0.0
        %v848 = vmax.f32 %v687, 0.0
        %v849 = vmax.f32 %v692, 0.0
        %v850 = vmax.f32 %v697, 0.0
        %v851 = vmax.f32 %v702, 0.0
        %v852 = vmax.f32 %v707, 0.0
        %v853 = vmax.f32 %v712, 0.0
        %v854 = vmax.f32 %v717, 0.0
        %v855 = vmax.f32 %v722, 0.0
        %v856 = vmax.f32 %v727, 0.0
        %v857 = vmax.f32 %v732, 0.0
        %v858 = vmax.f32 %v737, 0.0
        %v859 = vmax.f32 %v742, 0.0
        %v860 = vmax.f32 %v747, 0.0
        %v861 = vmax.f32 %v752, 0.0
        %v862 = vmax.f32 %v757, 0.0
        %v863 = vmax.f32 %v762, 0.0
        %v864 = vmax.f32 %v767, 0.0
        %v865 = vmax.f32 %v772, 0.0
        %v866 = vmax.f32 %v777, 0.0
        %v867 = vmax.f32 %v782, 0.0
        %v868 = vmax.f32 %v787, 0.0
        %v869 = vmax.f32 %v792, 0.0
        %v870 = vmax.f32 %v797, 0.0
        %v871 = vmax.f32 %v802, 0.0
        %v872 = vmax.f32 %v807, 0.0
        %v873 = vmax.f32 %v812, 0.0
        %v874 = vmax.f32 %v817, 0.0
        %v875 = vmax.f32 %v822, 0.0
        %v876 = vmax.f32 %v827, 0.0
        %v877 = vld [vmem:[%s3] sm:$0xff]
        %v878 = vld [vmem:[%s3 + $0x8] sm:$0xff]
        %s879 = scalar_lea.vmem %s3, 16
        %v880 = vld [vmem:[%s879] sm:$0xff]
        %v881 = vld [vmem:[%s879 + $0x8] sm:$0xff]
        %vm911 = vcmask 1046528
        %v912 = vrot.slane %v838, 1
        %v913 = vrot.slane %v839, 1
        %v914 = vsel %vm911, %v912, %v913
        %v915 = vrot.slane %v840, 1
        %v916 = vsel %vm911, %v913, %v915
        %v917 = vrot.slane %v841, 1
        %v918 = vsel %vm911, %v915, %v917
        %v919 = vrot.slane %v842, 1
        %v920 = vsel %vm911, %v917, %v919
        %v921 = vrot.slane %v843, 1
        %v922 = vsel %vm911, %v919, %v921
        %v923 = vrot.slane %v844, 1
        %v924 = vsel %vm911, %v921, %v923
        %v925 = vrot.slane %v845, 1
        %v926 = vsel %vm911, %v923, %v925
        %v927 = vrot.slane %v846, 1
        %v928 = vsel %vm911, %v925, %v927
        %v929 = vrot.slane %v847, 1
        %v930 = vsel %vm911, %v927, %v929
        %v931 = vrot.slane %v848, 1
        %v932 = vsel %vm911, %v929, %v931
        %v933 = vrot.slane %v849, 1
        %v934 = vsel %vm911, %v931, %v933
        %v935 = vrot.slane %v850, 1
        %v936 = vsel %vm911, %v933, %v935
        %v937 = vrot.slane %v851, 1
        %v938 = vsel %vm911, %v935, %v937
        %v939 = vrot.slane %v852, 1
        %v940 = vsel %vm911, %v937, %v939
        %v941 = vrot.slane %v853, 1
        %v942 = vsel %vm911, %v939, %v941
        %v943 = vrot.slane %v854, 1
        %v944 = vsel %vm911, %v941, %v943
        %v945 = vrot.slane %v855, 1
        %v946 = vsel %vm911, %v943, %v945
        %v947 = vrot.slane %v856, 1
        %v948 = vsel %vm911, %v945, %v947
        %v949 = vrot.slane %v857, 1
        %v950 = vsel %vm911, %v947, %v949
        %v951 = vrot.slane %v858, 1
        %v952 = vsel %vm911, %v949, %v951
        %v953 = vrot.slane %v859, 1
        %v954 = vsel %vm911, %v951, %v953
        %v955 = vrot.slane %v860, 1
        %v956 = vsel %vm911, %v953, %v955
        %v957 = vrot.slane %v861, 1
        %v958 = vsel %vm911, %v955, %v957
        %v959 = vrot.slane %v862, 1
        %v960 = vsel %vm911, %v957, %v959
        %v961 = vrot.slane %v863, 1
        %v962 = vsel %vm911, %v959, %v961
        %v963 = vrot.slane %v864, 1
        %v964 = vsel %vm911, %v961, %v963
        %v965 = vrot.slane %v865, 1
        %v966 = vsel %vm911, %v963, %v965
        %v967 = vrot.slane %v866, 1
        %v968 = vsel %vm911, %v965, %v967
        %vm969 = vcmask 130048
        %v970 = vsel %vm969, %v914, 0
        %v972 = vsel %vm969, %v916, 0
        %v974 = vsel %vm969, %v918, 0
        %v976 = vsel %vm969, %v920, 0
        %v978 = vsel %vm969, %v922, 0
        %v980 = vsel %vm969, %v924, 0
        %v982 = vsel %vm969, %v926, 0
        %v984 = vsel %vm969, %v928, 0
        %v986 = vsel %vm969, %v930, 0
        %v988 = vsel %vm969, %v932, 0
        %v990 = vsel %vm969, %v934, 0
        %v992 = vsel %vm969, %v936, 0
        %v994 = vsel %vm969, %v938, 0
        %v996 = vsel %vm969, %v940, 0
        %v998 = vsel %vm969, %v942, 0
        %v1000 = vsel %vm969, %v944, 0
        %v1002 = vsel %vm969, %v946, 0
        %v1004 = vsel %vm969, %v948, 0
        %v1006 = vsel %vm969, %v950, 0
        %v1008 = vsel %vm969, %v952, 0
        %v1010 = vsel %vm969, %v954, 0
        %v1012 = vsel %vm969, %v956, 0
        %v1014 = vsel %vm969, %v958, 0
        %v1016 = vsel %vm969, %v960, 0
        %v1018 = vsel %vm969, %v962, 0
        %v1020 = vsel %vm969, %v964, 0
        %v1022 = vsel %vm969, %v966, 0
        %v1024 = vsel %vm969, %v968, 0
        %v1026 = vsel %vm969, %v967, 0
        %1028 = vmatprep.subr.mxu0 0.0
        %1029 = vmatpush1.msra.mxu0 0.0
        %1030 = vmatprep.subr.mxu0 0.0
        %1031 = vmatpush1.msra.mxu0 0.0
        %1032 = vmatprep.subr.mxu0 0.0
        %1033 = vmatpush1.msra.mxu0 0.0
        %1034 = vmatprep.subr.mxu0 0.0
        %1035 = vmatpush1.msra.mxu0 0.0
        %1036 = vmatprep.subr.mxu0 0.0
        %1037 = vmatpush1.msra.mxu0 0.0
        %1038 = vmatprep.subr.mxu0 0.0
        %1039 = vmatpush1.msra.mxu0 0.0
        %1040 = vmatprep.subr.mxu0 0.0
        %1041 = vmatpush1.msra.mxu0 0.0
        %1042 = vmatprep.subr.mxu0 0.0
        %1043 = vmatpush1.msra.mxu0 0.0
        %1044 = vmatprep.subr.mxu0 0.0
        %1045 = vmatpush1.msra.mxu0 0.0
        %1046 = vmatprep.subr.mxu0 0.0
        %1047 = vmatpush1.msra.mxu0 0.0
        %1048 = vmatprep.subr.mxu0 0.0
        %1049 = vmatpush1.msra.mxu0 0.0
        %1050 = vmatprep.subr.mxu0 0.0
        %1051 = vmatpush1.msra.mxu0 0.0
        %1052 = vmatprep.subr.mxu0 0.0
        %1053 = vmatpush1.msra.mxu0 0.0
        %1054 = vmatprep.subr.mxu0 0.0
        %1055 = vmatpush1.msra.mxu0 0.0
        %1056 = vmatprep.subr.mxu0 0.0
        %1057 = vmatpush1.msra.mxu0 %v881
        %1058 = vmatprep.subr.mxu0 0.0
        %1059 = vmatpush1.msra.mxu0 %v880
        %1060 = vmatprep.subr.mxu0 0.0
        %1061 = vmatpush2.msra.mxu0 0.0
        %1062 = vmatprep.subr.mxu0 0.0
        %1063 = vmatpush2.msra.mxu0 0.0
        %1064 = vmatprep.subr.mxu0 0.0
        %1065 = vmatpush2.msra.mxu0 0.0
        %1066 = vmatprep.subr.mxu0 0.0
        %1067 = vmatpush2.msra.mxu0 0.0
        %1068 = vmatprep.subr.mxu0 0.0
        %1069 = vmatpush2.msra.mxu0 0.0
        %1070 = vmatprep.subr.mxu0 0.0
        %1071 = vmatpush2.msra.mxu0 0.0
        %1072 = vmatprep.subr.mxu0 0.0
        %1073 = vmatpush2.msra.mxu0 0.0
        %1074 = vmatprep.subr.mxu0 0.0
        %1075 = vmatpush2.msra.mxu0 0.0
        %1076 = vmatprep.subr.mxu0 0.0
        %1077 = vmatpush2.msra.mxu0 0.0
        %1078 = vmatprep.subr.mxu0 0.0
        %1079 = vmatpush2.msra.mxu0 0.0
        %1080 = vmatprep.subr.mxu0 0.0
        %1081 = vmatpush2.msra.mxu0 0.0
        %1082 = vmatprep.subr.mxu0 0.0
        %1083 = vmatpush2.msra.mxu0 0.0
        %1084 = vmatprep.subr.mxu0 0.0
        %1085 = vmatpush2.msra.mxu0 0.0
        %1086 = vmatprep.subr.mxu0 0.0
        %1087 = vmatpush2.msra.mxu0 0.0
        %1088 = vmatprep.subr.mxu0 0.0
        %1089 = vmatpush2.msra.mxu0 0.0
        %1090 = vmatprep.subr.mxu0 0.0
        %1091 = vmatpush2.msra.mxu0 0.0
        %1092 = vmatprep.mubr.f32.mxu0 0.0
        %1093 = vmatmul.mubr.f32.gmra.mxu0 %v970
        %v1094 = vpop.f32.mrf.mxu0
        %v1095 = vadd.f32 0.0, %v1094
        %v1096 = vpop.f32.mrf.mxu0
        %1097 = vmatprep.mubr.f32.mxu0 0.0
        %1098 = vmatmul.mubr.f32.gmra.mxu0 %v972
        %v1099 = vpop.f32.mrf.mxu0
        %v1100 = vadd.f32 0.0, %v1099
        %v1101 = vpop.f32.mrf.mxu0
        %1102 = vmatprep.mubr.f32.mxu0 0.0
        %1103 = vmatmul.mubr.f32.gmra.mxu0 %v974
        %v1104 = vpop.f32.mrf.mxu0
        %v1105 = vadd.f32 0.0, %v1104
        %v1106 = vpop.f32.mrf.mxu0
        %1107 = vmatprep.mubr.f32.mxu0 0.0
        %1108 = vmatmul.mubr.f32.gmra.mxu0 %v976
        %v1109 = vpop.f32.mrf.mxu0
        %v1110 = vadd.f32 0.0, %v1109
        %v1111 = vpop.f32.mrf.mxu0
        %1112 = vmatprep.mubr.f32.mxu0 0.0
        %1113 = vmatmul.mubr.f32.gmra.mxu0 %v978
        %v1114 = vpop.f32.mrf.mxu0
        %v1115 = vadd.f32 0.0, %v1114
        %v1116 = vpop.f32.mrf.mxu0
        %1117 = vmatprep.mubr.f32.mxu0 0.0
        %1118 = vmatmul.mubr.f32.gmra.mxu0 %v980
        %v1119 = vpop.f32.mrf.mxu0
        %v1120 = vadd.f32 0.0, %v1119
        %v1121 = vpop.f32.mrf.mxu0
        %1122 = vmatprep.mubr.f32.mxu0 0.0
        %1123 = vmatmul.mubr.f32.gmra.mxu0 %v982
        %v1124 = vpop.f32.mrf.mxu0
        %v1125 = vadd.f32 0.0, %v1124
        %v1126 = vpop.f32.mrf.mxu0
        %1127 = vmatprep.mubr.f32.mxu0 0.0
        %1128 = vmatmul.mubr.f32.gmra.mxu0 %v984
        %v1129 = vpop.f32.mrf.mxu0
        %v1130 = vadd.f32 0.0, %v1129
        %v1131 = vpop.f32.mrf.mxu0
        %1132 = vmatprep.mubr.f32.mxu0 0.0
        %1133 = vmatmul.mubr.f32.gmra.mxu0 %v986
        %v1134 = vpop.f32.mrf.mxu0
        %v1135 = vadd.f32 0.0, %v1134
        %v1136 = vpop.f32.mrf.mxu0
        %1137 = vmatprep.mubr.f32.mxu0 0.0
        %1138 = vmatmul.mubr.f32.gmra.mxu0 %v988
        %v1139 = vpop.f32.mrf.mxu0
        %v1140 = vadd.f32 0.0, %v1139
        %v1141 = vpop.f32.mrf.mxu0
        %1142 = vmatprep.mubr.f32.mxu0 0.0
        %1143 = vmatmul.mubr.f32.gmra.mxu0 %v990
        %v1144 = vpop.f32.mrf.mxu0
        %v1145 = vadd.f32 0.0, %v1144
        %v1146 = vpop.f32.mrf.mxu0
        %1147 = vmatprep.mubr.f32.mxu0 0.0
        %1148 = vmatmul.mubr.f32.gmra.mxu0 %v992
        %v1149 = vpop.f32.mrf.mxu0
        %v1150 = vadd.f32 0.0, %v1149
        %v1151 = vpop.f32.mrf.mxu0
        %1152 = vmatprep.mubr.f32.mxu0 0.0
        %1153 = vmatmul.mubr.f32.gmra.mxu0 %v994
        %v1154 = vpop.f32.mrf.mxu0
        %v1155 = vadd.f32 0.0, %v1154
        %v1156 = vpop.f32.mrf.mxu0
        %1157 = vmatprep.mubr.f32.mxu0 0.0
        %1158 = vmatmul.mubr.f32.gmra.mxu0 %v996
        %v1159 = vpop.f32.mrf.mxu0
        %v1160 = vadd.f32 0.0, %v1159
        %v1161 = vpop.f32.mrf.mxu0
        %1162 = vmatprep.mubr.f32.mxu0 0.0
        %1163 = vmatmul.mubr.f32.gmra.mxu0 %v998
        %v1164 = vpop.f32.mrf.mxu0
        %v1165 = vadd.f32 0.0, %v1164
        %v1166 = vpop.f32.mrf.mxu0
        %1167 = vmatprep.mubr.f32.mxu0 0.0
        %1168 = vmatmul.mubr.f32.gmra.mxu0 %v1000
        %v1169 = vpop.f32.mrf.mxu0
        %v1170 = vadd.f32 0.0, %v1169
        %v1171 = vpop.f32.mrf.mxu0
        %1172 = vmatprep.mubr.f32.mxu0 0.0
        %1173 = vmatmul.mubr.f32.gmra.mxu0 %v1002
        %v1174 = vpop.f32.mrf.mxu0
        %v1175 = vadd.f32 0.0, %v1174
        %v1176 = vpop.f32.mrf.mxu0
        %1177 = vmatprep.mubr.f32.mxu0 0.0
        %1178 = vmatmul.mubr.f32.gmra.mxu0 %v1004
        %v1179 = vpop.f32.mrf.mxu0
        %v1180 = vadd.f32 0.0, %v1179
        %v1181 = vpop.f32.mrf.mxu0
        %1182 = vmatprep.mubr.f32.mxu0 0.0
        %1183 = vmatmul.mubr.f32.gmra.mxu0 %v1006
        %v1184 = vpop.f32.mrf.mxu0
        %v1185 = vadd.f32 0.0, %v1184
        %v1186 = vpop.f32.mrf.mxu0
        %1187 = vmatprep.mubr.f32.mxu0 0.0
        %1188 = vmatmul.mubr.f32.gmra.mxu0 %v1008
        %v1189 = vpop.f32.mrf.mxu0
        %v1190 = vadd.f32 0.0, %v1189
        %v1191 = vpop.f32.mrf.mxu0
        %1192 = vmatprep.mubr.f32.mxu0 0.0
        %1193 = vmatmul.mubr.f32.gmra.mxu0 %v1010
        %v1194 = vpop.f32.mrf.mxu0
        %v1195 = vadd.f32 0.0, %v1194
        %v1196 = vpop.f32.mrf.mxu0
        %1197 = vmatprep.mubr.f32.mxu0 0.0
        %1198 = vmatmul.mubr.f32.gmra.mxu0 %v1012
        %v1199 = vpop.f32.mrf.mxu0
        %v1200 = vadd.f32 0.0, %v1199
        %v1201 = vpop.f32.mrf.mxu0
        %1202 = vmatprep.mubr.f32.mxu0 0.0
        %1203 = vmatmul.mubr.f32.gmra.mxu0 %v1014
        %v1204 = vpop.f32.mrf.mxu0
        %v1205 = vadd.f32 0.0, %v1204
        %v1206 = vpop.f32.mrf.mxu0
        %1207 = vmatprep.mubr.f32.mxu0 0.0
        %1208 = vmatmul.mubr.f32.gmra.mxu0 %v1016
        %v1209 = vpop.f32.mrf.mxu0
        %v1210 = vadd.f32 0.0, %v1209
        %v1211 = vpop.f32.mrf.mxu0
        %1212 = vmatprep.mubr.f32.mxu0 0.0
        %1213 = vmatmul.mubr.f32.gmra.mxu0 %v1018
        %v1214 = vpop.f32.mrf.mxu0
        %v1215 = vadd.f32 0.0, %v1214
        %v1216 = vpop.f32.mrf.mxu0
        %1217 = vmatprep.mubr.f32.mxu0 0.0
        %1218 = vmatmul.mubr.f32.gmra.mxu0 %v1020
        %v1219 = vpop.f32.mrf.mxu0
        %v1220 = vadd.f32 0.0, %v1219
        %v1221 = vpop.f32.mrf.mxu0
        %1222 = vmatprep.mubr.f32.mxu0 0.0
        %1223 = vmatmul.mubr.f32.gmra.mxu0 %v1022
        %v1224 = vpop.f32.mrf.mxu0
        %v1225 = vadd.f32 0.0, %v1224
        %v1226 = vpop.f32.mrf.mxu0
        %1227 = vmatprep.mubr.f32.mxu0 0.0
        %1228 = vmatmul.mubr.f32.gmra.mxu0 %v1024
        %v1229 = vpop.f32.mrf.mxu0
        %v1230 = vadd.f32 0.0, %v1229
        %v1231 = vpop.f32.mrf.mxu0
        %1232 = vmatprep.mubr.f32.mxu0 0.0
        %1233 = vmatmul.mubr.f32.gmra.mxu0 %v1026
        %v1234 = vpop.f32.mrf.mxu0
        %v1235 = vadd.f32 0.0, %v1234
        %v1236 = vpop.f32.mrf.mxu0
        %1237 = vdwg.mxu0
        %v1238 = vsel %vm969, %v838, 0
        %v1240 = vsel %vm969, %v839, 0
        %v1242 = vsel %vm969, %v840, 0
        %v1244 = vsel %vm969, %v841, 0
        %v1246 = vsel %vm969, %v842, 0
        %v1248 = vsel %vm969, %v843, 0
        %v1250 = vsel %vm969, %v844, 0
        %v1252 = vsel %vm969, %v845, 0
        %v1254 = vsel %vm969, %v846, 0
        %v1256 = vsel %vm969, %v847, 0
        %v1258 = vsel %vm969, %v848, 0
        %v1260 = vsel %vm969, %v849, 0
        %v1262 = vsel %vm969, %v850, 0
        %v1264 = vsel %vm969, %v851, 0
        %v1266 = vsel %vm969, %v852, 0
        %v1268 = vsel %vm969, %v853, 0
        %v1270 = vsel %vm969, %v854, 0
        %v1272 = vsel %vm969, %v855, 0
        %v1274 = vsel %vm969, %v856, 0
        %v1276 = vsel %vm969, %v857, 0
        %v1278 = vsel %vm969, %v858, 0
        %v1280 = vsel %vm969, %v859, 0
        %v1282 = vsel %vm969, %v860, 0
        %v1284 = vsel %vm969, %v861, 0
        %v1286 = vsel %vm969, %v862, 0
        %v1288 = vsel %vm969, %v863, 0
        %v1290 = vsel %vm969, %v864, 0
        %v1292 = vsel %vm969, %v865, 0
        %v1294 = vsel %vm969, %v866, 0
        %1296 = vmatprep.subr.mxu0 0.0
        %1297 = vmatpush1.msra.mxu0 0.0
        %1298 = vmatprep.subr.mxu0 0.0
        %1299 = vmatpush1.msra.mxu0 0.0
        %1300 = vmatprep.subr.mxu0 0.0
        %1301 = vmatpush1.msra.mxu0 0.0
        %1302 = vmatprep.subr.mxu0 0.0
        %1303 = vmatpush1.msra.mxu0 0.0
        %1304 = vmatprep.subr.mxu0 0.0
        %1305 = vmatpush1.msra.mxu0 0.0
        %1306 = vmatprep.subr.mxu0 0.0
        %1307 = vmatpush1.msra.mxu0 0.0
        %1308 = vmatprep.subr.mxu0 0.0
        %1309 = vmatpush1.msra.mxu0 0.0
        %1310 = vmatprep.subr.mxu0 0.0
        %1311 = vmatpush1.msra.mxu0 0.0
        %1312 = vmatprep.subr.mxu0 0.0
        %1313 = vmatpush1.msra.mxu0 0.0
        %1314 = vmatprep.subr.mxu0 0.0
        %1315 = vmatpush1.msra.mxu0 0.0
        %1316 = vmatprep.subr.mxu0 0.0
        %1317 = vmatpush1.msra.mxu0 0.0
        %1318 = vmatprep.subr.mxu0 0.0
        %1319 = vmatpush1.msra.mxu0 0.0
        %1320 = vmatprep.subr.mxu0 0.0
        %1321 = vmatpush1.msra.mxu0 0.0
        %1322 = vmatprep.subr.mxu0 0.0
        %1323 = vmatpush1.msra.mxu0 0.0
        %1324 = vmatprep.subr.mxu0 0.0
        %1325 = vmatpush1.msra.mxu0 %v878
        %1326 = vmatprep.subr.mxu0 0.0
        %1327 = vmatpush1.msra.mxu0 %v877
        %1328 = vmatprep.subr.mxu0 0.0
        %1329 = vmatpush2.msra.mxu0 0.0
        %1330 = vmatprep.subr.mxu0 0.0
        %1331 = vmatpush2.msra.mxu0 0.0
        %1332 = vmatprep.subr.mxu0 0.0
        %1333 = vmatpush2.msra.mxu0 0.0
        %1334 = vmatprep.subr.mxu0 0.0
        %1335 = vmatpush2.msra.mxu0 0.0
        %1336 = vmatprep.subr.mxu0 0.0
        %1337 = vmatpush2.msra.mxu0 0.0
        %1338 = vmatprep.subr.mxu0 0.0
        %1339 = vmatpush2.msra.mxu0 0.0
        %1340 = vmatprep.subr.mxu0 0.0
        %1341 = vmatpush2.msra.mxu0 0.0
        %1342 = vmatprep.subr.mxu0 0.0
        %1343 = vmatpush2.msra.mxu0 0.0
        %1344 = vmatprep.subr.mxu0 0.0
        %1345 = vmatpush2.msra.mxu0 0.0
        %1346 = vmatprep.subr.mxu0 0.0
        %1347 = vmatpush2.msra.mxu0 0.0
        %1348 = vmatprep.subr.mxu0 0.0
        %1349 = vmatpush2.msra.mxu0 0.0
        %1350 = vmatprep.subr.mxu0 0.0
        %1351 = vmatpush2.msra.mxu0 0.0
        %1352 = vmatprep.subr.mxu0 0.0
        %1353 = vmatpush2.msra.mxu0 0.0
        %1354 = vmatprep.subr.mxu0 0.0
        %1355 = vmatpush2.msra.mxu0 0.0
        %1356 = vmatprep.subr.mxu0 0.0
        %1357 = vmatpush2.msra.mxu0 0.0
        %1358 = vmatprep.subr.mxu0 0.0
        %1359 = vmatpush2.msra.mxu0 0.0
        %1360 = vmatprep.mubr.f32.mxu0 0.0
        %1361 = vmatmul.mubr.f32.gmra.mxu0 %v1238
        %v1362 = vpop.f32.mrf.mxu0
        %v1363 = vadd.f32 %v1095, %v1362
        %v1364 = vpop.f32.mrf.mxu0
        %1365 = vmatprep.mubr.f32.mxu0 0.0
        %1366 = vmatmul.mubr.f32.gmra.mxu0 %v1240
        %v1367 = vpop.f32.mrf.mxu0
        %v1368 = vadd.f32 %v1100, %v1367
        %v1369 = vpop.f32.mrf.mxu0
        %1370 = vmatprep.mubr.f32.mxu0 0.0
        %1371 = vmatmul.mubr.f32.gmra.mxu0 %v1242
        %v1372 = vpop.f32.mrf.mxu0
        %v1373 = vadd.f32 %v1105, %v1372
        %v1374 = vpop.f32.mrf.mxu0
        %1375 = vmatprep.mubr.f32.mxu0 0.0
        %1376 = vmatmul.mubr.f32.gmra.mxu0 %v1244
        %v1377 = vpop.f32.mrf.mxu0
        %v1378 = vadd.f32 %v1110, %v1377
        %v1379 = vpop.f32.mrf.mxu0
        %1380 = vmatprep.mubr.f32.mxu0 0.0
        %1381 = vmatmul.mubr.f32.gmra.mxu0 %v1246
        %v1382 = vpop.f32.mrf.mxu0
        %v1383 = vadd.f32 %v1115, %v1382
        %v1384 = vpop.f32.mrf.mxu0
        %1385 = vmatprep.mubr.f32.mxu0 0.0
        %1386 = vmatmul.mubr.f32.gmra.mxu0 %v1248
        %v1387 = vpop.f32.mrf.mxu0
        %v1388 = vadd.f32 %v1120, %v1387
        %v1389 = vpop.f32.mrf.mxu0
        %1390 = vmatprep.mubr.f32.mxu0 0.0
        %1391 = vmatmul.mubr.f32.gmra.mxu0 %v1250
        %v1392 = vpop.f32.mrf.mxu0
        %v1393 = vadd.f32 %v1125, %v1392
        %v1394 = vpop.f32.mrf.mxu0
        %1395 = vmatprep.mubr.f32.mxu0 0.0
        %1396 = vmatmul.mubr.f32.gmra.mxu0 %v1252
        %v1397 = vpop.f32.mrf.mxu0
        %v1398 = vadd.f32 %v1130, %v1397
        %v1399 = vpop.f32.mrf.mxu0
        %1400 = vmatprep.mubr.f32.mxu0 0.0
        %1401 = vmatmul.mubr.f32.gmra.mxu0 %v1254
        %v1402 = vpop.f32.mrf.mxu0
        %v1403 = vadd.f32 %v1135, %v1402
        %v1404 = vpop.f32.mrf.mxu0
        %1405 = vmatprep.mubr.f32.mxu0 0.0
        %1406 = vmatmul.mubr.f32.gmra.mxu0 %v1256
        %v1407 = vpop.f32.mrf.mxu0
        %v1408 = vadd.f32 %v1140, %v1407
        %v1409 = vpop.f32.mrf.mxu0
        %1410 = vmatprep.mubr.f32.mxu0 0.0
        %1411 = vmatmul.mubr.f32.gmra.mxu0 %v1258
        %v1412 = vpop.f32.mrf.mxu0
        %v1413 = vadd.f32 %v1145, %v1412
        %v1414 = vpop.f32.mrf.mxu0
        %1415 = vmatprep.mubr.f32.mxu0 0.0
        %1416 = vmatmul.mubr.f32.gmra.mxu0 %v1260
        %v1417 = vpop.f32.mrf.mxu0
        %v1418 = vadd.f32 %v1150, %v1417
        %v1419 = vpop.f32.mrf.mxu0
        %1420 = vmatprep.mubr.f32.mxu0 0.0
        %1421 = vmatmul.mubr.f32.gmra.mxu0 %v1262
        %v1422 = vpop.f32.mrf.mxu0
        %v1423 = vadd.f32 %v1155, %v1422
        %v1424 = vpop.f32.mrf.mxu0
        %1425 = vmatprep.mubr.f32.mxu0 0.0
        %1426 = vmatmul.mubr.f32.gmra.mxu0 %v1264
        %v1427 = vpop.f32.mrf.mxu0
        %v1428 = vadd.f32 %v1160, %v1427
        %v1429 = vpop.f32.mrf.mxu0
        %1430 = vmatprep.mubr.f32.mxu0 0.0
        %1431 = vmatmul.mubr.f32.gmra.mxu0 %v1266
        %v1432 = vpop.f32.mrf.mxu0
        %v1433 = vadd.f32 %v1165, %v1432
        %v1434 = vpop.f32.mrf.mxu0
        %1435 = vmatprep.mubr.f32.mxu0 0.0
        %1436 = vmatmul.mubr.f32.gmra.mxu0 %v1268
        %v1437 = vpop.f32.mrf.mxu0
        %v1438 = vadd.f32 %v1170, %v1437
        %v1439 = vpop.f32.mrf.mxu0
        %1440 = vmatprep.mubr.f32.mxu0 0.0
        %1441 = vmatmul.mubr.f32.gmra.mxu0 %v1270
        %v1442 = vpop.f32.mrf.mxu0
        %v1443 = vadd.f32 %v1175, %v1442
        %v1444 = vpop.f32.mrf.mxu0
        %1445 = vmatprep.mubr.f32.mxu0 0.0
        %1446 = vmatmul.mubr.f32.gmra.mxu0 %v1272
        %v1447 = vpop.f32.mrf.mxu0
        %v1448 = vadd.f32 %v1180, %v1447
        %v1449 = vpop.f32.mrf.mxu0
        %1450 = vmatprep.mubr.f32.mxu0 0.0
        %1451 = vmatmul.mubr.f32.gmra.mxu0 %v1274
        %v1452 = vpop.f32.mrf.mxu0
        %v1453 = vadd.f32 %v1185, %v1452
        %v1454 = vpop.f32.mrf.mxu0
        %1455 = vmatprep.mubr.f32.mxu0 0.0
        %1456 = vmatmul.mubr.f32.gmra.mxu0 %v1276
        %v1457 = vpop.f32.mrf.mxu0
        %v1458 = vadd.f32 %v1190, %v1457
        %v1459 = vpop.f32.mrf.mxu0
        %1460 = vmatprep.mubr.f32.mxu0 0.0
        %1461 = vmatmul.mubr.f32.gmra.mxu0 %v1278
        %v1462 = vpop.f32.mrf.mxu0
        %v1463 = vadd.f32 %v1195, %v1462
        %v1464 = vpop.f32.mrf.mxu0
        %1465 = vmatprep.mubr.f32.mxu0 0.0
        %1466 = vmatmul.mubr.f32.gmra.mxu0 %v1280
        %v1467 = vpop.f32.mrf.mxu0
        %v1468 = vadd.f32 %v1200, %v1467
        %v1469 = vpop.f32.mrf.mxu0
        %1470 = vmatprep.mubr.f32.mxu0 0.0
        %1471 = vmatmul.mubr.f32.gmra.mxu0 %v1282
        %v1472 = vpop.f32.mrf.mxu0
        %v1473 = vadd.f32 %v1205, %v1472
        %v1474 = vpop.f32.mrf.mxu0
        %1475 = vmatprep.mubr.f32.mxu0 0.0
        %1476 = vmatmul.mubr.f32.gmra.mxu0 %v1284
        %v1477 = vpop.f32.mrf.mxu0
        %v1478 = vadd.f32 %v1210, %v1477
        %v1479 = vpop.f32.mrf.mxu0
        %1480 = vmatprep.mubr.f32.mxu0 0.0
        %1481 = vmatmul.mubr.f32.gmra.mxu0 %v1286
        %v1482 = vpop.f32.mrf.mxu0
        %v1483 = vadd.f32 %v1215, %v1482
        %v1484 = vpop.f32.mrf.mxu0
        %1485 = vmatprep.mubr.f32.mxu0 0.0
        %1486 = vmatmul.mubr.f32.gmra.mxu0 %v1288
        %v1487 = vpop.f32.mrf.mxu0
        %v1488 = vadd.f32 %v1220, %v1487
        %v1489 = vpop.f32.mrf.mxu0
        %1490 = vmatprep.mubr.f32.mxu0 0.0
        %1491 = vmatmul.mubr.f32.gmra.mxu0 %v1290
        %v1492 = vpop.f32.mrf.mxu0
        %v1493 = vadd.f32 %v1225, %v1492
        %v1494 = vpop.f32.mrf.mxu0
        %1495 = vmatprep.mubr.f32.mxu0 0.0
        %1496 = vmatmul.mubr.f32.gmra.mxu0 %v1292
        %v1497 = vpop.f32.mrf.mxu0
        %v1498 = vadd.f32 %v1230, %v1497
        %v1499 = vpop.f32.mrf.mxu0
        %1500 = vmatprep.mubr.f32.mxu0 0.0
        %1501 = vmatmul.mubr.f32.gmra.mxu0 %v1294
        %v1502 = vpop.f32.mrf.mxu0
        %v1503 = vadd.f32 %v1235, %v1502
        %v1504 = vpop.f32.mrf.mxu0
        %1505 = vdwg.mxu0
        %s1506 = scalar_lea.vmem %s3, 32
        %v1507 = vld [vmem:[%s1506] sm:$0xff]
        %v1508 = vld [vmem:[%s1506 + $0x8] sm:$0xff]
        %vm1509 = vcmask 1045504
        %v1510 = vrot.slane %v838, 2
        %v1511 = vrot.slane %v839, 2
        %v1512 = vsel %vm1509, %v1510, %v1511
        %v1513 = vrot.slane %v840, 2
        %v1514 = vsel %vm1509, %v1511, %v1513
        %v1515 = vrot.slane %v841, 2
        %v1516 = vsel %vm1509, %v1513, %v1515
        %v1517 = vrot.slane %v842, 2
        %v1518 = vsel %vm1509, %v1515, %v1517
        %v1519 = vrot.slane %v843, 2
        %v1520 = vsel %vm1509, %v1517, %v1519
        %v1521 = vrot.slane %v844, 2
        %v1522 = vsel %vm1509, %v1519, %v1521
        %v1523 = vrot.slane %v845, 2
        %v1524 = vsel %vm1509, %v1521, %v1523
        %v1525 = vrot.slane %v846, 2
        %v1526 = vsel %vm1509, %v1523, %v1525
        %v1527 = vrot.slane %v847, 2
        %v1528 = vsel %vm1509, %v1525, %v1527
        %v1529 = vrot.slane %v848, 2
        %v1530 = vsel %vm1509, %v1527, %v1529
        %v1531 = vrot.slane %v849, 2
        %v1532 = vsel %vm1509, %v1529, %v1531
        %v1533 = vrot.slane %v850, 2
        %v1534 = vsel %vm1509, %v1531, %v1533
        %v1535 = vrot.slane %v851, 2
        %v1536 = vsel %vm1509, %v1533, %v1535
        %v1537 = vrot.slane %v852, 2
        %v1538 = vsel %vm1509, %v1535, %v1537
        %v1539 = vrot.slane %v853, 2
        %v1540 = vsel %vm1509, %v1537, %v1539
        %v1541 = vrot.slane %v854, 2
        %v1542 = vsel %vm1509, %v1539, %v1541
        %v1543 = vrot.slane %v855, 2
        %v1544 = vsel %vm1509, %v1541, %v1543
        %v1545 = vrot.slane %v856, 2
        %v1546 = vsel %vm1509, %v1543, %v1545
        %v1547 = vrot.slane %v857, 2
        %v1548 = vsel %vm1509, %v1545, %v1547
        %v1549 = vrot.slane %v858, 2
        %v1550 = vsel %vm1509, %v1547, %v1549
        %v1551 = vrot.slane %v859, 2
        %v1552 = vsel %vm1509, %v1549, %v1551
        %v1553 = vrot.slane %v860, 2
        %v1554 = vsel %vm1509, %v1551, %v1553
        %v1555 = vrot.slane %v861, 2
        %v1556 = vsel %vm1509, %v1553, %v1555
        %v1557 = vrot.slane %v862, 2
        %v1558 = vsel %vm1509, %v1555, %v1557
        %v1559 = vrot.slane %v863, 2
        %v1560 = vsel %vm1509, %v1557, %v1559
        %v1561 = vrot.slane %v864, 2
        %v1562 = vsel %vm1509, %v1559, %v1561
        %v1563 = vrot.slane %v865, 2
        %v1564 = vsel %vm1509, %v1561, %v1563
        %v1565 = vrot.slane %v866, 2
        %v1566 = vsel %vm1509, %v1563, %v1565
        %v1567 = vsel %vm969, %v1512, 0
        %v1569 = vsel %vm969, %v1514, 0
        %v1571 = vsel %vm969, %v1516, 0
        %v1573 = vsel %vm969, %v1518, 0
        %v1575 = vsel %vm969, %v1520, 0
        %v1577 = vsel %vm969, %v1522, 0
        %v1579 = vsel %vm969, %v1524, 0
        %v1581 = vsel %vm969, %v1526, 0
        %v1583 = vsel %vm969, %v1528, 0
        %v1585 = vsel %vm969, %v1530, 0
        %v1587 = vsel %vm969, %v1532, 0
        %v1589 = vsel %vm969, %v1534, 0
        %v1591 = vsel %vm969, %v1536, 0
        %v1593 = vsel %vm969, %v1538, 0
        %v1595 = vsel %vm969, %v1540, 0
        %v1597 = vsel %vm969, %v1542, 0
        %v1599 = vsel %vm969, %v1544, 0
        %v1601 = vsel %vm969, %v1546, 0
        %v1603 = vsel %vm969, %v1548, 0
        %v1605 = vsel %vm969, %v1550, 0
        %v1607 = vsel %vm969, %v1552, 0
        %v1609 = vsel %vm969, %v1554, 0
        %v1611 = vsel %vm969, %v1556, 0
        %v1613 = vsel %vm969, %v1558, 0
        %v1615 = vsel %vm969, %v1560, 0
        %v1617 = vsel %vm969, %v1562, 0
        %v1619 = vsel %vm969, %v1564, 0
        %v1621 = vsel %vm969, %v1566, 0
        %v1623 = vsel %vm969, %v1565, 0
        %1625 = vmatprep.subr.mxu0 0.0
        %1626 = vmatpush1.msra.mxu0 0.0
        %1627 = vmatprep.subr.mxu0 0.0
        %1628 = vmatpush1.msra.mxu0 0.0
        %1629 = vmatprep.subr.mxu0 0.0
        %1630 = vmatpush1.msra.mxu0 0.0
        %1631 = vmatprep.subr.mxu0 0.0
        %1632 = vmatpush1.msra.mxu0 0.0
        %1633 = vmatprep.subr.mxu0 0.0
        %1634 = vmatpush1.msra.mxu0 0.0
        %1635 = vmatprep.subr.mxu0 0.0
        %1636 = vmatpush1.msra.mxu0 0.0
        %1637 = vmatprep.subr.mxu0 0.0
        %1638 = vmatpush1.msra.mxu0 0.0
        %1639 = vmatprep.subr.mxu0 0.0
        %1640 = vmatpush1.msra.mxu0 0.0
        %1641 = vmatprep.subr.mxu0 0.0
        %1642 = vmatpush1.msra.mxu0 0.0
        %1643 = vmatprep.subr.mxu0 0.0
        %1644 = vmatpush1.msra.mxu0 0.0
        %1645 = vmatprep.subr.mxu0 0.0
        %1646 = vmatpush1.msra.mxu0 0.0
        %1647 = vmatprep.subr.mxu0 0.0
        %1648 = vmatpush1.msra.mxu0 0.0
        %1649 = vmatprep.subr.mxu0 0.0
        %1650 = vmatpush1.msra.mxu0 0.0
        %1651 = vmatprep.subr.mxu0 0.0
        %1652 = vmatpush1.msra.mxu0 0.0
        %1653 = vmatprep.subr.mxu0 0.0
        %1654 = vmatpush1.msra.mxu0 %v1508
        %1655 = vmatprep.subr.mxu0 0.0
        %1656 = vmatpush1.msra.mxu0 %v1507
        %1657 = vmatprep.subr.mxu0 0.0
        %1658 = vmatpush2.msra.mxu0 0.0
        %1659 = vmatprep.subr.mxu0 0.0
        %1660 = vmatpush2.msra.mxu0 0.0
        %1661 = vmatprep.subr.mxu0 0.0
        %1662 = vmatpush2.msra.mxu0 0.0
        %1663 = vmatprep.subr.mxu0 0.0
        %1664 = vmatpush2.msra.mxu0 0.0
        %1665 = vmatprep.subr.mxu0 0.0
        %1666 = vmatpush2.msra.mxu0 0.0
        %1667 = vmatprep.subr.mxu0 0.0
        %1668 = vmatpush2.msra.mxu0 0.0
        %1669 = vmatprep.subr.mxu0 0.0
        %1670 = vmatpush2.msra.mxu0 0.0
        %1671 = vmatprep.subr.mxu0 0.0
        %1672 = vmatpush2.msra.mxu0 0.0
        %1673 = vmatprep.subr.mxu0 0.0
        %1674 = vmatpush2.msra.mxu0 0.0
        %1675 = vmatprep.subr.mxu0 0.0
        %1676 = vmatpush2.msra.mxu0 0.0
        %1677 = vmatprep.subr.mxu0 0.0
        %1678 = vmatpush2.msra.mxu0 0.0
        %1679 = vmatprep.subr.mxu0 0.0
        %1680 = vmatpush2.msra.mxu0 0.0
        %1681 = vmatprep.subr.mxu0 0.0
        %1682 = vmatpush2.msra.mxu0 0.0
        %1683 = vmatprep.subr.mxu0 0.0
        %1684 = vmatpush2.msra.mxu0 0.0
        %1685 = vmatprep.subr.mxu0 0.0
        %1686 = vmatpush2.msra.mxu0 0.0
        %1687 = vmatprep.subr.mxu0 0.0
        %1688 = vmatpush2.msra.mxu0 0.0
        %1689 = vmatprep.mubr.f32.mxu0 0.0
        %1690 = vmatmul.mubr.f32.gmra.mxu0 %v1567
        %v1691 = vpop.f32.mrf.mxu0
        %v1692 = vadd.f32 0.0, %v1691
        %v1693 = vpop.f32.mrf.mxu0
        %1694 = vmatprep.mubr.f32.mxu0 0.0
        %1695 = vmatmul.mubr.f32.gmra.mxu0 %v1569
        %v1696 = vpop.f32.mrf.mxu0
        %v1697 = vadd.f32 0.0, %v1696
        %v1698 = vpop.f32.mrf.mxu0
        %1699 = vmatprep.mubr.f32.mxu0 0.0
        %1700 = vmatmul.mubr.f32.gmra.mxu0 %v1571
        %v1701 = vpop.f32.mrf.mxu0
        %v1702 = vadd.f32 0.0, %v1701
        %v1703 = vpop.f32.mrf.mxu0
        %1704 = vmatprep.mubr.f32.mxu0 0.0
        %1705 = vmatmul.mubr.f32.gmra.mxu0 %v1573
        %v1706 = vpop.f32.mrf.mxu0
        %v1707 = vadd.f32 0.0, %v1706
        %v1708 = vpop.f32.mrf.mxu0
        %1709 = vmatprep.mubr.f32.mxu0 0.0
        %1710 = vmatmul.mubr.f32.gmra.mxu0 %v1575
        %v1711 = vpop.f32.mrf.mxu0
        %v1712 = vadd.f32 0.0, %v1711
        %v1713 = vpop.f32.mrf.mxu0
        %1714 = vmatprep.mubr.f32.mxu0 0.0
        %1715 = vmatmul.mubr.f32.gmra.mxu0 %v1577
        %v1716 = vpop.f32.mrf.mxu0
        %v1717 = vadd.f32 0.0, %v1716
        %v1718 = vpop.f32.mrf.mxu0
        %1719 = vmatprep.mubr.f32.mxu0 0.0
        %1720 = vmatmul.mubr.f32.gmra.mxu0 %v1579
        %v1721 = vpop.f32.mrf.mxu0
        %v1722 = vadd.f32 0.0, %v1721
        %v1723 = vpop.f32.mrf.mxu0
        %1724 = vmatprep.mubr.f32.mxu0 0.0
        %1725 = vmatmul.mubr.f32.gmra.mxu0 %v1581
        %v1726 = vpop.f32.mrf.mxu0
        %v1727 = vadd.f32 0.0, %v1726
        %v1728 = vpop.f32.mrf.mxu0
        %1729 = vmatprep.mubr.f32.mxu0 0.0
        %1730 = vmatmul.mubr.f32.gmra.mxu0 %v1583
        %v1731 = vpop.f32.mrf.mxu0
        %v1732 = vadd.f32 0.0, %v1731
        %v1733 = vpop.f32.mrf.mxu0
        %1734 = vmatprep.mubr.f32.mxu0 0.0
        %1735 = vmatmul.mubr.f32.gmra.mxu0 %v1585
        %v1736 = vpop.f32.mrf.mxu0
        %v1737 = vadd.f32 0.0, %v1736
        %v1738 = vpop.f32.mrf.mxu0
        %1739 = vmatprep.mubr.f32.mxu0 0.0
        %1740 = vmatmul.mubr.f32.gmra.mxu0 %v1587
        %v1741 = vpop.f32.mrf.mxu0
        %v1742 = vadd.f32 0.0, %v1741
        %v1743 = vpop.f32.mrf.mxu0
        %1744 = vmatprep.mubr.f32.mxu0 0.0
        %1745 = vmatmul.mubr.f32.gmra.mxu0 %v1589
        %v1746 = vpop.f32.mrf.mxu0
        %v1747 = vadd.f32 0.0, %v1746
        %v1748 = vpop.f32.mrf.mxu0
        %1749 = vmatprep.mubr.f32.mxu0 0.0
        %1750 = vmatmul.mubr.f32.gmra.mxu0 %v1591
        %v1751 = vpop.f32.mrf.mxu0
        %v1752 = vadd.f32 0.0, %v1751
        %v1753 = vpop.f32.mrf.mxu0
        %1754 = vmatprep.mubr.f32.mxu0 0.0
        %1755 = vmatmul.mubr.f32.gmra.mxu0 %v1593
        %v1756 = vpop.f32.mrf.mxu0
        %v1757 = vadd.f32 0.0, %v1756
        %v1758 = vpop.f32.mrf.mxu0
        %1759 = vmatprep.mubr.f32.mxu0 0.0
        %1760 = vmatmul.mubr.f32.gmra.mxu0 %v1595
        %v1761 = vpop.f32.mrf.mxu0
        %v1762 = vadd.f32 0.0, %v1761
        %v1763 = vpop.f32.mrf.mxu0
        %1764 = vmatprep.mubr.f32.mxu0 0.0
        %1765 = vmatmul.mubr.f32.gmra.mxu0 %v1597
        %v1766 = vpop.f32.mrf.mxu0
        %v1767 = vadd.f32 0.0, %v1766
        %v1768 = vpop.f32.mrf.mxu0
        %1769 = vmatprep.mubr.f32.mxu0 0.0
        %1770 = vmatmul.mubr.f32.gmra.mxu0 %v1599
        %v1771 = vpop.f32.mrf.mxu0
        %v1772 = vadd.f32 0.0, %v1771
        %v1773 = vpop.f32.mrf.mxu0
        %1774 = vmatprep.mubr.f32.mxu0 0.0
        %1775 = vmatmul.mubr.f32.gmra.mxu0 %v1601
        %v1776 = vpop.f32.mrf.mxu0
        %v1777 = vadd.f32 0.0, %v1776
        %v1778 = vpop.f32.mrf.mxu0
        %1779 = vmatprep.mubr.f32.mxu0 0.0
        %1780 = vmatmul.mubr.f32.gmra.mxu0 %v1603
        %v1781 = vpop.f32.mrf.mxu0
        %v1782 = vadd.f32 0.0, %v1781
        %v1783 = vpop.f32.mrf.mxu0
        %1784 = vmatprep.mubr.f32.mxu0 0.0
        %1785 = vmatmul.mubr.f32.gmra.mxu0 %v1605
        %v1786 = vpop.f32.mrf.mxu0
        %v1787 = vadd.f32 0.0, %v1786
        %v1788 = vpop.f32.mrf.mxu0
        %1789 = vmatprep.mubr.f32.mxu0 0.0
        %1790 = vmatmul.mubr.f32.gmra.mxu0 %v1607
        %v1791 = vpop.f32.mrf.mxu0
        %v1792 = vadd.f32 0.0, %v1791
        %v1793 = vpop.f32.mrf.mxu0
        %1794 = vmatprep.mubr.f32.mxu0 0.0
        %1795 = vmatmul.mubr.f32.gmra.mxu0 %v1609
        %v1796 = vpop.f32.mrf.mxu0
        %v1797 = vadd.f32 0.0, %v1796
        %v1798 = vpop.f32.mrf.mxu0
        %1799 = vmatprep.mubr.f32.mxu0 0.0
        %1800 = vmatmul.mubr.f32.gmra.mxu0 %v1611
        %v1801 = vpop.f32.mrf.mxu0
        %v1802 = vadd.f32 0.0, %v1801
        %v1803 = vpop.f32.mrf.mxu0
        %1804 = vmatprep.mubr.f32.mxu0 0.0
        %1805 = vmatmul.mubr.f32.gmra.mxu0 %v1613
        %v1806 = vpop.f32.mrf.mxu0
        %v1807 = vadd.f32 0.0, %v1806
        %v1808 = vpop.f32.mrf.mxu0
        %1809 = vmatprep.mubr.f32.mxu0 0.0
        %1810 = vmatmul.mubr.f32.gmra.mxu0 %v1615
        %v1811 = vpop.f32.mrf.mxu0
        %v1812 = vadd.f32 0.0, %v1811
        %v1813 = vpop.f32.mrf.mxu0
        %1814 = vmatprep.mubr.f32.mxu0 0.0
        %1815 = vmatmul.mubr.f32.gmra.mxu0 %v1617
        %v1816 = vpop.f32.mrf.mxu0
        %v1817 = vadd.f32 0.0, %v1816
        %v1818 = vpop.f32.mrf.mxu0
        %1819 = vmatprep.mubr.f32.mxu0 0.0
        %1820 = vmatmul.mubr.f32.gmra.mxu0 %v1619
        %v1821 = vpop.f32.mrf.mxu0
        %v1822 = vadd.f32 0.0, %v1821
        %v1823 = vpop.f32.mrf.mxu0
        %1824 = vmatprep.mubr.f32.mxu0 0.0
        %1825 = vmatmul.mubr.f32.gmra.mxu0 %v1621
        %v1826 = vpop.f32.mrf.mxu0
        %v1827 = vadd.f32 0.0, %v1826
        %v1828 = vpop.f32.mrf.mxu0
        %1829 = vmatprep.mubr.f32.mxu0 0.0
        %1830 = vmatmul.mubr.f32.gmra.mxu0 %v1623
        %v1831 = vpop.f32.mrf.mxu0
        %v1832 = vadd.f32 0.0, %v1831
        %v1833 = vpop.f32.mrf.mxu0
        %1834 = vdwg.mxu0
        %v1835 = vadd.f32 %v1363, %v1692
        %v1836 = vadd.f32 %v1368, %v1697
        %v1837 = vadd.f32 %v1373, %v1702
        %v1838 = vadd.f32 %v1378, %v1707
        %v1839 = vadd.f32 %v1383, %v1712
        %v1840 = vadd.f32 %v1388, %v1717
        %v1841 = vadd.f32 %v1393, %v1722
        %v1842 = vadd.f32 %v1398, %v1727
        %v1843 = vadd.f32 %v1403, %v1732
        %v1844 = vadd.f32 %v1408, %v1737
        %v1845 = vadd.f32 %v1413, %v1742
        %v1846 = vadd.f32 %v1418, %v1747
        %v1847 = vadd.f32 %v1423, %v1752
        %v1848 = vadd.f32 %v1428, %v1757
        %v1849 = vadd.f32 %v1433, %v1762
        %v1850 = vadd.f32 %v1438, %v1767
        %v1851 = vadd.f32 %v1443, %v1772
        %v1852 = vadd.f32 %v1448, %v1777
        %v1853 = vadd.f32 %v1453, %v1782
        %v1854 = vadd.f32 %v1458, %v1787
        %v1855 = vadd.f32 %v1463, %v1792
        %v1856 = vadd.f32 %v1468, %v1797
        %v1857 = vadd.f32 %v1473, %v1802
        %v1858 = vadd.f32 %v1478, %v1807
        %v1859 = vadd.f32 %v1483, %v1812
        %v1860 = vadd.f32 %v1488, %v1817
        %v1861 = vadd.f32 %v1493, %v1822
        %v1862 = vadd.f32 %v1498, %v1827
        %v1863 = vadd.f32 %v1503, %v1832
        %s1864 = scalar_lea.vmem %s3, 48
        %v1865 = vld [vmem:[%s1864] sm:$0xff]
        %v1866 = vld [vmem:[%s1864 + $0x8] sm:$0xff]
        %vm1867 = vcmask 1044480
        %v1868 = vrot.slane %v838, 3
        %v1869 = vrot.slane %v839, 3
        %v1870 = vsel %vm1867, %v1868, %v1869
        %v1871 = vrot.slane %v840, 3
        %v1872 = vsel %vm1867, %v1869, %v1871
        %v1873 = vrot.slane %v841, 3
        %v1874 = vsel %vm1867, %v1871, %v1873
        %v1875 = vrot.slane %v842, 3
        %v1876 = vsel %vm1867, %v1873, %v1875
        %v1877 = vrot.slane %v843, 3
        %v1878 = vsel %vm1867, %v1875, %v1877
        %v1879 = vrot.slane %v844, 3
        %v1880 = vsel %vm1867, %v1877, %v1879
        %v1881 = vrot.slane %v845, 3
        %v1882 = vsel %vm1867, %v1879, %v1881
        %v1883 = vrot.slane %v846, 3
        %v1884 = vsel %vm1867, %v1881, %v1883
        %v1885 = vrot.slane %v847, 3
        %v1886 = vsel %vm1867, %v1883, %v1885
        %v1887 = vrot.slane %v848, 3
        %v1888 = vsel %vm1867, %v1885, %v1887
        %v1889 = vrot.slane %v849, 3
        %v1890 = vsel %vm1867, %v1887, %v1889
        %v1891 = vrot.slane %v850, 3
        %v1892 = vsel %vm1867, %v1889, %v1891
        %v1893 = vrot.slane %v851, 3
        %v1894 = vsel %vm1867, %v1891, %v1893
        %v1895 = vrot.slane %v852, 3
        %v1896 = vsel %vm1867, %v1893, %v1895
        %v1897 = vrot.slane %v853, 3
        %v1898 = vsel %vm1867, %v1895, %v1897
        %v1899 = vrot.slane %v854, 3
        %v1900 = vsel %vm1867, %v1897, %v1899
        %v1901 = vrot.slane %v855, 3
        %v1902 = vsel %vm1867, %v1899, %v1901
        %v1903 = vrot.slane %v856, 3
        %v1904 = vsel %vm1867, %v1901, %v1903
        %v1905 = vrot.slane %v857, 3
        %v1906 = vsel %vm1867, %v1903, %v1905
        %v1907 = vrot.slane %v858, 3
        %v1908 = vsel %vm1867, %v1905, %v1907
        %v1909 = vrot.slane %v859, 3
        %v1910 = vsel %vm1867, %v1907, %v1909
        %v1911 = vrot.slane %v860, 3
        %v1912 = vsel %vm1867, %v1909, %v1911
        %v1913 = vrot.slane %v861, 3
        %v1914 = vsel %vm1867, %v1911, %v1913
        %v1915 = vrot.slane %v862, 3
        %v1916 = vsel %vm1867, %v1913, %v1915
        %v1917 = vrot.slane %v863, 3
        %v1918 = vsel %vm1867, %v1915, %v1917
        %v1919 = vrot.slane %v864, 3
        %v1920 = vsel %vm1867, %v1917, %v1919
        %v1921 = vrot.slane %v865, 3
        %v1922 = vsel %vm1867, %v1919, %v1921
        %v1923 = vrot.slane %v866, 3
        %v1924 = vsel %vm1867, %v1921, %v1923
        %v1925 = vsel %vm969, %v1870, 0
        %v1927 = vsel %vm969, %v1872, 0
        %v1929 = vsel %vm969, %v1874, 0
        %v1931 = vsel %vm969, %v1876, 0
        %v1933 = vsel %vm969, %v1878, 0
        %v1935 = vsel %vm969, %v1880, 0
        %v1937 = vsel %vm969, %v1882, 0
        %v1939 = vsel %vm969, %v1884, 0
        %v1941 = vsel %vm969, %v1886, 0
        %v1943 = vsel %vm969, %v1888, 0
        %v1945 = vsel %vm969, %v1890, 0
        %v1947 = vsel %vm969, %v1892, 0
        %v1949 = vsel %vm969, %v1894, 0
        %v1951 = vsel %vm969, %v1896, 0
        %v1953 = vsel %vm969, %v1898, 0
        %v1955 = vsel %vm969, %v1900, 0
        %v1957 = vsel %vm969, %v1902, 0
        %v1959 = vsel %vm969, %v1904, 0
        %v1961 = vsel %vm969, %v1906, 0
        %v1963 = vsel %vm969, %v1908, 0
        %v1965 = vsel %vm969, %v1910, 0
        %v1967 = vsel %vm969, %v1912, 0
        %v1969 = vsel %vm969, %v1914, 0
        %v1971 = vsel %vm969, %v1916, 0
        %v1973 = vsel %vm969, %v1918, 0
        %v1975 = vsel %vm969, %v1920, 0
        %v1977 = vsel %vm969, %v1922, 0
        %v1979 = vsel %vm969, %v1924, 0
        %v1981 = vsel %vm969, %v1923, 0
        %1983 = vmatprep.subr.mxu0 0.0
        %1984 = vmatpush1.msra.mxu0 0.0
        %1985 = vmatprep.subr.mxu0 0.0
        %1986 = vmatpush1.msra.mxu0 0.0
        %1987 = vmatprep.subr.mxu0 0.0
        %1988 = vmatpush1.msra.mxu0 0.0
        %1989 = vmatprep.subr.mxu0 0.0
        %1990 = vmatpush1.msra.mxu0 0.0
        %1991 = vmatprep.subr.mxu0 0.0
        %1992 = vmatpush1.msra.mxu0 0.0
        %1993 = vmatprep.subr.mxu0 0.0
        %1994 = vmatpush1.msra.mxu0 0.0
        %1995 = vmatprep.subr.mxu0 0.0
        %1996 = vmatpush1.msra.mxu0 0.0
        %1997 = vmatprep.subr.mxu0 0.0
        %1998 = vmatpush1.msra.mxu0 0.0
        %1999 = vmatprep.subr.mxu0 0.0
        %2000 = vmatpush1.msra.mxu0 0.0
        %2001 = vmatprep.subr.mxu0 0.0
        %2002 = vmatpush1.msra.mxu0 0.0
        %2003 = vmatprep.subr.mxu0 0.0
        %2004 = vmatpush1.msra.mxu0 0.0
        %2005 = vmatprep.subr.mxu0 0.0
        %2006 = vmatpush1.msra.mxu0 0.0
        %2007 = vmatprep.subr.mxu0 0.0
        %2008 = vmatpush1.msra.mxu0 0.0
        %2009 = vmatprep.subr.mxu0 0.0
        %2010 = vmatpush1.msra.mxu0 0.0
        %2011 = vmatprep.subr.mxu0 0.0
        %2012 = vmatpush1.msra.mxu0 %v1866
        %2013 = vmatprep.subr.mxu0 0.0
        %2014 = vmatpush1.msra.mxu0 %v1865
        %2015 = vmatprep.subr.mxu0 0.0
        %2016 = vmatpush2.msra.mxu0 0.0
        %2017 = vmatprep.subr.mxu0 0.0
        %2018 = vmatpush2.msra.mxu0 0.0
        %2019 = vmatprep.subr.mxu0 0.0
        %2020 = vmatpush2.msra.mxu0 0.0
        %2021 = vmatprep.subr.mxu0 0.0
        %2022 = vmatpush2.msra.mxu0 0.0
        %2023 = vmatprep.subr.mxu0 0.0
        %2024 = vmatpush2.msra.mxu0 0.0
        %2025 = vmatprep.subr.mxu0 0.0
        %2026 = vmatpush2.msra.mxu0 0.0
        %2027 = vmatprep.subr.mxu0 0.0
        %2028 = vmatpush2.msra.mxu0 0.0
        %2029 = vmatprep.subr.mxu0 0.0
        %2030 = vmatpush2.msra.mxu0 0.0
        %2031 = vmatprep.subr.mxu0 0.0
        %2032 = vmatpush2.msra.mxu0 0.0
        %2033 = vmatprep.subr.mxu0 0.0
        %2034 = vmatpush2.msra.mxu0 0.0
        %2035 = vmatprep.subr.mxu0 0.0
        %2036 = vmatpush2.msra.mxu0 0.0
        %2037 = vmatprep.subr.mxu0 0.0
        %2038 = vmatpush2.msra.mxu0 0.0
        %2039 = vmatprep.subr.mxu0 0.0
        %2040 = vmatpush2.msra.mxu0 0.0
        %2041 = vmatprep.subr.mxu0 0.0
        %2042 = vmatpush2.msra.mxu0 0.0
        %2043 = vmatprep.subr.mxu0 0.0
        %2044 = vmatpush2.msra.mxu0 0.0
        %2045 = vmatprep.subr.mxu0 0.0
        %2046 = vmatpush2.msra.mxu0 0.0
        %2047 = vmatprep.mubr.f32.mxu0 0.0
        %2048 = vmatmul.mubr.f32.gmra.mxu0 %v1925
        %v2049 = vpop.f32.mrf.mxu0
        %v2050 = vadd.f32 0.0, %v2049
        %v2051 = vpop.f32.mrf.mxu0
        %2052 = vmatprep.mubr.f32.mxu0 0.0
        %2053 = vmatmul.mubr.f32.gmra.mxu0 %v1927
        %v2054 = vpop.f32.mrf.mxu0
        %v2055 = vadd.f32 0.0, %v2054
        %v2056 = vpop.f32.mrf.mxu0
        %2057 = vmatprep.mubr.f32.mxu0 0.0
        %2058 = vmatmul.mubr.f32.gmra.mxu0 %v1929
        %v2059 = vpop.f32.mrf.mxu0
        %v2060 = vadd.f32 0.0, %v2059
        %v2061 = vpop.f32.mrf.mxu0
        %2062 = vmatprep.mubr.f32.mxu0 0.0
        %2063 = vmatmul.mubr.f32.gmra.mxu0 %v1931
        %v2064 = vpop.f32.mrf.mxu0
        %v2065 = vadd.f32 0.0, %v2064
        %v2066 = vpop.f32.mrf.mxu0
        %2067 = vmatprep.mubr.f32.mxu0 0.0
        %2068 = vmatmul.mubr.f32.gmra.mxu0 %v1933
        %v2069 = vpop.f32.mrf.mxu0
        %v2070 = vadd.f32 0.0, %v2069
        %v2071 = vpop.f32.mrf.mxu0
        %2072 = vmatprep.mubr.f32.mxu0 0.0
        %2073 = vmatmul.mubr.f32.gmra.mxu0 %v1935
        %v2074 = vpop.f32.mrf.mxu0
        %v2075 = vadd.f32 0.0, %v2074
        %v2076 = vpop.f32.mrf.mxu0
        %2077 = vmatprep.mubr.f32.mxu0 0.0
        %2078 = vmatmul.mubr.f32.gmra.mxu0 %v1937
        %v2079 = vpop.f32.mrf.mxu0
        %v2080 = vadd.f32 0.0, %v2079
        %v2081 = vpop.f32.mrf.mxu0
        %2082 = vmatprep.mubr.f32.mxu0 0.0
        %2083 = vmatmul.mubr.f32.gmra.mxu0 %v1939
        %v2084 = vpop.f32.mrf.mxu0
        %v2085 = vadd.f32 0.0, %v2084
        %v2086 = vpop.f32.mrf.mxu0
        %2087 = vmatprep.mubr.f32.mxu0 0.0
        %2088 = vmatmul.mubr.f32.gmra.mxu0 %v1941
        %v2089 = vpop.f32.mrf.mxu0
        %v2090 = vadd.f32 0.0, %v2089
        %v2091 = vpop.f32.mrf.mxu0
        %2092 = vmatprep.mubr.f32.mxu0 0.0
        %2093 = vmatmul.mubr.f32.gmra.mxu0 %v1943
        %v2094 = vpop.f32.mrf.mxu0
        %v2095 = vadd.f32 0.0, %v2094
        %v2096 = vpop.f32.mrf.mxu0
        %2097 = vmatprep.mubr.f32.mxu0 0.0
        %2098 = vmatmul.mubr.f32.gmra.mxu0 %v1945
        %v2099 = vpop.f32.mrf.mxu0
        %v2100 = vadd.f32 0.0, %v2099
        %v2101 = vpop.f32.mrf.mxu0
        %2102 = vmatprep.mubr.f32.mxu0 0.0
        %2103 = vmatmul.mubr.f32.gmra.mxu0 %v1947
        %v2104 = vpop.f32.mrf.mxu0
        %v2105 = vadd.f32 0.0, %v2104
        %v2106 = vpop.f32.mrf.mxu0
        %2107 = vmatprep.mubr.f32.mxu0 0.0
        %2108 = vmatmul.mubr.f32.gmra.mxu0 %v1949
        %v2109 = vpop.f32.mrf.mxu0
        %v2110 = vadd.f32 0.0, %v2109
        %v2111 = vpop.f32.mrf.mxu0
        %2112 = vmatprep.mubr.f32.mxu0 0.0
        %2113 = vmatmul.mubr.f32.gmra.mxu0 %v1951
        %v2114 = vpop.f32.mrf.mxu0
        %v2115 = vadd.f32 0.0, %v2114
        %v2116 = vpop.f32.mrf.mxu0
        %2117 = vmatprep.mubr.f32.mxu0 0.0
        %2118 = vmatmul.mubr.f32.gmra.mxu0 %v1953
        %v2119 = vpop.f32.mrf.mxu0
        %v2120 = vadd.f32 0.0, %v2119
        %v2121 = vpop.f32.mrf.mxu0
        %2122 = vmatprep.mubr.f32.mxu0 0.0
        %2123 = vmatmul.mubr.f32.gmra.mxu0 %v1955
        %v2124 = vpop.f32.mrf.mxu0
        %v2125 = vadd.f32 0.0, %v2124
        %v2126 = vpop.f32.mrf.mxu0
        %2127 = vmatprep.mubr.f32.mxu0 0.0
        %2128 = vmatmul.mubr.f32.gmra.mxu0 %v1957
        %v2129 = vpop.f32.mrf.mxu0
        %v2130 = vadd.f32 0.0, %v2129
        %v2131 = vpop.f32.mrf.mxu0
        %2132 = vmatprep.mubr.f32.mxu0 0.0
        %2133 = vmatmul.mubr.f32.gmra.mxu0 %v1959
        %v2134 = vpop.f32.mrf.mxu0
        %v2135 = vadd.f32 0.0, %v2134
        %v2136 = vpop.f32.mrf.mxu0
        %2137 = vmatprep.mubr.f32.mxu0 0.0
        %2138 = vmatmul.mubr.f32.gmra.mxu0 %v1961
        %v2139 = vpop.f32.mrf.mxu0
        %v2140 = vadd.f32 0.0, %v2139
        %v2141 = vpop.f32.mrf.mxu0
        %2142 = vmatprep.mubr.f32.mxu0 0.0
        %2143 = vmatmul.mubr.f32.gmra.mxu0 %v1963
        %v2144 = vpop.f32.mrf.mxu0
        %v2145 = vadd.f32 0.0, %v2144
        %v2146 = vpop.f32.mrf.mxu0
        %2147 = vmatprep.mubr.f32.mxu0 0.0
        %2148 = vmatmul.mubr.f32.gmra.mxu0 %v1965
        %v2149 = vpop.f32.mrf.mxu0
        %v2150 = vadd.f32 0.0, %v2149
        %v2151 = vpop.f32.mrf.mxu0
        %2152 = vmatprep.mubr.f32.mxu0 0.0
        %2153 = vmatmul.mubr.f32.gmra.mxu0 %v1967
        %v2154 = vpop.f32.mrf.mxu0
        %v2155 = vadd.f32 0.0, %v2154
        %v2156 = vpop.f32.mrf.mxu0
        %2157 = vmatprep.mubr.f32.mxu0 0.0
        %2158 = vmatmul.mubr.f32.gmra.mxu0 %v1969
        %v2159 = vpop.f32.mrf.mxu0
        %v2160 = vadd.f32 0.0, %v2159
        %v2161 = vpop.f32.mrf.mxu0
        %2162 = vmatprep.mubr.f32.mxu0 0.0
        %2163 = vmatmul.mubr.f32.gmra.mxu0 %v1971
        %v2164 = vpop.f32.mrf.mxu0
        %v2165 = vadd.f32 0.0, %v2164
        %v2166 = vpop.f32.mrf.mxu0
        %2167 = vmatprep.mubr.f32.mxu0 0.0
        %2168 = vmatmul.mubr.f32.gmra.mxu0 %v1973
        %v2169 = vpop.f32.mrf.mxu0
        %v2170 = vadd.f32 0.0, %v2169
        %v2171 = vpop.f32.mrf.mxu0
        %2172 = vmatprep.mubr.f32.mxu0 0.0
        %2173 = vmatmul.mubr.f32.gmra.mxu0 %v1975
        %v2174 = vpop.f32.mrf.mxu0
        %v2175 = vadd.f32 0.0, %v2174
        %v2176 = vpop.f32.mrf.mxu0
        %2177 = vmatprep.mubr.f32.mxu0 0.0
        %2178 = vmatmul.mubr.f32.gmra.mxu0 %v1977
        %v2179 = vpop.f32.mrf.mxu0
        %v2180 = vadd.f32 0.0, %v2179
        %v2181 = vpop.f32.mrf.mxu0
        %2182 = vmatprep.mubr.f32.mxu0 0.0
        %2183 = vmatmul.mubr.f32.gmra.mxu0 %v1979
        %v2184 = vpop.f32.mrf.mxu0
        %v2185 = vadd.f32 0.0, %v2184
        %v2186 = vpop.f32.mrf.mxu0
        %2187 = vmatprep.mubr.f32.mxu0 0.0
        %2188 = vmatmul.mubr.f32.gmra.mxu0 %v1981
        %v2189 = vpop.f32.mrf.mxu0
        %v2190 = vadd.f32 0.0, %v2189
        %v2191 = vpop.f32.mrf.mxu0
        %2192 = vdwg.mxu0
        %v2193 = vadd.f32 %v1835, %v2050
        %v2194 = vadd.f32 %v1836, %v2055
        %v2195 = vadd.f32 %v1837, %v2060
        %v2196 = vadd.f32 %v1838, %v2065
        %v2197 = vadd.f32 %v1839, %v2070
        %v2198 = vadd.f32 %v1840, %v2075
        %v2199 = vadd.f32 %v1841, %v2080
        %v2200 = vadd.f32 %v1842, %v2085
        %v2201 = vadd.f32 %v1843, %v2090
        %v2202 = vadd.f32 %v1844, %v2095
        %v2203 = vadd.f32 %v1845, %v2100
        %v2204 = vadd.f32 %v1846, %v2105
        %v2205 = vadd.f32 %v1847, %v2110
        %v2206 = vadd.f32 %v1848, %v2115
        %v2207 = vadd.f32 %v1849, %v2120
        %v2208 = vadd.f32 %v1850, %v2125
        %v2209 = vadd.f32 %v1851, %v2130
        %v2210 = vadd.f32 %v1852, %v2135
        %v2211 = vadd.f32 %v1853, %v2140
        %v2212 = vadd.f32 %v1854, %v2145
        %v2213 = vadd.f32 %v1855, %v2150
        %v2214 = vadd.f32 %v1856, %v2155
        %v2215 = vadd.f32 %v1857, %v2160
        %v2216 = vadd.f32 %v1858, %v2165
        %v2217 = vadd.f32 %v1859, %v2170
        %v2218 = vadd.f32 %v1860, %v2175
        %v2219 = vadd.f32 %v1861, %v2180
        %v2220 = vadd.f32 %v1862, %v2185
        %v2221 = vadd.f32 %v1863, %v2190
        %s2222 = scalar_lea.vmem %s3, 64
        %v2223 = vld [vmem:[%s2222] sm:$0xff]
        %v2224 = vld [vmem:[%s2222 + $0x8] sm:$0xff]
        %vm2226 = vcmask 1043456
        %v2227 = vrot.slane %v838, 4
        %v2228 = vrot.slane %v839, 4
        %v2229 = vsel %vm2226, %v2227, %v2228
        %v2230 = vrot.slane %v840, 4
        %v2231 = vsel %vm2226, %v2228, %v2230
        %v2232 = vrot.slane %v841, 4
        %v2233 = vsel %vm2226, %v2230, %v2232
        %v2234 = vrot.slane %v842, 4
        %v2235 = vsel %vm2226, %v2232, %v2234
        %v2236 = vrot.slane %v843, 4
        %v2237 = vsel %vm2226, %v2234, %v2236
        %v2238 = vrot.slane %v844, 4
        %v2239 = vsel %vm2226, %v2236, %v2238
        %v2240 = vrot.slane %v845, 4
        %v2241 = vsel %vm2226, %v2238, %v2240
        %v2242 = vrot.slane %v846, 4
        %v2243 = vsel %vm2226, %v2240, %v2242
        %v2244 = vrot.slane %v847, 4
        %v2245 = vsel %vm2226, %v2242, %v2244
        %v2246 = vrot.slane %v848, 4
        %v2247 = vsel %vm2226, %v2244, %v2246
        %v2248 = vrot.slane %v849, 4
        %v2249 = vsel %vm2226, %v2246, %v2248
        %v2250 = vrot.slane %v850, 4
        %v2251 = vsel %vm2226, %v2248, %v2250
        %v2252 = vrot.slane %v851, 4
        %v2253 = vsel %vm2226, %v2250, %v2252
        %v2254 = vrot.slane %v852, 4
        %v2255 = vsel %vm2226, %v2252, %v2254
        %v2256 = vrot.slane %v853, 4
        %v2257 = vsel %vm2226, %v2254, %v2256
        %v2258 = vrot.slane %v854, 4
        %v2259 = vsel %vm2226, %v2256, %v2258
        %v2260 = vrot.slane %v855, 4
        %v2261 = vsel %vm2226, %v2258, %v2260
        %v2262 = vrot.slane %v856, 4
        %v2263 = vsel %vm2226, %v2260, %v2262
        %v2264 = vrot.slane %v857, 4
        %v2265 = vsel %vm2226, %v2262, %v2264
        %v2266 = vrot.slane %v858, 4
        %v2267 = vsel %vm2226, %v2264, %v2266
        %v2268 = vrot.slane %v859, 4
        %v2269 = vsel %vm2226, %v2266, %v2268
        %v2270 = vrot.slane %v860, 4
        %v2271 = vsel %vm2226, %v2268, %v2270
        %v2272 = vrot.slane %v861, 4
        %v2273 = vsel %vm2226, %v2270, %v2272
        %v2274 = vrot.slane %v862, 4
        %v2275 = vsel %vm2226, %v2272, %v2274
        %v2276 = vrot.slane %v863, 4
        %v2277 = vsel %vm2226, %v2274, %v2276
        %v2278 = vrot.slane %v864, 4
        %v2279 = vsel %vm2226, %v2276, %v2278
        %v2280 = vrot.slane %v865, 4
        %v2281 = vsel %vm2226, %v2278, %v2280
        %v2282 = vrot.slane %v866, 4
        %v2283 = vsel %vm2226, %v2280, %v2282
        %v2284 = vrot.slane %v867, 4
        %v2285 = vsel %vm2226, %v2282, %v2284
        %v2286 = vsel %vm969, %v2229, 0
        %v2288 = vsel %vm969, %v2231, 0
        %v2290 = vsel %vm969, %v2233, 0
        %v2292 = vsel %vm969, %v2235, 0
        %v2294 = vsel %vm969, %v2237, 0
        %v2296 = vsel %vm969, %v2239, 0
        %v2298 = vsel %vm969, %v2241, 0
        %v2300 = vsel %vm969, %v2243, 0
        %v2302 = vsel %vm969, %v2245, 0
        %v2304 = vsel %vm969, %v2247, 0
        %v2306 = vsel %vm969, %v2249, 0
        %v2308 = vsel %vm969, %v2251, 0
        %v2310 = vsel %vm969, %v2253, 0
        %v2312 = vsel %vm969, %v2255, 0
        %v2314 = vsel %vm969, %v2257, 0
        %v2316 = vsel %vm969, %v2259, 0
        %v2318 = vsel %vm969, %v2261, 0
        %v2320 = vsel %vm969, %v2263, 0
        %v2322 = vsel %vm969, %v2265, 0
        %v2324 = vsel %vm969, %v2267, 0
        %v2326 = vsel %vm969, %v2269, 0
        %v2328 = vsel %vm969, %v2271, 0
        %v2330 = vsel %vm969, %v2273, 0
        %v2332 = vsel %vm969, %v2275, 0
        %v2334 = vsel %vm969, %v2277, 0
        %v2336 = vsel %vm969, %v2279, 0
        %v2338 = vsel %vm969, %v2281, 0
        %v2340 = vsel %vm969, %v2283, 0
        %v2342 = vsel %vm969, %v2285, 0
        %2344 = vmatprep.subr.mxu0 0.0
        %2345 = vmatpush1.msra.mxu0 0.0
        %2346 = vmatprep.subr.mxu0 0.0
        %2347 = vmatpush1.msra.mxu0 0.0
        %2348 = vmatprep.subr.mxu0 0.0
        %2349 = vmatpush1.msra.mxu0 0.0
        %2350 = vmatprep.subr.mxu0 0.0
        %2351 = vmatpush1.msra.mxu0 0.0
        %2352 = vmatprep.subr.mxu0 0.0
        %2353 = vmatpush1.msra.mxu0 0.0
        %2354 = vmatprep.subr.mxu0 0.0
        %2355 = vmatpush1.msra.mxu0 0.0
        %2356 = vmatprep.subr.mxu0 0.0
        %2357 = vmatpush1.msra.mxu0 0.0
        %2358 = vmatprep.subr.mxu0 0.0
        %2359 = vmatpush1.msra.mxu0 0.0
        %2360 = vmatprep.subr.mxu0 0.0
        %2361 = vmatpush1.msra.mxu0 0.0
        %2362 = vmatprep.subr.mxu0 0.0
        %2363 = vmatpush1.msra.mxu0 0.0
        %2364 = vmatprep.subr.mxu0 0.0
        %2365 = vmatpush1.msra.mxu0 0.0
        %2366 = vmatprep.subr.mxu0 0.0
        %2367 = vmatpush1.msra.mxu0 0.0
        %2368 = vmatprep.subr.mxu0 0.0
        %2369 = vmatpush1.msra.mxu0 0.0
        %2370 = vmatprep.subr.mxu0 0.0
        %2371 = vmatpush1.msra.mxu0 0.0
        %2372 = vmatprep.subr.mxu0 0.0
        %2373 = vmatpush1.msra.mxu0 %v2224
        %2374 = vmatprep.subr.mxu0 0.0
        %2375 = vmatpush1.msra.mxu0 %v2223
        %2376 = vmatprep.subr.mxu0 0.0
        %2377 = vmatpush2.msra.mxu0 0.0
        %2378 = vmatprep.subr.mxu0 0.0
        %2379 = vmatpush2.msra.mxu0 0.0
        %2380 = vmatprep.subr.mxu0 0.0
        %2381 = vmatpush2.msra.mxu0 0.0
        %2382 = vmatprep.subr.mxu0 0.0
        %2383 = vmatpush2.msra.mxu0 0.0
        %2384 = vmatprep.subr.mxu0 0.0
        %2385 = vmatpush2.msra.mxu0 0.0
        %2386 = vmatprep.subr.mxu0 0.0
        %2387 = vmatpush2.msra.mxu0 0.0
        %2388 = vmatprep.subr.mxu0 0.0
        %2389 = vmatpush2.msra.mxu0 0.0
        %2390 = vmatprep.subr.mxu0 0.0
        %2391 = vmatpush2.msra.mxu0 0.0
        %2392 = vmatprep.subr.mxu0 0.0
        %2393 = vmatpush2.msra.mxu0 0.0
        %2394 = vmatprep.subr.mxu0 0.0
        %2395 = vmatpush2.msra.mxu0 0.0
        %2396 = vmatprep.subr.mxu0 0.0
        %2397 = vmatpush2.msra.mxu0 0.0
        %2398 = vmatprep.subr.mxu0 0.0
        %2399 = vmatpush2.msra.mxu0 0.0
        %2400 = vmatprep.subr.mxu0 0.0
        %2401 = vmatpush2.msra.mxu0 0.0
        %2402 = vmatprep.subr.mxu0 0.0
        %2403 = vmatpush2.msra.mxu0 0.0
        %2404 = vmatprep.subr.mxu0 0.0
        %2405 = vmatpush2.msra.mxu0 0.0
        %2406 = vmatprep.subr.mxu0 0.0
        %2407 = vmatpush2.msra.mxu0 0.0
        %2408 = vmatprep.mubr.f32.mxu0 0.0
        %2409 = vmatmul.mubr.f32.gmra.mxu0 %v2286
        %v2410 = vpop.f32.mrf.mxu0
        %v2411 = vadd.f32 0.0, %v2410
        %v2412 = vpop.f32.mrf.mxu0
        %2413 = vmatprep.mubr.f32.mxu0 0.0
        %2414 = vmatmul.mubr.f32.gmra.mxu0 %v2288
        %v2415 = vpop.f32.mrf.mxu0
        %v2416 = vadd.f32 0.0, %v2415
        %v2417 = vpop.f32.mrf.mxu0
        %2418 = vmatprep.mubr.f32.mxu0 0.0
        %2419 = vmatmul.mubr.f32.gmra.mxu0 %v2290
        %v2420 = vpop.f32.mrf.mxu0
        %v2421 = vadd.f32 0.0, %v2420
        %v2422 = vpop.f32.mrf.mxu0
        %2423 = vmatprep.mubr.f32.mxu0 0.0
        %2424 = vmatmul.mubr.f32.gmra.mxu0 %v2292
        %v2425 = vpop.f32.mrf.mxu0
        %v2426 = vadd.f32 0.0, %v2425
        %v2427 = vpop.f32.mrf.mxu0
        %2428 = vmatprep.mubr.f32.mxu0 0.0
        %2429 = vmatmul.mubr.f32.gmra.mxu0 %v2294
        %v2430 = vpop.f32.mrf.mxu0
        %v2431 = vadd.f32 0.0, %v2430
        %v2432 = vpop.f32.mrf.mxu0
        %2433 = vmatprep.mubr.f32.mxu0 0.0
        %2434 = vmatmul.mubr.f32.gmra.mxu0 %v2296
        %v2435 = vpop.f32.mrf.mxu0
        %v2436 = vadd.f32 0.0, %v2435
        %v2437 = vpop.f32.mrf.mxu0
        %2438 = vmatprep.mubr.f32.mxu0 0.0
        %2439 = vmatmul.mubr.f32.gmra.mxu0 %v2298
        %v2440 = vpop.f32.mrf.mxu0
        %v2441 = vadd.f32 0.0, %v2440
        %v2442 = vpop.f32.mrf.mxu0
        %2443 = vmatprep.mubr.f32.mxu0 0.0
        %2444 = vmatmul.mubr.f32.gmra.mxu0 %v2300
        %v2445 = vpop.f32.mrf.mxu0
        %v2446 = vadd.f32 0.0, %v2445
        %v2447 = vpop.f32.mrf.mxu0
        %2448 = vmatprep.mubr.f32.mxu0 0.0
        %2449 = vmatmul.mubr.f32.gmra.mxu0 %v2302
        %v2450 = vpop.f32.mrf.mxu0
        %v2451 = vadd.f32 0.0, %v2450
        %v2452 = vpop.f32.mrf.mxu0
        %2453 = vmatprep.mubr.f32.mxu0 0.0
        %2454 = vmatmul.mubr.f32.gmra.mxu0 %v2304
        %v2455 = vpop.f32.mrf.mxu0
        %v2456 = vadd.f32 0.0, %v2455
        %v2457 = vpop.f32.mrf.mxu0
        %2458 = vmatprep.mubr.f32.mxu0 0.0
        %2459 = vmatmul.mubr.f32.gmra.mxu0 %v2306
        %v2460 = vpop.f32.mrf.mxu0
        %v2461 = vadd.f32 0.0, %v2460
        %v2462 = vpop.f32.mrf.mxu0
        %2463 = vmatprep.mubr.f32.mxu0 0.0
        %2464 = vmatmul.mubr.f32.gmra.mxu0 %v2308
        %v2465 = vpop.f32.mrf.mxu0
        %v2466 = vadd.f32 0.0, %v2465
        %v2467 = vpop.f32.mrf.mxu0
        %2468 = vmatprep.mubr.f32.mxu0 0.0
        %2469 = vmatmul.mubr.f32.gmra.mxu0 %v2310
        %v2470 = vpop.f32.mrf.mxu0
        %v2471 = vadd.f32 0.0, %v2470
        %v2472 = vpop.f32.mrf.mxu0
        %2473 = vmatprep.mubr.f32.mxu0 0.0
        %2474 = vmatmul.mubr.f32.gmra.mxu0 %v2312
        %v2475 = vpop.f32.mrf.mxu0
        %v2476 = vadd.f32 0.0, %v2475
        %v2477 = vpop.f32.mrf.mxu0
        %2478 = vmatprep.mubr.f32.mxu0 0.0
        %2479 = vmatmul.mubr.f32.gmra.mxu0 %v2314
        %v2480 = vpop.f32.mrf.mxu0
        %v2481 = vadd.f32 0.0, %v2480
        %v2482 = vpop.f32.mrf.mxu0
        %2483 = vmatprep.mubr.f32.mxu0 0.0
        %2484 = vmatmul.mubr.f32.gmra.mxu0 %v2316
        %v2485 = vpop.f32.mrf.mxu0
        %v2486 = vadd.f32 0.0, %v2485
        %v2487 = vpop.f32.mrf.mxu0
        %2488 = vmatprep.mubr.f32.mxu0 0.0
        %2489 = vmatmul.mubr.f32.gmra.mxu0 %v2318
        %v2490 = vpop.f32.mrf.mxu0
        %v2491 = vadd.f32 0.0, %v2490
        %v2492 = vpop.f32.mrf.mxu0
        %2493 = vmatprep.mubr.f32.mxu0 0.0
        %2494 = vmatmul.mubr.f32.gmra.mxu0 %v2320
        %v2495 = vpop.f32.mrf.mxu0
        %v2496 = vadd.f32 0.0, %v2495
        %v2497 = vpop.f32.mrf.mxu0
        %2498 = vmatprep.mubr.f32.mxu0 0.0
        %2499 = vmatmul.mubr.f32.gmra.mxu0 %v2322
        %v2500 = vpop.f32.mrf.mxu0
        %v2501 = vadd.f32 0.0, %v2500
        %v2502 = vpop.f32.mrf.mxu0
        %2503 = vmatprep.mubr.f32.mxu0 0.0
        %2504 = vmatmul.mubr.f32.gmra.mxu0 %v2324
        %v2505 = vpop.f32.mrf.mxu0
        %v2506 = vadd.f32 0.0, %v2505
        %v2507 = vpop.f32.mrf.mxu0
        %2508 = vmatprep.mubr.f32.mxu0 0.0
        %2509 = vmatmul.mubr.f32.gmra.mxu0 %v2326
        %v2510 = vpop.f32.mrf.mxu0
        %v2511 = vadd.f32 0.0, %v2510
        %v2512 = vpop.f32.mrf.mxu0
        %2513 = vmatprep.mubr.f32.mxu0 0.0
        %2514 = vmatmul.mubr.f32.gmra.mxu0 %v2328
        %v2515 = vpop.f32.mrf.mxu0
        %v2516 = vadd.f32 0.0, %v2515
        %v2517 = vpop.f32.mrf.mxu0
        %2518 = vmatprep.mubr.f32.mxu0 0.0
        %2519 = vmatmul.mubr.f32.gmra.mxu0 %v2330
        %v2520 = vpop.f32.mrf.mxu0
        %v2521 = vadd.f32 0.0, %v2520
        %v2522 = vpop.f32.mrf.mxu0
        %2523 = vmatprep.mubr.f32.mxu0 0.0
        %2524 = vmatmul.mubr.f32.gmra.mxu0 %v2332
        %v2525 = vpop.f32.mrf.mxu0
        %v2526 = vadd.f32 0.0, %v2525
        %v2527 = vpop.f32.mrf.mxu0
        %2528 = vmatprep.mubr.f32.mxu0 0.0
        %2529 = vmatmul.mubr.f32.gmra.mxu0 %v2334
        %v2530 = vpop.f32.mrf.mxu0
        %v2531 = vadd.f32 0.0, %v2530
        %v2532 = vpop.f32.mrf.mxu0
        %2533 = vmatprep.mubr.f32.mxu0 0.0
        %2534 = vmatmul.mubr.f32.gmra.mxu0 %v2336
        %v2535 = vpop.f32.mrf.mxu0
        %v2536 = vadd.f32 0.0, %v2535
        %v2537 = vpop.f32.mrf.mxu0
        %2538 = vmatprep.mubr.f32.mxu0 0.0
        %2539 = vmatmul.mubr.f32.gmra.mxu0 %v2338
        %v2540 = vpop.f32.mrf.mxu0
        %v2541 = vadd.f32 0.0, %v2540
        %v2542 = vpop.f32.mrf.mxu0
        %2543 = vmatprep.mubr.f32.mxu0 0.0
        %2544 = vmatmul.mubr.f32.gmra.mxu0 %v2340
        %v2545 = vpop.f32.mrf.mxu0
        %v2546 = vadd.f32 0.0, %v2545
        %v2547 = vpop.f32.mrf.mxu0
        %2548 = vmatprep.mubr.f32.mxu0 0.0
        %2549 = vmatmul.mubr.f32.gmra.mxu0 %v2342
        %v2550 = vpop.f32.mrf.mxu0
        %v2551 = vadd.f32 0.0, %v2550
        %v2552 = vpop.f32.mrf.mxu0
        %2553 = vdwg.mxu0
        %v2554 = vadd.f32 %v2193, %v2411
        %v2555 = vadd.f32 %v2194, %v2416
        %v2556 = vadd.f32 %v2195, %v2421
        %v2557 = vadd.f32 %v2196, %v2426
        %v2558 = vadd.f32 %v2197, %v2431
        %v2559 = vadd.f32 %v2198, %v2436
        %v2560 = vadd.f32 %v2199, %v2441
        %v2561 = vadd.f32 %v2200, %v2446
        %v2562 = vadd.f32 %v2201, %v2451
        %v2563 = vadd.f32 %v2202, %v2456
        %v2564 = vadd.f32 %v2203, %v2461
        %v2565 = vadd.f32 %v2204, %v2466
        %v2566 = vadd.f32 %v2205, %v2471
        %v2567 = vadd.f32 %v2206, %v2476
        %v2568 = vadd.f32 %v2207, %v2481
        %v2569 = vadd.f32 %v2208, %v2486
        %v2570 = vadd.f32 %v2209, %v2491
        %v2571 = vadd.f32 %v2210, %v2496
        %v2572 = vadd.f32 %v2211, %v2501
        %v2573 = vadd.f32 %v2212, %v2506
        %v2574 = vadd.f32 %v2213, %v2511
        %v2575 = vadd.f32 %v2214, %v2516
        %v2576 = vadd.f32 %v2215, %v2521
        %v2577 = vadd.f32 %v2216, %v2526
        %v2578 = vadd.f32 %v2217, %v2531
        %v2579 = vadd.f32 %v2218, %v2536
        %v2580 = vadd.f32 %v2219, %v2541
        %v2581 = vadd.f32 %v2220, %v2546
        %v2582 = vadd.f32 %v2221, %v2551
        %s2583 = scalar_lea.vmem %s3, 80
        %v2584 = vld [vmem:[%s2583] sm:$0xff]
        %v2585 = vld [vmem:[%s2583 + $0x8] sm:$0xff]
        %v2587 = vrot.slane %v867, 2
        %v2588 = vsel %vm1509, %v1565, %v2587
        %v2589 = vrot.slane %v868, 2
        %v2590 = vsel %vm1509, %v2587, %v2589
        %v2591 = vsel %vm969, %v2588, 0
        %v2593 = vsel %vm969, %v2590, 0
        %v2595 = vsel %vm969, %v2589, 0
        %2597 = vmatprep.subr.mxu0 0.0
        %2598 = vmatpush1.msra.mxu0 0.0
        %2599 = vmatprep.subr.mxu0 0.0
        %2600 = vmatpush1.msra.mxu0 0.0
        %2601 = vmatprep.subr.mxu0 0.0
        %2602 = vmatpush1.msra.mxu0 0.0
        %2603 = vmatprep.subr.mxu0 0.0
        %2604 = vmatpush1.msra.mxu0 0.0
        %2605 = vmatprep.subr.mxu0 0.0
        %2606 = vmatpush1.msra.mxu0 0.0
        %2607 = vmatprep.subr.mxu0 0.0
        %2608 = vmatpush1.msra.mxu0 0.0
        %2609 = vmatprep.subr.mxu0 0.0
        %2610 = vmatpush1.msra.mxu0 0.0
        %2611 = vmatprep.subr.mxu0 0.0
        %2612 = vmatpush1.msra.mxu0 0.0
        %2613 = vmatprep.subr.mxu0 0.0
        %2614 = vmatpush1.msra.mxu0 0.0
        %2615 = vmatprep.subr.mxu0 0.0
        %2616 = vmatpush1.msra.mxu0 0.0
        %2617 = vmatprep.subr.mxu0 0.0
        %2618 = vmatpush1.msra.mxu0 0.0
        %2619 = vmatprep.subr.mxu0 0.0
        %2620 = vmatpush1.msra.mxu0 0.0
        %2621 = vmatprep.subr.mxu0 0.0
        %2622 = vmatpush1.msra.mxu0 0.0
        %2623 = vmatprep.subr.mxu0 0.0
        %2624 = vmatpush1.msra.mxu0 0.0
        %2625 = vmatprep.subr.mxu0 0.0
        %2626 = vmatpush1.msra.mxu0 %v2585
        %2627 = vmatprep.subr.mxu0 0.0
        %2628 = vmatpush1.msra.mxu0 %v2584
        %2629 = vmatprep.subr.mxu0 0.0
        %2630 = vmatpush2.msra.mxu0 0.0
        %2631 = vmatprep.subr.mxu0 0.0
        %2632 = vmatpush2.msra.mxu0 0.0
        %2633 = vmatprep.subr.mxu0 0.0
        %2634 = vmatpush2.msra.mxu0 0.0
        %2635 = vmatprep.subr.mxu0 0.0
        %2636 = vmatpush2.msra.mxu0 0.0
        %2637 = vmatprep.subr.mxu0 0.0
        %2638 = vmatpush2.msra.mxu0 0.0
        %2639 = vmatprep.subr.mxu0 0.0
        %2640 = vmatpush2.msra.mxu0 0.0
        %2641 = vmatprep.subr.mxu0 0.0
        %2642 = vmatpush2.msra.mxu0 0.0
        %2643 = vmatprep.subr.mxu0 0.0
        %2644 = vmatpush2.msra.mxu0 0.0
        %2645 = vmatprep.subr.mxu0 0.0
        %2646 = vmatpush2.msra.mxu0 0.0
        %2647 = vmatprep.subr.mxu0 0.0
        %2648 = vmatpush2.msra.mxu0 0.0
        %2649 = vmatprep.subr.mxu0 0.0
        %2650 = vmatpush2.msra.mxu0 0.0
        %2651 = vmatprep.subr.mxu0 0.0
        %2652 = vmatpush2.msra.mxu0 0.0
        %2653 = vmatprep.subr.mxu0 0.0
        %2654 = vmatpush2.msra.mxu0 0.0
        %2655 = vmatprep.subr.mxu0 0.0
        %2656 = vmatpush2.msra.mxu0 0.0
        %2657 = vmatprep.subr.mxu0 0.0
        %2658 = vmatpush2.msra.mxu0 0.0
        %2659 = vmatprep.subr.mxu0 0.0
        %2660 = vmatpush2.msra.mxu0 0.0
        %2661 = vmatprep.mubr.f32.mxu0 0.0
        %2662 = vmatmul.mubr.f32.gmra.mxu0 %v1571
        %v2663 = vpop.f32.mrf.mxu0
        %v2664 = vadd.f32 0.0, %v2663
        %v2665 = vpop.f32.mrf.mxu0
        %2666 = vmatprep.mubr.f32.mxu0 0.0
        %2667 = vmatmul.mubr.f32.gmra.mxu0 %v1573
        %v2668 = vpop.f32.mrf.mxu0
        %v2669 = vadd.f32 0.0, %v2668
        %v2670 = vpop.f32.mrf.mxu0
        %2671 = vmatprep.mubr.f32.mxu0 0.0
        %2672 = vmatmul.mubr.f32.gmra.mxu0 %v1575
        %v2673 = vpop.f32.mrf.mxu0
        %v2674 = vadd.f32 0.0, %v2673
        %v2675 = vpop.f32.mrf.mxu0
        %2676 = vmatprep.mubr.f32.mxu0 0.0
        %2677 = vmatmul.mubr.f32.gmra.mxu0 %v1577
        %v2678 = vpop.f32.mrf.mxu0
        %v2679 = vadd.f32 0.0, %v2678
        %v2680 = vpop.f32.mrf.mxu0
        %2681 = vmatprep.mubr.f32.mxu0 0.0
        %2682 = vmatmul.mubr.f32.gmra.mxu0 %v1579
        %v2683 = vpop.f32.mrf.mxu0
        %v2684 = vadd.f32 0.0, %v2683
        %v2685 = vpop.f32.mrf.mxu0
        %2686 = vmatprep.mubr.f32.mxu0 0.0
        %2687 = vmatmul.mubr.f32.gmra.mxu0 %v1581
        %v2688 = vpop.f32.mrf.mxu0
        %v2689 = vadd.f32 0.0, %v2688
        %v2690 = vpop.f32.mrf.mxu0
        %2691 = vmatprep.mubr.f32.mxu0 0.0
        %2692 = vmatmul.mubr.f32.gmra.mxu0 %v1583
        %v2693 = vpop.f32.mrf.mxu0
        %v2694 = vadd.f32 0.0, %v2693
        %v2695 = vpop.f32.mrf.mxu0
        %2696 = vmatprep.mubr.f32.mxu0 0.0
        %2697 = vmatmul.mubr.f32.gmra.mxu0 %v1585
        %v2698 = vpop.f32.mrf.mxu0
        %v2699 = vadd.f32 0.0, %v2698
        %v2700 = vpop.f32.mrf.mxu0
        %2701 = vmatprep.mubr.f32.mxu0 0.0
        %2702 = vmatmul.mubr.f32.gmra.mxu0 %v1587
        %v2703 = vpop.f32.mrf.mxu0
        %v2704 = vadd.f32 0.0, %v2703
        %v2705 = vpop.f32.mrf.mxu0
        %2706 = vmatprep.mubr.f32.mxu0 0.0
        %2707 = vmatmul.mubr.f32.gmra.mxu0 %v1589
        %v2708 = vpop.f32.mrf.mxu0
        %v2709 = vadd.f32 0.0, %v2708
        %v2710 = vpop.f32.mrf.mxu0
        %2711 = vmatprep.mubr.f32.mxu0 0.0
        %2712 = vmatmul.mubr.f32.gmra.mxu0 %v1591
        %v2713 = vpop.f32.mrf.mxu0
        %v2714 = vadd.f32 0.0, %v2713
        %v2715 = vpop.f32.mrf.mxu0
        %2716 = vmatprep.mubr.f32.mxu0 0.0
        %2717 = vmatmul.mubr.f32.gmra.mxu0 %v1593
        %v2718 = vpop.f32.mrf.mxu0
        %v2719 = vadd.f32 0.0, %v2718
        %v2720 = vpop.f32.mrf.mxu0
        %2721 = vmatprep.mubr.f32.mxu0 0.0
        %2722 = vmatmul.mubr.f32.gmra.mxu0 %v1595
        %v2723 = vpop.f32.mrf.mxu0
        %v2724 = vadd.f32 0.0, %v2723
        %v2725 = vpop.f32.mrf.mxu0
        %2726 = vmatprep.mubr.f32.mxu0 0.0
        %2727 = vmatmul.mubr.f32.gmra.mxu0 %v1597
        %v2728 = vpop.f32.mrf.mxu0
        %v2729 = vadd.f32 0.0, %v2728
        %v2730 = vpop.f32.mrf.mxu0
        %2731 = vmatprep.mubr.f32.mxu0 0.0
        %2732 = vmatmul.mubr.f32.gmra.mxu0 %v1599
        %v2733 = vpop.f32.mrf.mxu0
        %v2734 = vadd.f32 0.0, %v2733
        %v2735 = vpop.f32.mrf.mxu0
        %2736 = vmatprep.mubr.f32.mxu0 0.0
        %2737 = vmatmul.mubr.f32.gmra.mxu0 %v1601
        %v2738 = vpop.f32.mrf.mxu0
        %v2739 = vadd.f32 0.0, %v2738
        %v2740 = vpop.f32.mrf.mxu0
        %2741 = vmatprep.mubr.f32.mxu0 0.0
        %2742 = vmatmul.mubr.f32.gmra.mxu0 %v1603
        %v2743 = vpop.f32.mrf.mxu0
        %v2744 = vadd.f32 0.0, %v2743
        %v2745 = vpop.f32.mrf.mxu0
        %2746 = vmatprep.mubr.f32.mxu0 0.0
        %2747 = vmatmul.mubr.f32.gmra.mxu0 %v1605
        %v2748 = vpop.f32.mrf.mxu0
        %v2749 = vadd.f32 0.0, %v2748
        %v2750 = vpop.f32.mrf.mxu0
        %2751 = vmatprep.mubr.f32.mxu0 0.0
        %2752 = vmatmul.mubr.f32.gmra.mxu0 %v1607
        %v2753 = vpop.f32.mrf.mxu0
        %v2754 = vadd.f32 0.0, %v2753
        %v2755 = vpop.f32.mrf.mxu0
        %2756 = vmatprep.mubr.f32.mxu0 0.0
        %2757 = vmatmul.mubr.f32.gmra.mxu0 %v1609
        %v2758 = vpop.f32.mrf.mxu0
        %v2759 = vadd.f32 0.0, %v2758
        %v2760 = vpop.f32.mrf.mxu0
        %2761 = vmatprep.mubr.f32.mxu0 0.0
        %2762 = vmatmul.mubr.f32.gmra.mxu0 %v1611
        %v2763 = vpop.f32.mrf.mxu0
        %v2764 = vadd.f32 0.0, %v2763
        %v2765 = vpop.f32.mrf.mxu0
        %2766 = vmatprep.mubr.f32.mxu0 0.0
        %2767 = vmatmul.mubr.f32.gmra.mxu0 %v1613
        %v2768 = vpop.f32.mrf.mxu0
        %v2769 = vadd.f32 0.0, %v2768
        %v2770 = vpop.f32.mrf.mxu0
        %2771 = vmatprep.mubr.f32.mxu0 0.0
        %2772 = vmatmul.mubr.f32.gmra.mxu0 %v1615
        %v2773 = vpop.f32.mrf.mxu0
        %v2774 = vadd.f32 0.0, %v2773
        %v2775 = vpop.f32.mrf.mxu0
        %2776 = vmatprep.mubr.f32.mxu0 0.0
        %2777 = vmatmul.mubr.f32.gmra.mxu0 %v1617
        %v2778 = vpop.f32.mrf.mxu0
        %v2779 = vadd.f32 0.0, %v2778
        %v2780 = vpop.f32.mrf.mxu0
        %2781 = vmatprep.mubr.f32.mxu0 0.0
        %2782 = vmatmul.mubr.f32.gmra.mxu0 %v1619
        %v2783 = vpop.f32.mrf.mxu0
        %v2784 = vadd.f32 0.0, %v2783
        %v2785 = vpop.f32.mrf.mxu0
        %2786 = vmatprep.mubr.f32.mxu0 0.0
        %2787 = vmatmul.mubr.f32.gmra.mxu0 %v1621
        %v2788 = vpop.f32.mrf.mxu0
        %v2789 = vadd.f32 0.0, %v2788
        %v2790 = vpop.f32.mrf.mxu0
        %2791 = vmatprep.mubr.f32.mxu0 0.0
        %2792 = vmatmul.mubr.f32.gmra.mxu0 %v2591
        %v2793 = vpop.f32.mrf.mxu0
        %v2794 = vadd.f32 0.0, %v2793
        %v2795 = vpop.f32.mrf.mxu0
        %2796 = vmatprep.mubr.f32.mxu0 0.0
        %2797 = vmatmul.mubr.f32.gmra.mxu0 %v2593
        %v2798 = vpop.f32.mrf.mxu0
        %v2799 = vadd.f32 0.0, %v2798
        %v2800 = vpop.f32.mrf.mxu0
        %2801 = vmatprep.mubr.f32.mxu0 0.0
        %2802 = vmatmul.mubr.f32.gmra.mxu0 %v2595
        %v2803 = vpop.f32.mrf.mxu0
        %v2804 = vadd.f32 0.0, %v2803
        %v2805 = vpop.f32.mrf.mxu0
        %2806 = vdwg.mxu0
        %v2807 = vadd.f32 %v2554, %v2664
        %v2808 = vadd.f32 %v2555, %v2669
        %v2809 = vadd.f32 %v2556, %v2674
        %v2810 = vadd.f32 %v2557, %v2679
        %v2811 = vadd.f32 %v2558, %v2684
        %v2812 = vadd.f32 %v2559, %v2689
        %v2813 = vadd.f32 %v2560, %v2694
        %v2814 = vadd.f32 %v2561, %v2699
        %v2815 = vadd.f32 %v2562, %v2704
        %v2816 = vadd.f32 %v2563, %v2709
        %v2817 = vadd.f32 %v2564, %v2714
        %v2818 = vadd.f32 %v2565, %v2719
        %v2819 = vadd.f32 %v2566, %v2724
        %v2820 = vadd.f32 %v2567, %v2729
        %v2821 = vadd.f32 %v2568, %v2734
        %v2822 = vadd.f32 %v2569, %v2739
        %v2823 = vadd.f32 %v2570, %v2744
        %v2824 = vadd.f32 %v2571, %v2749
        %v2825 = vadd.f32 %v2572, %v2754
        %v2826 = vadd.f32 %v2573, %v2759
        %v2827 = vadd.f32 %v2574, %v2764
        %v2828 = vadd.f32 %v2575, %v2769
        %v2829 = vadd.f32 %v2576, %v2774
        %v2830 = vadd.f32 %v2577, %v2779
        %v2831 = vadd.f32 %v2578, %v2784
        %v2832 = vadd.f32 %v2579, %v2789
        %v2833 = vadd.f32 %v2580, %v2794
        %v2834 = vadd.f32 %v2581, %v2799
        %v2835 = vadd.f32 %v2582, %v2804
        %s2836 = scalar_lea.vmem %s3, 96
        %v2837 = vld [vmem:[%s2836] sm:$0xff]
        %v2838 = vld [vmem:[%s2836 + $0x8] sm:$0xff]
        %v2839 = vrot.slane %v867, 3
        %v2840 = vsel %vm1867, %v1923, %v2839
        %v2841 = vrot.slane %v868, 3
        %v2842 = vsel %vm1867, %v2839, %v2841
        %v2843 = vsel %vm969, %v2840, 0
        %v2845 = vsel %vm969, %v2842, 0
        %v2847 = vsel %vm969, %v2841, 0
        %2849 = vmatprep.subr.mxu0 0.0
        %2850 = vmatpush1.msra.mxu0 0.0
        %2851 = vmatprep.subr.mxu0 0.0
        %2852 = vmatpush1.msra.mxu0 0.0
        %2853 = vmatprep.subr.mxu0 0.0
        %2854 = vmatpush1.msra.mxu0 0.0
        %2855 = vmatprep.subr.mxu0 0.0
        %2856 = vmatpush1.msra.mxu0 0.0
        %2857 = vmatprep.subr.mxu0 0.0
        %2858 = vmatpush1.msra.mxu0 0.0
        %2859 = vmatprep.subr.mxu0 0.0
        %2860 = vmatpush1.msra.mxu0 0.0
        %2861 = vmatprep.subr.mxu0 0.0
        %2862 = vmatpush1.msra.mxu0 0.0
        %2863 = vmatprep.subr.mxu0 0.0
        %2864 = vmatpush1.msra.mxu0 0.0
        %2865 = vmatprep.subr.mxu0 0.0
        %2866 = vmatpush1.msra.mxu0 0.0
        %2867 = vmatprep.subr.mxu0 0.0
        %2868 = vmatpush1.msra.mxu0 0.0
        %2869 = vmatprep.subr.mxu0 0.0
        %2870 = vmatpush1.msra.mxu0 0.0
        %2871 = vmatprep.subr.mxu0 0.0
        %2872 = vmatpush1.msra.mxu0 0.0
        %2873 = vmatprep.subr.mxu0 0.0
        %2874 = vmatpush1.msra.mxu0 0.0
        %2875 = vmatprep.subr.mxu0 0.0
        %2876 = vmatpush1.msra.mxu0 0.0
        %2877 = vmatprep.subr.mxu0 0.0
        %2878 = vmatpush1.msra.mxu0 %v2838
        %2879 = vmatprep.subr.mxu0 0.0
        %2880 = vmatpush1.msra.mxu0 %v2837
        %2881 = vmatprep.subr.mxu0 0.0
        %2882 = vmatpush2.msra.mxu0 0.0
        %2883 = vmatprep.subr.mxu0 0.0
        %2884 = vmatpush2.msra.mxu0 0.0
        %2885 = vmatprep.subr.mxu0 0.0
        %2886 = vmatpush2.msra.mxu0 0.0
        %2887 = vmatprep.subr.mxu0 0.0
        %2888 = vmatpush2.msra.mxu0 0.0
        %2889 = vmatprep.subr.mxu0 0.0
        %2890 = vmatpush2.msra.mxu0 0.0
        %2891 = vmatprep.subr.mxu0 0.0
        %2892 = vmatpush2.msra.mxu0 0.0
        %2893 = vmatprep.subr.mxu0 0.0
        %2894 = vmatpush2.msra.mxu0 0.0
        %2895 = vmatprep.subr.mxu0 0.0
        %2896 = vmatpush2.msra.mxu0 0.0
        %2897 = vmatprep.subr.mxu0 0.0
        %2898 = vmatpush2.msra.mxu0 0.0
        %2899 = vmatprep.subr.mxu0 0.0
        %2900 = vmatpush2.msra.mxu0 0.0
        %2901 = vmatprep.subr.mxu0 0.0
        %2902 = vmatpush2.msra.mxu0 0.0
        %2903 = vmatprep.subr.mxu0 0.0
        %2904 = vmatpush2.msra.mxu0 0.0
        %2905 = vmatprep.subr.mxu0 0.0
        %2906 = vmatpush2.msra.mxu0 0.0
        %2907 = vmatprep.subr.mxu0 0.0
        %2908 = vmatpush2.msra.mxu0 0.0
        %2909 = vmatprep.subr.mxu0 0.0
        %2910 = vmatpush2.msra.mxu0 0.0
        %2911 = vmatprep.subr.mxu0 0.0
        %2912 = vmatpush2.msra.mxu0 0.0
        %2913 = vmatprep.mubr.f32.mxu0 0.0
        %2914 = vmatmul.mubr.f32.gmra.mxu0 %v1929
        %v2915 = vpop.f32.mrf.mxu0
        %v2916 = vadd.f32 0.0, %v2915
        %v2917 = vpop.f32.mrf.mxu0
        %2918 = vmatprep.mubr.f32.mxu0 0.0
        %2919 = vmatmul.mubr.f32.gmra.mxu0 %v1931
        %v2920 = vpop.f32.mrf.mxu0
        %v2921 = vadd.f32 0.0, %v2920
        %v2922 = vpop.f32.mrf.mxu0
        %2923 = vmatprep.mubr.f32.mxu0 0.0
        %2924 = vmatmul.mubr.f32.gmra.mxu0 %v1933
        %v2925 = vpop.f32.mrf.mxu0
        %v2926 = vadd.f32 0.0, %v2925
        %v2927 = vpop.f32.mrf.mxu0
        %2928 = vmatprep.mubr.f32.mxu0 0.0
        %2929 = vmatmul.mubr.f32.gmra.mxu0 %v1935
        %v2930 = vpop.f32.mrf.mxu0
        %v2931 = vadd.f32 0.0, %v2930
        %v2932 = vpop.f32.mrf.mxu0
        %2933 = vmatprep.mubr.f32.mxu0 0.0
        %2934 = vmatmul.mubr.f32.gmra.mxu0 %v1937
        %v2935 = vpop.f32.mrf.mxu0
        %v2936 = vadd.f32 0.0, %v2935
        %v2937 = vpop.f32.mrf.mxu0
        %2938 = vmatprep.mubr.f32.mxu0 0.0
        %2939 = vmatmul.mubr.f32.gmra.mxu0 %v1939
        %v2940 = vpop.f32.mrf.mxu0
        %v2941 = vadd.f32 0.0, %v2940
        %v2942 = vpop.f32.mrf.mxu0
        %2943 = vmatprep.mubr.f32.mxu0 0.0
        %2944 = vmatmul.mubr.f32.gmra.mxu0 %v1941
        %v2945 = vpop.f32.mrf.mxu0
        %v2946 = vadd.f32 0.0, %v2945
        %v2947 = vpop.f32.mrf.mxu0
        %2948 = vmatprep.mubr.f32.mxu0 0.0
        %2949 = vmatmul.mubr.f32.gmra.mxu0 %v1943
        %v2950 = vpop.f32.mrf.mxu0
        %v2951 = vadd.f32 0.0, %v2950
        %v2952 = vpop.f32.mrf.mxu0
        %2953 = vmatprep.mubr.f32.mxu0 0.0
        %2954 = vmatmul.mubr.f32.gmra.mxu0 %v1945
        %v2955 = vpop.f32.mrf.mxu0
        %v2956 = vadd.f32 0.0, %v2955
        %v2957 = vpop.f32.mrf.mxu0
        %2958 = vmatprep.mubr.f32.mxu0 0.0
        %2959 = vmatmul.mubr.f32.gmra.mxu0 %v1947
        %v2960 = vpop.f32.mrf.mxu0
        %v2961 = vadd.f32 0.0, %v2960
        %v2962 = vpop.f32.mrf.mxu0
        %2963 = vmatprep.mubr.f32.mxu0 0.0
        %2964 = vmatmul.mubr.f32.gmra.mxu0 %v1949
        %v2965 = vpop.f32.mrf.mxu0
        %v2966 = vadd.f32 0.0, %v2965
        %v2967 = vpop.f32.mrf.mxu0
        %2968 = vmatprep.mubr.f32.mxu0 0.0
        %2969 = vmatmul.mubr.f32.gmra.mxu0 %v1951
        %v2970 = vpop.f32.mrf.mxu0
        %v2971 = vadd.f32 0.0, %v2970
        %v2972 = vpop.f32.mrf.mxu0
        %2973 = vmatprep.mubr.f32.mxu0 0.0
        %2974 = vmatmul.mubr.f32.gmra.mxu0 %v1953
        %v2975 = vpop.f32.mrf.mxu0
        %v2976 = vadd.f32 0.0, %v2975
        %v2977 = vpop.f32.mrf.mxu0
        %2978 = vmatprep.mubr.f32.mxu0 0.0
        %2979 = vmatmul.mubr.f32.gmra.mxu0 %v1955
        %v2980 = vpop.f32.mrf.mxu0
        %v2981 = vadd.f32 0.0, %v2980
        %v2982 = vpop.f32.mrf.mxu0
        %2983 = vmatprep.mubr.f32.mxu0 0.0
        %2984 = vmatmul.mubr.f32.gmra.mxu0 %v1957
        %v2985 = vpop.f32.mrf.mxu0
        %v2986 = vadd.f32 0.0, %v2985
        %v2987 = vpop.f32.mrf.mxu0
        %2988 = vmatprep.mubr.f32.mxu0 0.0
        %2989 = vmatmul.mubr.f32.gmra.mxu0 %v1959
        %v2990 = vpop.f32.mrf.mxu0
        %v2991 = vadd.f32 0.0, %v2990
        %v2992 = vpop.f32.mrf.mxu0
        %2993 = vmatprep.mubr.f32.mxu0 0.0
        %2994 = vmatmul.mubr.f32.gmra.mxu0 %v1961
        %v2995 = vpop.f32.mrf.mxu0
        %v2996 = vadd.f32 0.0, %v2995
        %v2997 = vpop.f32.mrf.mxu0
        %2998 = vmatprep.mubr.f32.mxu0 0.0
        %2999 = vmatmul.mubr.f32.gmra.mxu0 %v1963
        %v3000 = vpop.f32.mrf.mxu0
        %v3001 = vadd.f32 0.0, %v3000
        %v3002 = vpop.f32.mrf.mxu0
        %3003 = vmatprep.mubr.f32.mxu0 0.0
        %3004 = vmatmul.mubr.f32.gmra.mxu0 %v1965
        %v3005 = vpop.f32.mrf.mxu0
        %v3006 = vadd.f32 0.0, %v3005
        %v3007 = vpop.f32.mrf.mxu0
        %3008 = vmatprep.mubr.f32.mxu0 0.0
        %3009 = vmatmul.mubr.f32.gmra.mxu0 %v1967
        %v3010 = vpop.f32.mrf.mxu0
        %v3011 = vadd.f32 0.0, %v3010
        %v3012 = vpop.f32.mrf.mxu0
        %3013 = vmatprep.mubr.f32.mxu0 0.0
        %3014 = vmatmul.mubr.f32.gmra.mxu0 %v1969
        %v3015 = vpop.f32.mrf.mxu0
        %v3016 = vadd.f32 0.0, %v3015
        %v3017 = vpop.f32.mrf.mxu0
        %3018 = vmatprep.mubr.f32.mxu0 0.0
        %3019 = vmatmul.mubr.f32.gmra.mxu0 %v1971
        %v3020 = vpop.f32.mrf.mxu0
        %v3021 = vadd.f32 0.0, %v3020
        %v3022 = vpop.f32.mrf.mxu0
        %3023 = vmatprep.mubr.f32.mxu0 0.0
        %3024 = vmatmul.mubr.f32.gmra.mxu0 %v1973
        %v3025 = vpop.f32.mrf.mxu0
        %v3026 = vadd.f32 0.0, %v3025
        %v3027 = vpop.f32.mrf.mxu0
        %3028 = vmatprep.mubr.f32.mxu0 0.0
        %3029 = vmatmul.mubr.f32.gmra.mxu0 %v1975
        %v3030 = vpop.f32.mrf.mxu0
        %v3031 = vadd.f32 0.0, %v3030
        %v3032 = vpop.f32.mrf.mxu0
        %3033 = vmatprep.mubr.f32.mxu0 0.0
        %3034 = vmatmul.mubr.f32.gmra.mxu0 %v1977
        %v3035 = vpop.f32.mrf.mxu0
        %v3036 = vadd.f32 0.0, %v3035
        %v3037 = vpop.f32.mrf.mxu0
        %3038 = vmatprep.mubr.f32.mxu0 0.0
        %3039 = vmatmul.mubr.f32.gmra.mxu0 %v1979
        %v3040 = vpop.f32.mrf.mxu0
        %v3041 = vadd.f32 0.0, %v3040
        %v3042 = vpop.f32.mrf.mxu0
        %3043 = vmatprep.mubr.f32.mxu0 0.0
        %3044 = vmatmul.mubr.f32.gmra.mxu0 %v2843
        %v3045 = vpop.f32.mrf.mxu0
        %v3046 = vadd.f32 0.0, %v3045
        %v3047 = vpop.f32.mrf.mxu0
        %3048 = vmatprep.mubr.f32.mxu0 0.0
        %3049 = vmatmul.mubr.f32.gmra.mxu0 %v2845
        %v3050 = vpop.f32.mrf.mxu0
        %v3051 = vadd.f32 0.0, %v3050
        %v3052 = vpop.f32.mrf.mxu0
        %3053 = vmatprep.mubr.f32.mxu0 0.0
        %3054 = vmatmul.mubr.f32.gmra.mxu0 %v2847
        %v3055 = vpop.f32.mrf.mxu0
        %v3056 = vadd.f32 0.0, %v3055
        %v3057 = vpop.f32.mrf.mxu0
        %3058 = vdwg.mxu0
        %v3059 = vadd.f32 %v2807, %v2916
        %v3060 = vadd.f32 %v2808, %v2921
        %v3061 = vadd.f32 %v2809, %v2926
        %v3062 = vadd.f32 %v2810, %v2931
        %v3063 = vadd.f32 %v2811, %v2936
        %v3064 = vadd.f32 %v2812, %v2941
        %v3065 = vadd.f32 %v2813, %v2946
        %v3066 = vadd.f32 %v2814, %v2951
        %v3067 = vadd.f32 %v2815, %v2956
        %v3068 = vadd.f32 %v2816, %v2961
        %v3069 = vadd.f32 %v2817, %v2966
        %v3070 = vadd.f32 %v2818, %v2971
        %v3071 = vadd.f32 %v2819, %v2976
        %v3072 = vadd.f32 %v2820, %v2981
        %v3073 = vadd.f32 %v2821, %v2986
        %v3074 = vadd.f32 %v2822, %v2991
        %v3075 = vadd.f32 %v2823, %v2996
        %v3076 = vadd.f32 %v2824, %v3001
        %v3077 = vadd.f32 %v2825, %v3006
        %v3078 = vadd.f32 %v2826, %v3011
        %v3079 = vadd.f32 %v2827, %v3016
        %v3080 = vadd.f32 %v2828, %v3021
        %v3081 = vadd.f32 %v2829, %v3026
        %v3082 = vadd.f32 %v2830, %v3031
        %v3083 = vadd.f32 %v2831, %v3036
        %v3084 = vadd.f32 %v2832, %v3041
        %v3085 = vadd.f32 %v2833, %v3046
        %v3086 = vadd.f32 %v2834, %v3051
        %v3087 = vadd.f32 %v2835, %v3056
        %s3088 = scalar_lea.vmem %s3, 112
        %v3089 = vld [vmem:[%s3088] sm:$0xff]
        %v3090 = vld [vmem:[%s3088 + $0x8] sm:$0xff]
        %v3092 = vrot.slane %v868, 4
        %v3093 = vsel %vm2226, %v2284, %v3092
        %v3094 = vrot.slane %v869, 4
        %v3095 = vsel %vm2226, %v3092, %v3094
        %v3096 = vsel %vm969, %v3093, 0
        %v3098 = vsel %vm969, %v3095, 0
        %3100 = vmatprep.subr.mxu0 0.0
        %3101 = vmatpush1.msra.mxu0 0.0
        %3102 = vmatprep.subr.mxu0 0.0
        %3103 = vmatpush1.msra.mxu0 0.0
        %3104 = vmatprep.subr.mxu0 0.0
        %3105 = vmatpush1.msra.mxu0 0.0
        %3106 = vmatprep.subr.mxu0 0.0
        %3107 = vmatpush1.msra.mxu0 0.0
        %3108 = vmatprep.subr.mxu0 0.0
        %3109 = vmatpush1.msra.mxu0 0.0
        %3110 = vmatprep.subr.mxu0 0.0
        %3111 = vmatpush1.msra.mxu0 0.0
        %3112 = vmatprep.subr.mxu0 0.0
        %3113 = vmatpush1.msra.mxu0 0.0
        %3114 = vmatprep.subr.mxu0 0.0
        %3115 = vmatpush1.msra.mxu0 0.0
        %3116 = vmatprep.subr.mxu0 0.0
        %3117 = vmatpush1.msra.mxu0 0.0
        %3118 = vmatprep.subr.mxu0 0.0
        %3119 = vmatpush1.msra.mxu0 0.0
        %3120 = vmatprep.subr.mxu0 0.0
        %3121 = vmatpush1.msra.mxu0 0.0
        %3122 = vmatprep.subr.mxu0 0.0
        %3123 = vmatpush1.msra.mxu0 0.0
        %3124 = vmatprep.subr.mxu0 0.0
        %3125 = vmatpush1.msra.mxu0 0.0
        %3126 = vmatprep.subr.mxu0 0.0
        %3127 = vmatpush1.msra.mxu0 0.0
        %3128 = vmatprep.subr.mxu0 0.0
        %3129 = vmatpush1.msra.mxu0 %v3090
        %3130 = vmatprep.subr.mxu0 0.0
        %3131 = vmatpush1.msra.mxu0 %v3089
        %3132 = vmatprep.subr.mxu0 0.0
        %3133 = vmatpush2.msra.mxu0 0.0
        %3134 = vmatprep.subr.mxu0 0.0
        %3135 = vmatpush2.msra.mxu0 0.0
        %3136 = vmatprep.subr.mxu0 0.0
        %3137 = vmatpush2.msra.mxu0 0.0
        %3138 = vmatprep.subr.mxu0 0.0
        %3139 = vmatpush2.msra.mxu0 0.0
        %3140 = vmatprep.subr.mxu0 0.0
        %3141 = vmatpush2.msra.mxu0 0.0
        %3142 = vmatprep.subr.mxu0 0.0
        %3143 = vmatpush2.msra.mxu0 0.0
        %3144 = vmatprep.subr.mxu0 0.0
        %3145 = vmatpush2.msra.mxu0 0.0
        %3146 = vmatprep.subr.mxu0 0.0
        %3147 = vmatpush2.msra.mxu0 0.0
        %3148 = vmatprep.subr.mxu0 0.0
        %3149 = vmatpush2.msra.mxu0 0.0
        %3150 = vmatprep.subr.mxu0 0.0
        %3151 = vmatpush2.msra.mxu0 0.0
        %3152 = vmatprep.subr.mxu0 0.0
        %3153 = vmatpush2.msra.mxu0 0.0
        %3154 = vmatprep.subr.mxu0 0.0
        %3155 = vmatpush2.msra.mxu0 0.0
        %3156 = vmatprep.subr.mxu0 0.0
        %3157 = vmatpush2.msra.mxu0 0.0
        %3158 = vmatprep.subr.mxu0 0.0
        %3159 = vmatpush2.msra.mxu0 0.0
        %3160 = vmatprep.subr.mxu0 0.0
        %3161 = vmatpush2.msra.mxu0 0.0
        %3162 = vmatprep.subr.mxu0 0.0
        %3163 = vmatpush2.msra.mxu0 0.0
        %3164 = vmatprep.mubr.f32.mxu0 0.0
        %3165 = vmatmul.mubr.f32.gmra.mxu0 %v2290
        %v3166 = vpop.f32.mrf.mxu0
        %v3167 = vadd.f32 0.0, %v3166
        %v3168 = vpop.f32.mrf.mxu0
        %3169 = vmatprep.mubr.f32.mxu0 0.0
        %3170 = vmatmul.mubr.f32.gmra.mxu0 %v2292
        %v3171 = vpop.f32.mrf.mxu0
        %v3172 = vadd.f32 0.0, %v3171
        %v3173 = vpop.f32.mrf.mxu0
        %3174 = vmatprep.mubr.f32.mxu0 0.0
        %3175 = vmatmul.mubr.f32.gmra.mxu0 %v2294
        %v3176 = vpop.f32.mrf.mxu0
        %v3177 = vadd.f32 0.0, %v3176
        %v3178 = vpop.f32.mrf.mxu0
        %3179 = vmatprep.mubr.f32.mxu0 0.0
        %3180 = vmatmul.mubr.f32.gmra.mxu0 %v2296
        %v3181 = vpop.f32.mrf.mxu0
        %v3182 = vadd.f32 0.0, %v3181
        %v3183 = vpop.f32.mrf.mxu0
        %3184 = vmatprep.mubr.f32.mxu0 0.0
        %3185 = vmatmul.mubr.f32.gmra.mxu0 %v2298
        %v3186 = vpop.f32.mrf.mxu0
        %v3187 = vadd.f32 0.0, %v3186
        %v3188 = vpop.f32.mrf.mxu0
        %3189 = vmatprep.mubr.f32.mxu0 0.0
        %3190 = vmatmul.mubr.f32.gmra.mxu0 %v2300
        %v3191 = vpop.f32.mrf.mxu0
        %v3192 = vadd.f32 0.0, %v3191
        %v3193 = vpop.f32.mrf.mxu0
        %3194 = vmatprep.mubr.f32.mxu0 0.0
        %3195 = vmatmul.mubr.f32.gmra.mxu0 %v2302
        %v3196 = vpop.f32.mrf.mxu0
        %v3197 = vadd.f32 0.0, %v3196
        %v3198 = vpop.f32.mrf.mxu0
        %3199 = vmatprep.mubr.f32.mxu0 0.0
        %3200 = vmatmul.mubr.f32.gmra.mxu0 %v2304
        %v3201 = vpop.f32.mrf.mxu0
        %v3202 = vadd.f32 0.0, %v3201
        %v3203 = vpop.f32.mrf.mxu0
        %3204 = vmatprep.mubr.f32.mxu0 0.0
        %3205 = vmatmul.mubr.f32.gmra.mxu0 %v2306
        %v3206 = vpop.f32.mrf.mxu0
        %v3207 = vadd.f32 0.0, %v3206
        %v3208 = vpop.f32.mrf.mxu0
        %3209 = vmatprep.mubr.f32.mxu0 0.0
        %3210 = vmatmul.mubr.f32.gmra.mxu0 %v2308
        %v3211 = vpop.f32.mrf.mxu0
        %v3212 = vadd.f32 0.0, %v3211
        %v3213 = vpop.f32.mrf.mxu0
        %3214 = vmatprep.mubr.f32.mxu0 0.0
        %3215 = vmatmul.mubr.f32.gmra.mxu0 %v2310
        %v3216 = vpop.f32.mrf.mxu0
        %v3217 = vadd.f32 0.0, %v3216
        %v3218 = vpop.f32.mrf.mxu0
        %3219 = vmatprep.mubr.f32.mxu0 0.0
        %3220 = vmatmul.mubr.f32.gmra.mxu0 %v2312
        %v3221 = vpop.f32.mrf.mxu0
        %v3222 = vadd.f32 0.0, %v3221
        %v3223 = vpop.f32.mrf.mxu0
        %3224 = vmatprep.mubr.f32.mxu0 0.0
        %3225 = vmatmul.mubr.f32.gmra.mxu0 %v2314
        %v3226 = vpop.f32.mrf.mxu0
        %v3227 = vadd.f32 0.0, %v3226
        %v3228 = vpop.f32.mrf.mxu0
        %3229 = vmatprep.mubr.f32.mxu0 0.0
        %3230 = vmatmul.mubr.f32.gmra.mxu0 %v2316
        %v3231 = vpop.f32.mrf.mxu0
        %v3232 = vadd.f32 0.0, %v3231
        %v3233 = vpop.f32.mrf.mxu0
        %3234 = vmatprep.mubr.f32.mxu0 0.0
        %3235 = vmatmul.mubr.f32.gmra.mxu0 %v2318
        %v3236 = vpop.f32.mrf.mxu0
        %v3237 = vadd.f32 0.0, %v3236
        %v3238 = vpop.f32.mrf.mxu0
        %3239 = vmatprep.mubr.f32.mxu0 0.0
        %3240 = vmatmul.mubr.f32.gmra.mxu0 %v2320
        %v3241 = vpop.f32.mrf.mxu0
        %v3242 = vadd.f32 0.0, %v3241
        %v3243 = vpop.f32.mrf.mxu0
        %3244 = vmatprep.mubr.f32.mxu0 0.0
        %3245 = vmatmul.mubr.f32.gmra.mxu0 %v2322
        %v3246 = vpop.f32.mrf.mxu0
        %v3247 = vadd.f32 0.0, %v3246
        %v3248 = vpop.f32.mrf.mxu0
        %3249 = vmatprep.mubr.f32.mxu0 0.0
        %3250 = vmatmul.mubr.f32.gmra.mxu0 %v2324
        %v3251 = vpop.f32.mrf.mxu0
        %v3252 = vadd.f32 0.0, %v3251
        %v3253 = vpop.f32.mrf.mxu0
        %3254 = vmatprep.mubr.f32.mxu0 0.0
        %3255 = vmatmul.mubr.f32.gmra.mxu0 %v2326
        %v3256 = vpop.f32.mrf.mxu0
        %v3257 = vadd.f32 0.0, %v3256
        %v3258 = vpop.f32.mrf.mxu0
        %3259 = vmatprep.mubr.f32.mxu0 0.0
        %3260 = vmatmul.mubr.f32.gmra.mxu0 %v2328
        %v3261 = vpop.f32.mrf.mxu0
        %v3262 = vadd.f32 0.0, %v3261
        %v3263 = vpop.f32.mrf.mxu0
        %3264 = vmatprep.mubr.f32.mxu0 0.0
        %3265 = vmatmul.mubr.f32.gmra.mxu0 %v2330
        %v3266 = vpop.f32.mrf.mxu0
        %v3267 = vadd.f32 0.0, %v3266
        %v3268 = vpop.f32.mrf.mxu0
        %3269 = vmatprep.mubr.f32.mxu0 0.0
        %3270 = vmatmul.mubr.f32.gmra.mxu0 %v2332
        %v3271 = vpop.f32.mrf.mxu0
        %v3272 = vadd.f32 0.0, %v3271
        %v3273 = vpop.f32.mrf.mxu0
        %3274 = vmatprep.mubr.f32.mxu0 0.0
        %3275 = vmatmul.mubr.f32.gmra.mxu0 %v2334
        %v3276 = vpop.f32.mrf.mxu0
        %v3277 = vadd.f32 0.0, %v3276
        %v3278 = vpop.f32.mrf.mxu0
        %3279 = vmatprep.mubr.f32.mxu0 0.0
        %3280 = vmatmul.mubr.f32.gmra.mxu0 %v2336
        %v3281 = vpop.f32.mrf.mxu0
        %v3282 = vadd.f32 0.0, %v3281
        %v3283 = vpop.f32.mrf.mxu0
        %3284 = vmatprep.mubr.f32.mxu0 0.0
        %3285 = vmatmul.mubr.f32.gmra.mxu0 %v2338
        %v3286 = vpop.f32.mrf.mxu0
        %v3287 = vadd.f32 0.0, %v3286
        %v3288 = vpop.f32.mrf.mxu0
        %3289 = vmatprep.mubr.f32.mxu0 0.0
        %3290 = vmatmul.mubr.f32.gmra.mxu0 %v2340
        %v3291 = vpop.f32.mrf.mxu0
        %v3292 = vadd.f32 0.0, %v3291
        %v3293 = vpop.f32.mrf.mxu0
        %3294 = vmatprep.mubr.f32.mxu0 0.0
        %3295 = vmatmul.mubr.f32.gmra.mxu0 %v2342
        %v3296 = vpop.f32.mrf.mxu0
        %v3297 = vadd.f32 0.0, %v3296
        %v3298 = vpop.f32.mrf.mxu0
        %3299 = vmatprep.mubr.f32.mxu0 0.0
        %3300 = vmatmul.mubr.f32.gmra.mxu0 %v3096
        %v3301 = vpop.f32.mrf.mxu0
        %v3302 = vadd.f32 0.0, %v3301
        %v3303 = vpop.f32.mrf.mxu0
        %3304 = vmatprep.mubr.f32.mxu0 0.0
        %3305 = vmatmul.mubr.f32.gmra.mxu0 %v3098
        %v3306 = vpop.f32.mrf.mxu0
        %v3307 = vadd.f32 0.0, %v3306
        %v3308 = vpop.f32.mrf.mxu0
        %3309 = vdwg.mxu0
        %v3310 = vadd.f32 %v3059, %v3167
        %v3311 = vadd.f32 %v3060, %v3172
        %v3312 = vadd.f32 %v3061, %v3177
        %v3313 = vadd.f32 %v3062, %v3182
        %v3314 = vadd.f32 %v3063, %v3187
        %v3315 = vadd.f32 %v3064, %v3192
        %v3316 = vadd.f32 %v3065, %v3197
        %v3317 = vadd.f32 %v3066, %v3202
        %v3318 = vadd.f32 %v3067, %v3207
        %v3319 = vadd.f32 %v3068, %v3212
        %v3320 = vadd.f32 %v3069, %v3217
        %v3321 = vadd.f32 %v3070, %v3222
        %v3322 = vadd.f32 %v3071, %v3227
        %v3323 = vadd.f32 %v3072, %v3232
        %v3324 = vadd.f32 %v3073, %v3237
        %v3325 = vadd.f32 %v3074, %v3242
        %v3326 = vadd.f32 %v3075, %v3247
        %v3327 = vadd.f32 %v3076, %v3252
        %v3328 = vadd.f32 %v3077, %v3257
        %v3329 = vadd.f32 %v3078, %v3262
        %v3330 = vadd.f32 %v3079, %v3267
        %v3331 = vadd.f32 %v3080, %v3272
        %v3332 = vadd.f32 %v3081, %v3277
        %v3333 = vadd.f32 %v3082, %v3282
        %v3334 = vadd.f32 %v3083, %v3287
        %v3335 = vadd.f32 %v3084, %v3292
        %v3336 = vadd.f32 %v3085, %v3297
        %v3337 = vadd.f32 %v3086, %v3302
        %v3338 = vadd.f32 %v3087, %v3307
        %s3339 = scalar_lea.vmem %s3, 128
        %v3340 = vld [vmem:[%s3339] sm:$0xff]
        %v3341 = vld [vmem:[%s3339 + $0x8] sm:$0xff]
        %v3342 = vrot.slane %v840, 5
        %v3343 = vrot.slane %v841, 5
        %v3344 = vsel %vm566, %v3342, %v3343
        %v3345 = vrot.slane %v842, 5
        %v3346 = vsel %vm566, %v3343, %v3345
        %v3347 = vrot.slane %v843, 5
        %v3348 = vsel %vm566, %v3345, %v3347
        %v3349 = vrot.slane %v844, 5
        %v3350 = vsel %vm566, %v3347, %v3349
        %v3351 = vrot.slane %v845, 5
        %v3352 = vsel %vm566, %v3349, %v3351
        %v3353 = vrot.slane %v846, 5
        %v3354 = vsel %vm566, %v3351, %v3353
        %v3355 = vrot.slane %v847, 5
        %v3356 = vsel %vm566, %v3353, %v3355
        %v3357 = vrot.slane %v848, 5
        %v3358 = vsel %vm566, %v3355, %v3357
        %v3359 = vrot.slane %v849, 5
        %v3360 = vsel %vm566, %v3357, %v3359
        %v3361 = vrot.slane %v850, 5
        %v3362 = vsel %vm566, %v3359, %v3361
        %v3363 = vrot.slane %v851, 5
        %v3364 = vsel %vm566, %v3361, %v3363
        %v3365 = vrot.slane %v852, 5
        %v3366 = vsel %vm566, %v3363, %v3365
        %v3367 = vrot.slane %v853, 5
        %v3368 = vsel %vm566, %v3365, %v3367
        %v3369 = vrot.slane %v854, 5
        %v3370 = vsel %vm566, %v3367, %v3369
        %v3371 = vrot.slane %v855, 5
        %v3372 = vsel %vm566, %v3369, %v3371
        %v3373 = vrot.slane %v856, 5
        %v3374 = vsel %vm566, %v3371, %v3373
        %v3375 = vrot.slane %v857, 5
        %v3376 = vsel %vm566, %v3373, %v3375
        %v3377 = vrot.slane %v858, 5
        %v3378 = vsel %vm566, %v3375, %v3377
        %v3379 = vrot.slane %v859, 5
        %v3380 = vsel %vm566, %v3377, %v3379
        %v3381 = vrot.slane %v860, 5
        %v3382 = vsel %vm566, %v3379, %v3381
        %v3383 = vrot.slane %v861, 5
        %v3384 = vsel %vm566, %v3381, %v3383
        %v3385 = vrot.slane %v862, 5
        %v3386 = vsel %vm566, %v3383, %v3385
        %v3387 = vrot.slane %v863, 5
        %v3388 = vsel %vm566, %v3385, %v3387
        %v3389 = vrot.slane %v864, 5
        %v3390 = vsel %vm566, %v3387, %v3389
        %v3391 = vrot.slane %v865, 5
        %v3392 = vsel %vm566, %v3389, %v3391
        %v3393 = vrot.slane %v866, 5
        %v3394 = vsel %vm566, %v3391, %v3393
        %v3395 = vrot.slane %v867, 5
        %v3396 = vsel %vm566, %v3393, %v3395
        %v3397 = vrot.slane %v868, 5
        %v3398 = vsel %vm566, %v3395, %v3397
        %v3399 = vrot.slane %v869, 5
        %v3400 = vsel %vm566, %v3397, %v3399
        %v3401 = vsel %vm969, %v3344, 0
        %v3403 = vsel %vm969, %v3346, 0
        %v3405 = vsel %vm969, %v3348, 0
        %v3407 = vsel %vm969, %v3350, 0
        %v3409 = vsel %vm969, %v3352, 0
        %v3411 = vsel %vm969, %v3354, 0
        %v3413 = vsel %vm969, %v3356, 0
        %v3415 = vsel %vm969, %v3358, 0
        %v3417 = vsel %vm969, %v3360, 0
        %v3419 = vsel %vm969, %v3362, 0
        %v3421 = vsel %vm969, %v3364, 0
        %v3423 = vsel %vm969, %v3366, 0
        %v3425 = vsel %vm969, %v3368, 0
        %v3427 = vsel %vm969, %v3370, 0
        %v3429 = vsel %vm969, %v3372, 0
        %v3431 = vsel %vm969, %v3374, 0
        %v3433 = vsel %vm969, %v3376, 0
        %v3435 = vsel %vm969, %v3378, 0
        %v3437 = vsel %vm969, %v3380, 0
        %v3439 = vsel %vm969, %v3382, 0
        %v3441 = vsel %vm969, %v3384, 0
        %v3443 = vsel %vm969, %v3386, 0
        %v3445 = vsel %vm969, %v3388, 0
        %v3447 = vsel %vm969, %v3390, 0
        %v3449 = vsel %vm969, %v3392, 0
        %v3451 = vsel %vm969, %v3394, 0
        %v3453 = vsel %vm969, %v3396, 0
        %v3455 = vsel %vm969, %v3398, 0
        %v3457 = vsel %vm969, %v3400, 0
        %3459 = vmatprep.subr.mxu0 0.0
        %3460 = vmatpush1.msra.mxu0 0.0
        %3461 = vmatprep.subr.mxu0 0.0
        %3462 = vmatpush1.msra.mxu0 0.0
        %3463 = vmatprep.subr.mxu0 0.0
        %3464 = vmatpush1.msra.mxu0 0.0
        %3465 = vmatprep.subr.mxu0 0.0
        %3466 = vmatpush1.msra.mxu0 0.0
        %3467 = vmatprep.subr.mxu0 0.0
        %3468 = vmatpush1.msra.mxu0 0.0
        %3469 = vmatprep.subr.mxu0 0.0
        %3470 = vmatpush1.msra.mxu0 0.0
        %3471 = vmatprep.subr.mxu0 0.0
        %3472 = vmatpush1.msra.mxu0 0.0
        %3473 = vmatprep.subr.mxu0 0.0
        %3474 = vmatpush1.msra.mxu0 0.0
        %3475 = vmatprep.subr.mxu0 0.0
        %3476 = vmatpush1.msra.mxu0 0.0
        %3477 = vmatprep.subr.mxu0 0.0
        %3478 = vmatpush1.msra.mxu0 0.0
        %3479 = vmatprep.subr.mxu0 0.0
        %3480 = vmatpush1.msra.mxu0 0.0
        %3481 = vmatprep.subr.mxu0 0.0
        %3482 = vmatpush1.msra.mxu0 0.0
        %3483 = vmatprep.subr.mxu0 0.0
        %3484 = vmatpush1.msra.mxu0 0.0
        %3485 = vmatprep.subr.mxu0 0.0
        %3486 = vmatpush1.msra.mxu0 0.0
        %3487 = vmatprep.subr.mxu0 0.0
        %3488 = vmatpush1.msra.mxu0 %v3341
        %3489 = vmatprep.subr.mxu0 0.0
        %3490 = vmatpush1.msra.mxu0 %v3340
        %3491 = vmatprep.subr.mxu0 0.0
        %3492 = vmatpush2.msra.mxu0 0.0
        %3493 = vmatprep.subr.mxu0 0.0
        %3494 = vmatpush2.msra.mxu0 0.0
        %3495 = vmatprep.subr.mxu0 0.0
        %3496 = vmatpush2.msra.mxu0 0.0
        %3497 = vmatprep.subr.mxu0 0.0
        %3498 = vmatpush2.msra.mxu0 0.0
        %3499 = vmatprep.subr.mxu0 0.0
        %3500 = vmatpush2.msra.mxu0 0.0
        %3501 = vmatprep.subr.mxu0 0.0
        %3502 = vmatpush2.msra.mxu0 0.0
        %3503 = vmatprep.subr.mxu0 0.0
        %3504 = vmatpush2.msra.mxu0 0.0
        %3505 = vmatprep.subr.mxu0 0.0
        %3506 = vmatpush2.msra.mxu0 0.0
        %3507 = vmatprep.subr.mxu0 0.0
        %3508 = vmatpush2.msra.mxu0 0.0
        %3509 = vmatprep.subr.mxu0 0.0
        %3510 = vmatpush2.msra.mxu0 0.0
        %3511 = vmatprep.subr.mxu0 0.0
        %3512 = vmatpush2.msra.mxu0 0.0
        %3513 = vmatprep.subr.mxu0 0.0
        %3514 = vmatpush2.msra.mxu0 0.0
        %3515 = vmatprep.subr.mxu0 0.0
        %3516 = vmatpush2.msra.mxu0 0.0
        %3517 = vmatprep.subr.mxu0 0.0
        %3518 = vmatpush2.msra.mxu0 0.0
        %3519 = vmatprep.subr.mxu0 0.0
        %3520 = vmatpush2.msra.mxu0 0.0
        %3521 = vmatprep.subr.mxu0 0.0
        %3522 = vmatpush2.msra.mxu0 0.0
        %3523 = vmatprep.mubr.f32.mxu0 0.0
        %3524 = vmatmul.mubr.f32.gmra.mxu0 %v3401
        %v3525 = vpop.f32.mrf.mxu0
        %v3526 = vadd.f32 0.0, %v3525
        %v3527 = vpop.f32.mrf.mxu0
        %3528 = vmatprep.mubr.f32.mxu0 0.0
        %3529 = vmatmul.mubr.f32.gmra.mxu0 %v3403
        %v3530 = vpop.f32.mrf.mxu0
        %v3531 = vadd.f32 0.0, %v3530
        %v3532 = vpop.f32.mrf.mxu0
        %3533 = vmatprep.mubr.f32.mxu0 0.0
        %3534 = vmatmul.mubr.f32.gmra.mxu0 %v3405
        %v3535 = vpop.f32.mrf.mxu0
        %v3536 = vadd.f32 0.0, %v3535
        %v3537 = vpop.f32.mrf.mxu0
        %3538 = vmatprep.mubr.f32.mxu0 0.0
        %3539 = vmatmul.mubr.f32.gmra.mxu0 %v3407
        %v3540 = vpop.f32.mrf.mxu0
        %v3541 = vadd.f32 0.0, %v3540
        %v3542 = vpop.f32.mrf.mxu0
        %3543 = vmatprep.mubr.f32.mxu0 0.0
        %3544 = vmatmul.mubr.f32.gmra.mxu0 %v3409
        %v3545 = vpop.f32.mrf.mxu0
        %v3546 = vadd.f32 0.0, %v3545
        %v3547 = vpop.f32.mrf.mxu0
        %3548 = vmatprep.mubr.f32.mxu0 0.0
        %3549 = vmatmul.mubr.f32.gmra.mxu0 %v3411
        %v3550 = vpop.f32.mrf.mxu0
        %v3551 = vadd.f32 0.0, %v3550
        %v3552 = vpop.f32.mrf.mxu0
        %3553 = vmatprep.mubr.f32.mxu0 0.0
        %3554 = vmatmul.mubr.f32.gmra.mxu0 %v3413
        %v3555 = vpop.f32.mrf.mxu0
        %v3556 = vadd.f32 0.0, %v3555
        %v3557 = vpop.f32.mrf.mxu0
        %3558 = vmatprep.mubr.f32.mxu0 0.0
        %3559 = vmatmul.mubr.f32.gmra.mxu0 %v3415
        %v3560 = vpop.f32.mrf.mxu0
        %v3561 = vadd.f32 0.0, %v3560
        %v3562 = vpop.f32.mrf.mxu0
        %3563 = vmatprep.mubr.f32.mxu0 0.0
        %3564 = vmatmul.mubr.f32.gmra.mxu0 %v3417
        %v3565 = vpop.f32.mrf.mxu0
        %v3566 = vadd.f32 0.0, %v3565
        %v3567 = vpop.f32.mrf.mxu0
        %3568 = vmatprep.mubr.f32.mxu0 0.0
        %3569 = vmatmul.mubr.f32.gmra.mxu0 %v3419
        %v3570 = vpop.f32.mrf.mxu0
        %v3571 = vadd.f32 0.0, %v3570
        %v3572 = vpop.f32.mrf.mxu0
        %3573 = vmatprep.mubr.f32.mxu0 0.0
        %3574 = vmatmul.mubr.f32.gmra.mxu0 %v3421
        %v3575 = vpop.f32.mrf.mxu0
        %v3576 = vadd.f32 0.0, %v3575
        %v3577 = vpop.f32.mrf.mxu0
        %3578 = vmatprep.mubr.f32.mxu0 0.0
        %3579 = vmatmul.mubr.f32.gmra.mxu0 %v3423
        %v3580 = vpop.f32.mrf.mxu0
        %v3581 = vadd.f32 0.0, %v3580
        %v3582 = vpop.f32.mrf.mxu0
        %3583 = vmatprep.mubr.f32.mxu0 0.0
        %3584 = vmatmul.mubr.f32.gmra.mxu0 %v3425
        %v3585 = vpop.f32.mrf.mxu0
        %v3586 = vadd.f32 0.0, %v3585
        %v3587 = vpop.f32.mrf.mxu0
        %3588 = vmatprep.mubr.f32.mxu0 0.0
        %3589 = vmatmul.mubr.f32.gmra.mxu0 %v3427
        %v3590 = vpop.f32.mrf.mxu0
        %v3591 = vadd.f32 0.0, %v3590
        %v3592 = vpop.f32.mrf.mxu0
        %3593 = vmatprep.mubr.f32.mxu0 0.0
        %3594 = vmatmul.mubr.f32.gmra.mxu0 %v3429
        %v3595 = vpop.f32.mrf.mxu0
        %v3596 = vadd.f32 0.0, %v3595
        %v3597 = vpop.f32.mrf.mxu0
        %3598 = vmatprep.mubr.f32.mxu0 0.0
        %3599 = vmatmul.mubr.f32.gmra.mxu0 %v3431
        %v3600 = vpop.f32.mrf.mxu0
        %v3601 = vadd.f32 0.0, %v3600
        %v3602 = vpop.f32.mrf.mxu0
        %3603 = vmatprep.mubr.f32.mxu0 0.0
        %3604 = vmatmul.mubr.f32.gmra.mxu0 %v3433
        %v3605 = vpop.f32.mrf.mxu0
        %v3606 = vadd.f32 0.0, %v3605
        %v3607 = vpop.f32.mrf.mxu0
        %3608 = vmatprep.mubr.f32.mxu0 0.0
        %3609 = vmatmul.mubr.f32.gmra.mxu0 %v3435
        %v3610 = vpop.f32.mrf.mxu0
        %v3611 = vadd.f32 0.0, %v3610
        %v3612 = vpop.f32.mrf.mxu0
        %3613 = vmatprep.mubr.f32.mxu0 0.0
        %3614 = vmatmul.mubr.f32.gmra.mxu0 %v3437
        %v3615 = vpop.f32.mrf.mxu0
        %v3616 = vadd.f32 0.0, %v3615
        %v3617 = vpop.f32.mrf.mxu0
        %3618 = vmatprep.mubr.f32.mxu0 0.0
        %3619 = vmatmul.mubr.f32.gmra.mxu0 %v3439
        %v3620 = vpop.f32.mrf.mxu0
        %v3621 = vadd.f32 0.0, %v3620
        %v3622 = vpop.f32.mrf.mxu0
        %3623 = vmatprep.mubr.f32.mxu0 0.0
        %3624 = vmatmul.mubr.f32.gmra.mxu0 %v3441
        %v3625 = vpop.f32.mrf.mxu0
        %v3626 = vadd.f32 0.0, %v3625
        %v3627 = vpop.f32.mrf.mxu0
        %3628 = vmatprep.mubr.f32.mxu0 0.0
        %3629 = vmatmul.mubr.f32.gmra.mxu0 %v3443
        %v3630 = vpop.f32.mrf.mxu0
        %v3631 = vadd.f32 0.0, %v3630
        %v3632 = vpop.f32.mrf.mxu0
        %3633 = vmatprep.mubr.f32.mxu0 0.0
        %3634 = vmatmul.mubr.f32.gmra.mxu0 %v3445
        %v3635 = vpop.f32.mrf.mxu0
        %v3636 = vadd.f32 0.0, %v3635
        %v3637 = vpop.f32.mrf.mxu0
        %3638 = vmatprep.mubr.f32.mxu0 0.0
        %3639 = vmatmul.mubr.f32.gmra.mxu0 %v3447
        %v3640 = vpop.f32.mrf.mxu0
        %v3641 = vadd.f32 0.0, %v3640
        %v3642 = vpop.f32.mrf.mxu0
        %3643 = vmatprep.mubr.f32.mxu0 0.0
        %3644 = vmatmul.mubr.f32.gmra.mxu0 %v3449
        %v3645 = vpop.f32.mrf.mxu0
        %v3646 = vadd.f32 0.0, %v3645
        %v3647 = vpop.f32.mrf.mxu0
        %3648 = vmatprep.mubr.f32.mxu0 0.0
        %3649 = vmatmul.mubr.f32.gmra.mxu0 %v3451
        %v3650 = vpop.f32.mrf.mxu0
        %v3651 = vadd.f32 0.0, %v3650
        %v3652 = vpop.f32.mrf.mxu0
        %3653 = vmatprep.mubr.f32.mxu0 0.0
        %3654 = vmatmul.mubr.f32.gmra.mxu0 %v3453
        %v3655 = vpop.f32.mrf.mxu0
        %v3656 = vadd.f32 0.0, %v3655
        %v3657 = vpop.f32.mrf.mxu0
        %3658 = vmatprep.mubr.f32.mxu0 0.0
        %3659 = vmatmul.mubr.f32.gmra.mxu0 %v3455
        %v3660 = vpop.f32.mrf.mxu0
        %v3661 = vadd.f32 0.0, %v3660
        %v3662 = vpop.f32.mrf.mxu0
        %3663 = vmatprep.mubr.f32.mxu0 0.0
        %3664 = vmatmul.mubr.f32.gmra.mxu0 %v3457
        %v3665 = vpop.f32.mrf.mxu0
        %v3666 = vadd.f32 0.0, %v3665
        %v3667 = vpop.f32.mrf.mxu0
        %3668 = vdwg.mxu0
        %v3669 = vadd.f32 %v3310, %v3526
        %v3670 = vadd.f32 %v3311, %v3531
        %v3671 = vadd.f32 %v3312, %v3536
        %v3672 = vadd.f32 %v3313, %v3541
        %v3673 = vadd.f32 %v3314, %v3546
        %v3674 = vadd.f32 %v3315, %v3551
        %v3675 = vadd.f32 %v3316, %v3556
        %v3676 = vadd.f32 %v3317, %v3561
        %v3677 = vadd.f32 %v3318, %v3566
        %v3678 = vadd.f32 %v3319, %v3571
        %v3679 = vadd.f32 %v3320, %v3576
        %v3680 = vadd.f32 %v3321, %v3581
        %v3681 = vadd.f32 %v3322, %v3586
        %v3682 = vadd.f32 %v3323, %v3591
        %v3683 = vadd.f32 %v3324, %v3596
        %v3684 = vadd.f32 %v3325, %v3601
        %v3685 = vadd.f32 %v3326, %v3606
        %v3686 = vadd.f32 %v3327, %v3611
        %v3687 = vadd.f32 %v3328, %v3616
        %v3688 = vadd.f32 %v3329, %v3621
        %v3689 = vadd.f32 %v3330, %v3626
        %v3690 = vadd.f32 %v3331, %v3631
        %v3691 = vadd.f32 %v3332, %v3636
        %v3692 = vadd.f32 %v3333, %v3641
        %v3693 = vadd.f32 %v3334, %v3646
        %v3694 = vadd.f32 %v3335, %v3651
        %v3695 = vadd.f32 %v3336, %v3656
        %v3696 = vadd.f32 %v3337, %v3661
        %v3697 = vadd.f32 %v3338, %v3666
        %s3698 = scalar_lea.vmem %s3, 144
        %v3699 = vld [vmem:[%s3698] sm:$0xff]
        %v3700 = vld [vmem:[%s3698 + $0x8] sm:$0xff]
        %vm3701 = vcmask 1041408
        %v3702 = vrot.slane %v840, 6
        %v3703 = vrot.slane %v841, 6
        %v3704 = vsel %vm3701, %v3702, %v3703
        %v3705 = vrot.slane %v842, 6
        %v3706 = vsel %vm3701, %v3703, %v3705
        %v3707 = vrot.slane %v843, 6
        %v3708 = vsel %vm3701, %v3705, %v3707
        %v3709 = vrot.slane %v844, 6
        %v3710 = vsel %vm3701, %v3707, %v3709
        %v3711 = vrot.slane %v845, 6
        %v3712 = vsel %vm3701, %v3709, %v3711
        %v3713 = vrot.slane %v846, 6
        %v3714 = vsel %vm3701, %v3711, %v3713
        %v3715 = vrot.slane %v847, 6
        %v3716 = vsel %vm3701, %v3713, %v3715
        %v3717 = vrot.slane %v848, 6
        %v3718 = vsel %vm3701, %v3715, %v3717
        %v3719 = vrot.slane %v849, 6
        %v3720 = vsel %vm3701, %v3717, %v3719
        %v3721 = vrot.slane %v850, 6
        %v3722 = vsel %vm3701, %v3719, %v3721
        %v3723 = vrot.slane %v851, 6
        %v3724 = vsel %vm3701, %v3721, %v3723
        %v3725 = vrot.slane %v852, 6
        %v3726 = vsel %vm3701, %v3723, %v3725
        %v3727 = vrot.slane %v853, 6
        %v3728 = vsel %vm3701, %v3725, %v3727
        %v3729 = vrot.slane %v854, 6
        %v3730 = vsel %vm3701, %v3727, %v3729
        %v3731 = vrot.slane %v855, 6
        %v3732 = vsel %vm3701, %v3729, %v3731
        %v3733 = vrot.slane %v856, 6
        %v3734 = vsel %vm3701, %v3731, %v3733
        %v3735 = vrot.slane %v857, 6
        %v3736 = vsel %vm3701, %v3733, %v3735
        %v3737 = vrot.slane %v858, 6
        %v3738 = vsel %vm3701, %v3735, %v3737
        %v3739 = vrot.slane %v859, 6
        %v3740 = vsel %vm3701, %v3737, %v3739
        %v3741 = vrot.slane %v860, 6
        %v3742 = vsel %vm3701, %v3739, %v3741
        %v3743 = vrot.slane %v861, 6
        %v3744 = vsel %vm3701, %v3741, %v3743
        %v3745 = vrot.slane %v862, 6
        %v3746 = vsel %vm3701, %v3743, %v3745
        %v3747 = vrot.slane %v863, 6
        %v3748 = vsel %vm3701, %v3745, %v3747
        %v3749 = vrot.slane %v864, 6
        %v3750 = vsel %vm3701, %v3747, %v3749
        %v3751 = vrot.slane %v865, 6
        %v3752 = vsel %vm3701, %v3749, %v3751
        %v3753 = vrot.slane %v866, 6
        %v3754 = vsel %vm3701, %v3751, %v3753
        %v3755 = vrot.slane %v867, 6
        %v3756 = vsel %vm3701, %v3753, %v3755
        %v3757 = vrot.slane %v868, 6
        %v3758 = vsel %vm3701, %v3755, %v3757
        %v3759 = vrot.slane %v869, 6
        %v3760 = vsel %vm3701, %v3757, %v3759
        %v3761 = vsel %vm969, %v3704, 0
        %v3763 = vsel %vm969, %v3706, 0
        %v3765 = vsel %vm969, %v3708, 0
        %v3767 = vsel %vm969, %v3710, 0
        %v3769 = vsel %vm969, %v3712, 0
        %v3771 = vsel %vm969, %v3714, 0
        %v3773 = vsel %vm969, %v3716, 0
        %v3775 = vsel %vm969, %v3718, 0
        %v3777 = vsel %vm969, %v3720, 0
        %v3779 = vsel %vm969, %v3722, 0
        %v3781 = vsel %vm969, %v3724, 0
        %v3783 = vsel %vm969, %v3726, 0
        %v3785 = vsel %vm969, %v3728, 0
        %v3787 = vsel %vm969, %v3730, 0
        %v3789 = vsel %vm969, %v3732, 0
        %v3791 = vsel %vm969, %v3734, 0
        %v3793 = vsel %vm969, %v3736, 0
        %v3795 = vsel %vm969, %v3738, 0
        %v3797 = vsel %vm969, %v3740, 0
        %v3799 = vsel %vm969, %v3742, 0
        %v3801 = vsel %vm969, %v3744, 0
        %v3803 = vsel %vm969, %v3746, 0
        %v3805 = vsel %vm969, %v3748, 0
        %v3807 = vsel %vm969, %v3750, 0
        %v3809 = vsel %vm969, %v3752, 0
        %v3811 = vsel %vm969, %v3754, 0
        %v3813 = vsel %vm969, %v3756, 0
        %v3815 = vsel %vm969, %v3758, 0
        %v3817 = vsel %vm969, %v3760, 0
        %3819 = vmatprep.subr.mxu0 0.0
        %3820 = vmatpush1.msra.mxu0 0.0
        %3821 = vmatprep.subr.mxu0 0.0
        %3822 = vmatpush1.msra.mxu0 0.0
        %3823 = vmatprep.subr.mxu0 0.0
        %3824 = vmatpush1.msra.mxu0 0.0
        %3825 = vmatprep.subr.mxu0 0.0
        %3826 = vmatpush1.msra.mxu0 0.0
        %3827 = vmatprep.subr.mxu0 0.0
        %3828 = vmatpush1.msra.mxu0 0.0
        %3829 = vmatprep.subr.mxu0 0.0
        %3830 = vmatpush1.msra.mxu0 0.0
        %3831 = vmatprep.subr.mxu0 0.0
        %3832 = vmatpush1.msra.mxu0 0.0
        %3833 = vmatprep.subr.mxu0 0.0
        %3834 = vmatpush1.msra.mxu0 0.0
        %3835 = vmatprep.subr.mxu0 0.0
        %3836 = vmatpush1.msra.mxu0 0.0
        %3837 = vmatprep.subr.mxu0 0.0
        %3838 = vmatpush1.msra.mxu0 0.0
        %3839 = vmatprep.subr.mxu0 0.0
        %3840 = vmatpush1.msra.mxu0 0.0
        %3841 = vmatprep.subr.mxu0 0.0
        %3842 = vmatpush1.msra.mxu0 0.0
        %3843 = vmatprep.subr.mxu0 0.0
        %3844 = vmatpush1.msra.mxu0 0.0
        %3845 = vmatprep.subr.mxu0 0.0
        %3846 = vmatpush1.msra.mxu0 0.0
        %3847 = vmatprep.subr.mxu0 0.0
        %3848 = vmatpush1.msra.mxu0 %v3700
        %3849 = vmatprep.subr.mxu0 0.0
        %3850 = vmatpush1.msra.mxu0 %v3699
        %3851 = vmatprep.subr.mxu0 0.0
        %3852 = vmatpush2.msra.mxu0 0.0
        %3853 = vmatprep.subr.mxu0 0.0
        %3854 = vmatpush2.msra.mxu0 0.0
        %3855 = vmatprep.subr.mxu0 0.0
        %3856 = vmatpush2.msra.mxu0 0.0
        %3857 = vmatprep.subr.mxu0 0.0
        %3858 = vmatpush2.msra.mxu0 0.0
        %3859 = vmatprep.subr.mxu0 0.0
        %3860 = vmatpush2.msra.mxu0 0.0
        %3861 = vmatprep.subr.mxu0 0.0
        %3862 = vmatpush2.msra.mxu0 0.0
        %3863 = vmatprep.subr.mxu0 0.0
        %3864 = vmatpush2.msra.mxu0 0.0
        %3865 = vmatprep.subr.mxu0 0.0
        %3866 = vmatpush2.msra.mxu0 0.0
        %3867 = vmatprep.subr.mxu0 0.0
        %3868 = vmatpush2.msra.mxu0 0.0
        %3869 = vmatprep.subr.mxu0 0.0
        %3870 = vmatpush2.msra.mxu0 0.0
        %3871 = vmatprep.subr.mxu0 0.0
        %3872 = vmatpush2.msra.mxu0 0.0
        %3873 = vmatprep.subr.mxu0 0.0
        %3874 = vmatpush2.msra.mxu0 0.0
        %3875 = vmatprep.subr.mxu0 0.0
        %3876 = vmatpush2.msra.mxu0 0.0
        %3877 = vmatprep.subr.mxu0 0.0
        %3878 = vmatpush2.msra.mxu0 0.0
        %3879 = vmatprep.subr.mxu0 0.0
        %3880 = vmatpush2.msra.mxu0 0.0
        %3881 = vmatprep.subr.mxu0 0.0
        %3882 = vmatpush2.msra.mxu0 0.0
        %3883 = vmatprep.mubr.f32.mxu0 0.0
        %3884 = vmatmul.mubr.f32.gmra.mxu0 %v3761
        %v3885 = vpop.f32.mrf.mxu0
        %v3886 = vadd.f32 0.0, %v3885
        %v3887 = vpop.f32.mrf.mxu0
        %3888 = vmatprep.mubr.f32.mxu0 0.0
        %3889 = vmatmul.mubr.f32.gmra.mxu0 %v3763
        %v3890 = vpop.f32.mrf.mxu0
        %v3891 = vadd.f32 0.0, %v3890
        %v3892 = vpop.f32.mrf.mxu0
        %3893 = vmatprep.mubr.f32.mxu0 0.0
        %3894 = vmatmul.mubr.f32.gmra.mxu0 %v3765
        %v3895 = vpop.f32.mrf.mxu0
        %v3896 = vadd.f32 0.0, %v3895
        %v3897 = vpop.f32.mrf.mxu0
        %3898 = vmatprep.mubr.f32.mxu0 0.0
        %3899 = vmatmul.mubr.f32.gmra.mxu0 %v3767
        %v3900 = vpop.f32.mrf.mxu0
        %v3901 = vadd.f32 0.0, %v3900
        %v3902 = vpop.f32.mrf.mxu0
        %3903 = vmatprep.mubr.f32.mxu0 0.0
        %3904 = vmatmul.mubr.f32.gmra.mxu0 %v3769
        %v3905 = vpop.f32.mrf.mxu0
        %v3906 = vadd.f32 0.0, %v3905
        %v3907 = vpop.f32.mrf.mxu0
        %3908 = vmatprep.mubr.f32.mxu0 0.0
        %3909 = vmatmul.mubr.f32.gmra.mxu0 %v3771
        %v3910 = vpop.f32.mrf.mxu0
        %v3911 = vadd.f32 0.0, %v3910
        %v3912 = vpop.f32.mrf.mxu0
        %3913 = vmatprep.mubr.f32.mxu0 0.0
        %3914 = vmatmul.mubr.f32.gmra.mxu0 %v3773
        %v3915 = vpop.f32.mrf.mxu0
        %v3916 = vadd.f32 0.0, %v3915
        %v3917 = vpop.f32.mrf.mxu0
        %3918 = vmatprep.mubr.f32.mxu0 0.0
        %3919 = vmatmul.mubr.f32.gmra.mxu0 %v3775
        %v3920 = vpop.f32.mrf.mxu0
        %v3921 = vadd.f32 0.0, %v3920
        %v3922 = vpop.f32.mrf.mxu0
        %3923 = vmatprep.mubr.f32.mxu0 0.0
        %3924 = vmatmul.mubr.f32.gmra.mxu0 %v3777
        %v3925 = vpop.f32.mrf.mxu0
        %v3926 = vadd.f32 0.0, %v3925
        %v3927 = vpop.f32.mrf.mxu0
        %3928 = vmatprep.mubr.f32.mxu0 0.0
        %3929 = vmatmul.mubr.f32.gmra.mxu0 %v3779
        %v3930 = vpop.f32.mrf.mxu0
        %v3931 = vadd.f32 0.0, %v3930
        %v3932 = vpop.f32.mrf.mxu0
        %3933 = vmatprep.mubr.f32.mxu0 0.0
        %3934 = vmatmul.mubr.f32.gmra.mxu0 %v3781
        %v3935 = vpop.f32.mrf.mxu0
        %v3936 = vadd.f32 0.0, %v3935
        %v3937 = vpop.f32.mrf.mxu0
        %3938 = vmatprep.mubr.f32.mxu0 0.0
        %3939 = vmatmul.mubr.f32.gmra.mxu0 %v3783
        %v3940 = vpop.f32.mrf.mxu0
        %v3941 = vadd.f32 0.0, %v3940
        %v3942 = vpop.f32.mrf.mxu0
        %3943 = vmatprep.mubr.f32.mxu0 0.0
        %3944 = vmatmul.mubr.f32.gmra.mxu0 %v3785
        %v3945 = vpop.f32.mrf.mxu0
        %v3946 = vadd.f32 0.0, %v3945
        %v3947 = vpop.f32.mrf.mxu0
        %3948 = vmatprep.mubr.f32.mxu0 0.0
        %3949 = vmatmul.mubr.f32.gmra.mxu0 %v3787
        %v3950 = vpop.f32.mrf.mxu0
        %v3951 = vadd.f32 0.0, %v3950
        %v3952 = vpop.f32.mrf.mxu0
        %3953 = vmatprep.mubr.f32.mxu0 0.0
        %3954 = vmatmul.mubr.f32.gmra.mxu0 %v3789
        %v3955 = vpop.f32.mrf.mxu0
        %v3956 = vadd.f32 0.0, %v3955
        %v3957 = vpop.f32.mrf.mxu0
        %3958 = vmatprep.mubr.f32.mxu0 0.0
        %3959 = vmatmul.mubr.f32.gmra.mxu0 %v3791
        %v3960 = vpop.f32.mrf.mxu0
        %v3961 = vadd.f32 0.0, %v3960
        %v3962 = vpop.f32.mrf.mxu0
        %3963 = vmatprep.mubr.f32.mxu0 0.0
        %3964 = vmatmul.mubr.f32.gmra.mxu0 %v3793
        %v3965 = vpop.f32.mrf.mxu0
        %v3966 = vadd.f32 0.0, %v3965
        %v3967 = vpop.f32.mrf.mxu0
        %3968 = vmatprep.mubr.f32.mxu0 0.0
        %3969 = vmatmul.mubr.f32.gmra.mxu0 %v3795
        %v3970 = vpop.f32.mrf.mxu0
        %v3971 = vadd.f32 0.0, %v3970
        %v3972 = vpop.f32.mrf.mxu0
        %3973 = vmatprep.mubr.f32.mxu0 0.0
        %3974 = vmatmul.mubr.f32.gmra.mxu0 %v3797
        %v3975 = vpop.f32.mrf.mxu0
        %v3976 = vadd.f32 0.0, %v3975
        %v3977 = vpop.f32.mrf.mxu0
        %3978 = vmatprep.mubr.f32.mxu0 0.0
        %3979 = vmatmul.mubr.f32.gmra.mxu0 %v3799
        %v3980 = vpop.f32.mrf.mxu0
        %v3981 = vadd.f32 0.0, %v3980
        %v3982 = vpop.f32.mrf.mxu0
        %3983 = vmatprep.mubr.f32.mxu0 0.0
        %3984 = vmatmul.mubr.f32.gmra.mxu0 %v3801
        %v3985 = vpop.f32.mrf.mxu0
        %v3986 = vadd.f32 0.0, %v3985
        %v3987 = vpop.f32.mrf.mxu0
        %3988 = vmatprep.mubr.f32.mxu0 0.0
        %3989 = vmatmul.mubr.f32.gmra.mxu0 %v3803
        %v3990 = vpop.f32.mrf.mxu0
        %v3991 = vadd.f32 0.0, %v3990
        %v3992 = vpop.f32.mrf.mxu0
        %3993 = vmatprep.mubr.f32.mxu0 0.0
        %3994 = vmatmul.mubr.f32.gmra.mxu0 %v3805
        %v3995 = vpop.f32.mrf.mxu0
        %v3996 = vadd.f32 0.0, %v3995
        %v3997 = vpop.f32.mrf.mxu0
        %3998 = vmatprep.mubr.f32.mxu0 0.0
        %3999 = vmatmul.mubr.f32.gmra.mxu0 %v3807
        %v4000 = vpop.f32.mrf.mxu0
        %v4001 = vadd.f32 0.0, %v4000
        %v4002 = vpop.f32.mrf.mxu0
        %4003 = vmatprep.mubr.f32.mxu0 0.0
        %4004 = vmatmul.mubr.f32.gmra.mxu0 %v3809
        %v4005 = vpop.f32.mrf.mxu0
        %v4006 = vadd.f32 0.0, %v4005
        %v4007 = vpop.f32.mrf.mxu0
        %4008 = vmatprep.mubr.f32.mxu0 0.0
        %4009 = vmatmul.mubr.f32.gmra.mxu0 %v3811
        %v4010 = vpop.f32.mrf.mxu0
        %v4011 = vadd.f32 0.0, %v4010
        %v4012 = vpop.f32.mrf.mxu0
        %4013 = vmatprep.mubr.f32.mxu0 0.0
        %4014 = vmatmul.mubr.f32.gmra.mxu0 %v3813
        %v4015 = vpop.f32.mrf.mxu0
        %v4016 = vadd.f32 0.0, %v4015
        %v4017 = vpop.f32.mrf.mxu0
        %4018 = vmatprep.mubr.f32.mxu0 0.0
        %4019 = vmatmul.mubr.f32.gmra.mxu0 %v3815
        %v4020 = vpop.f32.mrf.mxu0
        %v4021 = vadd.f32 0.0, %v4020
        %v4022 = vpop.f32.mrf.mxu0
        %4023 = vmatprep.mubr.f32.mxu0 0.0
        %4024 = vmatmul.mubr.f32.gmra.mxu0 %v3817
        %v4025 = vpop.f32.mrf.mxu0
        %v4026 = vadd.f32 0.0, %v4025
        %v4027 = vpop.f32.mrf.mxu0
        %4028 = vdwg.mxu0
        %v4029 = vadd.f32 %v3669, %v3886
        %v4030 = vadd.f32 %v3670, %v3891
        %v4031 = vadd.f32 %v3671, %v3896
        %v4032 = vadd.f32 %v3672, %v3901
        %v4033 = vadd.f32 %v3673, %v3906
        %v4034 = vadd.f32 %v3674, %v3911
        %v4035 = vadd.f32 %v3675, %v3916
        %v4036 = vadd.f32 %v3676, %v3921
        %v4037 = vadd.f32 %v3677, %v3926
        %v4038 = vadd.f32 %v3678, %v3931
        %v4039 = vadd.f32 %v3679, %v3936
        %v4040 = vadd.f32 %v3680, %v3941
        %v4041 = vadd.f32 %v3681, %v3946
        %v4042 = vadd.f32 %v3682, %v3951
        %v4043 = vadd.f32 %v3683, %v3956
        %v4044 = vadd.f32 %v3684, %v3961
        %v4045 = vadd.f32 %v3685, %v3966
        %v4046 = vadd.f32 %v3686, %v3971
        %v4047 = vadd.f32 %v3687, %v3976
        %v4048 = vadd.f32 %v3688, %v3981
        %v4049 = vadd.f32 %v3689, %v3986
        %v4050 = vadd.f32 %v3690, %v3991
        %v4051 = vadd.f32 %v3691, %v3996
        %v4052 = vadd.f32 %v3692, %v4001
        %v4053 = vadd.f32 %v3693, %v4006
        %v4054 = vadd.f32 %v3694, %v4011
        %v4055 = vadd.f32 %v3695, %v4016
        %v4056 = vadd.f32 %v3696, %v4021
        %v4057 = vadd.f32 %v3697, %v4026
        %s4058 = scalar_lea.vmem %s3, 160
        %v4059 = vld [vmem:[%s4058] sm:$0xff]
        %v4060 = vld [vmem:[%s4058 + $0x8] sm:$0xff]
        %v4063 = vrot.slane %v870, 4
        %v4064 = vsel %vm2226, %v3094, %v4063
        %v4065 = vrot.slane %v871, 4
        %v4066 = vsel %vm2226, %v4063, %v4065
        %v4067 = vsel %vm969, %v4064, 0
        %v4069 = vsel %vm969, %v4066, 0
        %4071 = vmatprep.subr.mxu0 0.0
        %4072 = vmatpush1.msra.mxu0 0.0
        %4073 = vmatprep.subr.mxu0 0.0
        %4074 = vmatpush1.msra.mxu0 0.0
        %4075 = vmatprep.subr.mxu0 0.0
        %4076 = vmatpush1.msra.mxu0 0.0
        %4077 = vmatprep.subr.mxu0 0.0
        %4078 = vmatpush1.msra.mxu0 0.0
        %4079 = vmatprep.subr.mxu0 0.0
        %4080 = vmatpush1.msra.mxu0 0.0
        %4081 = vmatprep.subr.mxu0 0.0
        %4082 = vmatpush1.msra.mxu0 0.0
        %4083 = vmatprep.subr.mxu0 0.0
        %4084 = vmatpush1.msra.mxu0 0.0
        %4085 = vmatprep.subr.mxu0 0.0
        %4086 = vmatpush1.msra.mxu0 0.0
        %4087 = vmatprep.subr.mxu0 0.0
        %4088 = vmatpush1.msra.mxu0 0.0
        %4089 = vmatprep.subr.mxu0 0.0
        %4090 = vmatpush1.msra.mxu0 0.0
        %4091 = vmatprep.subr.mxu0 0.0
        %4092 = vmatpush1.msra.mxu0 0.0
        %4093 = vmatprep.subr.mxu0 0.0
        %4094 = vmatpush1.msra.mxu0 0.0
        %4095 = vmatprep.subr.mxu0 0.0
        %4096 = vmatpush1.msra.mxu0 0.0
        %4097 = vmatprep.subr.mxu0 0.0
        %4098 = vmatpush1.msra.mxu0 0.0
        %4099 = vmatprep.subr.mxu0 0.0
        %4100 = vmatpush1.msra.mxu0 %v4060
        %4101 = vmatprep.subr.mxu0 0.0
        %4102 = vmatpush1.msra.mxu0 %v4059
        %4103 = vmatprep.subr.mxu0 0.0
        %4104 = vmatpush2.msra.mxu0 0.0
        %4105 = vmatprep.subr.mxu0 0.0
        %4106 = vmatpush2.msra.mxu0 0.0
        %4107 = vmatprep.subr.mxu0 0.0
        %4108 = vmatpush2.msra.mxu0 0.0
        %4109 = vmatprep.subr.mxu0 0.0
        %4110 = vmatpush2.msra.mxu0 0.0
        %4111 = vmatprep.subr.mxu0 0.0
        %4112 = vmatpush2.msra.mxu0 0.0
        %4113 = vmatprep.subr.mxu0 0.0
        %4114 = vmatpush2.msra.mxu0 0.0
        %4115 = vmatprep.subr.mxu0 0.0
        %4116 = vmatpush2.msra.mxu0 0.0
        %4117 = vmatprep.subr.mxu0 0.0
        %4118 = vmatpush2.msra.mxu0 0.0
        %4119 = vmatprep.subr.mxu0 0.0
        %4120 = vmatpush2.msra.mxu0 0.0
        %4121 = vmatprep.subr.mxu0 0.0
        %4122 = vmatpush2.msra.mxu0 0.0
        %4123 = vmatprep.subr.mxu0 0.0
        %4124 = vmatpush2.msra.mxu0 0.0
        %4125 = vmatprep.subr.mxu0 0.0
        %4126 = vmatpush2.msra.mxu0 0.0
        %4127 = vmatprep.subr.mxu0 0.0
        %4128 = vmatpush2.msra.mxu0 0.0
        %4129 = vmatprep.subr.mxu0 0.0
        %4130 = vmatpush2.msra.mxu0 0.0
        %4131 = vmatprep.subr.mxu0 0.0
        %4132 = vmatpush2.msra.mxu0 0.0
        %4133 = vmatprep.subr.mxu0 0.0
        %4134 = vmatpush2.msra.mxu0 0.0
        %4135 = vmatprep.mubr.f32.mxu0 0.0
        %4136 = vmatmul.mubr.f32.gmra.mxu0 %v2294
        %v4137 = vpop.f32.mrf.mxu0
        %v4138 = vadd.f32 0.0, %v4137
        %v4139 = vpop.f32.mrf.mxu0
        %4140 = vmatprep.mubr.f32.mxu0 0.0
        %4141 = vmatmul.mubr.f32.gmra.mxu0 %v2296
        %v4142 = vpop.f32.mrf.mxu0
        %v4143 = vadd.f32 0.0, %v4142
        %v4144 = vpop.f32.mrf.mxu0
        %4145 = vmatprep.mubr.f32.mxu0 0.0
        %4146 = vmatmul.mubr.f32.gmra.mxu0 %v2298
        %v4147 = vpop.f32.mrf.mxu0
        %v4148 = vadd.f32 0.0, %v4147
        %v4149 = vpop.f32.mrf.mxu0
        %4150 = vmatprep.mubr.f32.mxu0 0.0
        %4151 = vmatmul.mubr.f32.gmra.mxu0 %v2300
        %v4152 = vpop.f32.mrf.mxu0
        %v4153 = vadd.f32 0.0, %v4152
        %v4154 = vpop.f32.mrf.mxu0
        %4155 = vmatprep.mubr.f32.mxu0 0.0
        %4156 = vmatmul.mubr.f32.gmra.mxu0 %v2302
        %v4157 = vpop.f32.mrf.mxu0
        %v4158 = vadd.f32 0.0, %v4157
        %v4159 = vpop.f32.mrf.mxu0
        %4160 = vmatprep.mubr.f32.mxu0 0.0
        %4161 = vmatmul.mubr.f32.gmra.mxu0 %v2304
        %v4162 = vpop.f32.mrf.mxu0
        %v4163 = vadd.f32 0.0, %v4162
        %v4164 = vpop.f32.mrf.mxu0
        %4165 = vmatprep.mubr.f32.mxu0 0.0
        %4166 = vmatmul.mubr.f32.gmra.mxu0 %v2306
        %v4167 = vpop.f32.mrf.mxu0
        %v4168 = vadd.f32 0.0, %v4167
        %v4169 = vpop.f32.mrf.mxu0
        %4170 = vmatprep.mubr.f32.mxu0 0.0
        %4171 = vmatmul.mubr.f32.gmra.mxu0 %v2308
        %v4172 = vpop.f32.mrf.mxu0
        %v4173 = vadd.f32 0.0, %v4172
        %v4174 = vpop.f32.mrf.mxu0
        %4175 = vmatprep.mubr.f32.mxu0 0.0
        %4176 = vmatmul.mubr.f32.gmra.mxu0 %v2310
        %v4177 = vpop.f32.mrf.mxu0
        %v4178 = vadd.f32 0.0, %v4177
        %v4179 = vpop.f32.mrf.mxu0
        %4180 = vmatprep.mubr.f32.mxu0 0.0
        %4181 = vmatmul.mubr.f32.gmra.mxu0 %v2312
        %v4182 = vpop.f32.mrf.mxu0
        %v4183 = vadd.f32 0.0, %v4182
        %v4184 = vpop.f32.mrf.mxu0
        %4185 = vmatprep.mubr.f32.mxu0 0.0
        %4186 = vmatmul.mubr.f32.gmra.mxu0 %v2314
        %v4187 = vpop.f32.mrf.mxu0
        %v4188 = vadd.f32 0.0, %v4187
        %v4189 = vpop.f32.mrf.mxu0
        %4190 = vmatprep.mubr.f32.mxu0 0.0
        %4191 = vmatmul.mubr.f32.gmra.mxu0 %v2316
        %v4192 = vpop.f32.mrf.mxu0
        %v4193 = vadd.f32 0.0, %v4192
        %v4194 = vpop.f32.mrf.mxu0
        %4195 = vmatprep.mubr.f32.mxu0 0.0
        %4196 = vmatmul.mubr.f32.gmra.mxu0 %v2318
        %v4197 = vpop.f32.mrf.mxu0
        %v4198 = vadd.f32 0.0, %v4197
        %v4199 = vpop.f32.mrf.mxu0
        %4200 = vmatprep.mubr.f32.mxu0 0.0
        %4201 = vmatmul.mubr.f32.gmra.mxu0 %v2320
        %v4202 = vpop.f32.mrf.mxu0
        %v4203 = vadd.f32 0.0, %v4202
        %v4204 = vpop.f32.mrf.mxu0
        %4205 = vmatprep.mubr.f32.mxu0 0.0
        %4206 = vmatmul.mubr.f32.gmra.mxu0 %v2322
        %v4207 = vpop.f32.mrf.mxu0
        %v4208 = vadd.f32 0.0, %v4207
        %v4209 = vpop.f32.mrf.mxu0
        %4210 = vmatprep.mubr.f32.mxu0 0.0
        %4211 = vmatmul.mubr.f32.gmra.mxu0 %v2324
        %v4212 = vpop.f32.mrf.mxu0
        %v4213 = vadd.f32 0.0, %v4212
        %v4214 = vpop.f32.mrf.mxu0
        %4215 = vmatprep.mubr.f32.mxu0 0.0
        %4216 = vmatmul.mubr.f32.gmra.mxu0 %v2326
        %v4217 = vpop.f32.mrf.mxu0
        %v4218 = vadd.f32 0.0, %v4217
        %v4219 = vpop.f32.mrf.mxu0
        %4220 = vmatprep.mubr.f32.mxu0 0.0
        %4221 = vmatmul.mubr.f32.gmra.mxu0 %v2328
        %v4222 = vpop.f32.mrf.mxu0
        %v4223 = vadd.f32 0.0, %v4222
        %v4224 = vpop.f32.mrf.mxu0
        %4225 = vmatprep.mubr.f32.mxu0 0.0
        %4226 = vmatmul.mubr.f32.gmra.mxu0 %v2330
        %v4227 = vpop.f32.mrf.mxu0
        %v4228 = vadd.f32 0.0, %v4227
        %v4229 = vpop.f32.mrf.mxu0
        %4230 = vmatprep.mubr.f32.mxu0 0.0
        %4231 = vmatmul.mubr.f32.gmra.mxu0 %v2332
        %v4232 = vpop.f32.mrf.mxu0
        %v4233 = vadd.f32 0.0, %v4232
        %v4234 = vpop.f32.mrf.mxu0
        %4235 = vmatprep.mubr.f32.mxu0 0.0
        %4236 = vmatmul.mubr.f32.gmra.mxu0 %v2334
        %v4237 = vpop.f32.mrf.mxu0
        %v4238 = vadd.f32 0.0, %v4237
        %v4239 = vpop.f32.mrf.mxu0
        %4240 = vmatprep.mubr.f32.mxu0 0.0
        %4241 = vmatmul.mubr.f32.gmra.mxu0 %v2336
        %v4242 = vpop.f32.mrf.mxu0
        %v4243 = vadd.f32 0.0, %v4242
        %v4244 = vpop.f32.mrf.mxu0
        %4245 = vmatprep.mubr.f32.mxu0 0.0
        %4246 = vmatmul.mubr.f32.gmra.mxu0 %v2338
        %v4247 = vpop.f32.mrf.mxu0
        %v4248 = vadd.f32 0.0, %v4247
        %v4249 = vpop.f32.mrf.mxu0
        %4250 = vmatprep.mubr.f32.mxu0 0.0
        %4251 = vmatmul.mubr.f32.gmra.mxu0 %v2340
        %v4252 = vpop.f32.mrf.mxu0
        %v4253 = vadd.f32 0.0, %v4252
        %v4254 = vpop.f32.mrf.mxu0
        %4255 = vmatprep.mubr.f32.mxu0 0.0
        %4256 = vmatmul.mubr.f32.gmra.mxu0 %v2342
        %v4257 = vpop.f32.mrf.mxu0
        %v4258 = vadd.f32 0.0, %v4257
        %v4259 = vpop.f32.mrf.mxu0
        %4260 = vmatprep.mubr.f32.mxu0 0.0
        %4261 = vmatmul.mubr.f32.gmra.mxu0 %v3096
        %v4262 = vpop.f32.mrf.mxu0
        %v4263 = vadd.f32 0.0, %v4262
        %v4264 = vpop.f32.mrf.mxu0
        %4265 = vmatprep.mubr.f32.mxu0 0.0
        %4266 = vmatmul.mubr.f32.gmra.mxu0 %v3098
        %v4267 = vpop.f32.mrf.mxu0
        %v4268 = vadd.f32 0.0, %v4267
        %v4269 = vpop.f32.mrf.mxu0
        %4270 = vmatprep.mubr.f32.mxu0 0.0
        %4271 = vmatmul.mubr.f32.gmra.mxu0 %v4067
        %v4272 = vpop.f32.mrf.mxu0
        %v4273 = vadd.f32 0.0, %v4272
        %v4274 = vpop.f32.mrf.mxu0
        %4275 = vmatprep.mubr.f32.mxu0 0.0
        %4276 = vmatmul.mubr.f32.gmra.mxu0 %v4069
        %v4277 = vpop.f32.mrf.mxu0
        %v4278 = vadd.f32 0.0, %v4277
        %v4279 = vpop.f32.mrf.mxu0
        %4280 = vdwg.mxu0
        %v4281 = vadd.f32 %v4029, %v4138
        %v4282 = vadd.f32 %v4030, %v4143
        %v4283 = vadd.f32 %v4031, %v4148
        %v4284 = vadd.f32 %v4032, %v4153
        %v4285 = vadd.f32 %v4033, %v4158
        %v4286 = vadd.f32 %v4034, %v4163
        %v4287 = vadd.f32 %v4035, %v4168
        %v4288 = vadd.f32 %v4036, %v4173
        %v4289 = vadd.f32 %v4037, %v4178
        %v4290 = vadd.f32 %v4038, %v4183
        %v4291 = vadd.f32 %v4039, %v4188
        %v4292 = vadd.f32 %v4040, %v4193
        %v4293 = vadd.f32 %v4041, %v4198
        %v4294 = vadd.f32 %v4042, %v4203
        %v4295 = vadd.f32 %v4043, %v4208
        %v4296 = vadd.f32 %v4044, %v4213
        %v4297 = vadd.f32 %v4045, %v4218
        %v4298 = vadd.f32 %v4046, %v4223
        %v4299 = vadd.f32 %v4047, %v4228
        %v4300 = vadd.f32 %v4048, %v4233
        %v4301 = vadd.f32 %v4049, %v4238
        %v4302 = vadd.f32 %v4050, %v4243
        %v4303 = vadd.f32 %v4051, %v4248
        %v4304 = vadd.f32 %v4052, %v4253
        %v4305 = vadd.f32 %v4053, %v4258
        %v4306 = vadd.f32 %v4054, %v4263
        %v4307 = vadd.f32 %v4055, %v4268
        %v4308 = vadd.f32 %v4056, %v4273
        %v4309 = vadd.f32 %v4057, %v4278
        %s4310 = scalar_lea.vmem %s3, 176
        %v4311 = vld [vmem:[%s4310] sm:$0xff]
        %v4312 = vld [vmem:[%s4310 + $0x8] sm:$0xff]
        %v4313 = vrot.slane %v870, 5
        %v4314 = vsel %vm566, %v3399, %v4313
        %v4315 = vrot.slane %v871, 5
        %v4316 = vsel %vm566, %v4313, %v4315
        %v4317 = vsel %vm969, %v4314, 0
        %v4319 = vsel %vm969, %v4316, 0
        %4321 = vmatprep.subr.mxu0 0.0
        %4322 = vmatpush1.msra.mxu0 0.0
        %4323 = vmatprep.subr.mxu0 0.0
        %4324 = vmatpush1.msra.mxu0 0.0
        %4325 = vmatprep.subr.mxu0 0.0
        %4326 = vmatpush1.msra.mxu0 0.0
        %4327 = vmatprep.subr.mxu0 0.0
        %4328 = vmatpush1.msra.mxu0 0.0
        %4329 = vmatprep.subr.mxu0 0.0
        %4330 = vmatpush1.msra.mxu0 0.0
        %4331 = vmatprep.subr.mxu0 0.0
        %4332 = vmatpush1.msra.mxu0 0.0
        %4333 = vmatprep.subr.mxu0 0.0
        %4334 = vmatpush1.msra.mxu0 0.0
        %4335 = vmatprep.subr.mxu0 0.0
        %4336 = vmatpush1.msra.mxu0 0.0
        %4337 = vmatprep.subr.mxu0 0.0
        %4338 = vmatpush1.msra.mxu0 0.0
        %4339 = vmatprep.subr.mxu0 0.0
        %4340 = vmatpush1.msra.mxu0 0.0
        %4341 = vmatprep.subr.mxu0 0.0
        %4342 = vmatpush1.msra.mxu0 0.0
        %4343 = vmatprep.subr.mxu0 0.0
        %4344 = vmatpush1.msra.mxu0 0.0
        %4345 = vmatprep.subr.mxu0 0.0
        %4346 = vmatpush1.msra.mxu0 0.0
        %4347 = vmatprep.subr.mxu0 0.0
        %4348 = vmatpush1.msra.mxu0 0.0
        %4349 = vmatprep.subr.mxu0 0.0
        %4350 = vmatpush1.msra.mxu0 %v4312
        %4351 = vmatprep.subr.mxu0 0.0
        %4352 = vmatpush1.msra.mxu0 %v4311
        %4353 = vmatprep.subr.mxu0 0.0
        %4354 = vmatpush2.msra.mxu0 0.0
        %4355 = vmatprep.subr.mxu0 0.0
        %4356 = vmatpush2.msra.mxu0 0.0
        %4357 = vmatprep.subr.mxu0 0.0
        %4358 = vmatpush2.msra.mxu0 0.0
        %4359 = vmatprep.subr.mxu0 0.0
        %4360 = vmatpush2.msra.mxu0 0.0
        %4361 = vmatprep.subr.mxu0 0.0
        %4362 = vmatpush2.msra.mxu0 0.0
        %4363 = vmatprep.subr.mxu0 0.0
        %4364 = vmatpush2.msra.mxu0 0.0
        %4365 = vmatprep.subr.mxu0 0.0
        %4366 = vmatpush2.msra.mxu0 0.0
        %4367 = vmatprep.subr.mxu0 0.0
        %4368 = vmatpush2.msra.mxu0 0.0
        %4369 = vmatprep.subr.mxu0 0.0
        %4370 = vmatpush2.msra.mxu0 0.0
        %4371 = vmatprep.subr.mxu0 0.0
        %4372 = vmatpush2.msra.mxu0 0.0
        %4373 = vmatprep.subr.mxu0 0.0
        %4374 = vmatpush2.msra.mxu0 0.0
        %4375 = vmatprep.subr.mxu0 0.0
        %4376 = vmatpush2.msra.mxu0 0.0
        %4377 = vmatprep.subr.mxu0 0.0
        %4378 = vmatpush2.msra.mxu0 0.0
        %4379 = vmatprep.subr.mxu0 0.0
        %4380 = vmatpush2.msra.mxu0 0.0
        %4381 = vmatprep.subr.mxu0 0.0
        %4382 = vmatpush2.msra.mxu0 0.0
        %4383 = vmatprep.subr.mxu0 0.0
        %4384 = vmatpush2.msra.mxu0 0.0
        %4385 = vmatprep.mubr.f32.mxu0 0.0
        %4386 = vmatmul.mubr.f32.gmra.mxu0 %v3405
        %v4387 = vpop.f32.mrf.mxu0
        %v4388 = vadd.f32 0.0, %v4387
        %v4389 = vpop.f32.mrf.mxu0
        %4390 = vmatprep.mubr.f32.mxu0 0.0
        %4391 = vmatmul.mubr.f32.gmra.mxu0 %v3407
        %v4392 = vpop.f32.mrf.mxu0
        %v4393 = vadd.f32 0.0, %v4392
        %v4394 = vpop.f32.mrf.mxu0
        %4395 = vmatprep.mubr.f32.mxu0 0.0
        %4396 = vmatmul.mubr.f32.gmra.mxu0 %v3409
        %v4397 = vpop.f32.mrf.mxu0
        %v4398 = vadd.f32 0.0, %v4397
        %v4399 = vpop.f32.mrf.mxu0
        %4400 = vmatprep.mubr.f32.mxu0 0.0
        %4401 = vmatmul.mubr.f32.gmra.mxu0 %v3411
        %v4402 = vpop.f32.mrf.mxu0
        %v4403 = vadd.f32 0.0, %v4402
        %v4404 = vpop.f32.mrf.mxu0
        %4405 = vmatprep.mubr.f32.mxu0 0.0
        %4406 = vmatmul.mubr.f32.gmra.mxu0 %v3413
        %v4407 = vpop.f32.mrf.mxu0
        %v4408 = vadd.f32 0.0, %v4407
        %v4409 = vpop.f32.mrf.mxu0
        %4410 = vmatprep.mubr.f32.mxu0 0.0
        %4411 = vmatmul.mubr.f32.gmra.mxu0 %v3415
        %v4412 = vpop.f32.mrf.mxu0
        %v4413 = vadd.f32 0.0, %v4412
        %v4414 = vpop.f32.mrf.mxu0
        %4415 = vmatprep.mubr.f32.mxu0 0.0
        %4416 = vmatmul.mubr.f32.gmra.mxu0 %v3417
        %v4417 = vpop.f32.mrf.mxu0
        %v4418 = vadd.f32 0.0, %v4417
        %v4419 = vpop.f32.mrf.mxu0
        %4420 = vmatprep.mubr.f32.mxu0 0.0
        %4421 = vmatmul.mubr.f32.gmra.mxu0 %v3419
        %v4422 = vpop.f32.mrf.mxu0
        %v4423 = vadd.f32 0.0, %v4422
        %v4424 = vpop.f32.mrf.mxu0
        %4425 = vmatprep.mubr.f32.mxu0 0.0
        %4426 = vmatmul.mubr.f32.gmra.mxu0 %v3421
        %v4427 = vpop.f32.mrf.mxu0
        %v4428 = vadd.f32 0.0, %v4427
        %v4429 = vpop.f32.mrf.mxu0
        %4430 = vmatprep.mubr.f32.mxu0 0.0
        %4431 = vmatmul.mubr.f32.gmra.mxu0 %v3423
        %v4432 = vpop.f32.mrf.mxu0
        %v4433 = vadd.f32 0.0, %v4432
        %v4434 = vpop.f32.mrf.mxu0
        %4435 = vmatprep.mubr.f32.mxu0 0.0
        %4436 = vmatmul.mubr.f32.gmra.mxu0 %v3425
        %v4437 = vpop.f32.mrf.mxu0
        %v4438 = vadd.f32 0.0, %v4437
        %v4439 = vpop.f32.mrf.mxu0
        %4440 = vmatprep.mubr.f32.mxu0 0.0
        %4441 = vmatmul.mubr.f32.gmra.mxu0 %v3427
        %v4442 = vpop.f32.mrf.mxu0
        %v4443 = vadd.f32 0.0, %v4442
        %v4444 = vpop.f32.mrf.mxu0
        %4445 = vmatprep.mubr.f32.mxu0 0.0
        %4446 = vmatmul.mubr.f32.gmra.mxu0 %v3429
        %v4447 = vpop.f32.mrf.mxu0
        %v4448 = vadd.f32 0.0, %v4447
        %v4449 = vpop.f32.mrf.mxu0
        %4450 = vmatprep.mubr.f32.mxu0 0.0
        %4451 = vmatmul.mubr.f32.gmra.mxu0 %v3431
        %v4452 = vpop.f32.mrf.mxu0
        %v4453 = vadd.f32 0.0, %v4452
        %v4454 = vpop.f32.mrf.mxu0
        %4455 = vmatprep.mubr.f32.mxu0 0.0
        %4456 = vmatmul.mubr.f32.gmra.mxu0 %v3433
        %v4457 = vpop.f32.mrf.mxu0
        %v4458 = vadd.f32 0.0, %v4457
        %v4459 = vpop.f32.mrf.mxu0
        %4460 = vmatprep.mubr.f32.mxu0 0.0
        %4461 = vmatmul.mubr.f32.gmra.mxu0 %v3435
        %v4462 = vpop.f32.mrf.mxu0
        %v4463 = vadd.f32 0.0, %v4462
        %v4464 = vpop.f32.mrf.mxu0
        %4465 = vmatprep.mubr.f32.mxu0 0.0
        %4466 = vmatmul.mubr.f32.gmra.mxu0 %v3437
        %v4467 = vpop.f32.mrf.mxu0
        %v4468 = vadd.f32 0.0, %v4467
        %v4469 = vpop.f32.mrf.mxu0
        %4470 = vmatprep.mubr.f32.mxu0 0.0
        %4471 = vmatmul.mubr.f32.gmra.mxu0 %v3439
        %v4472 = vpop.f32.mrf.mxu0
        %v4473 = vadd.f32 0.0, %v4472
        %v4474 = vpop.f32.mrf.mxu0
        %4475 = vmatprep.mubr.f32.mxu0 0.0
        %4476 = vmatmul.mubr.f32.gmra.mxu0 %v3441
        %v4477 = vpop.f32.mrf.mxu0
        %v4478 = vadd.f32 0.0, %v4477
        %v4479 = vpop.f32.mrf.mxu0
        %4480 = vmatprep.mubr.f32.mxu0 0.0
        %4481 = vmatmul.mubr.f32.gmra.mxu0 %v3443
        %v4482 = vpop.f32.mrf.mxu0
        %v4483 = vadd.f32 0.0, %v4482
        %v4484 = vpop.f32.mrf.mxu0
        %4485 = vmatprep.mubr.f32.mxu0 0.0
        %4486 = vmatmul.mubr.f32.gmra.mxu0 %v3445
        %v4487 = vpop.f32.mrf.mxu0
        %v4488 = vadd.f32 0.0, %v4487
        %v4489 = vpop.f32.mrf.mxu0
        %4490 = vmatprep.mubr.f32.mxu0 0.0
        %4491 = vmatmul.mubr.f32.gmra.mxu0 %v3447
        %v4492 = vpop.f32.mrf.mxu0
        %v4493 = vadd.f32 0.0, %v4492
        %v4494 = vpop.f32.mrf.mxu0
        %4495 = vmatprep.mubr.f32.mxu0 0.0
        %4496 = vmatmul.mubr.f32.gmra.mxu0 %v3449
        %v4497 = vpop.f32.mrf.mxu0
        %v4498 = vadd.f32 0.0, %v4497
        %v4499 = vpop.f32.mrf.mxu0
        %4500 = vmatprep.mubr.f32.mxu0 0.0
        %4501 = vmatmul.mubr.f32.gmra.mxu0 %v3451
        %v4502 = vpop.f32.mrf.mxu0
        %v4503 = vadd.f32 0.0, %v4502
        %v4504 = vpop.f32.mrf.mxu0
        %4505 = vmatprep.mubr.f32.mxu0 0.0
        %4506 = vmatmul.mubr.f32.gmra.mxu0 %v3453
        %v4507 = vpop.f32.mrf.mxu0
        %v4508 = vadd.f32 0.0, %v4507
        %v4509 = vpop.f32.mrf.mxu0
        %4510 = vmatprep.mubr.f32.mxu0 0.0
        %4511 = vmatmul.mubr.f32.gmra.mxu0 %v3455
        %v4512 = vpop.f32.mrf.mxu0
        %v4513 = vadd.f32 0.0, %v4512
        %v4514 = vpop.f32.mrf.mxu0
        %4515 = vmatprep.mubr.f32.mxu0 0.0
        %4516 = vmatmul.mubr.f32.gmra.mxu0 %v3457
        %v4517 = vpop.f32.mrf.mxu0
        %v4518 = vadd.f32 0.0, %v4517
        %v4519 = vpop.f32.mrf.mxu0
        %4520 = vmatprep.mubr.f32.mxu0 0.0
        %4521 = vmatmul.mubr.f32.gmra.mxu0 %v4317
        %v4522 = vpop.f32.mrf.mxu0
        %v4523 = vadd.f32 0.0, %v4522
        %v4524 = vpop.f32.mrf.mxu0
        %4525 = vmatprep.mubr.f32.mxu0 0.0
        %4526 = vmatmul.mubr.f32.gmra.mxu0 %v4319
        %v4527 = vpop.f32.mrf.mxu0
        %v4528 = vadd.f32 0.0, %v4527
        %v4529 = vpop.f32.mrf.mxu0
        %4530 = vdwg.mxu0
        %v4531 = vadd.f32 %v4281, %v4388
        %v4532 = vadd.f32 %v4282, %v4393
        %v4533 = vadd.f32 %v4283, %v4398
        %v4534 = vadd.f32 %v4284, %v4403
        %v4535 = vadd.f32 %v4285, %v4408
        %v4536 = vadd.f32 %v4286, %v4413
        %v4537 = vadd.f32 %v4287, %v4418
        %v4538 = vadd.f32 %v4288, %v4423
        %v4539 = vadd.f32 %v4289, %v4428
        %v4540 = vadd.f32 %v4290, %v4433
        %v4541 = vadd.f32 %v4291, %v4438
        %v4542 = vadd.f32 %v4292, %v4443
        %v4543 = vadd.f32 %v4293, %v4448
        %v4544 = vadd.f32 %v4294, %v4453
        %v4545 = vadd.f32 %v4295, %v4458
        %v4546 = vadd.f32 %v4296, %v4463
        %v4547 = vadd.f32 %v4297, %v4468
        %v4548 = vadd.f32 %v4298, %v4473
        %v4549 = vadd.f32 %v4299, %v4478
        %v4550 = vadd.f32 %v4300, %v4483
        %v4551 = vadd.f32 %v4301, %v4488
        %v4552 = vadd.f32 %v4302, %v4493
        %v4553 = vadd.f32 %v4303, %v4498
        %v4554 = vadd.f32 %v4304, %v4503
        %v4555 = vadd.f32 %v4305, %v4508
        %v4556 = vadd.f32 %v4306, %v4513
        %v4557 = vadd.f32 %v4307, %v4518
        %v4558 = vadd.f32 %v4308, %v4523
        %v4559 = vadd.f32 %v4309, %v4528
        %s4560 = scalar_lea.vmem %s3, 192
        %v4561 = vld [vmem:[%s4560] sm:$0xff]
        %v4562 = vld [vmem:[%s4560 + $0x8] sm:$0xff]
        %v4563 = vrot.slane %v870, 6
        %v4564 = vsel %vm3701, %v3759, %v4563
        %v4565 = vrot.slane %v871, 6
        %v4566 = vsel %vm3701, %v4563, %v4565
        %v4567 = vsel %vm969, %v4564, 0
        %v4569 = vsel %vm969, %v4566, 0
        %4571 = vmatprep.subr.mxu0 0.0
        %4572 = vmatpush1.msra.mxu0 0.0
        %4573 = vmatprep.subr.mxu0 0.0
        %4574 = vmatpush1.msra.mxu0 0.0
        %4575 = vmatprep.subr.mxu0 0.0
        %4576 = vmatpush1.msra.mxu0 0.0
        %4577 = vmatprep.subr.mxu0 0.0
        %4578 = vmatpush1.msra.mxu0 0.0
        %4579 = vmatprep.subr.mxu0 0.0
        %4580 = vmatpush1.msra.mxu0 0.0
        %4581 = vmatprep.subr.mxu0 0.0
        %4582 = vmatpush1.msra.mxu0 0.0
        %4583 = vmatprep.subr.mxu0 0.0
        %4584 = vmatpush1.msra.mxu0 0.0
        %4585 = vmatprep.subr.mxu0 0.0
        %4586 = vmatpush1.msra.mxu0 0.0
        %4587 = vmatprep.subr.mxu0 0.0
        %4588 = vmatpush1.msra.mxu0 0.0
        %4589 = vmatprep.subr.mxu0 0.0
        %4590 = vmatpush1.msra.mxu0 0.0
        %4591 = vmatprep.subr.mxu0 0.0
        %4592 = vmatpush1.msra.mxu0 0.0
        %4593 = vmatprep.subr.mxu0 0.0
        %4594 = vmatpush1.msra.mxu0 0.0
        %4595 = vmatprep.subr.mxu0 0.0
        %4596 = vmatpush1.msra.mxu0 0.0
        %4597 = vmatprep.subr.mxu0 0.0
        %4598 = vmatpush1.msra.mxu0 0.0
        %4599 = vmatprep.subr.mxu0 0.0
        %4600 = vmatpush1.msra.mxu0 %v4562
        %4601 = vmatprep.subr.mxu0 0.0
        %4602 = vmatpush1.msra.mxu0 %v4561
        %4603 = vmatprep.subr.mxu0 0.0
        %4604 = vmatpush2.msra.mxu0 0.0
        %4605 = vmatprep.subr.mxu0 0.0
        %4606 = vmatpush2.msra.mxu0 0.0
        %4607 = vmatprep.subr.mxu0 0.0
        %4608 = vmatpush2.msra.mxu0 0.0
        %4609 = vmatprep.subr.mxu0 0.0
        %4610 = vmatpush2.msra.mxu0 0.0
        %4611 = vmatprep.subr.mxu0 0.0
        %4612 = vmatpush2.msra.mxu0 0.0
        %4613 = vmatprep.subr.mxu0 0.0
        %4614 = vmatpush2.msra.mxu0 0.0
        %4615 = vmatprep.subr.mxu0 0.0
        %4616 = vmatpush2.msra.mxu0 0.0
        %4617 = vmatprep.subr.mxu0 0.0
        %4618 = vmatpush2.msra.mxu0 0.0
        %4619 = vmatprep.subr.mxu0 0.0
        %4620 = vmatpush2.msra.mxu0 0.0
        %4621 = vmatprep.subr.mxu0 0.0
        %4622 = vmatpush2.msra.mxu0 0.0
        %4623 = vmatprep.subr.mxu0 0.0
        %4624 = vmatpush2.msra.mxu0 0.0
        %4625 = vmatprep.subr.mxu0 0.0
        %4626 = vmatpush2.msra.mxu0 0.0
        %4627 = vmatprep.subr.mxu0 0.0
        %4628 = vmatpush2.msra.mxu0 0.0
        %4629 = vmatprep.subr.mxu0 0.0
        %4630 = vmatpush2.msra.mxu0 0.0
        %4631 = vmatprep.subr.mxu0 0.0
        %4632 = vmatpush2.msra.mxu0 0.0
        %4633 = vmatprep.subr.mxu0 0.0
        %4634 = vmatpush2.msra.mxu0 0.0
        %4635 = vmatprep.mubr.f32.mxu0 0.0
        %4636 = vmatmul.mubr.f32.gmra.mxu0 %v3765
        %v4637 = vpop.f32.mrf.mxu0
        %v4638 = vadd.f32 0.0, %v4637
        %v4639 = vpop.f32.mrf.mxu0
        %4640 = vmatprep.mubr.f32.mxu0 0.0
        %4641 = vmatmul.mubr.f32.gmra.mxu0 %v3767
        %v4642 = vpop.f32.mrf.mxu0
        %v4643 = vadd.f32 0.0, %v4642
        %v4644 = vpop.f32.mrf.mxu0
        %4645 = vmatprep.mubr.f32.mxu0 0.0
        %4646 = vmatmul.mubr.f32.gmra.mxu0 %v3769
        %v4647 = vpop.f32.mrf.mxu0
        %v4648 = vadd.f32 0.0, %v4647
        %v4649 = vpop.f32.mrf.mxu0
        %4650 = vmatprep.mubr.f32.mxu0 0.0
        %4651 = vmatmul.mubr.f32.gmra.mxu0 %v3771
        %v4652 = vpop.f32.mrf.mxu0
        %v4653 = vadd.f32 0.0, %v4652
        %v4654 = vpop.f32.mrf.mxu0
        %4655 = vmatprep.mubr.f32.mxu0 0.0
        %4656 = vmatmul.mubr.f32.gmra.mxu0 %v3773
        %v4657 = vpop.f32.mrf.mxu0
        %v4658 = vadd.f32 0.0, %v4657
        %v4659 = vpop.f32.mrf.mxu0
        %4660 = vmatprep.mubr.f32.mxu0 0.0
        %4661 = vmatmul.mubr.f32.gmra.mxu0 %v3775
        %v4662 = vpop.f32.mrf.mxu0
        %v4663 = vadd.f32 0.0, %v4662
        %v4664 = vpop.f32.mrf.mxu0
        %4665 = vmatprep.mubr.f32.mxu0 0.0
        %4666 = vmatmul.mubr.f32.gmra.mxu0 %v3777
        %v4667 = vpop.f32.mrf.mxu0
        %v4668 = vadd.f32 0.0, %v4667
        %v4669 = vpop.f32.mrf.mxu0
        %4670 = vmatprep.mubr.f32.mxu0 0.0
        %4671 = vmatmul.mubr.f32.gmra.mxu0 %v3779
        %v4672 = vpop.f32.mrf.mxu0
        %v4673 = vadd.f32 0.0, %v4672
        %v4674 = vpop.f32.mrf.mxu0
        %4675 = vmatprep.mubr.f32.mxu0 0.0
        %4676 = vmatmul.mubr.f32.gmra.mxu0 %v3781
        %v4677 = vpop.f32.mrf.mxu0
        %v4678 = vadd.f32 0.0, %v4677
        %v4679 = vpop.f32.mrf.mxu0
        %4680 = vmatprep.mubr.f32.mxu0 0.0
        %4681 = vmatmul.mubr.f32.gmra.mxu0 %v3783
        %v4682 = vpop.f32.mrf.mxu0
        %v4683 = vadd.f32 0.0, %v4682
        %v4684 = vpop.f32.mrf.mxu0
        %4685 = vmatprep.mubr.f32.mxu0 0.0
        %4686 = vmatmul.mubr.f32.gmra.mxu0 %v3785
        %v4687 = vpop.f32.mrf.mxu0
        %v4688 = vadd.f32 0.0, %v4687
        %v4689 = vpop.f32.mrf.mxu0
        %4690 = vmatprep.mubr.f32.mxu0 0.0
        %4691 = vmatmul.mubr.f32.gmra.mxu0 %v3787
        %v4692 = vpop.f32.mrf.mxu0
        %v4693 = vadd.f32 0.0, %v4692
        %v4694 = vpop.f32.mrf.mxu0
        %4695 = vmatprep.mubr.f32.mxu0 0.0
        %4696 = vmatmul.mubr.f32.gmra.mxu0 %v3789
        %v4697 = vpop.f32.mrf.mxu0
        %v4698 = vadd.f32 0.0, %v4697
        %v4699 = vpop.f32.mrf.mxu0
        %4700 = vmatprep.mubr.f32.mxu0 0.0
        %4701 = vmatmul.mubr.f32.gmra.mxu0 %v3791
        %v4702 = vpop.f32.mrf.mxu0
        %v4703 = vadd.f32 0.0, %v4702
        %v4704 = vpop.f32.mrf.mxu0
        %4705 = vmatprep.mubr.f32.mxu0 0.0
        %4706 = vmatmul.mubr.f32.gmra.mxu0 %v3793
        %v4707 = vpop.f32.mrf.mxu0
        %v4708 = vadd.f32 0.0, %v4707
        %v4709 = vpop.f32.mrf.mxu0
        %4710 = vmatprep.mubr.f32.mxu0 0.0
        %4711 = vmatmul.mubr.f32.gmra.mxu0 %v3795
        %v4712 = vpop.f32.mrf.mxu0
        %v4713 = vadd.f32 0.0, %v4712
        %v4714 = vpop.f32.mrf.mxu0
        %4715 = vmatprep.mubr.f32.mxu0 0.0
        %4716 = vmatmul.mubr.f32.gmra.mxu0 %v3797
        %v4717 = vpop.f32.mrf.mxu0
        %v4718 = vadd.f32 0.0, %v4717
        %v4719 = vpop.f32.mrf.mxu0
        %4720 = vmatprep.mubr.f32.mxu0 0.0
        %4721 = vmatmul.mubr.f32.gmra.mxu0 %v3799
        %v4722 = vpop.f32.mrf.mxu0
        %v4723 = vadd.f32 0.0, %v4722
        %v4724 = vpop.f32.mrf.mxu0
        %4725 = vmatprep.mubr.f32.mxu0 0.0
        %4726 = vmatmul.mubr.f32.gmra.mxu0 %v3801
        %v4727 = vpop.f32.mrf.mxu0
        %v4728 = vadd.f32 0.0, %v4727
        %v4729 = vpop.f32.mrf.mxu0
        %4730 = vmatprep.mubr.f32.mxu0 0.0
        %4731 = vmatmul.mubr.f32.gmra.mxu0 %v3803
        %v4732 = vpop.f32.mrf.mxu0
        %v4733 = vadd.f32 0.0, %v4732
        %v4734 = vpop.f32.mrf.mxu0
        %4735 = vmatprep.mubr.f32.mxu0 0.0
        %4736 = vmatmul.mubr.f32.gmra.mxu0 %v3805
        %v4737 = vpop.f32.mrf.mxu0
        %v4738 = vadd.f32 0.0, %v4737
        %v4739 = vpop.f32.mrf.mxu0
        %4740 = vmatprep.mubr.f32.mxu0 0.0
        %4741 = vmatmul.mubr.f32.gmra.mxu0 %v3807
        %v4742 = vpop.f32.mrf.mxu0
        %v4743 = vadd.f32 0.0, %v4742
        %v4744 = vpop.f32.mrf.mxu0
        %4745 = vmatprep.mubr.f32.mxu0 0.0
        %4746 = vmatmul.mubr.f32.gmra.mxu0 %v3809
        %v4747 = vpop.f32.mrf.mxu0
        %v4748 = vadd.f32 0.0, %v4747
        %v4749 = vpop.f32.mrf.mxu0
        %4750 = vmatprep.mubr.f32.mxu0 0.0
        %4751 = vmatmul.mubr.f32.gmra.mxu0 %v3811
        %v4752 = vpop.f32.mrf.mxu0
        %v4753 = vadd.f32 0.0, %v4752
        %v4754 = vpop.f32.mrf.mxu0
        %4755 = vmatprep.mubr.f32.mxu0 0.0
        %4756 = vmatmul.mubr.f32.gmra.mxu0 %v3813
        %v4757 = vpop.f32.mrf.mxu0
        %v4758 = vadd.f32 0.0, %v4757
        %v4759 = vpop.f32.mrf.mxu0
        %4760 = vmatprep.mubr.f32.mxu0 0.0
        %4761 = vmatmul.mubr.f32.gmra.mxu0 %v3815
        %v4762 = vpop.f32.mrf.mxu0
        %v4763 = vadd.f32 0.0, %v4762
        %v4764 = vpop.f32.mrf.mxu0
        %4765 = vmatprep.mubr.f32.mxu0 0.0
        %4766 = vmatmul.mubr.f32.gmra.mxu0 %v3817
        %v4767 = vpop.f32.mrf.mxu0
        %v4768 = vadd.f32 0.0, %v4767
        %v4769 = vpop.f32.mrf.mxu0
        %4770 = vmatprep.mubr.f32.mxu0 0.0
        %4771 = vmatmul.mubr.f32.gmra.mxu0 %v4567
        %v4772 = vpop.f32.mrf.mxu0
        %v4773 = vadd.f32 0.0, %v4772
        %v4774 = vpop.f32.mrf.mxu0
        %4775 = vmatprep.mubr.f32.mxu0 0.0
        %4776 = vmatmul.mubr.f32.gmra.mxu0 %v4569
        %v4777 = vpop.f32.mrf.mxu0
        %v4778 = vadd.f32 0.0, %v4777
        %v4779 = vpop.f32.mrf.mxu0
        %4780 = vdwg.mxu0
        %v4781 = vadd.f32 %v4531, %v4638
        %v4782 = vadd.f32 %v4532, %v4643
        %v4783 = vadd.f32 %v4533, %v4648
        %v4784 = vadd.f32 %v4534, %v4653
        %v4785 = vadd.f32 %v4535, %v4658
        %v4786 = vadd.f32 %v4536, %v4663
        %v4787 = vadd.f32 %v4537, %v4668
        %v4788 = vadd.f32 %v4538, %v4673
        %v4789 = vadd.f32 %v4539, %v4678
        %v4790 = vadd.f32 %v4540, %v4683
        %v4791 = vadd.f32 %v4541, %v4688
        %v4792 = vadd.f32 %v4542, %v4693
        %v4793 = vadd.f32 %v4543, %v4698
        %v4794 = vadd.f32 %v4544, %v4703
        %v4795 = vadd.f32 %v4545, %v4708
        %v4796 = vadd.f32 %v4546, %v4713
        %v4797 = vadd.f32 %v4547, %v4718
        %v4798 = vadd.f32 %v4548, %v4723
        %v4799 = vadd.f32 %v4549, %v4728
        %v4800 = vadd.f32 %v4550, %v4733
        %v4801 = vadd.f32 %v4551, %v4738
        %v4802 = vadd.f32 %v4552, %v4743
        %v4803 = vadd.f32 %v4553, %v4748
        %v4804 = vadd.f32 %v4554, %v4753
        %v4805 = vadd.f32 %v4555, %v4758
        %v4806 = vadd.f32 %v4556, %v4763
        %v4807 = vadd.f32 %v4557, %v4768
        %v4808 = vadd.f32 %v4558, %v4773
        %v4809 = vadd.f32 %v4559, %v4778
        %s4810 = scalar_lea.vmem %s3, 208
        %v4811 = vld [vmem:[%s4810] sm:$0xff]
        %v4812 = vld [vmem:[%s4810 + $0x8] sm:$0xff]
        %vm4813 = vcmask 1040384
        %v4814 = vrot.slane %v842, 7
        %v4815 = vrot.slane %v843, 7
        %v4816 = vsel %vm4813, %v4814, %v4815
        %v4817 = vrot.slane %v844, 7
        %v4818 = vsel %vm4813, %v4815, %v4817
        %v4819 = vrot.slane %v845, 7
        %v4820 = vsel %vm4813, %v4817, %v4819
        %v4821 = vrot.slane %v846, 7
        %v4822 = vsel %vm4813, %v4819, %v4821
        %v4823 = vrot.slane %v847, 7
        %v4824 = vsel %vm4813, %v4821, %v4823
        %v4825 = vrot.slane %v848, 7
        %v4826 = vsel %vm4813, %v4823, %v4825
        %v4827 = vrot.slane %v849, 7
        %v4828 = vsel %vm4813, %v4825, %v4827
        %v4829 = vrot.slane %v850, 7
        %v4830 = vsel %vm4813, %v4827, %v4829
        %v4831 = vrot.slane %v851, 7
        %v4832 = vsel %vm4813, %v4829, %v4831
        %v4833 = vrot.slane %v852, 7
        %v4834 = vsel %vm4813, %v4831, %v4833
        %v4835 = vrot.slane %v853, 7
        %v4836 = vsel %vm4813, %v4833, %v4835
        %v4837 = vrot.slane %v854, 7
        %v4838 = vsel %vm4813, %v4835, %v4837
        %v4839 = vrot.slane %v855, 7
        %v4840 = vsel %vm4813, %v4837, %v4839
        %v4841 = vrot.slane %v856, 7
        %v4842 = vsel %vm4813, %v4839, %v4841
        %v4843 = vrot.slane %v857, 7
        %v4844 = vsel %vm4813, %v4841, %v4843
        %v4845 = vrot.slane %v858, 7
        %v4846 = vsel %vm4813, %v4843, %v4845
        %v4847 = vrot.slane %v859, 7
        %v4848 = vsel %vm4813, %v4845, %v4847
        %v4849 = vrot.slane %v860, 7
        %v4850 = vsel %vm4813, %v4847, %v4849
        %v4851 = vrot.slane %v861, 7
        %v4852 = vsel %vm4813, %v4849, %v4851
        %v4853 = vrot.slane %v862, 7
        %v4854 = vsel %vm4813, %v4851, %v4853
        %v4855 = vrot.slane %v863, 7
        %v4856 = vsel %vm4813, %v4853, %v4855
        %v4857 = vrot.slane %v864, 7
        %v4858 = vsel %vm4813, %v4855, %v4857
        %v4859 = vrot.slane %v865, 7
        %v4860 = vsel %vm4813, %v4857, %v4859
        %v4861 = vrot.slane %v866, 7
        %v4862 = vsel %vm4813, %v4859, %v4861
        %v4863 = vrot.slane %v867, 7
        %v4864 = vsel %vm4813, %v4861, %v4863
        %v4865 = vrot.slane %v868, 7
        %v4866 = vsel %vm4813, %v4863, %v4865
        %v4867 = vrot.slane %v869, 7
        %v4868 = vsel %vm4813, %v4865, %v4867
        %v4869 = vrot.slane %v870, 7
        %v4870 = vsel %vm4813, %v4867, %v4869
        %v4871 = vrot.slane %v871, 7
        %v4872 = vsel %vm4813, %v4869, %v4871
        %v4873 = vsel %vm969, %v4816, 0
        %v4875 = vsel %vm969, %v4818, 0
        %v4877 = vsel %vm969, %v4820, 0
        %v4879 = vsel %vm969, %v4822, 0
        %v4881 = vsel %vm969, %v4824, 0
        %v4883 = vsel %vm969, %v4826, 0
        %v4885 = vsel %vm969, %v4828, 0
        %v4887 = vsel %vm969, %v4830, 0
        %v4889 = vsel %vm969, %v4832, 0
        %v4891 = vsel %vm969, %v4834, 0
        %v4893 = vsel %vm969, %v4836, 0
        %v4895 = vsel %vm969, %v4838, 0
        %v4897 = vsel %vm969, %v4840, 0
        %v4899 = vsel %vm969, %v4842, 0
        %v4901 = vsel %vm969, %v4844, 0
        %v4903 = vsel %vm969, %v4846, 0
        %v4905 = vsel %vm969, %v4848, 0
        %v4907 = vsel %vm969, %v4850, 0
        %v4909 = vsel %vm969, %v4852, 0
        %v4911 = vsel %vm969, %v4854, 0
        %v4913 = vsel %vm969, %v4856, 0
        %v4915 = vsel %vm969, %v4858, 0
        %v4917 = vsel %vm969, %v4860, 0
        %v4919 = vsel %vm969, %v4862, 0
        %v4921 = vsel %vm969, %v4864, 0
        %v4923 = vsel %vm969, %v4866, 0
        %v4925 = vsel %vm969, %v4868, 0
        %v4927 = vsel %vm969, %v4870, 0
        %v4929 = vsel %vm969, %v4872, 0
        %4931 = vmatprep.subr.mxu0 0.0
        %4932 = vmatpush1.msra.mxu0 0.0
        %4933 = vmatprep.subr.mxu0 0.0
        %4934 = vmatpush1.msra.mxu0 0.0
        %4935 = vmatprep.subr.mxu0 0.0
        %4936 = vmatpush1.msra.mxu0 0.0
        %4937 = vmatprep.subr.mxu0 0.0
        %4938 = vmatpush1.msra.mxu0 0.0
        %4939 = vmatprep.subr.mxu0 0.0
        %4940 = vmatpush1.msra.mxu0 0.0
        %4941 = vmatprep.subr.mxu0 0.0
        %4942 = vmatpush1.msra.mxu0 0.0
        %4943 = vmatprep.subr.mxu0 0.0
        %4944 = vmatpush1.msra.mxu0 0.0
        %4945 = vmatprep.subr.mxu0 0.0
        %4946 = vmatpush1.msra.mxu0 0.0
        %4947 = vmatprep.subr.mxu0 0.0
        %4948 = vmatpush1.msra.mxu0 0.0
        %4949 = vmatprep.subr.mxu0 0.0
        %4950 = vmatpush1.msra.mxu0 0.0
        %4951 = vmatprep.subr.mxu0 0.0
        %4952 = vmatpush1.msra.mxu0 0.0
        %4953 = vmatprep.subr.mxu0 0.0
        %4954 = vmatpush1.msra.mxu0 0.0
        %4955 = vmatprep.subr.mxu0 0.0
        %4956 = vmatpush1.msra.mxu0 0.0
        %4957 = vmatprep.subr.mxu0 0.0
        %4958 = vmatpush1.msra.mxu0 0.0
        %4959 = vmatprep.subr.mxu0 0.0
        %4960 = vmatpush1.msra.mxu0 %v4812
        %4961 = vmatprep.subr.mxu0 0.0
        %4962 = vmatpush1.msra.mxu0 %v4811
        %4963 = vmatprep.subr.mxu0 0.0
        %4964 = vmatpush2.msra.mxu0 0.0
        %4965 = vmatprep.subr.mxu0 0.0
        %4966 = vmatpush2.msra.mxu0 0.0
        %4967 = vmatprep.subr.mxu0 0.0
        %4968 = vmatpush2.msra.mxu0 0.0
        %4969 = vmatprep.subr.mxu0 0.0
        %4970 = vmatpush2.msra.mxu0 0.0
        %4971 = vmatprep.subr.mxu0 0.0
        %4972 = vmatpush2.msra.mxu0 0.0
        %4973 = vmatprep.subr.mxu0 0.0
        %4974 = vmatpush2.msra.mxu0 0.0
        %4975 = vmatprep.subr.mxu0 0.0
        %4976 = vmatpush2.msra.mxu0 0.0
        %4977 = vmatprep.subr.mxu0 0.0
        %4978 = vmatpush2.msra.mxu0 0.0
        %4979 = vmatprep.subr.mxu0 0.0
        %4980 = vmatpush2.msra.mxu0 0.0
        %4981 = vmatprep.subr.mxu0 0.0
        %4982 = vmatpush2.msra.mxu0 0.0
        %4983 = vmatprep.subr.mxu0 0.0
        %4984 = vmatpush2.msra.mxu0 0.0
        %4985 = vmatprep.subr.mxu0 0.0
        %4986 = vmatpush2.msra.mxu0 0.0
        %4987 = vmatprep.subr.mxu0 0.0
        %4988 = vmatpush2.msra.mxu0 0.0
        %4989 = vmatprep.subr.mxu0 0.0
        %4990 = vmatpush2.msra.mxu0 0.0
        %4991 = vmatprep.subr.mxu0 0.0
        %4992 = vmatpush2.msra.mxu0 0.0
        %4993 = vmatprep.subr.mxu0 0.0
        %4994 = vmatpush2.msra.mxu0 0.0
        %4995 = vmatprep.mubr.f32.mxu0 0.0
        %4996 = vmatmul.mubr.f32.gmra.mxu0 %v4873
        %v4997 = vpop.f32.mrf.mxu0
        %v4998 = vadd.f32 0.0, %v4997
        %v4999 = vpop.f32.mrf.mxu0
        %5000 = vmatprep.mubr.f32.mxu0 0.0
        %5001 = vmatmul.mubr.f32.gmra.mxu0 %v4875
        %v5002 = vpop.f32.mrf.mxu0
        %v5003 = vadd.f32 0.0, %v5002
        %v5004 = vpop.f32.mrf.mxu0
        %5005 = vmatprep.mubr.f32.mxu0 0.0
        %5006 = vmatmul.mubr.f32.gmra.mxu0 %v4877
        %v5007 = vpop.f32.mrf.mxu0
        %v5008 = vadd.f32 0.0, %v5007
        %v5009 = vpop.f32.mrf.mxu0
        %5010 = vmatprep.mubr.f32.mxu0 0.0
        %5011 = vmatmul.mubr.f32.gmra.mxu0 %v4879
        %v5012 = vpop.f32.mrf.mxu0
        %v5013 = vadd.f32 0.0, %v5012
        %v5014 = vpop.f32.mrf.mxu0
        %5015 = vmatprep.mubr.f32.mxu0 0.0
        %5016 = vmatmul.mubr.f32.gmra.mxu0 %v4881
        %v5017 = vpop.f32.mrf.mxu0
        %v5018 = vadd.f32 0.0, %v5017
        %v5019 = vpop.f32.mrf.mxu0
        %5020 = vmatprep.mubr.f32.mxu0 0.0
        %5021 = vmatmul.mubr.f32.gmra.mxu0 %v4883
        %v5022 = vpop.f32.mrf.mxu0
        %v5023 = vadd.f32 0.0, %v5022
        %v5024 = vpop.f32.mrf.mxu0
        %5025 = vmatprep.mubr.f32.mxu0 0.0
        %5026 = vmatmul.mubr.f32.gmra.mxu0 %v4885
        %v5027 = vpop.f32.mrf.mxu0
        %v5028 = vadd.f32 0.0, %v5027
        %v5029 = vpop.f32.mrf.mxu0
        %5030 = vmatprep.mubr.f32.mxu0 0.0
        %5031 = vmatmul.mubr.f32.gmra.mxu0 %v4887
        %v5032 = vpop.f32.mrf.mxu0
        %v5033 = vadd.f32 0.0, %v5032
        %v5034 = vpop.f32.mrf.mxu0
        %5035 = vmatprep.mubr.f32.mxu0 0.0
        %5036 = vmatmul.mubr.f32.gmra.mxu0 %v4889
        %v5037 = vpop.f32.mrf.mxu0
        %v5038 = vadd.f32 0.0, %v5037
        %v5039 = vpop.f32.mrf.mxu0
        %5040 = vmatprep.mubr.f32.mxu0 0.0
        %5041 = vmatmul.mubr.f32.gmra.mxu0 %v4891
        %v5042 = vpop.f32.mrf.mxu0
        %v5043 = vadd.f32 0.0, %v5042
        %v5044 = vpop.f32.mrf.mxu0
        %5045 = vmatprep.mubr.f32.mxu0 0.0
        %5046 = vmatmul.mubr.f32.gmra.mxu0 %v4893
        %v5047 = vpop.f32.mrf.mxu0
        %v5048 = vadd.f32 0.0, %v5047
        %v5049 = vpop.f32.mrf.mxu0
        %5050 = vmatprep.mubr.f32.mxu0 0.0
        %5051 = vmatmul.mubr.f32.gmra.mxu0 %v4895
        %v5052 = vpop.f32.mrf.mxu0
        %v5053 = vadd.f32 0.0, %v5052
        %v5054 = vpop.f32.mrf.mxu0
        %5055 = vmatprep.mubr.f32.mxu0 0.0
        %5056 = vmatmul.mubr.f32.gmra.mxu0 %v4897
        %v5057 = vpop.f32.mrf.mxu0
        %v5058 = vadd.f32 0.0, %v5057
        %v5059 = vpop.f32.mrf.mxu0
        %5060 = vmatprep.mubr.f32.mxu0 0.0
        %5061 = vmatmul.mubr.f32.gmra.mxu0 %v4899
        %v5062 = vpop.f32.mrf.mxu0
        %v5063 = vadd.f32 0.0, %v5062
        %v5064 = vpop.f32.mrf.mxu0
        %5065 = vmatprep.mubr.f32.mxu0 0.0
        %5066 = vmatmul.mubr.f32.gmra.mxu0 %v4901
        %v5067 = vpop.f32.mrf.mxu0
        %v5068 = vadd.f32 0.0, %v5067
        %v5069 = vpop.f32.mrf.mxu0
        %5070 = vmatprep.mubr.f32.mxu0 0.0
        %5071 = vmatmul.mubr.f32.gmra.mxu0 %v4903
        %v5072 = vpop.f32.mrf.mxu0
        %v5073 = vadd.f32 0.0, %v5072
        %v5074 = vpop.f32.mrf.mxu0
        %5075 = vmatprep.mubr.f32.mxu0 0.0
        %5076 = vmatmul.mubr.f32.gmra.mxu0 %v4905
        %v5077 = vpop.f32.mrf.mxu0
        %v5078 = vadd.f32 0.0, %v5077
        %v5079 = vpop.f32.mrf.mxu0
        %5080 = vmatprep.mubr.f32.mxu0 0.0
        %5081 = vmatmul.mubr.f32.gmra.mxu0 %v4907
        %v5082 = vpop.f32.mrf.mxu0
        %v5083 = vadd.f32 0.0, %v5082
        %v5084 = vpop.f32.mrf.mxu0
        %5085 = vmatprep.mubr.f32.mxu0 0.0
        %5086 = vmatmul.mubr.f32.gmra.mxu0 %v4909
        %v5087 = vpop.f32.mrf.mxu0
        %v5088 = vadd.f32 0.0, %v5087
        %v5089 = vpop.f32.mrf.mxu0
        %5090 = vmatprep.mubr.f32.mxu0 0.0
        %5091 = vmatmul.mubr.f32.gmra.mxu0 %v4911
        %v5092 = vpop.f32.mrf.mxu0
        %v5093 = vadd.f32 0.0, %v5092
        %v5094 = vpop.f32.mrf.mxu0
        %5095 = vmatprep.mubr.f32.mxu0 0.0
        %5096 = vmatmul.mubr.f32.gmra.mxu0 %v4913
        %v5097 = vpop.f32.mrf.mxu0
        %v5098 = vadd.f32 0.0, %v5097
        %v5099 = vpop.f32.mrf.mxu0
        %5100 = vmatprep.mubr.f32.mxu0 0.0
        %5101 = vmatmul.mubr.f32.gmra.mxu0 %v4915
        %v5102 = vpop.f32.mrf.mxu0
        %v5103 = vadd.f32 0.0, %v5102
        %v5104 = vpop.f32.mrf.mxu0
        %5105 = vmatprep.mubr.f32.mxu0 0.0
        %5106 = vmatmul.mubr.f32.gmra.mxu0 %v4917
        %v5107 = vpop.f32.mrf.mxu0
        %v5108 = vadd.f32 0.0, %v5107
        %v5109 = vpop.f32.mrf.mxu0
        %5110 = vmatprep.mubr.f32.mxu0 0.0
        %5111 = vmatmul.mubr.f32.gmra.mxu0 %v4919
        %v5112 = vpop.f32.mrf.mxu0
        %v5113 = vadd.f32 0.0, %v5112
        %v5114 = vpop.f32.mrf.mxu0
        %5115 = vmatprep.mubr.f32.mxu0 0.0
        %5116 = vmatmul.mubr.f32.gmra.mxu0 %v4921
        %v5117 = vpop.f32.mrf.mxu0
        %v5118 = vadd.f32 0.0, %v5117
        %v5119 = vpop.f32.mrf.mxu0
        %5120 = vmatprep.mubr.f32.mxu0 0.0
        %5121 = vmatmul.mubr.f32.gmra.mxu0 %v4923
        %v5122 = vpop.f32.mrf.mxu0
        %v5123 = vadd.f32 0.0, %v5122
        %v5124 = vpop.f32.mrf.mxu0
        %5125 = vmatprep.mubr.f32.mxu0 0.0
        %5126 = vmatmul.mubr.f32.gmra.mxu0 %v4925
        %v5127 = vpop.f32.mrf.mxu0
        %v5128 = vadd.f32 0.0, %v5127
        %v5129 = vpop.f32.mrf.mxu0
        %5130 = vmatprep.mubr.f32.mxu0 0.0
        %5131 = vmatmul.mubr.f32.gmra.mxu0 %v4927
        %v5132 = vpop.f32.mrf.mxu0
        %v5133 = vadd.f32 0.0, %v5132
        %v5134 = vpop.f32.mrf.mxu0
        %5135 = vmatprep.mubr.f32.mxu0 0.0
        %5136 = vmatmul.mubr.f32.gmra.mxu0 %v4929
        %v5137 = vpop.f32.mrf.mxu0
        %v5138 = vadd.f32 0.0, %v5137
        %v5139 = vpop.f32.mrf.mxu0
        %5140 = vdwg.mxu0
        %v5141 = vadd.f32 %v4781, %v4998
        %v5142 = vadd.f32 %v4782, %v5003
        %v5143 = vadd.f32 %v4783, %v5008
        %v5144 = vadd.f32 %v4784, %v5013
        %v5145 = vadd.f32 %v4785, %v5018
        %v5146 = vadd.f32 %v4786, %v5023
        %v5147 = vadd.f32 %v4787, %v5028
        %v5148 = vadd.f32 %v4788, %v5033
        %v5149 = vadd.f32 %v4789, %v5038
        %v5150 = vadd.f32 %v4790, %v5043
        %v5151 = vadd.f32 %v4791, %v5048
        %v5152 = vadd.f32 %v4792, %v5053
        %v5153 = vadd.f32 %v4793, %v5058
        %v5154 = vadd.f32 %v4794, %v5063
        %v5155 = vadd.f32 %v4795, %v5068
        %v5156 = vadd.f32 %v4796, %v5073
        %v5157 = vadd.f32 %v4797, %v5078
        %v5158 = vadd.f32 %v4798, %v5083
        %v5159 = vadd.f32 %v4799, %v5088
        %v5160 = vadd.f32 %v4800, %v5093
        %v5161 = vadd.f32 %v4801, %v5098
        %v5162 = vadd.f32 %v4802, %v5103
        %v5163 = vadd.f32 %v4803, %v5108
        %v5164 = vadd.f32 %v4804, %v5113
        %v5165 = vadd.f32 %v4805, %v5118
        %v5166 = vadd.f32 %v4806, %v5123
        %v5167 = vadd.f32 %v4807, %v5128
        %v5168 = vadd.f32 %v4808, %v5133
        %v5169 = vadd.f32 %v4809, %v5138
        %s5170 = scalar_lea.vmem %s3, 224
        %v5171 = vld [vmem:[%s5170] sm:$0xff]
        %v5172 = vld [vmem:[%s5170 + $0x8] sm:$0xff]
        %v5173 = vsel %vm969, %v867, 0
        %v5175 = vsel %vm969, %v868, 0
        %v5177 = vsel %vm969, %v869, 0
        %v5179 = vsel %vm969, %v870, 0
        %v5181 = vsel %vm969, %v871, 0
        %5183 = vmatprep.subr.mxu0 0.0
        %5184 = vmatpush1.msra.mxu0 0.0
        %5185 = vmatprep.subr.mxu0 0.0
        %5186 = vmatpush1.msra.mxu0 0.0
        %5187 = vmatprep.subr.mxu0 0.0
        %5188 = vmatpush1.msra.mxu0 0.0
        %5189 = vmatprep.subr.mxu0 0.0
        %5190 = vmatpush1.msra.mxu0 0.0
        %5191 = vmatprep.subr.mxu0 0.0
        %5192 = vmatpush1.msra.mxu0 0.0
        %5193 = vmatprep.subr.mxu0 0.0
        %5194 = vmatpush1.msra.mxu0 0.0
        %5195 = vmatprep.subr.mxu0 0.0
        %5196 = vmatpush1.msra.mxu0 0.0
        %5197 = vmatprep.subr.mxu0 0.0
        %5198 = vmatpush1.msra.mxu0 0.0
        %5199 = vmatprep.subr.mxu0 0.0
        %5200 = vmatpush1.msra.mxu0 0.0
        %5201 = vmatprep.subr.mxu0 0.0
        %5202 = vmatpush1.msra.mxu0 0.0
        %5203 = vmatprep.subr.mxu0 0.0
        %5204 = vmatpush1.msra.mxu0 0.0
        %5205 = vmatprep.subr.mxu0 0.0
        %5206 = vmatpush1.msra.mxu0 0.0
        %5207 = vmatprep.subr.mxu0 0.0
        %5208 = vmatpush1.msra.mxu0 0.0
        %5209 = vmatprep.subr.mxu0 0.0
        %5210 = vmatpush1.msra.mxu0 0.0
        %5211 = vmatprep.subr.mxu0 0.0
        %5212 = vmatpush1.msra.mxu0 %v5172
        %5213 = vmatprep.subr.mxu0 0.0
        %5214 = vmatpush1.msra.mxu0 %v5171
        %5215 = vmatprep.subr.mxu0 0.0
        %5216 = vmatpush2.msra.mxu0 0.0
        %5217 = vmatprep.subr.mxu0 0.0
        %5218 = vmatpush2.msra.mxu0 0.0
        %5219 = vmatprep.subr.mxu0 0.0
        %5220 = vmatpush2.msra.mxu0 0.0
        %5221 = vmatprep.subr.mxu0 0.0
        %5222 = vmatpush2.msra.mxu0 0.0
        %5223 = vmatprep.subr.mxu0 0.0
        %5224 = vmatpush2.msra.mxu0 0.0
        %5225 = vmatprep.subr.mxu0 0.0
        %5226 = vmatpush2.msra.mxu0 0.0
        %5227 = vmatprep.subr.mxu0 0.0
        %5228 = vmatpush2.msra.mxu0 0.0
        %5229 = vmatprep.subr.mxu0 0.0
        %5230 = vmatpush2.msra.mxu0 0.0
        %5231 = vmatprep.subr.mxu0 0.0
        %5232 = vmatpush2.msra.mxu0 0.0
        %5233 = vmatprep.subr.mxu0 0.0
        %5234 = vmatpush2.msra.mxu0 0.0
        %5235 = vmatprep.subr.mxu0 0.0
        %5236 = vmatpush2.msra.mxu0 0.0
        %5237 = vmatprep.subr.mxu0 0.0
        %5238 = vmatpush2.msra.mxu0 0.0
        %5239 = vmatprep.subr.mxu0 0.0
        %5240 = vmatpush2.msra.mxu0 0.0
        %5241 = vmatprep.subr.mxu0 0.0
        %5242 = vmatpush2.msra.mxu0 0.0
        %5243 = vmatprep.subr.mxu0 0.0
        %5244 = vmatpush2.msra.mxu0 0.0
        %5245 = vmatprep.subr.mxu0 0.0
        %5246 = vmatpush2.msra.mxu0 0.0
        %5247 = vmatprep.mubr.f32.mxu0 0.0
        %5248 = vmatmul.mubr.f32.gmra.mxu0 %v1248
        %v5249 = vpop.f32.mrf.mxu0
        %v5250 = vadd.f32 0.0, %v5249
        %v5251 = vpop.f32.mrf.mxu0
        %5252 = vmatprep.mubr.f32.mxu0 0.0
        %5253 = vmatmul.mubr.f32.gmra.mxu0 %v1250
        %v5254 = vpop.f32.mrf.mxu0
        %v5255 = vadd.f32 0.0, %v5254
        %v5256 = vpop.f32.mrf.mxu0
        %5257 = vmatprep.mubr.f32.mxu0 0.0
        %5258 = vmatmul.mubr.f32.gmra.mxu0 %v1252
        %v5259 = vpop.f32.mrf.mxu0
        %v5260 = vadd.f32 0.0, %v5259
        %v5261 = vpop.f32.mrf.mxu0
        %5262 = vmatprep.mubr.f32.mxu0 0.0
        %5263 = vmatmul.mubr.f32.gmra.mxu0 %v1254
        %v5264 = vpop.f32.mrf.mxu0
        %v5265 = vadd.f32 0.0, %v5264
        %v5266 = vpop.f32.mrf.mxu0
        %5267 = vmatprep.mubr.f32.mxu0 0.0
        %5268 = vmatmul.mubr.f32.gmra.mxu0 %v1256
        %v5269 = vpop.f32.mrf.mxu0
        %v5270 = vadd.f32 0.0, %v5269
        %v5271 = vpop.f32.mrf.mxu0
        %5272 = vmatprep.mubr.f32.mxu0 0.0
        %5273 = vmatmul.mubr.f32.gmra.mxu0 %v1258
        %v5274 = vpop.f32.mrf.mxu0
        %v5275 = vadd.f32 0.0, %v5274
        %v5276 = vpop.f32.mrf.mxu0
        %5277 = vmatprep.mubr.f32.mxu0 0.0
        %5278 = vmatmul.mubr.f32.gmra.mxu0 %v1260
        %v5279 = vpop.f32.mrf.mxu0
        %v5280 = vadd.f32 0.0, %v5279
        %v5281 = vpop.f32.mrf.mxu0
        %5282 = vmatprep.mubr.f32.mxu0 0.0
        %5283 = vmatmul.mubr.f32.gmra.mxu0 %v1262
        %v5284 = vpop.f32.mrf.mxu0
        %v5285 = vadd.f32 0.0, %v5284
        %v5286 = vpop.f32.mrf.mxu0
        %5287 = vmatprep.mubr.f32.mxu0 0.0
        %5288 = vmatmul.mubr.f32.gmra.mxu0 %v1264
        %v5289 = vpop.f32.mrf.mxu0
        %v5290 = vadd.f32 0.0, %v5289
        %v5291 = vpop.f32.mrf.mxu0
        %5292 = vmatprep.mubr.f32.mxu0 0.0
        %5293 = vmatmul.mubr.f32.gmra.mxu0 %v1266
        %v5294 = vpop.f32.mrf.mxu0
        %v5295 = vadd.f32 0.0, %v5294
        %v5296 = vpop.f32.mrf.mxu0
        %5297 = vmatprep.mubr.f32.mxu0 0.0
        %5298 = vmatmul.mubr.f32.gmra.mxu0 %v1268
        %v5299 = vpop.f32.mrf.mxu0
        %v5300 = vadd.f32 0.0, %v5299
        %v5301 = vpop.f32.mrf.mxu0
        %5302 = vmatprep.mubr.f32.mxu0 0.0
        %5303 = vmatmul.mubr.f32.gmra.mxu0 %v1270
        %v5304 = vpop.f32.mrf.mxu0
        %v5305 = vadd.f32 0.0, %v5304
        %v5306 = vpop.f32.mrf.mxu0
        %5307 = vmatprep.mubr.f32.mxu0 0.0
        %5308 = vmatmul.mubr.f32.gmra.mxu0 %v1272
        %v5309 = vpop.f32.mrf.mxu0
        %v5310 = vadd.f32 0.0, %v5309
        %v5311 = vpop.f32.mrf.mxu0
        %5312 = vmatprep.mubr.f32.mxu0 0.0
        %5313 = vmatmul.mubr.f32.gmra.mxu0 %v1274
        %v5314 = vpop.f32.mrf.mxu0
        %v5315 = vadd.f32 0.0, %v5314
        %v5316 = vpop.f32.mrf.mxu0
        %5317 = vmatprep.mubr.f32.mxu0 0.0
        %5318 = vmatmul.mubr.f32.gmra.mxu0 %v1276
        %v5319 = vpop.f32.mrf.mxu0
        %v5320 = vadd.f32 0.0, %v5319
        %v5321 = vpop.f32.mrf.mxu0
        %5322 = vmatprep.mubr.f32.mxu0 0.0
        %5323 = vmatmul.mubr.f32.gmra.mxu0 %v1278
        %v5324 = vpop.f32.mrf.mxu0
        %v5325 = vadd.f32 0.0, %v5324
        %v5326 = vpop.f32.mrf.mxu0
        %5327 = vmatprep.mubr.f32.mxu0 0.0
        %5328 = vmatmul.mubr.f32.gmra.mxu0 %v1280
        %v5329 = vpop.f32.mrf.mxu0
        %v5330 = vadd.f32 0.0, %v5329
        %v5331 = vpop.f32.mrf.mxu0
        %5332 = vmatprep.mubr.f32.mxu0 0.0
        %5333 = vmatmul.mubr.f32.gmra.mxu0 %v1282
        %v5334 = vpop.f32.mrf.mxu0
        %v5335 = vadd.f32 0.0, %v5334
        %v5336 = vpop.f32.mrf.mxu0
        %5337 = vmatprep.mubr.f32.mxu0 0.0
        %5338 = vmatmul.mubr.f32.gmra.mxu0 %v1284
        %v5339 = vpop.f32.mrf.mxu0
        %v5340 = vadd.f32 0.0, %v5339
        %v5341 = vpop.f32.mrf.mxu0
        %5342 = vmatprep.mubr.f32.mxu0 0.0
        %5343 = vmatmul.mubr.f32.gmra.mxu0 %v1286
        %v5344 = vpop.f32.mrf.mxu0
        %v5345 = vadd.f32 0.0, %v5344
        %v5346 = vpop.f32.mrf.mxu0
        %5347 = vmatprep.mubr.f32.mxu0 0.0
        %5348 = vmatmul.mubr.f32.gmra.mxu0 %v1288
        %v5349 = vpop.f32.mrf.mxu0
        %v5350 = vadd.f32 0.0, %v5349
        %v5351 = vpop.f32.mrf.mxu0
        %5352 = vmatprep.mubr.f32.mxu0 0.0
        %5353 = vmatmul.mubr.f32.gmra.mxu0 %v1290
        %v5354 = vpop.f32.mrf.mxu0
        %v5355 = vadd.f32 0.0, %v5354
        %v5356 = vpop.f32.mrf.mxu0
        %5357 = vmatprep.mubr.f32.mxu0 0.0
        %5358 = vmatmul.mubr.f32.gmra.mxu0 %v1292
        %v5359 = vpop.f32.mrf.mxu0
        %v5360 = vadd.f32 0.0, %v5359
        %v5361 = vpop.f32.mrf.mxu0
        %5362 = vmatprep.mubr.f32.mxu0 0.0
        %5363 = vmatmul.mubr.f32.gmra.mxu0 %v1294
        %v5364 = vpop.f32.mrf.mxu0
        %v5365 = vadd.f32 0.0, %v5364
        %v5366 = vpop.f32.mrf.mxu0
        %5367 = vmatprep.mubr.f32.mxu0 0.0
        %5368 = vmatmul.mubr.f32.gmra.mxu0 %v5173
        %v5369 = vpop.f32.mrf.mxu0
        %v5370 = vadd.f32 0.0, %v5369
        %v5371 = vpop.f32.mrf.mxu0
        %5372 = vmatprep.mubr.f32.mxu0 0.0
        %5373 = vmatmul.mubr.f32.gmra.mxu0 %v5175
        %v5374 = vpop.f32.mrf.mxu0
        %v5375 = vadd.f32 0.0, %v5374
        %v5376 = vpop.f32.mrf.mxu0
        %5377 = vmatprep.mubr.f32.mxu0 0.0
        %5378 = vmatmul.mubr.f32.gmra.mxu0 %v5177
        %v5379 = vpop.f32.mrf.mxu0
        %v5380 = vadd.f32 0.0, %v5379
        %v5381 = vpop.f32.mrf.mxu0
        %5382 = vmatprep.mubr.f32.mxu0 0.0
        %5383 = vmatmul.mubr.f32.gmra.mxu0 %v5179
        %v5384 = vpop.f32.mrf.mxu0
        %v5385 = vadd.f32 0.0, %v5384
        %v5386 = vpop.f32.mrf.mxu0
        %5387 = vmatprep.mubr.f32.mxu0 0.0
        %5388 = vmatmul.mubr.f32.gmra.mxu0 %v5181
        %v5389 = vpop.f32.mrf.mxu0
        %v5390 = vadd.f32 0.0, %v5389
        %v5391 = vpop.f32.mrf.mxu0
        %5392 = vdwg.mxu0
        %v5393 = vadd.f32 %v5141, %v5250
        %v5394 = vadd.f32 %v5142, %v5255
        %v5395 = vadd.f32 %v5143, %v5260
        %v5396 = vadd.f32 %v5144, %v5265
        %v5397 = vadd.f32 %v5145, %v5270
        %v5398 = vadd.f32 %v5146, %v5275
        %v5399 = vadd.f32 %v5147, %v5280
        %v5400 = vadd.f32 %v5148, %v5285
        %v5401 = vadd.f32 %v5149, %v5290
        %v5402 = vadd.f32 %v5150, %v5295
        %v5403 = vadd.f32 %v5151, %v5300
        %v5404 = vadd.f32 %v5152, %v5305
        %v5405 = vadd.f32 %v5153, %v5310
        %v5406 = vadd.f32 %v5154, %v5315
        %v5407 = vadd.f32 %v5155, %v5320
        %v5408 = vadd.f32 %v5156, %v5325
        %v5409 = vadd.f32 %v5157, %v5330
        %v5410 = vadd.f32 %v5158, %v5335
        %v5411 = vadd.f32 %v5159, %v5340
        %v5412 = vadd.f32 %v5160, %v5345
        %v5413 = vadd.f32 %v5161, %v5350
        %v5414 = vadd.f32 %v5162, %v5355
        %v5415 = vadd.f32 %v5163, %v5360
        %v5416 = vadd.f32 %v5164, %v5365
        %v5417 = vadd.f32 %v5165, %v5370
        %v5418 = vadd.f32 %v5166, %v5375
        %v5419 = vadd.f32 %v5167, %v5380
        %v5420 = vadd.f32 %v5168, %v5385
        %v5421 = vadd.f32 %v5169, %v5390
        %s5422 = scalar_lea.vmem %s3, 240
        %v5423 = vld [vmem:[%s5422] sm:$0xff]
        %v5424 = vld [vmem:[%s5422 + $0x8] sm:$0xff]
        %v5427 = vrot.slane %v872, 6
        %v5428 = vsel %vm3701, %v4565, %v5427
        %v5429 = vrot.slane %v873, 6
        %v5430 = vsel %vm3701, %v5427, %v5429
        %v5431 = vsel %vm969, %v5428, 0
        %v5433 = vsel %vm969, %v5430, 0
        %5435 = vmatprep.subr.mxu0 0.0
        %5436 = vmatpush1.msra.mxu0 0.0
        %5437 = vmatprep.subr.mxu0 0.0
        %5438 = vmatpush1.msra.mxu0 0.0
        %5439 = vmatprep.subr.mxu0 0.0
        %5440 = vmatpush1.msra.mxu0 0.0
        %5441 = vmatprep.subr.mxu0 0.0
        %5442 = vmatpush1.msra.mxu0 0.0
        %5443 = vmatprep.subr.mxu0 0.0
        %5444 = vmatpush1.msra.mxu0 0.0
        %5445 = vmatprep.subr.mxu0 0.0
        %5446 = vmatpush1.msra.mxu0 0.0
        %5447 = vmatprep.subr.mxu0 0.0
        %5448 = vmatpush1.msra.mxu0 0.0
        %5449 = vmatprep.subr.mxu0 0.0
        %5450 = vmatpush1.msra.mxu0 0.0
        %5451 = vmatprep.subr.mxu0 0.0
        %5452 = vmatpush1.msra.mxu0 0.0
        %5453 = vmatprep.subr.mxu0 0.0
        %5454 = vmatpush1.msra.mxu0 0.0
        %5455 = vmatprep.subr.mxu0 0.0
        %5456 = vmatpush1.msra.mxu0 0.0
        %5457 = vmatprep.subr.mxu0 0.0
        %5458 = vmatpush1.msra.mxu0 0.0
        %5459 = vmatprep.subr.mxu0 0.0
        %5460 = vmatpush1.msra.mxu0 0.0
        %5461 = vmatprep.subr.mxu0 0.0
        %5462 = vmatpush1.msra.mxu0 0.0
        %5463 = vmatprep.subr.mxu0 0.0
        %5464 = vmatpush1.msra.mxu0 %v5424
        %5465 = vmatprep.subr.mxu0 0.0
        %5466 = vmatpush1.msra.mxu0 %v5423
        %5467 = vmatprep.subr.mxu0 0.0
        %5468 = vmatpush2.msra.mxu0 0.0
        %5469 = vmatprep.subr.mxu0 0.0
        %5470 = vmatpush2.msra.mxu0 0.0
        %5471 = vmatprep.subr.mxu0 0.0
        %5472 = vmatpush2.msra.mxu0 0.0
        %5473 = vmatprep.subr.mxu0 0.0
        %5474 = vmatpush2.msra.mxu0 0.0
        %5475 = vmatprep.subr.mxu0 0.0
        %5476 = vmatpush2.msra.mxu0 0.0
        %5477 = vmatprep.subr.mxu0 0.0
        %5478 = vmatpush2.msra.mxu0 0.0
        %5479 = vmatprep.subr.mxu0 0.0
        %5480 = vmatpush2.msra.mxu0 0.0
        %5481 = vmatprep.subr.mxu0 0.0
        %5482 = vmatpush2.msra.mxu0 0.0
        %5483 = vmatprep.subr.mxu0 0.0
        %5484 = vmatpush2.msra.mxu0 0.0
        %5485 = vmatprep.subr.mxu0 0.0
        %5486 = vmatpush2.msra.mxu0 0.0
        %5487 = vmatprep.subr.mxu0 0.0
        %5488 = vmatpush2.msra.mxu0 0.0
        %5489 = vmatprep.subr.mxu0 0.0
        %5490 = vmatpush2.msra.mxu0 0.0
        %5491 = vmatprep.subr.mxu0 0.0
        %5492 = vmatpush2.msra.mxu0 0.0
        %5493 = vmatprep.subr.mxu0 0.0
        %5494 = vmatpush2.msra.mxu0 0.0
        %5495 = vmatprep.subr.mxu0 0.0
        %5496 = vmatpush2.msra.mxu0 0.0
        %5497 = vmatprep.subr.mxu0 0.0
        %5498 = vmatpush2.msra.mxu0 0.0
        %5499 = vmatprep.mubr.f32.mxu0 0.0
        %5500 = vmatmul.mubr.f32.gmra.mxu0 %v3769
        %v5501 = vpop.f32.mrf.mxu0
        %v5502 = vadd.f32 0.0, %v5501
        %v5503 = vpop.f32.mrf.mxu0
        %5504 = vmatprep.mubr.f32.mxu0 0.0
        %5505 = vmatmul.mubr.f32.gmra.mxu0 %v3771
        %v5506 = vpop.f32.mrf.mxu0
        %v5507 = vadd.f32 0.0, %v5506
        %v5508 = vpop.f32.mrf.mxu0
        %5509 = vmatprep.mubr.f32.mxu0 0.0
        %5510 = vmatmul.mubr.f32.gmra.mxu0 %v3773
        %v5511 = vpop.f32.mrf.mxu0
        %v5512 = vadd.f32 0.0, %v5511
        %v5513 = vpop.f32.mrf.mxu0
        %5514 = vmatprep.mubr.f32.mxu0 0.0
        %5515 = vmatmul.mubr.f32.gmra.mxu0 %v3775
        %v5516 = vpop.f32.mrf.mxu0
        %v5517 = vadd.f32 0.0, %v5516
        %v5518 = vpop.f32.mrf.mxu0
        %5519 = vmatprep.mubr.f32.mxu0 0.0
        %5520 = vmatmul.mubr.f32.gmra.mxu0 %v3777
        %v5521 = vpop.f32.mrf.mxu0
        %v5522 = vadd.f32 0.0, %v5521
        %v5523 = vpop.f32.mrf.mxu0
        %5524 = vmatprep.mubr.f32.mxu0 0.0
        %5525 = vmatmul.mubr.f32.gmra.mxu0 %v3779
        %v5526 = vpop.f32.mrf.mxu0
        %v5527 = vadd.f32 0.0, %v5526
        %v5528 = vpop.f32.mrf.mxu0
        %5529 = vmatprep.mubr.f32.mxu0 0.0
        %5530 = vmatmul.mubr.f32.gmra.mxu0 %v3781
        %v5531 = vpop.f32.mrf.mxu0
        %v5532 = vadd.f32 0.0, %v5531
        %v5533 = vpop.f32.mrf.mxu0
        %5534 = vmatprep.mubr.f32.mxu0 0.0
        %5535 = vmatmul.mubr.f32.gmra.mxu0 %v3783
        %v5536 = vpop.f32.mrf.mxu0
        %v5537 = vadd.f32 0.0, %v5536
        %v5538 = vpop.f32.mrf.mxu0
        %5539 = vmatprep.mubr.f32.mxu0 0.0
        %5540 = vmatmul.mubr.f32.gmra.mxu0 %v3785
        %v5541 = vpop.f32.mrf.mxu0
        %v5542 = vadd.f32 0.0, %v5541
        %v5543 = vpop.f32.mrf.mxu0
        %5544 = vmatprep.mubr.f32.mxu0 0.0
        %5545 = vmatmul.mubr.f32.gmra.mxu0 %v3787
        %v5546 = vpop.f32.mrf.mxu0
        %v5547 = vadd.f32 0.0, %v5546
        %v5548 = vpop.f32.mrf.mxu0
        %5549 = vmatprep.mubr.f32.mxu0 0.0
        %5550 = vmatmul.mubr.f32.gmra.mxu0 %v3789
        %v5551 = vpop.f32.mrf.mxu0
        %v5552 = vadd.f32 0.0, %v5551
        %v5553 = vpop.f32.mrf.mxu0
        %5554 = vmatprep.mubr.f32.mxu0 0.0
        %5555 = vmatmul.mubr.f32.gmra.mxu0 %v3791
        %v5556 = vpop.f32.mrf.mxu0
        %v5557 = vadd.f32 0.0, %v5556
        %v5558 = vpop.f32.mrf.mxu0
        %5559 = vmatprep.mubr.f32.mxu0 0.0
        %5560 = vmatmul.mubr.f32.gmra.mxu0 %v3793
        %v5561 = vpop.f32.mrf.mxu0
        %v5562 = vadd.f32 0.0, %v5561
        %v5563 = vpop.f32.mrf.mxu0
        %5564 = vmatprep.mubr.f32.mxu0 0.0
        %5565 = vmatmul.mubr.f32.gmra.mxu0 %v3795
        %v5566 = vpop.f32.mrf.mxu0
        %v5567 = vadd.f32 0.0, %v5566
        %v5568 = vpop.f32.mrf.mxu0
        %5569 = vmatprep.mubr.f32.mxu0 0.0
        %5570 = vmatmul.mubr.f32.gmra.mxu0 %v3797
        %v5571 = vpop.f32.mrf.mxu0
        %v5572 = vadd.f32 0.0, %v5571
        %v5573 = vpop.f32.mrf.mxu0
        %5574 = vmatprep.mubr.f32.mxu0 0.0
        %5575 = vmatmul.mubr.f32.gmra.mxu0 %v3799
        %v5576 = vpop.f32.mrf.mxu0
        %v5577 = vadd.f32 0.0, %v5576
        %v5578 = vpop.f32.mrf.mxu0
        %5579 = vmatprep.mubr.f32.mxu0 0.0
        %5580 = vmatmul.mubr.f32.gmra.mxu0 %v3801
        %v5581 = vpop.f32.mrf.mxu0
        %v5582 = vadd.f32 0.0, %v5581
        %v5583 = vpop.f32.mrf.mxu0
        %5584 = vmatprep.mubr.f32.mxu0 0.0
        %5585 = vmatmul.mubr.f32.gmra.mxu0 %v3803
        %v5586 = vpop.f32.mrf.mxu0
        %v5587 = vadd.f32 0.0, %v5586
        %v5588 = vpop.f32.mrf.mxu0
        %5589 = vmatprep.mubr.f32.mxu0 0.0
        %5590 = vmatmul.mubr.f32.gmra.mxu0 %v3805
        %v5591 = vpop.f32.mrf.mxu0
        %v5592 = vadd.f32 0.0, %v5591
        %v5593 = vpop.f32.mrf.mxu0
        %5594 = vmatprep.mubr.f32.mxu0 0.0
        %5595 = vmatmul.mubr.f32.gmra.mxu0 %v3807
        %v5596 = vpop.f32.mrf.mxu0
        %v5597 = vadd.f32 0.0, %v5596
        %v5598 = vpop.f32.mrf.mxu0
        %5599 = vmatprep.mubr.f32.mxu0 0.0
        %5600 = vmatmul.mubr.f32.gmra.mxu0 %v3809
        %v5601 = vpop.f32.mrf.mxu0
        %v5602 = vadd.f32 0.0, %v5601
        %v5603 = vpop.f32.mrf.mxu0
        %5604 = vmatprep.mubr.f32.mxu0 0.0
        %5605 = vmatmul.mubr.f32.gmra.mxu0 %v3811
        %v5606 = vpop.f32.mrf.mxu0
        %v5607 = vadd.f32 0.0, %v5606
        %v5608 = vpop.f32.mrf.mxu0
        %5609 = vmatprep.mubr.f32.mxu0 0.0
        %5610 = vmatmul.mubr.f32.gmra.mxu0 %v3813
        %v5611 = vpop.f32.mrf.mxu0
        %v5612 = vadd.f32 0.0, %v5611
        %v5613 = vpop.f32.mrf.mxu0
        %5614 = vmatprep.mubr.f32.mxu0 0.0
        %5615 = vmatmul.mubr.f32.gmra.mxu0 %v3815
        %v5616 = vpop.f32.mrf.mxu0
        %v5617 = vadd.f32 0.0, %v5616
        %v5618 = vpop.f32.mrf.mxu0
        %5619 = vmatprep.mubr.f32.mxu0 0.0
        %5620 = vmatmul.mubr.f32.gmra.mxu0 %v3817
        %v5621 = vpop.f32.mrf.mxu0
        %v5622 = vadd.f32 0.0, %v5621
        %v5623 = vpop.f32.mrf.mxu0
        %5624 = vmatprep.mubr.f32.mxu0 0.0
        %5625 = vmatmul.mubr.f32.gmra.mxu0 %v4567
        %v5626 = vpop.f32.mrf.mxu0
        %v5627 = vadd.f32 0.0, %v5626
        %v5628 = vpop.f32.mrf.mxu0
        %5629 = vmatprep.mubr.f32.mxu0 0.0
        %5630 = vmatmul.mubr.f32.gmra.mxu0 %v4569
        %v5631 = vpop.f32.mrf.mxu0
        %v5632 = vadd.f32 0.0, %v5631
        %v5633 = vpop.f32.mrf.mxu0
        %5634 = vmatprep.mubr.f32.mxu0 0.0
        %5635 = vmatmul.mubr.f32.gmra.mxu0 %v5431
        %v5636 = vpop.f32.mrf.mxu0
        %v5637 = vadd.f32 0.0, %v5636
        %v5638 = vpop.f32.mrf.mxu0
        %5639 = vmatprep.mubr.f32.mxu0 0.0
        %5640 = vmatmul.mubr.f32.gmra.mxu0 %v5433
        %v5641 = vpop.f32.mrf.mxu0
        %v5642 = vadd.f32 0.0, %v5641
        %v5643 = vpop.f32.mrf.mxu0
        %5644 = vdwg.mxu0
        %v5645 = vadd.f32 %v5393, %v5502
        %v5646 = vadd.f32 %v5394, %v5507
        %v5647 = vadd.f32 %v5395, %v5512
        %v5648 = vadd.f32 %v5396, %v5517
        %v5649 = vadd.f32 %v5397, %v5522
        %v5650 = vadd.f32 %v5398, %v5527
        %v5651 = vadd.f32 %v5399, %v5532
        %v5652 = vadd.f32 %v5400, %v5537
        %v5653 = vadd.f32 %v5401, %v5542
        %v5654 = vadd.f32 %v5402, %v5547
        %v5655 = vadd.f32 %v5403, %v5552
        %v5656 = vadd.f32 %v5404, %v5557
        %v5657 = vadd.f32 %v5405, %v5562
        %v5658 = vadd.f32 %v5406, %v5567
        %v5659 = vadd.f32 %v5407, %v5572
        %v5660 = vadd.f32 %v5408, %v5577
        %v5661 = vadd.f32 %v5409, %v5582
        %v5662 = vadd.f32 %v5410, %v5587
        %v5663 = vadd.f32 %v5411, %v5592
        %v5664 = vadd.f32 %v5412, %v5597
        %v5665 = vadd.f32 %v5413, %v5602
        %v5666 = vadd.f32 %v5414, %v5607
        %v5667 = vadd.f32 %v5415, %v5612
        %v5668 = vadd.f32 %v5416, %v5617
        %v5669 = vadd.f32 %v5417, %v5622
        %v5670 = vadd.f32 %v5418, %v5627
        %v5671 = vadd.f32 %v5419, %v5632
        %v5672 = vadd.f32 %v5420, %v5637
        %v5673 = vadd.f32 %v5421, %v5642
        %s5674 = scalar_lea.vmem %s3, 256
        %v5675 = vld [vmem:[%s5674] sm:$0xff]
        %v5676 = vld [vmem:[%s5674 + $0x8] sm:$0xff]
        %v5677 = vrot.slane %v872, 7
        %v5678 = vsel %vm4813, %v4871, %v5677
        %v5679 = vrot.slane %v873, 7
        %v5680 = vsel %vm4813, %v5677, %v5679
        %v5681 = vsel %vm969, %v5678, 0
        %v5683 = vsel %vm969, %v5680, 0
        %5685 = vmatprep.subr.mxu0 0.0
        %5686 = vmatpush1.msra.mxu0 0.0
        %5687 = vmatprep.subr.mxu0 0.0
        %5688 = vmatpush1.msra.mxu0 0.0
        %5689 = vmatprep.subr.mxu0 0.0
        %5690 = vmatpush1.msra.mxu0 0.0
        %5691 = vmatprep.subr.mxu0 0.0
        %5692 = vmatpush1.msra.mxu0 0.0
        %5693 = vmatprep.subr.mxu0 0.0
        %5694 = vmatpush1.msra.mxu0 0.0
        %5695 = vmatprep.subr.mxu0 0.0
        %5696 = vmatpush1.msra.mxu0 0.0
        %5697 = vmatprep.subr.mxu0 0.0
        %5698 = vmatpush1.msra.mxu0 0.0
        %5699 = vmatprep.subr.mxu0 0.0
        %5700 = vmatpush1.msra.mxu0 0.0
        %5701 = vmatprep.subr.mxu0 0.0
        %5702 = vmatpush1.msra.mxu0 0.0
        %5703 = vmatprep.subr.mxu0 0.0
        %5704 = vmatpush1.msra.mxu0 0.0
        %5705 = vmatprep.subr.mxu0 0.0
        %5706 = vmatpush1.msra.mxu0 0.0
        %5707 = vmatprep.subr.mxu0 0.0
        %5708 = vmatpush1.msra.mxu0 0.0
        %5709 = vmatprep.subr.mxu0 0.0
        %5710 = vmatpush1.msra.mxu0 0.0
        %5711 = vmatprep.subr.mxu0 0.0
        %5712 = vmatpush1.msra.mxu0 0.0
        %5713 = vmatprep.subr.mxu0 0.0
        %5714 = vmatpush1.msra.mxu0 %v5676
        %5715 = vmatprep.subr.mxu0 0.0
        %5716 = vmatpush1.msra.mxu0 %v5675
        %5717 = vmatprep.subr.mxu0 0.0
        %5718 = vmatpush2.msra.mxu0 0.0
        %5719 = vmatprep.subr.mxu0 0.0
        %5720 = vmatpush2.msra.mxu0 0.0
        %5721 = vmatprep.subr.mxu0 0.0
        %5722 = vmatpush2.msra.mxu0 0.0
        %5723 = vmatprep.subr.mxu0 0.0
        %5724 = vmatpush2.msra.mxu0 0.0
        %5725 = vmatprep.subr.mxu0 0.0
        %5726 = vmatpush2.msra.mxu0 0.0
        %5727 = vmatprep.subr.mxu0 0.0
        %5728 = vmatpush2.msra.mxu0 0.0
        %5729 = vmatprep.subr.mxu0 0.0
        %5730 = vmatpush2.msra.mxu0 0.0
        %5731 = vmatprep.subr.mxu0 0.0
        %5732 = vmatpush2.msra.mxu0 0.0
        %5733 = vmatprep.subr.mxu0 0.0
        %5734 = vmatpush2.msra.mxu0 0.0
        %5735 = vmatprep.subr.mxu0 0.0
        %5736 = vmatpush2.msra.mxu0 0.0
        %5737 = vmatprep.subr.mxu0 0.0
        %5738 = vmatpush2.msra.mxu0 0.0
        %5739 = vmatprep.subr.mxu0 0.0
        %5740 = vmatpush2.msra.mxu0 0.0
        %5741 = vmatprep.subr.mxu0 0.0
        %5742 = vmatpush2.msra.mxu0 0.0
        %5743 = vmatprep.subr.mxu0 0.0
        %5744 = vmatpush2.msra.mxu0 0.0
        %5745 = vmatprep.subr.mxu0 0.0
        %5746 = vmatpush2.msra.mxu0 0.0
        %5747 = vmatprep.subr.mxu0 0.0
        %5748 = vmatpush2.msra.mxu0 0.0
        %5749 = vmatprep.mubr.f32.mxu0 0.0
        %5750 = vmatmul.mubr.f32.gmra.mxu0 %v4877
        %v5751 = vpop.f32.mrf.mxu0
        %v5752 = vadd.f32 0.0, %v5751
        %v5753 = vpop.f32.mrf.mxu0
        %5754 = vmatprep.mubr.f32.mxu0 0.0
        %5755 = vmatmul.mubr.f32.gmra.mxu0 %v4879
        %v5756 = vpop.f32.mrf.mxu0
        %v5757 = vadd.f32 0.0, %v5756
        %v5758 = vpop.f32.mrf.mxu0
        %5759 = vmatprep.mubr.f32.mxu0 0.0
        %5760 = vmatmul.mubr.f32.gmra.mxu0 %v4881
        %v5761 = vpop.f32.mrf.mxu0
        %v5762 = vadd.f32 0.0, %v5761
        %v5763 = vpop.f32.mrf.mxu0
        %5764 = vmatprep.mubr.f32.mxu0 0.0
        %5765 = vmatmul.mubr.f32.gmra.mxu0 %v4883
        %v5766 = vpop.f32.mrf.mxu0
        %v5767 = vadd.f32 0.0, %v5766
        %v5768 = vpop.f32.mrf.mxu0
        %5769 = vmatprep.mubr.f32.mxu0 0.0
        %5770 = vmatmul.mubr.f32.gmra.mxu0 %v4885
        %v5771 = vpop.f32.mrf.mxu0
        %v5772 = vadd.f32 0.0, %v5771
        %v5773 = vpop.f32.mrf.mxu0
        %5774 = vmatprep.mubr.f32.mxu0 0.0
        %5775 = vmatmul.mubr.f32.gmra.mxu0 %v4887
        %v5776 = vpop.f32.mrf.mxu0
        %v5777 = vadd.f32 0.0, %v5776
        %v5778 = vpop.f32.mrf.mxu0
        %5779 = vmatprep.mubr.f32.mxu0 0.0
        %5780 = vmatmul.mubr.f32.gmra.mxu0 %v4889
        %v5781 = vpop.f32.mrf.mxu0
        %v5782 = vadd.f32 0.0, %v5781
        %v5783 = vpop.f32.mrf.mxu0
        %5784 = vmatprep.mubr.f32.mxu0 0.0
        %5785 = vmatmul.mubr.f32.gmra.mxu0 %v4891
        %v5786 = vpop.f32.mrf.mxu0
        %v5787 = vadd.f32 0.0, %v5786
        %v5788 = vpop.f32.mrf.mxu0
        %5789 = vmatprep.mubr.f32.mxu0 0.0
        %5790 = vmatmul.mubr.f32.gmra.mxu0 %v4893
        %v5791 = vpop.f32.mrf.mxu0
        %v5792 = vadd.f32 0.0, %v5791
        %v5793 = vpop.f32.mrf.mxu0
        %5794 = vmatprep.mubr.f32.mxu0 0.0
        %5795 = vmatmul.mubr.f32.gmra.mxu0 %v4895
        %v5796 = vpop.f32.mrf.mxu0
        %v5797 = vadd.f32 0.0, %v5796
        %v5798 = vpop.f32.mrf.mxu0
        %5799 = vmatprep.mubr.f32.mxu0 0.0
        %5800 = vmatmul.mubr.f32.gmra.mxu0 %v4897
        %v5801 = vpop.f32.mrf.mxu0
        %v5802 = vadd.f32 0.0, %v5801
        %v5803 = vpop.f32.mrf.mxu0
        %5804 = vmatprep.mubr.f32.mxu0 0.0
        %5805 = vmatmul.mubr.f32.gmra.mxu0 %v4899
        %v5806 = vpop.f32.mrf.mxu0
        %v5807 = vadd.f32 0.0, %v5806
        %v5808 = vpop.f32.mrf.mxu0
        %5809 = vmatprep.mubr.f32.mxu0 0.0
        %5810 = vmatmul.mubr.f32.gmra.mxu0 %v4901
        %v5811 = vpop.f32.mrf.mxu0
        %v5812 = vadd.f32 0.0, %v5811
        %v5813 = vpop.f32.mrf.mxu0
        %5814 = vmatprep.mubr.f32.mxu0 0.0
        %5815 = vmatmul.mubr.f32.gmra.mxu0 %v4903
        %v5816 = vpop.f32.mrf.mxu0
        %v5817 = vadd.f32 0.0, %v5816
        %v5818 = vpop.f32.mrf.mxu0
        %5819 = vmatprep.mubr.f32.mxu0 0.0
        %5820 = vmatmul.mubr.f32.gmra.mxu0 %v4905
        %v5821 = vpop.f32.mrf.mxu0
        %v5822 = vadd.f32 0.0, %v5821
        %v5823 = vpop.f32.mrf.mxu0
        %5824 = vmatprep.mubr.f32.mxu0 0.0
        %5825 = vmatmul.mubr.f32.gmra.mxu0 %v4907
        %v5826 = vpop.f32.mrf.mxu0
        %v5827 = vadd.f32 0.0, %v5826
        %v5828 = vpop.f32.mrf.mxu0
        %5829 = vmatprep.mubr.f32.mxu0 0.0
        %5830 = vmatmul.mubr.f32.gmra.mxu0 %v4909
        %v5831 = vpop.f32.mrf.mxu0
        %v5832 = vadd.f32 0.0, %v5831
        %v5833 = vpop.f32.mrf.mxu0
        %5834 = vmatprep.mubr.f32.mxu0 0.0
        %5835 = vmatmul.mubr.f32.gmra.mxu0 %v4911
        %v5836 = vpop.f32.mrf.mxu0
        %v5837 = vadd.f32 0.0, %v5836
        %v5838 = vpop.f32.mrf.mxu0
        %5839 = vmatprep.mubr.f32.mxu0 0.0
        %5840 = vmatmul.mubr.f32.gmra.mxu0 %v4913
        %v5841 = vpop.f32.mrf.mxu0
        %v5842 = vadd.f32 0.0, %v5841
        %v5843 = vpop.f32.mrf.mxu0
        %5844 = vmatprep.mubr.f32.mxu0 0.0
        %5845 = vmatmul.mubr.f32.gmra.mxu0 %v4915
        %v5846 = vpop.f32.mrf.mxu0
        %v5847 = vadd.f32 0.0, %v5846
        %v5848 = vpop.f32.mrf.mxu0
        %5849 = vmatprep.mubr.f32.mxu0 0.0
        %5850 = vmatmul.mubr.f32.gmra.mxu0 %v4917
        %v5851 = vpop.f32.mrf.mxu0
        %v5852 = vadd.f32 0.0, %v5851
        %v5853 = vpop.f32.mrf.mxu0
        %5854 = vmatprep.mubr.f32.mxu0 0.0
        %5855 = vmatmul.mubr.f32.gmra.mxu0 %v4919
        %v5856 = vpop.f32.mrf.mxu0
        %v5857 = vadd.f32 0.0, %v5856
        %v5858 = vpop.f32.mrf.mxu0
        %5859 = vmatprep.mubr.f32.mxu0 0.0
        %5860 = vmatmul.mubr.f32.gmra.mxu0 %v4921
        %v5861 = vpop.f32.mrf.mxu0
        %v5862 = vadd.f32 0.0, %v5861
        %v5863 = vpop.f32.mrf.mxu0
        %5864 = vmatprep.mubr.f32.mxu0 0.0
        %5865 = vmatmul.mubr.f32.gmra.mxu0 %v4923
        %v5866 = vpop.f32.mrf.mxu0
        %v5867 = vadd.f32 0.0, %v5866
        %v5868 = vpop.f32.mrf.mxu0
        %5869 = vmatprep.mubr.f32.mxu0 0.0
        %5870 = vmatmul.mubr.f32.gmra.mxu0 %v4925
        %v5871 = vpop.f32.mrf.mxu0
        %v5872 = vadd.f32 0.0, %v5871
        %v5873 = vpop.f32.mrf.mxu0
        %5874 = vmatprep.mubr.f32.mxu0 0.0
        %5875 = vmatmul.mubr.f32.gmra.mxu0 %v4927
        %v5876 = vpop.f32.mrf.mxu0
        %v5877 = vadd.f32 0.0, %v5876
        %v5878 = vpop.f32.mrf.mxu0
        %5879 = vmatprep.mubr.f32.mxu0 0.0
        %5880 = vmatmul.mubr.f32.gmra.mxu0 %v4929
        %v5881 = vpop.f32.mrf.mxu0
        %v5882 = vadd.f32 0.0, %v5881
        %v5883 = vpop.f32.mrf.mxu0
        %5884 = vmatprep.mubr.f32.mxu0 0.0
        %5885 = vmatmul.mubr.f32.gmra.mxu0 %v5681
        %v5886 = vpop.f32.mrf.mxu0
        %v5887 = vadd.f32 0.0, %v5886
        %v5888 = vpop.f32.mrf.mxu0
        %5889 = vmatprep.mubr.f32.mxu0 0.0
        %5890 = vmatmul.mubr.f32.gmra.mxu0 %v5683
        %v5891 = vpop.f32.mrf.mxu0
        %v5892 = vadd.f32 0.0, %v5891
        %v5893 = vpop.f32.mrf.mxu0
        %5894 = vdwg.mxu0
        %v5895 = vadd.f32 %v5645, %v5752
        %v5896 = vadd.f32 %v5646, %v5757
        %v5897 = vadd.f32 %v5647, %v5762
        %v5898 = vadd.f32 %v5648, %v5767
        %v5899 = vadd.f32 %v5649, %v5772
        %v5900 = vadd.f32 %v5650, %v5777
        %v5901 = vadd.f32 %v5651, %v5782
        %v5902 = vadd.f32 %v5652, %v5787
        %v5903 = vadd.f32 %v5653, %v5792
        %v5904 = vadd.f32 %v5654, %v5797
        %v5905 = vadd.f32 %v5655, %v5802
        %v5906 = vadd.f32 %v5656, %v5807
        %v5907 = vadd.f32 %v5657, %v5812
        %v5908 = vadd.f32 %v5658, %v5817
        %v5909 = vadd.f32 %v5659, %v5822
        %v5910 = vadd.f32 %v5660, %v5827
        %v5911 = vadd.f32 %v5661, %v5832
        %v5912 = vadd.f32 %v5662, %v5837
        %v5913 = vadd.f32 %v5663, %v5842
        %v5914 = vadd.f32 %v5664, %v5847
        %v5915 = vadd.f32 %v5665, %v5852
        %v5916 = vadd.f32 %v5666, %v5857
        %v5917 = vadd.f32 %v5667, %v5862
        %v5918 = vadd.f32 %v5668, %v5867
        %v5919 = vadd.f32 %v5669, %v5872
        %v5920 = vadd.f32 %v5670, %v5877
        %v5921 = vadd.f32 %v5671, %v5882
        %v5922 = vadd.f32 %v5672, %v5887
        %v5923 = vadd.f32 %v5673, %v5892
        %s5924 = scalar_lea.vmem %s3, 272
        %v5925 = vld [vmem:[%s5924] sm:$0xff]
        %v5926 = vld [vmem:[%s5924 + $0x8] sm:$0xff]
        %v5927 = vsel %vm969, %v872, 0
        %v5929 = vsel %vm969, %v873, 0
        %5931 = vmatprep.subr.mxu0 0.0
        %5932 = vmatpush1.msra.mxu0 0.0
        %5933 = vmatprep.subr.mxu0 0.0
        %5934 = vmatpush1.msra.mxu0 0.0
        %5935 = vmatprep.subr.mxu0 0.0
        %5936 = vmatpush1.msra.mxu0 0.0
        %5937 = vmatprep.subr.mxu0 0.0
        %5938 = vmatpush1.msra.mxu0 0.0
        %5939 = vmatprep.subr.mxu0 0.0
        %5940 = vmatpush1.msra.mxu0 0.0
        %5941 = vmatprep.subr.mxu0 0.0
        %5942 = vmatpush1.msra.mxu0 0.0
        %5943 = vmatprep.subr.mxu0 0.0
        %5944 = vmatpush1.msra.mxu0 0.0
        %5945 = vmatprep.subr.mxu0 0.0
        %5946 = vmatpush1.msra.mxu0 0.0
        %5947 = vmatprep.subr.mxu0 0.0
        %5948 = vmatpush1.msra.mxu0 0.0
        %5949 = vmatprep.subr.mxu0 0.0
        %5950 = vmatpush1.msra.mxu0 0.0
        %5951 = vmatprep.subr.mxu0 0.0
        %5952 = vmatpush1.msra.mxu0 0.0
        %5953 = vmatprep.subr.mxu0 0.0
        %5954 = vmatpush1.msra.mxu0 0.0
        %5955 = vmatprep.subr.mxu0 0.0
        %5956 = vmatpush1.msra.mxu0 0.0
        %5957 = vmatprep.subr.mxu0 0.0
        %5958 = vmatpush1.msra.mxu0 0.0
        %5959 = vmatprep.subr.mxu0 0.0
        %5960 = vmatpush1.msra.mxu0 %v5926
        %5961 = vmatprep.subr.mxu0 0.0
        %5962 = vmatpush1.msra.mxu0 %v5925
        %5963 = vmatprep.subr.mxu0 0.0
        %5964 = vmatpush2.msra.mxu0 0.0
        %5965 = vmatprep.subr.mxu0 0.0
        %5966 = vmatpush2.msra.mxu0 0.0
        %5967 = vmatprep.subr.mxu0 0.0
        %5968 = vmatpush2.msra.mxu0 0.0
        %5969 = vmatprep.subr.mxu0 0.0
        %5970 = vmatpush2.msra.mxu0 0.0
        %5971 = vmatprep.subr.mxu0 0.0
        %5972 = vmatpush2.msra.mxu0 0.0
        %5973 = vmatprep.subr.mxu0 0.0
        %5974 = vmatpush2.msra.mxu0 0.0
        %5975 = vmatprep.subr.mxu0 0.0
        %5976 = vmatpush2.msra.mxu0 0.0
        %5977 = vmatprep.subr.mxu0 0.0
        %5978 = vmatpush2.msra.mxu0 0.0
        %5979 = vmatprep.subr.mxu0 0.0
        %5980 = vmatpush2.msra.mxu0 0.0
        %5981 = vmatprep.subr.mxu0 0.0
        %5982 = vmatpush2.msra.mxu0 0.0
        %5983 = vmatprep.subr.mxu0 0.0
        %5984 = vmatpush2.msra.mxu0 0.0
        %5985 = vmatprep.subr.mxu0 0.0
        %5986 = vmatpush2.msra.mxu0 0.0
        %5987 = vmatprep.subr.mxu0 0.0
        %5988 = vmatpush2.msra.mxu0 0.0
        %5989 = vmatprep.subr.mxu0 0.0
        %5990 = vmatpush2.msra.mxu0 0.0
        %5991 = vmatprep.subr.mxu0 0.0
        %5992 = vmatpush2.msra.mxu0 0.0
        %5993 = vmatprep.subr.mxu0 0.0
        %5994 = vmatpush2.msra.mxu0 0.0
        %5995 = vmatprep.mubr.f32.mxu0 0.0
        %5996 = vmatmul.mubr.f32.gmra.mxu0 %v1252
        %v5997 = vpop.f32.mrf.mxu0
        %v5998 = vadd.f32 0.0, %v5997
        %v5999 = vpop.f32.mrf.mxu0
        %6000 = vmatprep.mubr.f32.mxu0 0.0
        %6001 = vmatmul.mubr.f32.gmra.mxu0 %v1254
        %v6002 = vpop.f32.mrf.mxu0
        %v6003 = vadd.f32 0.0, %v6002
        %v6004 = vpop.f32.mrf.mxu0
        %6005 = vmatprep.mubr.f32.mxu0 0.0
        %6006 = vmatmul.mubr.f32.gmra.mxu0 %v1256
        %v6007 = vpop.f32.mrf.mxu0
        %v6008 = vadd.f32 0.0, %v6007
        %v6009 = vpop.f32.mrf.mxu0
        %6010 = vmatprep.mubr.f32.mxu0 0.0
        %6011 = vmatmul.mubr.f32.gmra.mxu0 %v1258
        %v6012 = vpop.f32.mrf.mxu0
        %v6013 = vadd.f32 0.0, %v6012
        %v6014 = vpop.f32.mrf.mxu0
        %6015 = vmatprep.mubr.f32.mxu0 0.0
        %6016 = vmatmul.mubr.f32.gmra.mxu0 %v1260
        %v6017 = vpop.f32.mrf.mxu0
        %v6018 = vadd.f32 0.0, %v6017
        %v6019 = vpop.f32.mrf.mxu0
        %6020 = vmatprep.mubr.f32.mxu0 0.0
        %6021 = vmatmul.mubr.f32.gmra.mxu0 %v1262
        %v6022 = vpop.f32.mrf.mxu0
        %v6023 = vadd.f32 0.0, %v6022
        %v6024 = vpop.f32.mrf.mxu0
        %6025 = vmatprep.mubr.f32.mxu0 0.0
        %6026 = vmatmul.mubr.f32.gmra.mxu0 %v1264
        %v6027 = vpop.f32.mrf.mxu0
        %v6028 = vadd.f32 0.0, %v6027
        %v6029 = vpop.f32.mrf.mxu0
        %6030 = vmatprep.mubr.f32.mxu0 0.0
        %6031 = vmatmul.mubr.f32.gmra.mxu0 %v1266
        %v6032 = vpop.f32.mrf.mxu0
        %v6033 = vadd.f32 0.0, %v6032
        %v6034 = vpop.f32.mrf.mxu0
        %6035 = vmatprep.mubr.f32.mxu0 0.0
        %6036 = vmatmul.mubr.f32.gmra.mxu0 %v1268
        %v6037 = vpop.f32.mrf.mxu0
        %v6038 = vadd.f32 0.0, %v6037
        %v6039 = vpop.f32.mrf.mxu0
        %6040 = vmatprep.mubr.f32.mxu0 0.0
        %6041 = vmatmul.mubr.f32.gmra.mxu0 %v1270
        %v6042 = vpop.f32.mrf.mxu0
        %v6043 = vadd.f32 0.0, %v6042
        %v6044 = vpop.f32.mrf.mxu0
        %6045 = vmatprep.mubr.f32.mxu0 0.0
        %6046 = vmatmul.mubr.f32.gmra.mxu0 %v1272
        %v6047 = vpop.f32.mrf.mxu0
        %v6048 = vadd.f32 0.0, %v6047
        %v6049 = vpop.f32.mrf.mxu0
        %6050 = vmatprep.mubr.f32.mxu0 0.0
        %6051 = vmatmul.mubr.f32.gmra.mxu0 %v1274
        %v6052 = vpop.f32.mrf.mxu0
        %v6053 = vadd.f32 0.0, %v6052
        %v6054 = vpop.f32.mrf.mxu0
        %6055 = vmatprep.mubr.f32.mxu0 0.0
        %6056 = vmatmul.mubr.f32.gmra.mxu0 %v1276
        %v6057 = vpop.f32.mrf.mxu0
        %v6058 = vadd.f32 0.0, %v6057
        %v6059 = vpop.f32.mrf.mxu0
        %6060 = vmatprep.mubr.f32.mxu0 0.0
        %6061 = vmatmul.mubr.f32.gmra.mxu0 %v1278
        %v6062 = vpop.f32.mrf.mxu0
        %v6063 = vadd.f32 0.0, %v6062
        %v6064 = vpop.f32.mrf.mxu0
        %6065 = vmatprep.mubr.f32.mxu0 0.0
        %6066 = vmatmul.mubr.f32.gmra.mxu0 %v1280
        %v6067 = vpop.f32.mrf.mxu0
        %v6068 = vadd.f32 0.0, %v6067
        %v6069 = vpop.f32.mrf.mxu0
        %6070 = vmatprep.mubr.f32.mxu0 0.0
        %6071 = vmatmul.mubr.f32.gmra.mxu0 %v1282
        %v6072 = vpop.f32.mrf.mxu0
        %v6073 = vadd.f32 0.0, %v6072
        %v6074 = vpop.f32.mrf.mxu0
        %6075 = vmatprep.mubr.f32.mxu0 0.0
        %6076 = vmatmul.mubr.f32.gmra.mxu0 %v1284
        %v6077 = vpop.f32.mrf.mxu0
        %v6078 = vadd.f32 0.0, %v6077
        %v6079 = vpop.f32.mrf.mxu0
        %6080 = vmatprep.mubr.f32.mxu0 0.0
        %6081 = vmatmul.mubr.f32.gmra.mxu0 %v1286
        %v6082 = vpop.f32.mrf.mxu0
        %v6083 = vadd.f32 0.0, %v6082
        %v6084 = vpop.f32.mrf.mxu0
        %6085 = vmatprep.mubr.f32.mxu0 0.0
        %6086 = vmatmul.mubr.f32.gmra.mxu0 %v1288
        %v6087 = vpop.f32.mrf.mxu0
        %v6088 = vadd.f32 0.0, %v6087
        %v6089 = vpop.f32.mrf.mxu0
        %6090 = vmatprep.mubr.f32.mxu0 0.0
        %6091 = vmatmul.mubr.f32.gmra.mxu0 %v1290
        %v6092 = vpop.f32.mrf.mxu0
        %v6093 = vadd.f32 0.0, %v6092
        %v6094 = vpop.f32.mrf.mxu0
        %6095 = vmatprep.mubr.f32.mxu0 0.0
        %6096 = vmatmul.mubr.f32.gmra.mxu0 %v1292
        %v6097 = vpop.f32.mrf.mxu0
        %v6098 = vadd.f32 0.0, %v6097
        %v6099 = vpop.f32.mrf.mxu0
        %6100 = vmatprep.mubr.f32.mxu0 0.0
        %6101 = vmatmul.mubr.f32.gmra.mxu0 %v1294
        %v6102 = vpop.f32.mrf.mxu0
        %v6103 = vadd.f32 0.0, %v6102
        %v6104 = vpop.f32.mrf.mxu0
        %6105 = vmatprep.mubr.f32.mxu0 0.0
        %6106 = vmatmul.mubr.f32.gmra.mxu0 %v5173
        %v6107 = vpop.f32.mrf.mxu0
        %v6108 = vadd.f32 0.0, %v6107
        %v6109 = vpop.f32.mrf.mxu0
        %6110 = vmatprep.mubr.f32.mxu0 0.0
        %6111 = vmatmul.mubr.f32.gmra.mxu0 %v5175
        %v6112 = vpop.f32.mrf.mxu0
        %v6113 = vadd.f32 0.0, %v6112
        %v6114 = vpop.f32.mrf.mxu0
        %6115 = vmatprep.mubr.f32.mxu0 0.0
        %6116 = vmatmul.mubr.f32.gmra.mxu0 %v5177
        %v6117 = vpop.f32.mrf.mxu0
        %v6118 = vadd.f32 0.0, %v6117
        %v6119 = vpop.f32.mrf.mxu0
        %6120 = vmatprep.mubr.f32.mxu0 0.0
        %6121 = vmatmul.mubr.f32.gmra.mxu0 %v5179
        %v6122 = vpop.f32.mrf.mxu0
        %v6123 = vadd.f32 0.0, %v6122
        %v6124 = vpop.f32.mrf.mxu0
        %6125 = vmatprep.mubr.f32.mxu0 0.0
        %6126 = vmatmul.mubr.f32.gmra.mxu0 %v5181
        %v6127 = vpop.f32.mrf.mxu0
        %v6128 = vadd.f32 0.0, %v6127
        %v6129 = vpop.f32.mrf.mxu0
        %6130 = vmatprep.mubr.f32.mxu0 0.0
        %6131 = vmatmul.mubr.f32.gmra.mxu0 %v5927
        %v6132 = vpop.f32.mrf.mxu0
        %v6133 = vadd.f32 0.0, %v6132
        %v6134 = vpop.f32.mrf.mxu0
        %6135 = vmatprep.mubr.f32.mxu0 0.0
        %6136 = vmatmul.mubr.f32.gmra.mxu0 %v5929
        %v6137 = vpop.f32.mrf.mxu0
        %v6138 = vadd.f32 0.0, %v6137
        %v6139 = vpop.f32.mrf.mxu0
        %6140 = vdwg.mxu0
        %v6141 = vadd.f32 %v5895, %v5998
        %v6142 = vadd.f32 %v5896, %v6003
        %v6143 = vadd.f32 %v5897, %v6008
        %v6144 = vadd.f32 %v5898, %v6013
        %v6145 = vadd.f32 %v5899, %v6018
        %v6146 = vadd.f32 %v5900, %v6023
        %v6147 = vadd.f32 %v5901, %v6028
        %v6148 = vadd.f32 %v5902, %v6033
        %v6149 = vadd.f32 %v5903, %v6038
        %v6150 = vadd.f32 %v5904, %v6043
        %v6151 = vadd.f32 %v5905, %v6048
        %v6152 = vadd.f32 %v5906, %v6053
        %v6153 = vadd.f32 %v5907, %v6058
        %v6154 = vadd.f32 %v5908, %v6063
        %v6155 = vadd.f32 %v5909, %v6068
        %v6156 = vadd.f32 %v5910, %v6073
        %v6157 = vadd.f32 %v5911, %v6078
        %v6158 = vadd.f32 %v5912, %v6083
        %v6159 = vadd.f32 %v5913, %v6088
        %v6160 = vadd.f32 %v5914, %v6093
        %v6161 = vadd.f32 %v5915, %v6098
        %v6162 = vadd.f32 %v5916, %v6103
        %v6163 = vadd.f32 %v5917, %v6108
        %v6164 = vadd.f32 %v5918, %v6113
        %v6165 = vadd.f32 %v5919, %v6118
        %v6166 = vadd.f32 %v5920, %v6123
        %v6167 = vadd.f32 %v5921, %v6128
        %v6168 = vadd.f32 %v5922, %v6133
        %v6169 = vadd.f32 %v5923, %v6138
        %s6170 = scalar_lea.vmem %s3, 288
        %v6171 = vld [vmem:[%s6170] sm:$0xff]
        %v6172 = vld [vmem:[%s6170 + $0x8] sm:$0xff]
        %v6173 = vrot.slane %v867, 1
        %v6174 = vsel %vm911, %v967, %v6173
        %v6175 = vrot.slane %v868, 1
        %v6176 = vsel %vm911, %v6173, %v6175
        %v6177 = vrot.slane %v869, 1
        %v6178 = vsel %vm911, %v6175, %v6177
        %v6179 = vrot.slane %v870, 1
        %v6180 = vsel %vm911, %v6177, %v6179
        %v6181 = vrot.slane %v871, 1
        %v6182 = vsel %vm911, %v6179, %v6181
        %v6183 = vrot.slane %v872, 1
        %v6184 = vsel %vm911, %v6181, %v6183
        %v6185 = vrot.slane %v873, 1
        %v6186 = vsel %vm911, %v6183, %v6185
        %v6187 = vsel %vm969, %v6174, 0
        %v6189 = vsel %vm969, %v6176, 0
        %v6191 = vsel %vm969, %v6178, 0
        %v6193 = vsel %vm969, %v6180, 0
        %v6195 = vsel %vm969, %v6182, 0
        %v6197 = vsel %vm969, %v6184, 0
        %v6199 = vsel %vm969, %v6186, 0
        %v6201 = vsel %vm969, %v6185, 0
        %6203 = vmatprep.subr.mxu0 0.0
        %6204 = vmatpush1.msra.mxu0 0.0
        %6205 = vmatprep.subr.mxu0 0.0
        %6206 = vmatpush1.msra.mxu0 0.0
        %6207 = vmatprep.subr.mxu0 0.0
        %6208 = vmatpush1.msra.mxu0 0.0
        %6209 = vmatprep.subr.mxu0 0.0
        %6210 = vmatpush1.msra.mxu0 0.0
        %6211 = vmatprep.subr.mxu0 0.0
        %6212 = vmatpush1.msra.mxu0 0.0
        %6213 = vmatprep.subr.mxu0 0.0
        %6214 = vmatpush1.msra.mxu0 0.0
        %6215 = vmatprep.subr.mxu0 0.0
        %6216 = vmatpush1.msra.mxu0 0.0
        %6217 = vmatprep.subr.mxu0 0.0
        %6218 = vmatpush1.msra.mxu0 0.0
        %6219 = vmatprep.subr.mxu0 0.0
        %6220 = vmatpush1.msra.mxu0 0.0
        %6221 = vmatprep.subr.mxu0 0.0
        %6222 = vmatpush1.msra.mxu0 0.0
        %6223 = vmatprep.subr.mxu0 0.0
        %6224 = vmatpush1.msra.mxu0 0.0
        %6225 = vmatprep.subr.mxu0 0.0
        %6226 = vmatpush1.msra.mxu0 0.0
        %6227 = vmatprep.subr.mxu0 0.0
        %6228 = vmatpush1.msra.mxu0 0.0
        %6229 = vmatprep.subr.mxu0 0.0
        %6230 = vmatpush1.msra.mxu0 0.0
        %6231 = vmatprep.subr.mxu0 0.0
        %6232 = vmatpush1.msra.mxu0 %v6172
        %6233 = vmatprep.subr.mxu0 0.0
        %6234 = vmatpush1.msra.mxu0 %v6171
        %6235 = vmatprep.subr.mxu0 0.0
        %6236 = vmatpush2.msra.mxu0 0.0
        %6237 = vmatprep.subr.mxu0 0.0
        %6238 = vmatpush2.msra.mxu0 0.0
        %6239 = vmatprep.subr.mxu0 0.0
        %6240 = vmatpush2.msra.mxu0 0.0
        %6241 = vmatprep.subr.mxu0 0.0
        %6242 = vmatpush2.msra.mxu0 0.0
        %6243 = vmatprep.subr.mxu0 0.0
        %6244 = vmatpush2.msra.mxu0 0.0
        %6245 = vmatprep.subr.mxu0 0.0
        %6246 = vmatpush2.msra.mxu0 0.0
        %6247 = vmatprep.subr.mxu0 0.0
        %6248 = vmatpush2.msra.mxu0 0.0
        %6249 = vmatprep.subr.mxu0 0.0
        %6250 = vmatpush2.msra.mxu0 0.0
        %6251 = vmatprep.subr.mxu0 0.0
        %6252 = vmatpush2.msra.mxu0 0.0
        %6253 = vmatprep.subr.mxu0 0.0
        %6254 = vmatpush2.msra.mxu0 0.0
        %6255 = vmatprep.subr.mxu0 0.0
        %6256 = vmatpush2.msra.mxu0 0.0
        %6257 = vmatprep.subr.mxu0 0.0
        %6258 = vmatpush2.msra.mxu0 0.0
        %6259 = vmatprep.subr.mxu0 0.0
        %6260 = vmatpush2.msra.mxu0 0.0
        %6261 = vmatprep.subr.mxu0 0.0
        %6262 = vmatpush2.msra.mxu0 0.0
        %6263 = vmatprep.subr.mxu0 0.0
        %6264 = vmatpush2.msra.mxu0 0.0
        %6265 = vmatprep.subr.mxu0 0.0
        %6266 = vmatpush2.msra.mxu0 0.0
        %6267 = vmatprep.mubr.f32.mxu0 0.0
        %6268 = vmatmul.mubr.f32.gmra.mxu0 %v984
        %v6269 = vpop.f32.mrf.mxu0
        %v6270 = vadd.f32 0.0, %v6269
        %v6271 = vpop.f32.mrf.mxu0
        %6272 = vmatprep.mubr.f32.mxu0 0.0
        %6273 = vmatmul.mubr.f32.gmra.mxu0 %v986
        %v6274 = vpop.f32.mrf.mxu0
        %v6275 = vadd.f32 0.0, %v6274
        %v6276 = vpop.f32.mrf.mxu0
        %6277 = vmatprep.mubr.f32.mxu0 0.0
        %6278 = vmatmul.mubr.f32.gmra.mxu0 %v988
        %v6279 = vpop.f32.mrf.mxu0
        %v6280 = vadd.f32 0.0, %v6279
        %v6281 = vpop.f32.mrf.mxu0
        %6282 = vmatprep.mubr.f32.mxu0 0.0
        %6283 = vmatmul.mubr.f32.gmra.mxu0 %v990
        %v6284 = vpop.f32.mrf.mxu0
        %v6285 = vadd.f32 0.0, %v6284
        %v6286 = vpop.f32.mrf.mxu0
        %6287 = vmatprep.mubr.f32.mxu0 0.0
        %6288 = vmatmul.mubr.f32.gmra.mxu0 %v992
        %v6289 = vpop.f32.mrf.mxu0
        %v6290 = vadd.f32 0.0, %v6289
        %v6291 = vpop.f32.mrf.mxu0
        %6292 = vmatprep.mubr.f32.mxu0 0.0
        %6293 = vmatmul.mubr.f32.gmra.mxu0 %v994
        %v6294 = vpop.f32.mrf.mxu0
        %v6295 = vadd.f32 0.0, %v6294
        %v6296 = vpop.f32.mrf.mxu0
        %6297 = vmatprep.mubr.f32.mxu0 0.0
        %6298 = vmatmul.mubr.f32.gmra.mxu0 %v996
        %v6299 = vpop.f32.mrf.mxu0
        %v6300 = vadd.f32 0.0, %v6299
        %v6301 = vpop.f32.mrf.mxu0
        %6302 = vmatprep.mubr.f32.mxu0 0.0
        %6303 = vmatmul.mubr.f32.gmra.mxu0 %v998
        %v6304 = vpop.f32.mrf.mxu0
        %v6305 = vadd.f32 0.0, %v6304
        %v6306 = vpop.f32.mrf.mxu0
        %6307 = vmatprep.mubr.f32.mxu0 0.0
        %6308 = vmatmul.mubr.f32.gmra.mxu0 %v1000
        %v6309 = vpop.f32.mrf.mxu0
        %v6310 = vadd.f32 0.0, %v6309
        %v6311 = vpop.f32.mrf.mxu0
        %6312 = vmatprep.mubr.f32.mxu0 0.0
        %6313 = vmatmul.mubr.f32.gmra.mxu0 %v1002
        %v6314 = vpop.f32.mrf.mxu0
        %v6315 = vadd.f32 0.0, %v6314
        %v6316 = vpop.f32.mrf.mxu0
        %6317 = vmatprep.mubr.f32.mxu0 0.0
        %6318 = vmatmul.mubr.f32.gmra.mxu0 %v1004
        %v6319 = vpop.f32.mrf.mxu0
        %v6320 = vadd.f32 0.0, %v6319
        %v6321 = vpop.f32.mrf.mxu0
        %6322 = vmatprep.mubr.f32.mxu0 0.0
        %6323 = vmatmul.mubr.f32.gmra.mxu0 %v1006
        %v6324 = vpop.f32.mrf.mxu0
        %v6325 = vadd.f32 0.0, %v6324
        %v6326 = vpop.f32.mrf.mxu0
        %6327 = vmatprep.mubr.f32.mxu0 0.0
        %6328 = vmatmul.mubr.f32.gmra.mxu0 %v1008
        %v6329 = vpop.f32.mrf.mxu0
        %v6330 = vadd.f32 0.0, %v6329
        %v6331 = vpop.f32.mrf.mxu0
        %6332 = vmatprep.mubr.f32.mxu0 0.0
        %6333 = vmatmul.mubr.f32.gmra.mxu0 %v1010
        %v6334 = vpop.f32.mrf.mxu0
        %v6335 = vadd.f32 0.0, %v6334
        %v6336 = vpop.f32.mrf.mxu0
        %6337 = vmatprep.mubr.f32.mxu0 0.0
        %6338 = vmatmul.mubr.f32.gmra.mxu0 %v1012
        %v6339 = vpop.f32.mrf.mxu0
        %v6340 = vadd.f32 0.0, %v6339
        %v6341 = vpop.f32.mrf.mxu0
        %6342 = vmatprep.mubr.f32.mxu0 0.0
        %6343 = vmatmul.mubr.f32.gmra.mxu0 %v1014
        %v6344 = vpop.f32.mrf.mxu0
        %v6345 = vadd.f32 0.0, %v6344
        %v6346 = vpop.f32.mrf.mxu0
        %6347 = vmatprep.mubr.f32.mxu0 0.0
        %6348 = vmatmul.mubr.f32.gmra.mxu0 %v1016
        %v6349 = vpop.f32.mrf.mxu0
        %v6350 = vadd.f32 0.0, %v6349
        %v6351 = vpop.f32.mrf.mxu0
        %6352 = vmatprep.mubr.f32.mxu0 0.0
        %6353 = vmatmul.mubr.f32.gmra.mxu0 %v1018
        %v6354 = vpop.f32.mrf.mxu0
        %v6355 = vadd.f32 0.0, %v6354
        %v6356 = vpop.f32.mrf.mxu0
        %6357 = vmatprep.mubr.f32.mxu0 0.0
        %6358 = vmatmul.mubr.f32.gmra.mxu0 %v1020
        %v6359 = vpop.f32.mrf.mxu0
        %v6360 = vadd.f32 0.0, %v6359
        %v6361 = vpop.f32.mrf.mxu0
        %6362 = vmatprep.mubr.f32.mxu0 0.0
        %6363 = vmatmul.mubr.f32.gmra.mxu0 %v1022
        %v6364 = vpop.f32.mrf.mxu0
        %v6365 = vadd.f32 0.0, %v6364
        %v6366 = vpop.f32.mrf.mxu0
        %6367 = vmatprep.mubr.f32.mxu0 0.0
        %6368 = vmatmul.mubr.f32.gmra.mxu0 %v1024
        %v6369 = vpop.f32.mrf.mxu0
        %v6370 = vadd.f32 0.0, %v6369
        %v6371 = vpop.f32.mrf.mxu0
        %6372 = vmatprep.mubr.f32.mxu0 0.0
        %6373 = vmatmul.mubr.f32.gmra.mxu0 %v6187
        %v6374 = vpop.f32.mrf.mxu0
        %v6375 = vadd.f32 0.0, %v6374
        %v6376 = vpop.f32.mrf.mxu0
        %6377 = vmatprep.mubr.f32.mxu0 0.0
        %6378 = vmatmul.mubr.f32.gmra.mxu0 %v6189
        %v6379 = vpop.f32.mrf.mxu0
        %v6380 = vadd.f32 0.0, %v6379
        %v6381 = vpop.f32.mrf.mxu0
        %6382 = vmatprep.mubr.f32.mxu0 0.0
        %6383 = vmatmul.mubr.f32.gmra.mxu0 %v6191
        %v6384 = vpop.f32.mrf.mxu0
        %v6385 = vadd.f32 0.0, %v6384
        %v6386 = vpop.f32.mrf.mxu0
        %6387 = vmatprep.mubr.f32.mxu0 0.0
        %6388 = vmatmul.mubr.f32.gmra.mxu0 %v6193
        %v6389 = vpop.f32.mrf.mxu0
        %v6390 = vadd.f32 0.0, %v6389
        %v6391 = vpop.f32.mrf.mxu0
        %6392 = vmatprep.mubr.f32.mxu0 0.0
        %6393 = vmatmul.mubr.f32.gmra.mxu0 %v6195
        %v6394 = vpop.f32.mrf.mxu0
        %v6395 = vadd.f32 0.0, %v6394
        %v6396 = vpop.f32.mrf.mxu0
        %6397 = vmatprep.mubr.f32.mxu0 0.0
        %6398 = vmatmul.mubr.f32.gmra.mxu0 %v6197
        %v6399 = vpop.f32.mrf.mxu0
        %v6400 = vadd.f32 0.0, %v6399
        %v6401 = vpop.f32.mrf.mxu0
        %6402 = vmatprep.mubr.f32.mxu0 0.0
        %6403 = vmatmul.mubr.f32.gmra.mxu0 %v6199
        %v6404 = vpop.f32.mrf.mxu0
        %v6405 = vadd.f32 0.0, %v6404
        %v6406 = vpop.f32.mrf.mxu0
        %6407 = vmatprep.mubr.f32.mxu0 0.0
        %6408 = vmatmul.mubr.f32.gmra.mxu0 %v6201
        %v6409 = vpop.f32.mrf.mxu0
        %v6410 = vadd.f32 0.0, %v6409
        %v6411 = vpop.f32.mrf.mxu0
        %6412 = vdwg.mxu0
        %v6413 = vadd.f32 %v6141, %v6270
        %v6414 = vadd.f32 %v6142, %v6275
        %v6415 = vadd.f32 %v6143, %v6280
        %v6416 = vadd.f32 %v6144, %v6285
        %v6417 = vadd.f32 %v6145, %v6290
        %v6418 = vadd.f32 %v6146, %v6295
        %v6419 = vadd.f32 %v6147, %v6300
        %v6420 = vadd.f32 %v6148, %v6305
        %v6421 = vadd.f32 %v6149, %v6310
        %v6422 = vadd.f32 %v6150, %v6315
        %v6423 = vadd.f32 %v6151, %v6320
        %v6424 = vadd.f32 %v6152, %v6325
        %v6425 = vadd.f32 %v6153, %v6330
        %v6426 = vadd.f32 %v6154, %v6335
        %v6427 = vadd.f32 %v6155, %v6340
        %v6428 = vadd.f32 %v6156, %v6345
        %v6429 = vadd.f32 %v6157, %v6350
        %v6430 = vadd.f32 %v6158, %v6355
        %v6431 = vadd.f32 %v6159, %v6360
        %v6432 = vadd.f32 %v6160, %v6365
        %v6433 = vadd.f32 %v6161, %v6370
        %v6434 = vadd.f32 %v6162, %v6375
        %v6435 = vadd.f32 %v6163, %v6380
        %v6436 = vadd.f32 %v6164, %v6385
        %v6437 = vadd.f32 %v6165, %v6390
        %v6438 = vadd.f32 %v6166, %v6395
        %v6439 = vadd.f32 %v6167, %v6400
        %v6440 = vadd.f32 %v6168, %v6405
        %v6441 = vadd.f32 %v6169, %v6410
        %s6442 = scalar_lea.vmem %s3, 304
        %v6443 = vld [vmem:[%s6442] sm:$0xff]
        %v6444 = vld [vmem:[%s6442 + $0x8] sm:$0xff]
        %v6445 = vrot.slane %v869, 2
        %v6446 = vsel %vm1509, %v2589, %v6445
        %v6447 = vrot.slane %v870, 2
        %v6448 = vsel %vm1509, %v6445, %v6447
        %v6449 = vrot.slane %v871, 2
        %v6450 = vsel %vm1509, %v6447, %v6449
        %v6451 = vrot.slane %v872, 2
        %v6452 = vsel %vm1509, %v6449, %v6451
        %v6453 = vrot.slane %v873, 2
        %v6454 = vsel %vm1509, %v6451, %v6453
        %v6455 = vsel %vm969, %v6446, 0
        %v6457 = vsel %vm969, %v6448, 0
        %v6459 = vsel %vm969, %v6450, 0
        %v6461 = vsel %vm969, %v6452, 0
        %v6463 = vsel %vm969, %v6454, 0
        %v6465 = vsel %vm969, %v6453, 0
        %6467 = vmatprep.subr.mxu0 0.0
        %6468 = vmatpush1.msra.mxu0 0.0
        %6469 = vmatprep.subr.mxu0 0.0
        %6470 = vmatpush1.msra.mxu0 0.0
        %6471 = vmatprep.subr.mxu0 0.0
        %6472 = vmatpush1.msra.mxu0 0.0
        %6473 = vmatprep.subr.mxu0 0.0
        %6474 = vmatpush1.msra.mxu0 0.0
        %6475 = vmatprep.subr.mxu0 0.0
        %6476 = vmatpush1.msra.mxu0 0.0
        %6477 = vmatprep.subr.mxu0 0.0
        %6478 = vmatpush1.msra.mxu0 0.0
        %6479 = vmatprep.subr.mxu0 0.0
        %6480 = vmatpush1.msra.mxu0 0.0
        %6481 = vmatprep.subr.mxu0 0.0
        %6482 = vmatpush1.msra.mxu0 0.0
        %6483 = vmatprep.subr.mxu0 0.0
        %6484 = vmatpush1.msra.mxu0 0.0
        %6485 = vmatprep.subr.mxu0 0.0
        %6486 = vmatpush1.msra.mxu0 0.0
        %6487 = vmatprep.subr.mxu0 0.0
        %6488 = vmatpush1.msra.mxu0 0.0
        %6489 = vmatprep.subr.mxu0 0.0
        %6490 = vmatpush1.msra.mxu0 0.0
        %6491 = vmatprep.subr.mxu0 0.0
        %6492 = vmatpush1.msra.mxu0 0.0
        %6493 = vmatprep.subr.mxu0 0.0
        %6494 = vmatpush1.msra.mxu0 0.0
        %6495 = vmatprep.subr.mxu0 0.0
        %6496 = vmatpush1.msra.mxu0 %v6444
        %6497 = vmatprep.subr.mxu0 0.0
        %6498 = vmatpush1.msra.mxu0 %v6443
        %6499 = vmatprep.subr.mxu0 0.0
        %6500 = vmatpush2.msra.mxu0 0.0
        %6501 = vmatprep.subr.mxu0 0.0
        %6502 = vmatpush2.msra.mxu0 0.0
        %6503 = vmatprep.subr.mxu0 0.0
        %6504 = vmatpush2.msra.mxu0 0.0
        %6505 = vmatprep.subr.mxu0 0.0
        %6506 = vmatpush2.msra.mxu0 0.0
        %6507 = vmatprep.subr.mxu0 0.0
        %6508 = vmatpush2.msra.mxu0 0.0
        %6509 = vmatprep.subr.mxu0 0.0
        %6510 = vmatpush2.msra.mxu0 0.0
        %6511 = vmatprep.subr.mxu0 0.0
        %6512 = vmatpush2.msra.mxu0 0.0
        %6513 = vmatprep.subr.mxu0 0.0
        %6514 = vmatpush2.msra.mxu0 0.0
        %6515 = vmatprep.subr.mxu0 0.0
        %6516 = vmatpush2.msra.mxu0 0.0
        %6517 = vmatprep.subr.mxu0 0.0
        %6518 = vmatpush2.msra.mxu0 0.0
        %6519 = vmatprep.subr.mxu0 0.0
        %6520 = vmatpush2.msra.mxu0 0.0
        %6521 = vmatprep.subr.mxu0 0.0
        %6522 = vmatpush2.msra.mxu0 0.0
        %6523 = vmatprep.subr.mxu0 0.0
        %6524 = vmatpush2.msra.mxu0 0.0
        %6525 = vmatprep.subr.mxu0 0.0
        %6526 = vmatpush2.msra.mxu0 0.0
        %6527 = vmatprep.subr.mxu0 0.0
        %6528 = vmatpush2.msra.mxu0 0.0
        %6529 = vmatprep.subr.mxu0 0.0
        %6530 = vmatpush2.msra.mxu0 0.0
        %6531 = vmatprep.mubr.f32.mxu0 0.0
        %6532 = vmatmul.mubr.f32.gmra.mxu0 %v1581
        %v6533 = vpop.f32.mrf.mxu0
        %v6534 = vadd.f32 0.0, %v6533
        %v6535 = vpop.f32.mrf.mxu0
        %6536 = vmatprep.mubr.f32.mxu0 0.0
        %6537 = vmatmul.mubr.f32.gmra.mxu0 %v1583
        %v6538 = vpop.f32.mrf.mxu0
        %v6539 = vadd.f32 0.0, %v6538
        %v6540 = vpop.f32.mrf.mxu0
        %6541 = vmatprep.mubr.f32.mxu0 0.0
        %6542 = vmatmul.mubr.f32.gmra.mxu0 %v1585
        %v6543 = vpop.f32.mrf.mxu0
        %v6544 = vadd.f32 0.0, %v6543
        %v6545 = vpop.f32.mrf.mxu0
        %6546 = vmatprep.mubr.f32.mxu0 0.0
        %6547 = vmatmul.mubr.f32.gmra.mxu0 %v1587
        %v6548 = vpop.f32.mrf.mxu0
        %v6549 = vadd.f32 0.0, %v6548
        %v6550 = vpop.f32.mrf.mxu0
        %6551 = vmatprep.mubr.f32.mxu0 0.0
        %6552 = vmatmul.mubr.f32.gmra.mxu0 %v1589
        %v6553 = vpop.f32.mrf.mxu0
        %v6554 = vadd.f32 0.0, %v6553
        %v6555 = vpop.f32.mrf.mxu0
        %6556 = vmatprep.mubr.f32.mxu0 0.0
        %6557 = vmatmul.mubr.f32.gmra.mxu0 %v1591
        %v6558 = vpop.f32.mrf.mxu0
        %v6559 = vadd.f32 0.0, %v6558
        %v6560 = vpop.f32.mrf.mxu0
        %6561 = vmatprep.mubr.f32.mxu0 0.0
        %6562 = vmatmul.mubr.f32.gmra.mxu0 %v1593
        %v6563 = vpop.f32.mrf.mxu0
        %v6564 = vadd.f32 0.0, %v6563
        %v6565 = vpop.f32.mrf.mxu0
        %6566 = vmatprep.mubr.f32.mxu0 0.0
        %6567 = vmatmul.mubr.f32.gmra.mxu0 %v1595
        %v6568 = vpop.f32.mrf.mxu0
        %v6569 = vadd.f32 0.0, %v6568
        %v6570 = vpop.f32.mrf.mxu0
        %6571 = vmatprep.mubr.f32.mxu0 0.0
        %6572 = vmatmul.mubr.f32.gmra.mxu0 %v1597
        %v6573 = vpop.f32.mrf.mxu0
        %v6574 = vadd.f32 0.0, %v6573
        %v6575 = vpop.f32.mrf.mxu0
        %6576 = vmatprep.mubr.f32.mxu0 0.0
        %6577 = vmatmul.mubr.f32.gmra.mxu0 %v1599
        %v6578 = vpop.f32.mrf.mxu0
        %v6579 = vadd.f32 0.0, %v6578
        %v6580 = vpop.f32.mrf.mxu0
        %6581 = vmatprep.mubr.f32.mxu0 0.0
        %6582 = vmatmul.mubr.f32.gmra.mxu0 %v1601
        %v6583 = vpop.f32.mrf.mxu0
        %v6584 = vadd.f32 0.0, %v6583
        %v6585 = vpop.f32.mrf.mxu0
        %6586 = vmatprep.mubr.f32.mxu0 0.0
        %6587 = vmatmul.mubr.f32.gmra.mxu0 %v1603
        %v6588 = vpop.f32.mrf.mxu0
        %v6589 = vadd.f32 0.0, %v6588
        %v6590 = vpop.f32.mrf.mxu0
        %6591 = vmatprep.mubr.f32.mxu0 0.0
        %6592 = vmatmul.mubr.f32.gmra.mxu0 %v1605
        %v6593 = vpop.f32.mrf.mxu0
        %v6594 = vadd.f32 0.0, %v6593
        %v6595 = vpop.f32.mrf.mxu0
        %6596 = vmatprep.mubr.f32.mxu0 0.0
        %6597 = vmatmul.mubr.f32.gmra.mxu0 %v1607
        %v6598 = vpop.f32.mrf.mxu0
        %v6599 = vadd.f32 0.0, %v6598
        %v6600 = vpop.f32.mrf.mxu0
        %6601 = vmatprep.mubr.f32.mxu0 0.0
        %6602 = vmatmul.mubr.f32.gmra.mxu0 %v1609
        %v6603 = vpop.f32.mrf.mxu0
        %v6604 = vadd.f32 0.0, %v6603
        %v6605 = vpop.f32.mrf.mxu0
        %6606 = vmatprep.mubr.f32.mxu0 0.0
        %6607 = vmatmul.mubr.f32.gmra.mxu0 %v1611
        %v6608 = vpop.f32.mrf.mxu0
        %v6609 = vadd.f32 0.0, %v6608
        %v6610 = vpop.f32.mrf.mxu0
        %6611 = vmatprep.mubr.f32.mxu0 0.0
        %6612 = vmatmul.mubr.f32.gmra.mxu0 %v1613
        %v6613 = vpop.f32.mrf.mxu0
        %v6614 = vadd.f32 0.0, %v6613
        %v6615 = vpop.f32.mrf.mxu0
        %6616 = vmatprep.mubr.f32.mxu0 0.0
        %6617 = vmatmul.mubr.f32.gmra.mxu0 %v1615
        %v6618 = vpop.f32.mrf.mxu0
        %v6619 = vadd.f32 0.0, %v6618
        %v6620 = vpop.f32.mrf.mxu0
        %6621 = vmatprep.mubr.f32.mxu0 0.0
        %6622 = vmatmul.mubr.f32.gmra.mxu0 %v1617
        %v6623 = vpop.f32.mrf.mxu0
        %v6624 = vadd.f32 0.0, %v6623
        %v6625 = vpop.f32.mrf.mxu0
        %6626 = vmatprep.mubr.f32.mxu0 0.0
        %6627 = vmatmul.mubr.f32.gmra.mxu0 %v1619
        %v6628 = vpop.f32.mrf.mxu0
        %v6629 = vadd.f32 0.0, %v6628
        %v6630 = vpop.f32.mrf.mxu0
        %6631 = vmatprep.mubr.f32.mxu0 0.0
        %6632 = vmatmul.mubr.f32.gmra.mxu0 %v1621
        %v6633 = vpop.f32.mrf.mxu0
        %v6634 = vadd.f32 0.0, %v6633
        %v6635 = vpop.f32.mrf.mxu0
        %6636 = vmatprep.mubr.f32.mxu0 0.0
        %6637 = vmatmul.mubr.f32.gmra.mxu0 %v2591
        %v6638 = vpop.f32.mrf.mxu0
        %v6639 = vadd.f32 0.0, %v6638
        %v6640 = vpop.f32.mrf.mxu0
        %6641 = vmatprep.mubr.f32.mxu0 0.0
        %6642 = vmatmul.mubr.f32.gmra.mxu0 %v2593
        %v6643 = vpop.f32.mrf.mxu0
        %v6644 = vadd.f32 0.0, %v6643
        %v6645 = vpop.f32.mrf.mxu0
        %6646 = vmatprep.mubr.f32.mxu0 0.0
        %6647 = vmatmul.mubr.f32.gmra.mxu0 %v6455
        %v6648 = vpop.f32.mrf.mxu0
        %v6649 = vadd.f32 0.0, %v6648
        %v6650 = vpop.f32.mrf.mxu0
        %6651 = vmatprep.mubr.f32.mxu0 0.0
        %6652 = vmatmul.mubr.f32.gmra.mxu0 %v6457
        %v6653 = vpop.f32.mrf.mxu0
        %v6654 = vadd.f32 0.0, %v6653
        %v6655 = vpop.f32.mrf.mxu0
        %6656 = vmatprep.mubr.f32.mxu0 0.0
        %6657 = vmatmul.mubr.f32.gmra.mxu0 %v6459
        %v6658 = vpop.f32.mrf.mxu0
        %v6659 = vadd.f32 0.0, %v6658
        %v6660 = vpop.f32.mrf.mxu0
        %6661 = vmatprep.mubr.f32.mxu0 0.0
        %6662 = vmatmul.mubr.f32.gmra.mxu0 %v6461
        %v6663 = vpop.f32.mrf.mxu0
        %v6664 = vadd.f32 0.0, %v6663
        %v6665 = vpop.f32.mrf.mxu0
        %6666 = vmatprep.mubr.f32.mxu0 0.0
        %6667 = vmatmul.mubr.f32.gmra.mxu0 %v6463
        %v6668 = vpop.f32.mrf.mxu0
        %v6669 = vadd.f32 0.0, %v6668
        %v6670 = vpop.f32.mrf.mxu0
        %6671 = vmatprep.mubr.f32.mxu0 0.0
        %6672 = vmatmul.mubr.f32.gmra.mxu0 %v6465
        %v6673 = vpop.f32.mrf.mxu0
        %v6674 = vadd.f32 0.0, %v6673
        %v6675 = vpop.f32.mrf.mxu0
        %6676 = vdwg.mxu0
        %v6677 = vadd.f32 %v6413, %v6534
        %v6678 = vadd.f32 %v6414, %v6539
        %v6679 = vadd.f32 %v6415, %v6544
        %v6680 = vadd.f32 %v6416, %v6549
        %v6681 = vadd.f32 %v6417, %v6554
        %v6682 = vadd.f32 %v6418, %v6559
        %v6683 = vadd.f32 %v6419, %v6564
        %v6684 = vadd.f32 %v6420, %v6569
        %v6685 = vadd.f32 %v6421, %v6574
        %v6686 = vadd.f32 %v6422, %v6579
        %v6687 = vadd.f32 %v6423, %v6584
        %v6688 = vadd.f32 %v6424, %v6589
        %v6689 = vadd.f32 %v6425, %v6594
        %v6690 = vadd.f32 %v6426, %v6599
        %v6691 = vadd.f32 %v6427, %v6604
        %v6692 = vadd.f32 %v6428, %v6609
        %v6693 = vadd.f32 %v6429, %v6614
        %v6694 = vadd.f32 %v6430, %v6619
        %v6695 = vadd.f32 %v6431, %v6624
        %v6696 = vadd.f32 %v6432, %v6629
        %v6697 = vadd.f32 %v6433, %v6634
        %v6698 = vadd.f32 %v6434, %v6639
        %v6699 = vadd.f32 %v6435, %v6644
        %v6700 = vadd.f32 %v6436, %v6649
        %v6701 = vadd.f32 %v6437, %v6654
        %v6702 = vadd.f32 %v6438, %v6659
        %v6703 = vadd.f32 %v6439, %v6664
        %v6704 = vadd.f32 %v6440, %v6669
        %v6705 = vadd.f32 %v6441, %v6674
        %s6706 = scalar_lea.vmem %s3, 320
        %v6707 = vld [vmem:[%s6706] sm:$0xff]
        %v6708 = vld [vmem:[%s6706 + $0x8] sm:$0xff]
        %v6710 = vsel %vm969, %v874, 0
        %v6713 = vsel %vm969, %v875, 0
        %6715 = vmatprep.subr.mxu0 0.0
        %6716 = vmatpush1.msra.mxu0 0.0
        %6717 = vmatprep.subr.mxu0 0.0
        %6718 = vmatpush1.msra.mxu0 0.0
        %6719 = vmatprep.subr.mxu0 0.0
        %6720 = vmatpush1.msra.mxu0 0.0
        %6721 = vmatprep.subr.mxu0 0.0
        %6722 = vmatpush1.msra.mxu0 0.0
        %6723 = vmatprep.subr.mxu0 0.0
        %6724 = vmatpush1.msra.mxu0 0.0
        %6725 = vmatprep.subr.mxu0 0.0
        %6726 = vmatpush1.msra.mxu0 0.0
        %6727 = vmatprep.subr.mxu0 0.0
        %6728 = vmatpush1.msra.mxu0 0.0
        %6729 = vmatprep.subr.mxu0 0.0
        %6730 = vmatpush1.msra.mxu0 0.0
        %6731 = vmatprep.subr.mxu0 0.0
        %6732 = vmatpush1.msra.mxu0 0.0
        %6733 = vmatprep.subr.mxu0 0.0
        %6734 = vmatpush1.msra.mxu0 0.0
        %6735 = vmatprep.subr.mxu0 0.0
        %6736 = vmatpush1.msra.mxu0 0.0
        %6737 = vmatprep.subr.mxu0 0.0
        %6738 = vmatpush1.msra.mxu0 0.0
        %6739 = vmatprep.subr.mxu0 0.0
        %6740 = vmatpush1.msra.mxu0 0.0
        %6741 = vmatprep.subr.mxu0 0.0
        %6742 = vmatpush1.msra.mxu0 0.0
        %6743 = vmatprep.subr.mxu0 0.0
        %6744 = vmatpush1.msra.mxu0 %v6708
        %6745 = vmatprep.subr.mxu0 0.0
        %6746 = vmatpush1.msra.mxu0 %v6707
        %6747 = vmatprep.subr.mxu0 0.0
        %6748 = vmatpush2.msra.mxu0 0.0
        %6749 = vmatprep.subr.mxu0 0.0
        %6750 = vmatpush2.msra.mxu0 0.0
        %6751 = vmatprep.subr.mxu0 0.0
        %6752 = vmatpush2.msra.mxu0 0.0
        %6753 = vmatprep.subr.mxu0 0.0
        %6754 = vmatpush2.msra.mxu0 0.0
        %6755 = vmatprep.subr.mxu0 0.0
        %6756 = vmatpush2.msra.mxu0 0.0
        %6757 = vmatprep.subr.mxu0 0.0
        %6758 = vmatpush2.msra.mxu0 0.0
        %6759 = vmatprep.subr.mxu0 0.0
        %6760 = vmatpush2.msra.mxu0 0.0
        %6761 = vmatprep.subr.mxu0 0.0
        %6762 = vmatpush2.msra.mxu0 0.0
        %6763 = vmatprep.subr.mxu0 0.0
        %6764 = vmatpush2.msra.mxu0 0.0
        %6765 = vmatprep.subr.mxu0 0.0
        %6766 = vmatpush2.msra.mxu0 0.0
        %6767 = vmatprep.subr.mxu0 0.0
        %6768 = vmatpush2.msra.mxu0 0.0
        %6769 = vmatprep.subr.mxu0 0.0
        %6770 = vmatpush2.msra.mxu0 0.0
        %6771 = vmatprep.subr.mxu0 0.0
        %6772 = vmatpush2.msra.mxu0 0.0
        %6773 = vmatprep.subr.mxu0 0.0
        %6774 = vmatpush2.msra.mxu0 0.0
        %6775 = vmatprep.subr.mxu0 0.0
        %6776 = vmatpush2.msra.mxu0 0.0
        %6777 = vmatprep.subr.mxu0 0.0
        %6778 = vmatpush2.msra.mxu0 0.0
        %6779 = vmatprep.mubr.f32.mxu0 0.0
        %6780 = vmatmul.mubr.f32.gmra.mxu0 %v1256
        %v6781 = vpop.f32.mrf.mxu0
        %v6782 = vadd.f32 0.0, %v6781
        %v6783 = vpop.f32.mrf.mxu0
        %6784 = vmatprep.mubr.f32.mxu0 0.0
        %6785 = vmatmul.mubr.f32.gmra.mxu0 %v1258
        %v6786 = vpop.f32.mrf.mxu0
        %v6787 = vadd.f32 0.0, %v6786
        %v6788 = vpop.f32.mrf.mxu0
        %6789 = vmatprep.mubr.f32.mxu0 0.0
        %6790 = vmatmul.mubr.f32.gmra.mxu0 %v1260
        %v6791 = vpop.f32.mrf.mxu0
        %v6792 = vadd.f32 0.0, %v6791
        %v6793 = vpop.f32.mrf.mxu0
        %6794 = vmatprep.mubr.f32.mxu0 0.0
        %6795 = vmatmul.mubr.f32.gmra.mxu0 %v1262
        %v6796 = vpop.f32.mrf.mxu0
        %v6797 = vadd.f32 0.0, %v6796
        %v6798 = vpop.f32.mrf.mxu0
        %6799 = vmatprep.mubr.f32.mxu0 0.0
        %6800 = vmatmul.mubr.f32.gmra.mxu0 %v1264
        %v6801 = vpop.f32.mrf.mxu0
        %v6802 = vadd.f32 0.0, %v6801
        %v6803 = vpop.f32.mrf.mxu0
        %6804 = vmatprep.mubr.f32.mxu0 0.0
        %6805 = vmatmul.mubr.f32.gmra.mxu0 %v1266
        %v6806 = vpop.f32.mrf.mxu0
        %v6807 = vadd.f32 0.0, %v6806
        %v6808 = vpop.f32.mrf.mxu0
        %6809 = vmatprep.mubr.f32.mxu0 0.0
        %6810 = vmatmul.mubr.f32.gmra.mxu0 %v1268
        %v6811 = vpop.f32.mrf.mxu0
        %v6812 = vadd.f32 0.0, %v6811
        %v6813 = vpop.f32.mrf.mxu0
        %6814 = vmatprep.mubr.f32.mxu0 0.0
        %6815 = vmatmul.mubr.f32.gmra.mxu0 %v1270
        %v6816 = vpop.f32.mrf.mxu0
        %v6817 = vadd.f32 0.0, %v6816
        %v6818 = vpop.f32.mrf.mxu0
        %6819 = vmatprep.mubr.f32.mxu0 0.0
        %6820 = vmatmul.mubr.f32.gmra.mxu0 %v1272
        %v6821 = vpop.f32.mrf.mxu0
        %v6822 = vadd.f32 0.0, %v6821
        %v6823 = vpop.f32.mrf.mxu0
        %6824 = vmatprep.mubr.f32.mxu0 0.0
        %6825 = vmatmul.mubr.f32.gmra.mxu0 %v1274
        %v6826 = vpop.f32.mrf.mxu0
        %v6827 = vadd.f32 0.0, %v6826
        %v6828 = vpop.f32.mrf.mxu0
        %6829 = vmatprep.mubr.f32.mxu0 0.0
        %6830 = vmatmul.mubr.f32.gmra.mxu0 %v1276
        %v6831 = vpop.f32.mrf.mxu0
        %v6832 = vadd.f32 0.0, %v6831
        %v6833 = vpop.f32.mrf.mxu0
        %6834 = vmatprep.mubr.f32.mxu0 0.0
        %6835 = vmatmul.mubr.f32.gmra.mxu0 %v1278
        %v6836 = vpop.f32.mrf.mxu0
        %v6837 = vadd.f32 0.0, %v6836
        %v6838 = vpop.f32.mrf.mxu0
        %6839 = vmatprep.mubr.f32.mxu0 0.0
        %6840 = vmatmul.mubr.f32.gmra.mxu0 %v1280
        %v6841 = vpop.f32.mrf.mxu0
        %v6842 = vadd.f32 0.0, %v6841
        %v6843 = vpop.f32.mrf.mxu0
        %6844 = vmatprep.mubr.f32.mxu0 0.0
        %6845 = vmatmul.mubr.f32.gmra.mxu0 %v1282
        %v6846 = vpop.f32.mrf.mxu0
        %v6847 = vadd.f32 0.0, %v6846
        %v6848 = vpop.f32.mrf.mxu0
        %6849 = vmatprep.mubr.f32.mxu0 0.0
        %6850 = vmatmul.mubr.f32.gmra.mxu0 %v1284
        %v6851 = vpop.f32.mrf.mxu0
        %v6852 = vadd.f32 0.0, %v6851
        %v6853 = vpop.f32.mrf.mxu0
        %6854 = vmatprep.mubr.f32.mxu0 0.0
        %6855 = vmatmul.mubr.f32.gmra.mxu0 %v1286
        %v6856 = vpop.f32.mrf.mxu0
        %v6857 = vadd.f32 0.0, %v6856
        %v6858 = vpop.f32.mrf.mxu0
        %6859 = vmatprep.mubr.f32.mxu0 0.0
        %6860 = vmatmul.mubr.f32.gmra.mxu0 %v1288
        %v6861 = vpop.f32.mrf.mxu0
        %v6862 = vadd.f32 0.0, %v6861
        %v6863 = vpop.f32.mrf.mxu0
        %6864 = vmatprep.mubr.f32.mxu0 0.0
        %6865 = vmatmul.mubr.f32.gmra.mxu0 %v1290
        %v6866 = vpop.f32.mrf.mxu0
        %v6867 = vadd.f32 0.0, %v6866
        %v6868 = vpop.f32.mrf.mxu0
        %6869 = vmatprep.mubr.f32.mxu0 0.0
        %6870 = vmatmul.mubr.f32.gmra.mxu0 %v1292
        %v6871 = vpop.f32.mrf.mxu0
        %v6872 = vadd.f32 0.0, %v6871
        %v6873 = vpop.f32.mrf.mxu0
        %6874 = vmatprep.mubr.f32.mxu0 0.0
        %6875 = vmatmul.mubr.f32.gmra.mxu0 %v1294
        %v6876 = vpop.f32.mrf.mxu0
        %v6877 = vadd.f32 0.0, %v6876
        %v6878 = vpop.f32.mrf.mxu0
        %6879 = vmatprep.mubr.f32.mxu0 0.0
        %6880 = vmatmul.mubr.f32.gmra.mxu0 %v5173
        %v6881 = vpop.f32.mrf.mxu0
        %v6882 = vadd.f32 0.0, %v6881
        %v6883 = vpop.f32.mrf.mxu0
        %6884 = vmatprep.mubr.f32.mxu0 0.0
        %6885 = vmatmul.mubr.f32.gmra.mxu0 %v5175
        %v6886 = vpop.f32.mrf.mxu0
        %v6887 = vadd.f32 0.0, %v6886
        %v6888 = vpop.f32.mrf.mxu0
        %6889 = vmatprep.mubr.f32.mxu0 0.0
        %6890 = vmatmul.mubr.f32.gmra.mxu0 %v5177
        %v6891 = vpop.f32.mrf.mxu0
        %v6892 = vadd.f32 0.0, %v6891
        %v6893 = vpop.f32.mrf.mxu0
        %6894 = vmatprep.mubr.f32.mxu0 0.0
        %6895 = vmatmul.mubr.f32.gmra.mxu0 %v5179
        %v6896 = vpop.f32.mrf.mxu0
        %v6897 = vadd.f32 0.0, %v6896
        %v6898 = vpop.f32.mrf.mxu0
        %6899 = vmatprep.mubr.f32.mxu0 0.0
        %6900 = vmatmul.mubr.f32.gmra.mxu0 %v5181
        %v6901 = vpop.f32.mrf.mxu0
        %v6902 = vadd.f32 0.0, %v6901
        %v6903 = vpop.f32.mrf.mxu0
        %6904 = vmatprep.mubr.f32.mxu0 0.0
        %6905 = vmatmul.mubr.f32.gmra.mxu0 %v5927
        %v6906 = vpop.f32.mrf.mxu0
        %v6907 = vadd.f32 0.0, %v6906
        %v6908 = vpop.f32.mrf.mxu0
        %6909 = vmatprep.mubr.f32.mxu0 0.0
        %6910 = vmatmul.mubr.f32.gmra.mxu0 %v5929
        %v6911 = vpop.f32.mrf.mxu0
        %v6912 = vadd.f32 0.0, %v6911
        %v6913 = vpop.f32.mrf.mxu0
        %6914 = vmatprep.mubr.f32.mxu0 0.0
        %6915 = vmatmul.mubr.f32.gmra.mxu0 %v6710
        %v6916 = vpop.f32.mrf.mxu0
        %v6917 = vadd.f32 0.0, %v6916
        %v6918 = vpop.f32.mrf.mxu0
        %6919 = vmatprep.mubr.f32.mxu0 0.0
        %6920 = vmatmul.mubr.f32.gmra.mxu0 %v6713
        %v6921 = vpop.f32.mrf.mxu0
        %v6922 = vadd.f32 0.0, %v6921
        %v6923 = vpop.f32.mrf.mxu0
        %6924 = vdwg.mxu0
        %v6925 = vadd.f32 %v6677, %v6782
        %v6926 = vadd.f32 %v6678, %v6787
        %v6927 = vadd.f32 %v6679, %v6792
        %v6928 = vadd.f32 %v6680, %v6797
        %v6929 = vadd.f32 %v6681, %v6802
        %v6930 = vadd.f32 %v6682, %v6807
        %v6931 = vadd.f32 %v6683, %v6812
        %v6932 = vadd.f32 %v6684, %v6817
        %v6933 = vadd.f32 %v6685, %v6822
        %v6934 = vadd.f32 %v6686, %v6827
        %v6935 = vadd.f32 %v6687, %v6832
        %v6936 = vadd.f32 %v6688, %v6837
        %v6937 = vadd.f32 %v6689, %v6842
        %v6938 = vadd.f32 %v6690, %v6847
        %v6939 = vadd.f32 %v6691, %v6852
        %v6940 = vadd.f32 %v6692, %v6857
        %v6941 = vadd.f32 %v6693, %v6862
        %v6942 = vadd.f32 %v6694, %v6867
        %v6943 = vadd.f32 %v6695, %v6872
        %v6944 = vadd.f32 %v6696, %v6877
        %v6945 = vadd.f32 %v6697, %v6882
        %v6946 = vadd.f32 %v6698, %v6887
        %v6947 = vadd.f32 %v6699, %v6892
        %v6948 = vadd.f32 %v6700, %v6897
        %v6949 = vadd.f32 %v6701, %v6902
        %v6950 = vadd.f32 %v6702, %v6907
        %v6951 = vadd.f32 %v6703, %v6912
        %v6952 = vadd.f32 %v6704, %v6917
        %v6953 = vadd.f32 %v6705, %v6922
        %s6954 = scalar_lea.vmem %s3, 336
        %v6955 = vld [vmem:[%s6954] sm:$0xff]
        %v6956 = vld [vmem:[%s6954 + $0x8] sm:$0xff]
        %v6957 = vrot.slane %v874, 1
        %v6958 = vsel %vm911, %v6185, %v6957
        %v6959 = vrot.slane %v875, 1
        %v6960 = vsel %vm911, %v6957, %v6959
        %v6961 = vsel %vm969, %v6958, 0
        %v6963 = vsel %vm969, %v6960, 0
        %v6965 = vsel %vm969, %v6959, 0
        %6967 = vmatprep.subr.mxu0 0.0
        %6968 = vmatpush1.msra.mxu0 0.0
        %6969 = vmatprep.subr.mxu0 0.0
        %6970 = vmatpush1.msra.mxu0 0.0
        %6971 = vmatprep.subr.mxu0 0.0
        %6972 = vmatpush1.msra.mxu0 0.0
        %6973 = vmatprep.subr.mxu0 0.0
        %6974 = vmatpush1.msra.mxu0 0.0
        %6975 = vmatprep.subr.mxu0 0.0
        %6976 = vmatpush1.msra.mxu0 0.0
        %6977 = vmatprep.subr.mxu0 0.0
        %6978 = vmatpush1.msra.mxu0 0.0
        %6979 = vmatprep.subr.mxu0 0.0
        %6980 = vmatpush1.msra.mxu0 0.0
        %6981 = vmatprep.subr.mxu0 0.0
        %6982 = vmatpush1.msra.mxu0 0.0
        %6983 = vmatprep.subr.mxu0 0.0
        %6984 = vmatpush1.msra.mxu0 0.0
        %6985 = vmatprep.subr.mxu0 0.0
        %6986 = vmatpush1.msra.mxu0 0.0
        %6987 = vmatprep.subr.mxu0 0.0
        %6988 = vmatpush1.msra.mxu0 0.0
        %6989 = vmatprep.subr.mxu0 0.0
        %6990 = vmatpush1.msra.mxu0 0.0
        %6991 = vmatprep.subr.mxu0 0.0
        %6992 = vmatpush1.msra.mxu0 0.0
        %6993 = vmatprep.subr.mxu0 0.0
        %6994 = vmatpush1.msra.mxu0 0.0
        %6995 = vmatprep.subr.mxu0 0.0
        %6996 = vmatpush1.msra.mxu0 %v6956
        %6997 = vmatprep.subr.mxu0 0.0
        %6998 = vmatpush1.msra.mxu0 %v6955
        %6999 = vmatprep.subr.mxu0 0.0
        %7000 = vmatpush2.msra.mxu0 0.0
        %7001 = vmatprep.subr.mxu0 0.0
        %7002 = vmatpush2.msra.mxu0 0.0
        %7003 = vmatprep.subr.mxu0 0.0
        %7004 = vmatpush2.msra.mxu0 0.0
        %7005 = vmatprep.subr.mxu0 0.0
        %7006 = vmatpush2.msra.mxu0 0.0
        %7007 = vmatprep.subr.mxu0 0.0
        %7008 = vmatpush2.msra.mxu0 0.0
        %7009 = vmatprep.subr.mxu0 0.0
        %7010 = vmatpush2.msra.mxu0 0.0
        %7011 = vmatprep.subr.mxu0 0.0
        %7012 = vmatpush2.msra.mxu0 0.0
        %7013 = vmatprep.subr.mxu0 0.0
        %7014 = vmatpush2.msra.mxu0 0.0
        %7015 = vmatprep.subr.mxu0 0.0
        %7016 = vmatpush2.msra.mxu0 0.0
        %7017 = vmatprep.subr.mxu0 0.0
        %7018 = vmatpush2.msra.mxu0 0.0
        %7019 = vmatprep.subr.mxu0 0.0
        %7020 = vmatpush2.msra.mxu0 0.0
        %7021 = vmatprep.subr.mxu0 0.0
        %7022 = vmatpush2.msra.mxu0 0.0
        %7023 = vmatprep.subr.mxu0 0.0
        %7024 = vmatpush2.msra.mxu0 0.0
        %7025 = vmatprep.subr.mxu0 0.0
        %7026 = vmatpush2.msra.mxu0 0.0
        %7027 = vmatprep.subr.mxu0 0.0
        %7028 = vmatpush2.msra.mxu0 0.0
        %7029 = vmatprep.subr.mxu0 0.0
        %7030 = vmatpush2.msra.mxu0 0.0
        %7031 = vmatprep.mubr.f32.mxu0 0.0
        %7032 = vmatmul.mubr.f32.gmra.mxu0 %v988
        %v7033 = vpop.f32.mrf.mxu0
        %v7034 = vadd.f32 0.0, %v7033
        %v7035 = vpop.f32.mrf.mxu0
        %7036 = vmatprep.mubr.f32.mxu0 0.0
        %7037 = vmatmul.mubr.f32.gmra.mxu0 %v990
        %v7038 = vpop.f32.mrf.mxu0
        %v7039 = vadd.f32 0.0, %v7038
        %v7040 = vpop.f32.mrf.mxu0
        %7041 = vmatprep.mubr.f32.mxu0 0.0
        %7042 = vmatmul.mubr.f32.gmra.mxu0 %v992
        %v7043 = vpop.f32.mrf.mxu0
        %v7044 = vadd.f32 0.0, %v7043
        %v7045 = vpop.f32.mrf.mxu0
        %7046 = vmatprep.mubr.f32.mxu0 0.0
        %7047 = vmatmul.mubr.f32.gmra.mxu0 %v994
        %v7048 = vpop.f32.mrf.mxu0
        %v7049 = vadd.f32 0.0, %v7048
        %v7050 = vpop.f32.mrf.mxu0
        %7051 = vmatprep.mubr.f32.mxu0 0.0
        %7052 = vmatmul.mubr.f32.gmra.mxu0 %v996
        %v7053 = vpop.f32.mrf.mxu0
        %v7054 = vadd.f32 0.0, %v7053
        %v7055 = vpop.f32.mrf.mxu0
        %7056 = vmatprep.mubr.f32.mxu0 0.0
        %7057 = vmatmul.mubr.f32.gmra.mxu0 %v998
        %v7058 = vpop.f32.mrf.mxu0
        %v7059 = vadd.f32 0.0, %v7058
        %v7060 = vpop.f32.mrf.mxu0
        %7061 = vmatprep.mubr.f32.mxu0 0.0
        %7062 = vmatmul.mubr.f32.gmra.mxu0 %v1000
        %v7063 = vpop.f32.mrf.mxu0
        %v7064 = vadd.f32 0.0, %v7063
        %v7065 = vpop.f32.mrf.mxu0
        %7066 = vmatprep.mubr.f32.mxu0 0.0
        %7067 = vmatmul.mubr.f32.gmra.mxu0 %v1002
        %v7068 = vpop.f32.mrf.mxu0
        %v7069 = vadd.f32 0.0, %v7068
        %v7070 = vpop.f32.mrf.mxu0
        %7071 = vmatprep.mubr.f32.mxu0 0.0
        %7072 = vmatmul.mubr.f32.gmra.mxu0 %v1004
        %v7073 = vpop.f32.mrf.mxu0
        %v7074 = vadd.f32 0.0, %v7073
        %v7075 = vpop.f32.mrf.mxu0
        %7076 = vmatprep.mubr.f32.mxu0 0.0
        %7077 = vmatmul.mubr.f32.gmra.mxu0 %v1006
        %v7078 = vpop.f32.mrf.mxu0
        %v7079 = vadd.f32 0.0, %v7078
        %v7080 = vpop.f32.mrf.mxu0
        %7081 = vmatprep.mubr.f32.mxu0 0.0
        %7082 = vmatmul.mubr.f32.gmra.mxu0 %v1008
        %v7083 = vpop.f32.mrf.mxu0
        %v7084 = vadd.f32 0.0, %v7083
        %v7085 = vpop.f32.mrf.mxu0
        %7086 = vmatprep.mubr.f32.mxu0 0.0
        %7087 = vmatmul.mubr.f32.gmra.mxu0 %v1010
        %v7088 = vpop.f32.mrf.mxu0
        %v7089 = vadd.f32 0.0, %v7088
        %v7090 = vpop.f32.mrf.mxu0
        %7091 = vmatprep.mubr.f32.mxu0 0.0
        %7092 = vmatmul.mubr.f32.gmra.mxu0 %v1012
        %v7093 = vpop.f32.mrf.mxu0
        %v7094 = vadd.f32 0.0, %v7093
        %v7095 = vpop.f32.mrf.mxu0
        %7096 = vmatprep.mubr.f32.mxu0 0.0
        %7097 = vmatmul.mubr.f32.gmra.mxu0 %v1014
        %v7098 = vpop.f32.mrf.mxu0
        %v7099 = vadd.f32 0.0, %v7098
        %v7100 = vpop.f32.mrf.mxu0
        %7101 = vmatprep.mubr.f32.mxu0 0.0
        %7102 = vmatmul.mubr.f32.gmra.mxu0 %v1016
        %v7103 = vpop.f32.mrf.mxu0
        %v7104 = vadd.f32 0.0, %v7103
        %v7105 = vpop.f32.mrf.mxu0
        %7106 = vmatprep.mubr.f32.mxu0 0.0
        %7107 = vmatmul.mubr.f32.gmra.mxu0 %v1018
        %v7108 = vpop.f32.mrf.mxu0
        %v7109 = vadd.f32 0.0, %v7108
        %v7110 = vpop.f32.mrf.mxu0
        %7111 = vmatprep.mubr.f32.mxu0 0.0
        %7112 = vmatmul.mubr.f32.gmra.mxu0 %v1020
        %v7113 = vpop.f32.mrf.mxu0
        %v7114 = vadd.f32 0.0, %v7113
        %v7115 = vpop.f32.mrf.mxu0
        %7116 = vmatprep.mubr.f32.mxu0 0.0
        %7117 = vmatmul.mubr.f32.gmra.mxu0 %v1022
        %v7118 = vpop.f32.mrf.mxu0
        %v7119 = vadd.f32 0.0, %v7118
        %v7120 = vpop.f32.mrf.mxu0
        %7121 = vmatprep.mubr.f32.mxu0 0.0
        %7122 = vmatmul.mubr.f32.gmra.mxu0 %v1024
        %v7123 = vpop.f32.mrf.mxu0
        %v7124 = vadd.f32 0.0, %v7123
        %v7125 = vpop.f32.mrf.mxu0
        %7126 = vmatprep.mubr.f32.mxu0 0.0
        %7127 = vmatmul.mubr.f32.gmra.mxu0 %v6187
        %v7128 = vpop.f32.mrf.mxu0
        %v7129 = vadd.f32 0.0, %v7128
        %v7130 = vpop.f32.mrf.mxu0
        %7131 = vmatprep.mubr.f32.mxu0 0.0
        %7132 = vmatmul.mubr.f32.gmra.mxu0 %v6189
        %v7133 = vpop.f32.mrf.mxu0
        %v7134 = vadd.f32 0.0, %v7133
        %v7135 = vpop.f32.mrf.mxu0
        %7136 = vmatprep.mubr.f32.mxu0 0.0
        %7137 = vmatmul.mubr.f32.gmra.mxu0 %v6191
        %v7138 = vpop.f32.mrf.mxu0
        %v7139 = vadd.f32 0.0, %v7138
        %v7140 = vpop.f32.mrf.mxu0
        %7141 = vmatprep.mubr.f32.mxu0 0.0
        %7142 = vmatmul.mubr.f32.gmra.mxu0 %v6193
        %v7143 = vpop.f32.mrf.mxu0
        %v7144 = vadd.f32 0.0, %v7143
        %v7145 = vpop.f32.mrf.mxu0
        %7146 = vmatprep.mubr.f32.mxu0 0.0
        %7147 = vmatmul.mubr.f32.gmra.mxu0 %v6195
        %v7148 = vpop.f32.mrf.mxu0
        %v7149 = vadd.f32 0.0, %v7148
        %v7150 = vpop.f32.mrf.mxu0
        %7151 = vmatprep.mubr.f32.mxu0 0.0
        %7152 = vmatmul.mubr.f32.gmra.mxu0 %v6197
        %v7153 = vpop.f32.mrf.mxu0
        %v7154 = vadd.f32 0.0, %v7153
        %v7155 = vpop.f32.mrf.mxu0
        %7156 = vmatprep.mubr.f32.mxu0 0.0
        %7157 = vmatmul.mubr.f32.gmra.mxu0 %v6199
        %v7158 = vpop.f32.mrf.mxu0
        %v7159 = vadd.f32 0.0, %v7158
        %v7160 = vpop.f32.mrf.mxu0
        %7161 = vmatprep.mubr.f32.mxu0 0.0
        %7162 = vmatmul.mubr.f32.gmra.mxu0 %v6961
        %v7163 = vpop.f32.mrf.mxu0
        %v7164 = vadd.f32 0.0, %v7163
        %v7165 = vpop.f32.mrf.mxu0
        %7166 = vmatprep.mubr.f32.mxu0 0.0
        %7167 = vmatmul.mubr.f32.gmra.mxu0 %v6963
        %v7168 = vpop.f32.mrf.mxu0
        %v7169 = vadd.f32 0.0, %v7168
        %v7170 = vpop.f32.mrf.mxu0
        %7171 = vmatprep.mubr.f32.mxu0 0.0
        %7172 = vmatmul.mubr.f32.gmra.mxu0 %v6965
        %v7173 = vpop.f32.mrf.mxu0
        %v7174 = vadd.f32 0.0, %v7173
        %v7175 = vpop.f32.mrf.mxu0
        %7176 = vdwg.mxu0
        %v7177 = vadd.f32 %v6925, %v7034
        %v7178 = vadd.f32 %v6926, %v7039
        %v7179 = vadd.f32 %v6927, %v7044
        %v7180 = vadd.f32 %v6928, %v7049
        %v7181 = vadd.f32 %v6929, %v7054
        %v7182 = vadd.f32 %v6930, %v7059
        %v7183 = vadd.f32 %v6931, %v7064
        %v7184 = vadd.f32 %v6932, %v7069
        %v7185 = vadd.f32 %v6933, %v7074
        %v7186 = vadd.f32 %v6934, %v7079
        %v7187 = vadd.f32 %v6935, %v7084
        %v7188 = vadd.f32 %v6936, %v7089
        %v7189 = vadd.f32 %v6937, %v7094
        %v7190 = vadd.f32 %v6938, %v7099
        %v7191 = vadd.f32 %v6939, %v7104
        %v7192 = vadd.f32 %v6940, %v7109
        %v7193 = vadd.f32 %v6941, %v7114
        %v7194 = vadd.f32 %v6942, %v7119
        %v7195 = vadd.f32 %v6943, %v7124
        %v7196 = vadd.f32 %v6944, %v7129
        %v7197 = vadd.f32 %v6945, %v7134
        %v7198 = vadd.f32 %v6946, %v7139
        %v7199 = vadd.f32 %v6947, %v7144
        %v7200 = vadd.f32 %v6948, %v7149
        %v7201 = vadd.f32 %v6949, %v7154
        %v7202 = vadd.f32 %v6950, %v7159
        %v7203 = vadd.f32 %v6951, %v7164
        %v7204 = vadd.f32 %v6952, %v7169
        %v7205 = vadd.f32 %v6953, %v7174
        %s7206 = scalar_lea.vmem %s3, 352
        %v7207 = vld [vmem:[%s7206] sm:$0xff]
        %v7208 = vld [vmem:[%s7206 + $0x8] sm:$0xff]
        %v7209 = vrot.slane %v874, 2
        %v7210 = vsel %vm1509, %v6453, %v7209
        %v7211 = vrot.slane %v875, 2
        %v7212 = vsel %vm1509, %v7209, %v7211
        %v7213 = vsel %vm969, %v7210, 0
        %v7215 = vsel %vm969, %v7212, 0
        %v7217 = vsel %vm969, %v7211, 0
        %7219 = vmatprep.subr.mxu0 0.0
        %7220 = vmatpush1.msra.mxu0 0.0
        %7221 = vmatprep.subr.mxu0 0.0
        %7222 = vmatpush1.msra.mxu0 0.0
        %7223 = vmatprep.subr.mxu0 0.0
        %7224 = vmatpush1.msra.mxu0 0.0
        %7225 = vmatprep.subr.mxu0 0.0
        %7226 = vmatpush1.msra.mxu0 0.0
        %7227 = vmatprep.subr.mxu0 0.0
        %7228 = vmatpush1.msra.mxu0 0.0
        %7229 = vmatprep.subr.mxu0 0.0
        %7230 = vmatpush1.msra.mxu0 0.0
        %7231 = vmatprep.subr.mxu0 0.0
        %7232 = vmatpush1.msra.mxu0 0.0
        %7233 = vmatprep.subr.mxu0 0.0
        %7234 = vmatpush1.msra.mxu0 0.0
        %7235 = vmatprep.subr.mxu0 0.0
        %7236 = vmatpush1.msra.mxu0 0.0
        %7237 = vmatprep.subr.mxu0 0.0
        %7238 = vmatpush1.msra.mxu0 0.0
        %7239 = vmatprep.subr.mxu0 0.0
        %7240 = vmatpush1.msra.mxu0 0.0
        %7241 = vmatprep.subr.mxu0 0.0
        %7242 = vmatpush1.msra.mxu0 0.0
        %7243 = vmatprep.subr.mxu0 0.0
        %7244 = vmatpush1.msra.mxu0 0.0
        %7245 = vmatprep.subr.mxu0 0.0
        %7246 = vmatpush1.msra.mxu0 0.0
        %7247 = vmatprep.subr.mxu0 0.0
        %7248 = vmatpush1.msra.mxu0 %v7208
        %7249 = vmatprep.subr.mxu0 0.0
        %7250 = vmatpush1.msra.mxu0 %v7207
        %7251 = vmatprep.subr.mxu0 0.0
        %7252 = vmatpush2.msra.mxu0 0.0
        %7253 = vmatprep.subr.mxu0 0.0
        %7254 = vmatpush2.msra.mxu0 0.0
        %7255 = vmatprep.subr.mxu0 0.0
        %7256 = vmatpush2.msra.mxu0 0.0
        %7257 = vmatprep.subr.mxu0 0.0
        %7258 = vmatpush2.msra.mxu0 0.0
        %7259 = vmatprep.subr.mxu0 0.0
        %7260 = vmatpush2.msra.mxu0 0.0
        %7261 = vmatprep.subr.mxu0 0.0
        %7262 = vmatpush2.msra.mxu0 0.0
        %7263 = vmatprep.subr.mxu0 0.0
        %7264 = vmatpush2.msra.mxu0 0.0
        %7265 = vmatprep.subr.mxu0 0.0
        %7266 = vmatpush2.msra.mxu0 0.0
        %7267 = vmatprep.subr.mxu0 0.0
        %7268 = vmatpush2.msra.mxu0 0.0
        %7269 = vmatprep.subr.mxu0 0.0
        %7270 = vmatpush2.msra.mxu0 0.0
        %7271 = vmatprep.subr.mxu0 0.0
        %7272 = vmatpush2.msra.mxu0 0.0
        %7273 = vmatprep.subr.mxu0 0.0
        %7274 = vmatpush2.msra.mxu0 0.0
        %7275 = vmatprep.subr.mxu0 0.0
        %7276 = vmatpush2.msra.mxu0 0.0
        %7277 = vmatprep.subr.mxu0 0.0
        %7278 = vmatpush2.msra.mxu0 0.0
        %7279 = vmatprep.subr.mxu0 0.0
        %7280 = vmatpush2.msra.mxu0 0.0
        %7281 = vmatprep.subr.mxu0 0.0
        %7282 = vmatpush2.msra.mxu0 0.0
        %7283 = vmatprep.mubr.f32.mxu0 0.0
        %7284 = vmatmul.mubr.f32.gmra.mxu0 %v1585
        %v7285 = vpop.f32.mrf.mxu0
        %v7286 = vadd.f32 0.0, %v7285
        %v7287 = vpop.f32.mrf.mxu0
        %7288 = vmatprep.mubr.f32.mxu0 0.0
        %7289 = vmatmul.mubr.f32.gmra.mxu0 %v1587
        %v7290 = vpop.f32.mrf.mxu0
        %v7291 = vadd.f32 0.0, %v7290
        %v7292 = vpop.f32.mrf.mxu0
        %7293 = vmatprep.mubr.f32.mxu0 0.0
        %7294 = vmatmul.mubr.f32.gmra.mxu0 %v1589
        %v7295 = vpop.f32.mrf.mxu0
        %v7296 = vadd.f32 0.0, %v7295
        %v7297 = vpop.f32.mrf.mxu0
        %7298 = vmatprep.mubr.f32.mxu0 0.0
        %7299 = vmatmul.mubr.f32.gmra.mxu0 %v1591
        %v7300 = vpop.f32.mrf.mxu0
        %v7301 = vadd.f32 0.0, %v7300
        %v7302 = vpop.f32.mrf.mxu0
        %7303 = vmatprep.mubr.f32.mxu0 0.0
        %7304 = vmatmul.mubr.f32.gmra.mxu0 %v1593
        %v7305 = vpop.f32.mrf.mxu0
        %v7306 = vadd.f32 0.0, %v7305
        %v7307 = vpop.f32.mrf.mxu0
        %7308 = vmatprep.mubr.f32.mxu0 0.0
        %7309 = vmatmul.mubr.f32.gmra.mxu0 %v1595
        %v7310 = vpop.f32.mrf.mxu0
        %v7311 = vadd.f32 0.0, %v7310
        %v7312 = vpop.f32.mrf.mxu0
        %7313 = vmatprep.mubr.f32.mxu0 0.0
        %7314 = vmatmul.mubr.f32.gmra.mxu0 %v1597
        %v7315 = vpop.f32.mrf.mxu0
        %v7316 = vadd.f32 0.0, %v7315
        %v7317 = vpop.f32.mrf.mxu0
        %7318 = vmatprep.mubr.f32.mxu0 0.0
        %7319 = vmatmul.mubr.f32.gmra.mxu0 %v1599
        %v7320 = vpop.f32.mrf.mxu0
        %v7321 = vadd.f32 0.0, %v7320
        %v7322 = vpop.f32.mrf.mxu0
        %7323 = vmatprep.mubr.f32.mxu0 0.0
        %7324 = vmatmul.mubr.f32.gmra.mxu0 %v1601
        %v7325 = vpop.f32.mrf.mxu0
        %v7326 = vadd.f32 0.0, %v7325
        %v7327 = vpop.f32.mrf.mxu0
        %7328 = vmatprep.mubr.f32.mxu0 0.0
        %7329 = vmatmul.mubr.f32.gmra.mxu0 %v1603
        %v7330 = vpop.f32.mrf.mxu0
        %v7331 = vadd.f32 0.0, %v7330
        %v7332 = vpop.f32.mrf.mxu0
        %7333 = vmatprep.mubr.f32.mxu0 0.0
        %7334 = vmatmul.mubr.f32.gmra.mxu0 %v1605
        %v7335 = vpop.f32.mrf.mxu0
        %v7336 = vadd.f32 0.0, %v7335
        %v7337 = vpop.f32.mrf.mxu0
        %7338 = vmatprep.mubr.f32.mxu0 0.0
        %7339 = vmatmul.mubr.f32.gmra.mxu0 %v1607
        %v7340 = vpop.f32.mrf.mxu0
        %v7341 = vadd.f32 0.0, %v7340
        %v7342 = vpop.f32.mrf.mxu0
        %7343 = vmatprep.mubr.f32.mxu0 0.0
        %7344 = vmatmul.mubr.f32.gmra.mxu0 %v1609
        %v7345 = vpop.f32.mrf.mxu0
        %v7346 = vadd.f32 0.0, %v7345
        %v7347 = vpop.f32.mrf.mxu0
        %7348 = vmatprep.mubr.f32.mxu0 0.0
        %7349 = vmatmul.mubr.f32.gmra.mxu0 %v1611
        %v7350 = vpop.f32.mrf.mxu0
        %v7351 = vadd.f32 0.0, %v7350
        %v7352 = vpop.f32.mrf.mxu0
        %7353 = vmatprep.mubr.f32.mxu0 0.0
        %7354 = vmatmul.mubr.f32.gmra.mxu0 %v1613
        %v7355 = vpop.f32.mrf.mxu0
        %v7356 = vadd.f32 0.0, %v7355
        %v7357 = vpop.f32.mrf.mxu0
        %7358 = vmatprep.mubr.f32.mxu0 0.0
        %7359 = vmatmul.mubr.f32.gmra.mxu0 %v1615
        %v7360 = vpop.f32.mrf.mxu0
        %v7361 = vadd.f32 0.0, %v7360
        %v7362 = vpop.f32.mrf.mxu0
        %7363 = vmatprep.mubr.f32.mxu0 0.0
        %7364 = vmatmul.mubr.f32.gmra.mxu0 %v1617
        %v7365 = vpop.f32.mrf.mxu0
        %v7366 = vadd.f32 0.0, %v7365
        %v7367 = vpop.f32.mrf.mxu0
        %7368 = vmatprep.mubr.f32.mxu0 0.0
        %7369 = vmatmul.mubr.f32.gmra.mxu0 %v1619
        %v7370 = vpop.f32.mrf.mxu0
        %v7371 = vadd.f32 0.0, %v7370
        %v7372 = vpop.f32.mrf.mxu0
        %7373 = vmatprep.mubr.f32.mxu0 0.0
        %7374 = vmatmul.mubr.f32.gmra.mxu0 %v1621
        %v7375 = vpop.f32.mrf.mxu0
        %v7376 = vadd.f32 0.0, %v7375
        %v7377 = vpop.f32.mrf.mxu0
        %7378 = vmatprep.mubr.f32.mxu0 0.0
        %7379 = vmatmul.mubr.f32.gmra.mxu0 %v2591
        %v7380 = vpop.f32.mrf.mxu0
        %v7381 = vadd.f32 0.0, %v7380
        %v7382 = vpop.f32.mrf.mxu0
        %7383 = vmatprep.mubr.f32.mxu0 0.0
        %7384 = vmatmul.mubr.f32.gmra.mxu0 %v2593
        %v7385 = vpop.f32.mrf.mxu0
        %v7386 = vadd.f32 0.0, %v7385
        %v7387 = vpop.f32.mrf.mxu0
        %7388 = vmatprep.mubr.f32.mxu0 0.0
        %7389 = vmatmul.mubr.f32.gmra.mxu0 %v6455
        %v7390 = vpop.f32.mrf.mxu0
        %v7391 = vadd.f32 0.0, %v7390
        %v7392 = vpop.f32.mrf.mxu0
        %7393 = vmatprep.mubr.f32.mxu0 0.0
        %7394 = vmatmul.mubr.f32.gmra.mxu0 %v6457
        %v7395 = vpop.f32.mrf.mxu0
        %v7396 = vadd.f32 0.0, %v7395
        %v7397 = vpop.f32.mrf.mxu0
        %7398 = vmatprep.mubr.f32.mxu0 0.0
        %7399 = vmatmul.mubr.f32.gmra.mxu0 %v6459
        %v7400 = vpop.f32.mrf.mxu0
        %v7401 = vadd.f32 0.0, %v7400
        %v7402 = vpop.f32.mrf.mxu0
        %7403 = vmatprep.mubr.f32.mxu0 0.0
        %7404 = vmatmul.mubr.f32.gmra.mxu0 %v6461
        %v7405 = vpop.f32.mrf.mxu0
        %v7406 = vadd.f32 0.0, %v7405
        %v7407 = vpop.f32.mrf.mxu0
        %7408 = vmatprep.mubr.f32.mxu0 0.0
        %7409 = vmatmul.mubr.f32.gmra.mxu0 %v6463
        %v7410 = vpop.f32.mrf.mxu0
        %v7411 = vadd.f32 0.0, %v7410
        %v7412 = vpop.f32.mrf.mxu0
        %7413 = vmatprep.mubr.f32.mxu0 0.0
        %7414 = vmatmul.mubr.f32.gmra.mxu0 %v7213
        %v7415 = vpop.f32.mrf.mxu0
        %v7416 = vadd.f32 0.0, %v7415
        %v7417 = vpop.f32.mrf.mxu0
        %7418 = vmatprep.mubr.f32.mxu0 0.0
        %7419 = vmatmul.mubr.f32.gmra.mxu0 %v7215
        %v7420 = vpop.f32.mrf.mxu0
        %v7421 = vadd.f32 0.0, %v7420
        %v7422 = vpop.f32.mrf.mxu0
        %7423 = vmatprep.mubr.f32.mxu0 0.0
        %7424 = vmatmul.mubr.f32.gmra.mxu0 %v7217
        %v7425 = vpop.f32.mrf.mxu0
        %v7426 = vadd.f32 0.0, %v7425
        %v7427 = vpop.f32.mrf.mxu0
        %7428 = vdwg.mxu0
        %v7429 = vadd.f32 %v7177, %v7286
        %v7430 = vadd.f32 %v7178, %v7291
        %v7431 = vadd.f32 %v7179, %v7296
        %v7432 = vadd.f32 %v7180, %v7301
        %v7433 = vadd.f32 %v7181, %v7306
        %v7434 = vadd.f32 %v7182, %v7311
        %v7435 = vadd.f32 %v7183, %v7316
        %v7436 = vadd.f32 %v7184, %v7321
        %v7437 = vadd.f32 %v7185, %v7326
        %v7438 = vadd.f32 %v7186, %v7331
        %v7439 = vadd.f32 %v7187, %v7336
        %v7440 = vadd.f32 %v7188, %v7341
        %v7441 = vadd.f32 %v7189, %v7346
        %v7442 = vadd.f32 %v7190, %v7351
        %v7443 = vadd.f32 %v7191, %v7356
        %v7444 = vadd.f32 %v7192, %v7361
        %v7445 = vadd.f32 %v7193, %v7366
        %v7446 = vadd.f32 %v7194, %v7371
        %v7447 = vadd.f32 %v7195, %v7376
        %v7448 = vadd.f32 %v7196, %v7381
        %v7449 = vadd.f32 %v7197, %v7386
        %v7450 = vadd.f32 %v7198, %v7391
        %v7451 = vadd.f32 %v7199, %v7396
        %v7452 = vadd.f32 %v7200, %v7401
        %v7453 = vadd.f32 %v7201, %v7406
        %v7454 = vadd.f32 %v7202, %v7411
        %v7455 = vadd.f32 %v7203, %v7416
        %v7456 = vadd.f32 %v7204, %v7421
        %v7457 = vadd.f32 %v7205, %v7426
        %s7458 = scalar_lea.vmem %s3, 368
        %v7459 = vld [vmem:[%s7458] sm:$0xff]
        %v7460 = vld [vmem:[%s7458 + $0x8] sm:$0xff]
        %v7461 = vrot.slane %v869, 3
        %v7462 = vsel %vm1867, %v2841, %v7461
        %v7463 = vrot.slane %v870, 3
        %v7464 = vsel %vm1867, %v7461, %v7463
        %v7465 = vrot.slane %v871, 3
        %v7466 = vsel %vm1867, %v7463, %v7465
        %v7467 = vrot.slane %v872, 3
        %v7468 = vsel %vm1867, %v7465, %v7467
        %v7469 = vrot.slane %v873, 3
        %v7470 = vsel %vm1867, %v7467, %v7469
        %v7471 = vrot.slane %v874, 3
        %v7472 = vsel %vm1867, %v7469, %v7471
        %v7473 = vrot.slane %v875, 3
        %v7474 = vsel %vm1867, %v7471, %v7473
        %v7475 = vsel %vm969, %v7462, 0
        %v7477 = vsel %vm969, %v7464, 0
        %v7479 = vsel %vm969, %v7466, 0
        %v7481 = vsel %vm969, %v7468, 0
        %v7483 = vsel %vm969, %v7470, 0
        %v7485 = vsel %vm969, %v7472, 0
        %v7487 = vsel %vm969, %v7474, 0
        %v7489 = vsel %vm969, %v7473, 0
        %7491 = vmatprep.subr.mxu0 0.0
        %7492 = vmatpush1.msra.mxu0 0.0
        %7493 = vmatprep.subr.mxu0 0.0
        %7494 = vmatpush1.msra.mxu0 0.0
        %7495 = vmatprep.subr.mxu0 0.0
        %7496 = vmatpush1.msra.mxu0 0.0
        %7497 = vmatprep.subr.mxu0 0.0
        %7498 = vmatpush1.msra.mxu0 0.0
        %7499 = vmatprep.subr.mxu0 0.0
        %7500 = vmatpush1.msra.mxu0 0.0
        %7501 = vmatprep.subr.mxu0 0.0
        %7502 = vmatpush1.msra.mxu0 0.0
        %7503 = vmatprep.subr.mxu0 0.0
        %7504 = vmatpush1.msra.mxu0 0.0
        %7505 = vmatprep.subr.mxu0 0.0
        %7506 = vmatpush1.msra.mxu0 0.0
        %7507 = vmatprep.subr.mxu0 0.0
        %7508 = vmatpush1.msra.mxu0 0.0
        %7509 = vmatprep.subr.mxu0 0.0
        %7510 = vmatpush1.msra.mxu0 0.0
        %7511 = vmatprep.subr.mxu0 0.0
        %7512 = vmatpush1.msra.mxu0 0.0
        %7513 = vmatprep.subr.mxu0 0.0
        %7514 = vmatpush1.msra.mxu0 0.0
        %7515 = vmatprep.subr.mxu0 0.0
        %7516 = vmatpush1.msra.mxu0 0.0
        %7517 = vmatprep.subr.mxu0 0.0
        %7518 = vmatpush1.msra.mxu0 0.0
        %7519 = vmatprep.subr.mxu0 0.0
        %7520 = vmatpush1.msra.mxu0 %v7460
        %7521 = vmatprep.subr.mxu0 0.0
        %7522 = vmatpush1.msra.mxu0 %v7459
        %7523 = vmatprep.subr.mxu0 0.0
        %7524 = vmatpush2.msra.mxu0 0.0
        %7525 = vmatprep.subr.mxu0 0.0
        %7526 = vmatpush2.msra.mxu0 0.0
        %7527 = vmatprep.subr.mxu0 0.0
        %7528 = vmatpush2.msra.mxu0 0.0
        %7529 = vmatprep.subr.mxu0 0.0
        %7530 = vmatpush2.msra.mxu0 0.0
        %7531 = vmatprep.subr.mxu0 0.0
        %7532 = vmatpush2.msra.mxu0 0.0
        %7533 = vmatprep.subr.mxu0 0.0
        %7534 = vmatpush2.msra.mxu0 0.0
        %7535 = vmatprep.subr.mxu0 0.0
        %7536 = vmatpush2.msra.mxu0 0.0
        %7537 = vmatprep.subr.mxu0 0.0
        %7538 = vmatpush2.msra.mxu0 0.0
        %7539 = vmatprep.subr.mxu0 0.0
        %7540 = vmatpush2.msra.mxu0 0.0
        %7541 = vmatprep.subr.mxu0 0.0
        %7542 = vmatpush2.msra.mxu0 0.0
        %7543 = vmatprep.subr.mxu0 0.0
        %7544 = vmatpush2.msra.mxu0 0.0
        %7545 = vmatprep.subr.mxu0 0.0
        %7546 = vmatpush2.msra.mxu0 0.0
        %7547 = vmatprep.subr.mxu0 0.0
        %7548 = vmatpush2.msra.mxu0 0.0
        %7549 = vmatprep.subr.mxu0 0.0
        %7550 = vmatpush2.msra.mxu0 0.0
        %7551 = vmatprep.subr.mxu0 0.0
        %7552 = vmatpush2.msra.mxu0 0.0
        %7553 = vmatprep.subr.mxu0 0.0
        %7554 = vmatpush2.msra.mxu0 0.0
        %7555 = vmatprep.mubr.f32.mxu0 0.0
        %7556 = vmatmul.mubr.f32.gmra.mxu0 %v1943
        %v7557 = vpop.f32.mrf.mxu0
        %v7558 = vadd.f32 0.0, %v7557
        %v7559 = vpop.f32.mrf.mxu0
        %7560 = vmatprep.mubr.f32.mxu0 0.0
        %7561 = vmatmul.mubr.f32.gmra.mxu0 %v1945
        %v7562 = vpop.f32.mrf.mxu0
        %v7563 = vadd.f32 0.0, %v7562
        %v7564 = vpop.f32.mrf.mxu0
        %7565 = vmatprep.mubr.f32.mxu0 0.0
        %7566 = vmatmul.mubr.f32.gmra.mxu0 %v1947
        %v7567 = vpop.f32.mrf.mxu0
        %v7568 = vadd.f32 0.0, %v7567
        %v7569 = vpop.f32.mrf.mxu0
        %7570 = vmatprep.mubr.f32.mxu0 0.0
        %7571 = vmatmul.mubr.f32.gmra.mxu0 %v1949
        %v7572 = vpop.f32.mrf.mxu0
        %v7573 = vadd.f32 0.0, %v7572
        %v7574 = vpop.f32.mrf.mxu0
        %7575 = vmatprep.mubr.f32.mxu0 0.0
        %7576 = vmatmul.mubr.f32.gmra.mxu0 %v1951
        %v7577 = vpop.f32.mrf.mxu0
        %v7578 = vadd.f32 0.0, %v7577
        %v7579 = vpop.f32.mrf.mxu0
        %7580 = vmatprep.mubr.f32.mxu0 0.0
        %7581 = vmatmul.mubr.f32.gmra.mxu0 %v1953
        %v7582 = vpop.f32.mrf.mxu0
        %v7583 = vadd.f32 0.0, %v7582
        %v7584 = vpop.f32.mrf.mxu0
        %7585 = vmatprep.mubr.f32.mxu0 0.0
        %7586 = vmatmul.mubr.f32.gmra.mxu0 %v1955
        %v7587 = vpop.f32.mrf.mxu0
        %v7588 = vadd.f32 0.0, %v7587
        %v7589 = vpop.f32.mrf.mxu0
        %7590 = vmatprep.mubr.f32.mxu0 0.0
        %7591 = vmatmul.mubr.f32.gmra.mxu0 %v1957
        %v7592 = vpop.f32.mrf.mxu0
        %v7593 = vadd.f32 0.0, %v7592
        %v7594 = vpop.f32.mrf.mxu0
        %7595 = vmatprep.mubr.f32.mxu0 0.0
        %7596 = vmatmul.mubr.f32.gmra.mxu0 %v1959
        %v7597 = vpop.f32.mrf.mxu0
        %v7598 = vadd.f32 0.0, %v7597
        %v7599 = vpop.f32.mrf.mxu0
        %7600 = vmatprep.mubr.f32.mxu0 0.0
        %7601 = vmatmul.mubr.f32.gmra.mxu0 %v1961
        %v7602 = vpop.f32.mrf.mxu0
        %v7603 = vadd.f32 0.0, %v7602
        %v7604 = vpop.f32.mrf.mxu0
        %7605 = vmatprep.mubr.f32.mxu0 0.0
        %7606 = vmatmul.mubr.f32.gmra.mxu0 %v1963
        %v7607 = vpop.f32.mrf.mxu0
        %v7608 = vadd.f32 0.0, %v7607
        %v7609 = vpop.f32.mrf.mxu0
        %7610 = vmatprep.mubr.f32.mxu0 0.0
        %7611 = vmatmul.mubr.f32.gmra.mxu0 %v1965
        %v7612 = vpop.f32.mrf.mxu0
        %v7613 = vadd.f32 0.0, %v7612
        %v7614 = vpop.f32.mrf.mxu0
        %7615 = vmatprep.mubr.f32.mxu0 0.0
        %7616 = vmatmul.mubr.f32.gmra.mxu0 %v1967
        %v7617 = vpop.f32.mrf.mxu0
        %v7618 = vadd.f32 0.0, %v7617
        %v7619 = vpop.f32.mrf.mxu0
        %7620 = vmatprep.mubr.f32.mxu0 0.0
        %7621 = vmatmul.mubr.f32.gmra.mxu0 %v1969
        %v7622 = vpop.f32.mrf.mxu0
        %v7623 = vadd.f32 0.0, %v7622
        %v7624 = vpop.f32.mrf.mxu0
        %7625 = vmatprep.mubr.f32.mxu0 0.0
        %7626 = vmatmul.mubr.f32.gmra.mxu0 %v1971
        %v7627 = vpop.f32.mrf.mxu0
        %v7628 = vadd.f32 0.0, %v7627
        %v7629 = vpop.f32.mrf.mxu0
        %7630 = vmatprep.mubr.f32.mxu0 0.0
        %7631 = vmatmul.mubr.f32.gmra.mxu0 %v1973
        %v7632 = vpop.f32.mrf.mxu0
        %v7633 = vadd.f32 0.0, %v7632
        %v7634 = vpop.f32.mrf.mxu0
        %7635 = vmatprep.mubr.f32.mxu0 0.0
        %7636 = vmatmul.mubr.f32.gmra.mxu0 %v1975
        %v7637 = vpop.f32.mrf.mxu0
        %v7638 = vadd.f32 0.0, %v7637
        %v7639 = vpop.f32.mrf.mxu0
        %7640 = vmatprep.mubr.f32.mxu0 0.0
        %7641 = vmatmul.mubr.f32.gmra.mxu0 %v1977
        %v7642 = vpop.f32.mrf.mxu0
        %v7643 = vadd.f32 0.0, %v7642
        %v7644 = vpop.f32.mrf.mxu0
        %7645 = vmatprep.mubr.f32.mxu0 0.0
        %7646 = vmatmul.mubr.f32.gmra.mxu0 %v1979
        %v7647 = vpop.f32.mrf.mxu0
        %v7648 = vadd.f32 0.0, %v7647
        %v7649 = vpop.f32.mrf.mxu0
        %7650 = vmatprep.mubr.f32.mxu0 0.0
        %7651 = vmatmul.mubr.f32.gmra.mxu0 %v2843
        %v7652 = vpop.f32.mrf.mxu0
        %v7653 = vadd.f32 0.0, %v7652
        %v7654 = vpop.f32.mrf.mxu0
        %7655 = vmatprep.mubr.f32.mxu0 0.0
        %7656 = vmatmul.mubr.f32.gmra.mxu0 %v2845
        %v7657 = vpop.f32.mrf.mxu0
        %v7658 = vadd.f32 0.0, %v7657
        %v7659 = vpop.f32.mrf.mxu0
        %7660 = vmatprep.mubr.f32.mxu0 0.0
        %7661 = vmatmul.mubr.f32.gmra.mxu0 %v7475
        %v7662 = vpop.f32.mrf.mxu0
        %v7663 = vadd.f32 0.0, %v7662
        %v7664 = vpop.f32.mrf.mxu0
        %7665 = vmatprep.mubr.f32.mxu0 0.0
        %7666 = vmatmul.mubr.f32.gmra.mxu0 %v7477
        %v7667 = vpop.f32.mrf.mxu0
        %v7668 = vadd.f32 0.0, %v7667
        %v7669 = vpop.f32.mrf.mxu0
        %7670 = vmatprep.mubr.f32.mxu0 0.0
        %7671 = vmatmul.mubr.f32.gmra.mxu0 %v7479
        %v7672 = vpop.f32.mrf.mxu0
        %v7673 = vadd.f32 0.0, %v7672
        %v7674 = vpop.f32.mrf.mxu0
        %7675 = vmatprep.mubr.f32.mxu0 0.0
        %7676 = vmatmul.mubr.f32.gmra.mxu0 %v7481
        %v7677 = vpop.f32.mrf.mxu0
        %v7678 = vadd.f32 0.0, %v7677
        %v7679 = vpop.f32.mrf.mxu0
        %7680 = vmatprep.mubr.f32.mxu0 0.0
        %7681 = vmatmul.mubr.f32.gmra.mxu0 %v7483
        %v7682 = vpop.f32.mrf.mxu0
        %v7683 = vadd.f32 0.0, %v7682
        %v7684 = vpop.f32.mrf.mxu0
        %7685 = vmatprep.mubr.f32.mxu0 0.0
        %7686 = vmatmul.mubr.f32.gmra.mxu0 %v7485
        %v7687 = vpop.f32.mrf.mxu0
        %v7688 = vadd.f32 0.0, %v7687
        %v7689 = vpop.f32.mrf.mxu0
        %7690 = vmatprep.mubr.f32.mxu0 0.0
        %7691 = vmatmul.mubr.f32.gmra.mxu0 %v7487
        %v7692 = vpop.f32.mrf.mxu0
        %v7693 = vadd.f32 0.0, %v7692
        %v7694 = vpop.f32.mrf.mxu0
        %7695 = vmatprep.mubr.f32.mxu0 0.0
        %7696 = vmatmul.mubr.f32.gmra.mxu0 %v7489
        %v7697 = vpop.f32.mrf.mxu0
        %v7698 = vadd.f32 0.0, %v7697
        %v7699 = vpop.f32.mrf.mxu0
        %7700 = vdwg.mxu0
        %v7701 = vadd.f32 %v7429, %v7558
        %v7702 = vadd.f32 %v7430, %v7563
        %v7703 = vadd.f32 %v7431, %v7568
        %v7704 = vadd.f32 %v7432, %v7573
        %v7705 = vadd.f32 %v7433, %v7578
        %v7706 = vadd.f32 %v7434, %v7583
        %v7707 = vadd.f32 %v7435, %v7588
        %v7708 = vadd.f32 %v7436, %v7593
        %v7709 = vadd.f32 %v7437, %v7598
        %v7710 = vadd.f32 %v7438, %v7603
        %v7711 = vadd.f32 %v7439, %v7608
        %v7712 = vadd.f32 %v7440, %v7613
        %v7713 = vadd.f32 %v7441, %v7618
        %v7714 = vadd.f32 %v7442, %v7623
        %v7715 = vadd.f32 %v7443, %v7628
        %v7716 = vadd.f32 %v7444, %v7633
        %v7717 = vadd.f32 %v7445, %v7638
        %v7718 = vadd.f32 %v7446, %v7643
        %v7719 = vadd.f32 %v7447, %v7648
        %v7720 = vadd.f32 %v7448, %v7653
        %v7721 = vadd.f32 %v7449, %v7658
        %v7722 = vadd.f32 %v7450, %v7663
        %v7723 = vadd.f32 %v7451, %v7668
        %v7724 = vadd.f32 %v7452, %v7673
        %v7725 = vadd.f32 %v7453, %v7678
        %v7726 = vadd.f32 %v7454, %v7683
        %v7727 = vadd.f32 %v7455, %v7688
        %v7728 = vadd.f32 %v7456, %v7693
        %v7729 = vadd.f32 %v7457, %v7698
        %s7730 = scalar_lea.vmem %s3, 384
        %v7731 = vld [vmem:[%s7730] sm:$0xff]
        %v7732 = vld [vmem:[%s7730 + $0x8] sm:$0xff]
        %v7734 = vrot.slane %v872, 4
        %v7735 = vsel %vm2226, %v4065, %v7734
        %v7736 = vrot.slane %v873, 4
        %v7737 = vsel %vm2226, %v7734, %v7736
        %v7738 = vrot.slane %v874, 4
        %v7739 = vsel %vm2226, %v7736, %v7738
        %v7740 = vrot.slane %v875, 4
        %v7741 = vsel %vm2226, %v7738, %v7740
        %v7742 = vrot.slane %v876, 4
        %v7743 = vsel %vm2226, %v7740, %v7742
        %v7744 = vsel %vm969, %v7735, 0
        %v7746 = vsel %vm969, %v7737, 0
        %v7748 = vsel %vm969, %v7739, 0
        %v7750 = vsel %vm969, %v7741, 0
        %v7752 = vsel %vm969, %v7743, 0
        %7754 = vmatprep.subr.mxu0 0.0
        %7755 = vmatpush1.msra.mxu0 0.0
        %7756 = vmatprep.subr.mxu0 0.0
        %7757 = vmatpush1.msra.mxu0 0.0
        %7758 = vmatprep.subr.mxu0 0.0
        %7759 = vmatpush1.msra.mxu0 0.0
        %7760 = vmatprep.subr.mxu0 0.0
        %7761 = vmatpush1.msra.mxu0 0.0
        %7762 = vmatprep.subr.mxu0 0.0
        %7763 = vmatpush1.msra.mxu0 0.0
        %7764 = vmatprep.subr.mxu0 0.0
        %7765 = vmatpush1.msra.mxu0 0.0
        %7766 = vmatprep.subr.mxu0 0.0
        %7767 = vmatpush1.msra.mxu0 0.0
        %7768 = vmatprep.subr.mxu0 0.0
        %7769 = vmatpush1.msra.mxu0 0.0
        %7770 = vmatprep.subr.mxu0 0.0
        %7771 = vmatpush1.msra.mxu0 0.0
        %7772 = vmatprep.subr.mxu0 0.0
        %7773 = vmatpush1.msra.mxu0 0.0
        %7774 = vmatprep.subr.mxu0 0.0
        %7775 = vmatpush1.msra.mxu0 0.0
        %7776 = vmatprep.subr.mxu0 0.0
        %7777 = vmatpush1.msra.mxu0 0.0
        %7778 = vmatprep.subr.mxu0 0.0
        %7779 = vmatpush1.msra.mxu0 0.0
        %7780 = vmatprep.subr.mxu0 0.0
        %7781 = vmatpush1.msra.mxu0 0.0
        %7782 = vmatprep.subr.mxu0 0.0
        %7783 = vmatpush1.msra.mxu0 %v7732
        %7784 = vmatprep.subr.mxu0 0.0
        %7785 = vmatpush1.msra.mxu0 %v7731
        %7786 = vmatprep.subr.mxu0 0.0
        %7787 = vmatpush2.msra.mxu0 0.0
        %7788 = vmatprep.subr.mxu0 0.0
        %7789 = vmatpush2.msra.mxu0 0.0
        %7790 = vmatprep.subr.mxu0 0.0
        %7791 = vmatpush2.msra.mxu0 0.0
        %7792 = vmatprep.subr.mxu0 0.0
        %7793 = vmatpush2.msra.mxu0 0.0
        %7794 = vmatprep.subr.mxu0 0.0
        %7795 = vmatpush2.msra.mxu0 0.0
        %7796 = vmatprep.subr.mxu0 0.0
        %7797 = vmatpush2.msra.mxu0 0.0
        %7798 = vmatprep.subr.mxu0 0.0
        %7799 = vmatpush2.msra.mxu0 0.0
        %7800 = vmatprep.subr.mxu0 0.0
        %7801 = vmatpush2.msra.mxu0 0.0
        %7802 = vmatprep.subr.mxu0 0.0
        %7803 = vmatpush2.msra.mxu0 0.0
        %7804 = vmatprep.subr.mxu0 0.0
        %7805 = vmatpush2.msra.mxu0 0.0
        %7806 = vmatprep.subr.mxu0 0.0
        %7807 = vmatpush2.msra.mxu0 0.0
        %7808 = vmatprep.subr.mxu0 0.0
        %7809 = vmatpush2.msra.mxu0 0.0
        %7810 = vmatprep.subr.mxu0 0.0
        %7811 = vmatpush2.msra.mxu0 0.0
        %7812 = vmatprep.subr.mxu0 0.0
        %7813 = vmatpush2.msra.mxu0 0.0
        %7814 = vmatprep.subr.mxu0 0.0
        %7815 = vmatpush2.msra.mxu0 0.0
        %7816 = vmatprep.subr.mxu0 0.0
        %7817 = vmatpush2.msra.mxu0 0.0
        %7818 = vmatprep.mubr.f32.mxu0 0.0
        %7819 = vmatmul.mubr.f32.gmra.mxu0 %v2304
        %v7820 = vpop.f32.mrf.mxu0
        %v7821 = vadd.f32 0.0, %v7820
        %v7822 = vpop.f32.mrf.mxu0
        %7823 = vmatprep.mubr.f32.mxu0 0.0
        %7824 = vmatmul.mubr.f32.gmra.mxu0 %v2306
        %v7825 = vpop.f32.mrf.mxu0
        %v7826 = vadd.f32 0.0, %v7825
        %v7827 = vpop.f32.mrf.mxu0
        %7828 = vmatprep.mubr.f32.mxu0 0.0
        %7829 = vmatmul.mubr.f32.gmra.mxu0 %v2308
        %v7830 = vpop.f32.mrf.mxu0
        %v7831 = vadd.f32 0.0, %v7830
        %v7832 = vpop.f32.mrf.mxu0
        %7833 = vmatprep.mubr.f32.mxu0 0.0
        %7834 = vmatmul.mubr.f32.gmra.mxu0 %v2310
        %v7835 = vpop.f32.mrf.mxu0
        %v7836 = vadd.f32 0.0, %v7835
        %v7837 = vpop.f32.mrf.mxu0
        %7838 = vmatprep.mubr.f32.mxu0 0.0
        %7839 = vmatmul.mubr.f32.gmra.mxu0 %v2312
        %v7840 = vpop.f32.mrf.mxu0
        %v7841 = vadd.f32 0.0, %v7840
        %v7842 = vpop.f32.mrf.mxu0
        %7843 = vmatprep.mubr.f32.mxu0 0.0
        %7844 = vmatmul.mubr.f32.gmra.mxu0 %v2314
        %v7845 = vpop.f32.mrf.mxu0
        %v7846 = vadd.f32 0.0, %v7845
        %v7847 = vpop.f32.mrf.mxu0
        %7848 = vmatprep.mubr.f32.mxu0 0.0
        %7849 = vmatmul.mubr.f32.gmra.mxu0 %v2316
        %v7850 = vpop.f32.mrf.mxu0
        %v7851 = vadd.f32 0.0, %v7850
        %v7852 = vpop.f32.mrf.mxu0
        %7853 = vmatprep.mubr.f32.mxu0 0.0
        %7854 = vmatmul.mubr.f32.gmra.mxu0 %v2318
        %v7855 = vpop.f32.mrf.mxu0
        %v7856 = vadd.f32 0.0, %v7855
        %v7857 = vpop.f32.mrf.mxu0
        %7858 = vmatprep.mubr.f32.mxu0 0.0
        %7859 = vmatmul.mubr.f32.gmra.mxu0 %v2320
        %v7860 = vpop.f32.mrf.mxu0
        %v7861 = vadd.f32 0.0, %v7860
        %v7862 = vpop.f32.mrf.mxu0
        %7863 = vmatprep.mubr.f32.mxu0 0.0
        %7864 = vmatmul.mubr.f32.gmra.mxu0 %v2322
        %v7865 = vpop.f32.mrf.mxu0
        %v7866 = vadd.f32 0.0, %v7865
        %v7867 = vpop.f32.mrf.mxu0
        %7868 = vmatprep.mubr.f32.mxu0 0.0
        %7869 = vmatmul.mubr.f32.gmra.mxu0 %v2324
        %v7870 = vpop.f32.mrf.mxu0
        %v7871 = vadd.f32 0.0, %v7870
        %v7872 = vpop.f32.mrf.mxu0
        %7873 = vmatprep.mubr.f32.mxu0 0.0
        %7874 = vmatmul.mubr.f32.gmra.mxu0 %v2326
        %v7875 = vpop.f32.mrf.mxu0
        %v7876 = vadd.f32 0.0, %v7875
        %v7877 = vpop.f32.mrf.mxu0
        %7878 = vmatprep.mubr.f32.mxu0 0.0
        %7879 = vmatmul.mubr.f32.gmra.mxu0 %v2328
        %v7880 = vpop.f32.mrf.mxu0
        %v7881 = vadd.f32 0.0, %v7880
        %v7882 = vpop.f32.mrf.mxu0
        %7883 = vmatprep.mubr.f32.mxu0 0.0
        %7884 = vmatmul.mubr.f32.gmra.mxu0 %v2330
        %v7885 = vpop.f32.mrf.mxu0
        %v7886 = vadd.f32 0.0, %v7885
        %v7887 = vpop.f32.mrf.mxu0
        %7888 = vmatprep.mubr.f32.mxu0 0.0
        %7889 = vmatmul.mubr.f32.gmra.mxu0 %v2332
        %v7890 = vpop.f32.mrf.mxu0
        %v7891 = vadd.f32 0.0, %v7890
        %v7892 = vpop.f32.mrf.mxu0
        %7893 = vmatprep.mubr.f32.mxu0 0.0
        %7894 = vmatmul.mubr.f32.gmra.mxu0 %v2334
        %v7895 = vpop.f32.mrf.mxu0
        %v7896 = vadd.f32 0.0, %v7895
        %v7897 = vpop.f32.mrf.mxu0
        %7898 = vmatprep.mubr.f32.mxu0 0.0
        %7899 = vmatmul.mubr.f32.gmra.mxu0 %v2336
        %v7900 = vpop.f32.mrf.mxu0
        %v7901 = vadd.f32 0.0, %v7900
        %v7902 = vpop.f32.mrf.mxu0
        %7903 = vmatprep.mubr.f32.mxu0 0.0
        %7904 = vmatmul.mubr.f32.gmra.mxu0 %v2338
        %v7905 = vpop.f32.mrf.mxu0
        %v7906 = vadd.f32 0.0, %v7905
        %v7907 = vpop.f32.mrf.mxu0
        %7908 = vmatprep.mubr.f32.mxu0 0.0
        %7909 = vmatmul.mubr.f32.gmra.mxu0 %v2340
        %v7910 = vpop.f32.mrf.mxu0
        %v7911 = vadd.f32 0.0, %v7910
        %v7912 = vpop.f32.mrf.mxu0
        %7913 = vmatprep.mubr.f32.mxu0 0.0
        %7914 = vmatmul.mubr.f32.gmra.mxu0 %v2342
        %v7915 = vpop.f32.mrf.mxu0
        %v7916 = vadd.f32 0.0, %v7915
        %v7917 = vpop.f32.mrf.mxu0
        %7918 = vmatprep.mubr.f32.mxu0 0.0
        %7919 = vmatmul.mubr.f32.gmra.mxu0 %v3096
        %v7920 = vpop.f32.mrf.mxu0
        %v7921 = vadd.f32 0.0, %v7920
        %v7922 = vpop.f32.mrf.mxu0
        %7923 = vmatprep.mubr.f32.mxu0 0.0
        %7924 = vmatmul.mubr.f32.gmra.mxu0 %v3098
        %v7925 = vpop.f32.mrf.mxu0
        %v7926 = vadd.f32 0.0, %v7925
        %v7927 = vpop.f32.mrf.mxu0
        %7928 = vmatprep.mubr.f32.mxu0 0.0
        %7929 = vmatmul.mubr.f32.gmra.mxu0 %v4067
        %v7930 = vpop.f32.mrf.mxu0
        %v7931 = vadd.f32 0.0, %v7930
        %v7932 = vpop.f32.mrf.mxu0
        %7933 = vmatprep.mubr.f32.mxu0 0.0
        %7934 = vmatmul.mubr.f32.gmra.mxu0 %v4069
        %v7935 = vpop.f32.mrf.mxu0
        %v7936 = vadd.f32 0.0, %v7935
        %v7937 = vpop.f32.mrf.mxu0
        %7938 = vmatprep.mubr.f32.mxu0 0.0
        %7939 = vmatmul.mubr.f32.gmra.mxu0 %v7744
        %v7940 = vpop.f32.mrf.mxu0
        %v7941 = vadd.f32 0.0, %v7940
        %v7942 = vpop.f32.mrf.mxu0
        %7943 = vmatprep.mubr.f32.mxu0 0.0
        %7944 = vmatmul.mubr.f32.gmra.mxu0 %v7746
        %v7945 = vpop.f32.mrf.mxu0
        %v7946 = vadd.f32 0.0, %v7945
        %v7947 = vpop.f32.mrf.mxu0
        %7948 = vmatprep.mubr.f32.mxu0 0.0
        %7949 = vmatmul.mubr.f32.gmra.mxu0 %v7748
        %v7950 = vpop.f32.mrf.mxu0
        %v7951 = vadd.f32 0.0, %v7950
        %v7952 = vpop.f32.mrf.mxu0
        %7953 = vmatprep.mubr.f32.mxu0 0.0
        %7954 = vmatmul.mubr.f32.gmra.mxu0 %v7750
        %v7955 = vpop.f32.mrf.mxu0
        %v7956 = vadd.f32 0.0, %v7955
        %v7957 = vpop.f32.mrf.mxu0
        %7958 = vmatprep.mubr.f32.mxu0 0.0
        %7959 = vmatmul.mubr.f32.gmra.mxu0 %v7752
        %v7960 = vpop.f32.mrf.mxu0
        %v7961 = vadd.f32 0.0, %v7960
        %v7962 = vpop.f32.mrf.mxu0
        %7963 = vdwg.mxu0
        %v7964 = vadd.f32 %v7701, %v7821
        %v7965 = vadd.f32 %v7702, %v7826
        %v7966 = vadd.f32 %v7703, %v7831
        %v7967 = vadd.f32 %v7704, %v7836
        %v7968 = vadd.f32 %v7705, %v7841
        %v7969 = vadd.f32 %v7706, %v7846
        %v7970 = vadd.f32 %v7707, %v7851
        %v7971 = vadd.f32 %v7708, %v7856
        %v7972 = vadd.f32 %v7709, %v7861
        %v7973 = vadd.f32 %v7710, %v7866
        %v7974 = vadd.f32 %v7711, %v7871
        %v7975 = vadd.f32 %v7712, %v7876
        %v7976 = vadd.f32 %v7713, %v7881
        %v7977 = vadd.f32 %v7714, %v7886
        %v7978 = vadd.f32 %v7715, %v7891
        %v7979 = vadd.f32 %v7716, %v7896
        %v7980 = vadd.f32 %v7717, %v7901
        %v7981 = vadd.f32 %v7718, %v7906
        %v7982 = vadd.f32 %v7719, %v7911
        %v7983 = vadd.f32 %v7720, %v7916
        %v7984 = vadd.f32 %v7721, %v7921
        %v7985 = vadd.f32 %v7722, %v7926
        %v7986 = vadd.f32 %v7723, %v7931
        %v7987 = vadd.f32 %v7724, %v7936
        %v7988 = vadd.f32 %v7725, %v7941
        %v7989 = vadd.f32 %v7726, %v7946
        %v7990 = vadd.f32 %v7727, %v7951
        %v7991 = vadd.f32 %v7728, %v7956
        %v7992 = vadd.f32 %v7729, %v7961
        %v7993 = vld [vmem:[%s5] sm:$0xff]
        %v7994 = vld [vmem:[%s5 + $0x8] sm:$0xff]
        %v7995 = vld [vmem:[%s5 + $0x10] sm:$0xff]
        %v7996 = vld [vmem:[%s5 + $0x18] sm:$0xff]
        %v7997 = vld [vmem:[%s5 + $0x20] sm:$0xff]
        %v7998 = vld [vmem:[%s5 + $0x28] sm:$0xff]
        %v7999 = vld [vmem:[%s5 + $0x30] sm:$0xff]
        %v8000 = vld [vmem:[%s5 + $0x38] sm:$0xff]
        %v8001 = vld [vmem:[%s5 + $0x40] sm:$0xff]
        %v8002 = vld [vmem:[%s5 + $0x48] sm:$0xff]
        %v8003 = vld [vmem:[%s5 + $0x50] sm:$0xff]
        %v8004 = vld [vmem:[%s5 + $0x58] sm:$0xff]
        %v8005 = vld [vmem:[%s5 + $0x60] sm:$0x1]
        %v8006 = vld [vmem:[%s5 + $0x68] sm:$0x1]
        %v8007 = vld [vmem:[%s4] sm:$0x1]
        %v8009 = vlaneseq
        %v8010 = vshrl.u32 %v8009, 7
        %v8011 = vsub.s32 0, %v8010
        %v8012 = vrot.slane %v8007, %v8011
        %vm8014 = vcmask 826368
        %v8016 = vsel %vm8014, %v7994, 0
        %v8019 = vsel %vm8014, %v7996, 0
        %v8022 = vsel %vm8014, %v7998, 0
        %v8025 = vsel %vm8014, %v8000, 0
        %v8028 = vsel %vm8014, %v8002, 0
        %v8031 = vsel %vm8014, %v8004, 0
        %v8034 = vsel %vm8014, %v8006, 0
        %v8037 = vsel %vm1867, %v7992, 0
        %8039 = vmatprep.subr.mxu0 0.0
        %8040 = vmatpush1.msra.mxu0 %v7979
        %8041 = vmatprep.subr.mxu0 0.0
        %8042 = vmatpush1.msra.mxu0 %v7978
        %8043 = vmatprep.subr.mxu0 0.0
        %8044 = vmatpush1.msra.mxu0 %v7977
        %8045 = vmatprep.subr.mxu0 0.0
        %8046 = vmatpush1.msra.mxu0 %v7976
        %8047 = vmatprep.subr.mxu0 0.0
        %8048 = vmatpush1.msra.mxu0 %v7975
        %8049 = vmatprep.subr.mxu0 0.0
        %8050 = vmatpush1.msra.mxu0 %v7974
        %8051 = vmatprep.subr.mxu0 0.0
        %8052 = vmatpush1.msra.mxu0 %v7973
        %8053 = vmatprep.subr.mxu0 0.0
        %8054 = vmatpush1.msra.mxu0 %v7972
        %8055 = vmatprep.subr.mxu0 0.0
        %8056 = vmatpush1.msra.mxu0 %v7971
        %8057 = vmatprep.subr.mxu0 0.0
        %8058 = vmatpush1.msra.mxu0 %v7970
        %8059 = vmatprep.subr.mxu0 0.0
        %8060 = vmatpush1.msra.mxu0 %v7969
        %8061 = vmatprep.subr.mxu0 0.0
        %8062 = vmatpush1.msra.mxu0 %v7968
        %8063 = vmatprep.subr.mxu0 0.0
        %8064 = vmatpush1.msra.mxu0 %v7967
        %8065 = vmatprep.subr.mxu0 0.0
        %8066 = vmatpush1.msra.mxu0 %v7966
        %8067 = vmatprep.subr.mxu0 0.0
        %8068 = vmatpush1.msra.mxu0 %v7965
        %8069 = vmatprep.subr.mxu0 0.0
        %8070 = vmatpush1.msra.mxu0 %v7964
        %8071 = vmatprep.subr.mxu0 0.0
        %8072 = vmatpush2.msra.mxu0 0.0
        %8073 = vmatprep.subr.mxu0 0.0
        %8074 = vmatpush2.msra.mxu0 0.0
        %8075 = vmatprep.subr.mxu0 0.0
        %8076 = vmatpush2.msra.mxu0 0.0
        %8077 = vmatprep.subr.mxu0 0.0
        %8078 = vmatpush2.msra.mxu0 %v8037
        %8079 = vmatprep.subr.mxu0 0.0
        %8080 = vmatpush2.msra.mxu0 %v7991
        %8081 = vmatprep.subr.mxu0 0.0
        %8082 = vmatpush2.msra.mxu0 %v7990
        %8083 = vmatprep.subr.mxu0 0.0
        %8084 = vmatpush2.msra.mxu0 %v7989
        %8085 = vmatprep.subr.mxu0 0.0
        %8086 = vmatpush2.msra.mxu0 %v7988
        %8087 = vmatprep.subr.mxu0 0.0
        %8088 = vmatpush2.msra.mxu0 %v7987
        %8089 = vmatprep.subr.mxu0 0.0
        %8090 = vmatpush2.msra.mxu0 %v7986
        %8091 = vmatprep.subr.mxu0 0.0
        %8092 = vmatpush2.msra.mxu0 %v7985
        %8093 = vmatprep.subr.mxu0 0.0
        %8094 = vmatpush2.msra.mxu0 %v7984
        %8095 = vmatprep.subr.mxu0 0.0
        %8096 = vmatpush2.msra.mxu0 %v7983
        %8097 = vmatprep.subr.mxu0 0.0
        %8098 = vmatpush2.msra.mxu0 %v7982
        %8099 = vmatprep.subr.mxu0 0.0
        %8100 = vmatpush2.msra.mxu0 %v7981
        %8101 = vmatprep.subr.mxu0 0.0
        %8102 = vmatpush2.msra.mxu0 %v7980
        %8103 = vmatprep.mubr.f32.mxu0 %v8016
        %8104 = vmatmul.mubr.f32.gmra.mxu0 %v7993
        %v8105 = vpop.f32.mrf.mxu0
        %v8106 = vadd.f32 %v8012, %v8105
        %v8107 = vpop.f32.mrf.mxu0
        %8108 = vmatprep.mubr.f32.mxu0 %v8019
        %8109 = vmatmul.mubr.f32.gmra.mxu0 %v7995
        %v8110 = vpop.f32.mrf.mxu0
        %v8111 = vadd.f32 %v8012, %v8110
        %v8112 = vpop.f32.mrf.mxu0
        %8113 = vmatprep.mubr.f32.mxu0 %v8022
        %8114 = vmatmul.mubr.f32.gmra.mxu0 %v7997
        %v8115 = vpop.f32.mrf.mxu0
        %v8116 = vadd.f32 %v8012, %v8115
        %v8117 = vpop.f32.mrf.mxu0
        %8118 = vmatprep.mubr.f32.mxu0 %v8025
        %8119 = vmatmul.mubr.f32.gmra.mxu0 %v7999
        %v8120 = vpop.f32.mrf.mxu0
        %v8121 = vadd.f32 %v8012, %v8120
        %v8122 = vpop.f32.mrf.mxu0
        %8123 = vmatprep.mubr.f32.mxu0 %v8028
        %8124 = vmatmul.mubr.f32.gmra.mxu0 %v8001
        %v8125 = vpop.f32.mrf.mxu0
        %v8126 = vadd.f32 %v8012, %v8125
        %v8127 = vpop.f32.mrf.mxu0
        %8128 = vmatprep.mubr.f32.mxu0 %v8031
        %8129 = vmatmul.mubr.f32.gmra.mxu0 %v8003
        %v8130 = vpop.f32.mrf.mxu0
        %v8131 = vadd.f32 %v8012, %v8130
        %v8132 = vpop.f32.mrf.mxu0
        %8133 = vmatprep.mubr.f32.mxu0 %v8034
        %8134 = vmatmul.mubr.f32.gmra.mxu0 %v8005
        %v8135 = vpop.f32.mrf.mxu0
        %v8136 = vadd.f32 %v8012, %v8135
        %v8137 = vpop.f32.mrf.mxu0
        %8138 = vdwg.mxu0
        %v8139 = vmax.f32 %v8106, 0.0
        %v8140 = vmax.f32 %v8111, 0.0
        %v8141 = vmax.f32 %v8116, 0.0
        %v8142 = vmax.f32 %v8121, 0.0
        %v8143 = vmax.f32 %v8126, 0.0
        %v8144 = vmax.f32 %v8131, 0.0
        %v8145 = vmax.f32 %v8136, 0.0
        %v8146 = vld [vmem:[%s6] sm:$0xff]
        %v8147 = vld [vmem:[%s6 + $0x8] sm:$0xff]
        %v8148 = vld [vmem:[%s6 + $0x10] sm:$0xff]
        %v8149 = vld [vmem:[%s6 + $0x18] sm:$0xff]
        %s8150 = scalar_lea.vmem %s6, 32
        %v8151 = vld [vmem:[%s8150] sm:$0xff]
        %v8152 = vld [vmem:[%s8150 + $0x8] sm:$0xff]
        %v8153 = vld [vmem:[%s8150 + $0x10] sm:$0xff]
        %v8154 = vld [vmem:[%s8150 + $0x18] sm:$0xff]
        %v8158 = vrot.slane %v8139, 1
        %v8159 = vrot.slane %v8140, 1
        %v8160 = vsel %vm911, %v8158, %v8159
        %v8161 = vrot.slane %v8141, 1
        %v8162 = vsel %vm911, %v8159, %v8161
        %vm8163 = vcmask 261120
        %v8164 = vsel %vm8163, %v8160, 0
        %v8166 = vsel %vm8163, %v8162, 0
        %v8168 = vsel %vm8163, %v8161, 0
        %8170 = vmatprep.subr.mxu0 0.0
        %8171 = vmatpush1.msra.mxu0 0.0
        %8172 = vmatprep.subr.mxu0 0.0
        %8173 = vmatpush1.msra.mxu0 0.0
        %8174 = vmatprep.subr.mxu0 0.0
        %8175 = vmatpush1.msra.mxu0 0.0
        %8176 = vmatprep.subr.mxu0 0.0
        %8177 = vmatpush1.msra.mxu0 0.0
        %8178 = vmatprep.subr.mxu0 0.0
        %8179 = vmatpush1.msra.mxu0 0.0
        %8180 = vmatprep.subr.mxu0 0.0
        %8181 = vmatpush1.msra.mxu0 0.0
        %8182 = vmatprep.subr.mxu0 0.0
        %8183 = vmatpush1.msra.mxu0 0.0
        %8184 = vmatprep.subr.mxu0 0.0
        %8185 = vmatpush1.msra.mxu0 0.0
        %8186 = vmatprep.subr.mxu0 0.0
        %8187 = vmatpush1.msra.mxu0 0.0
        %8188 = vmatprep.subr.mxu0 0.0
        %8189 = vmatpush1.msra.mxu0 0.0
        %8190 = vmatprep.subr.mxu0 0.0
        %8191 = vmatpush1.msra.mxu0 0.0
        %8192 = vmatprep.subr.mxu0 0.0
        %8193 = vmatpush1.msra.mxu0 0.0
        %8194 = vmatprep.subr.mxu0 0.0
        %8195 = vmatpush1.msra.mxu0 %v8154
        %8196 = vmatprep.subr.mxu0 0.0
        %8197 = vmatpush1.msra.mxu0 %v8153
        %8198 = vmatprep.subr.mxu0 0.0
        %8199 = vmatpush1.msra.mxu0 %v8152
        %8200 = vmatprep.subr.mxu0 0.0
        %8201 = vmatpush1.msra.mxu0 %v8151
        %8202 = vmatprep.subr.mxu0 0.0
        %8203 = vmatpush2.msra.mxu0 0.0
        %8204 = vmatprep.subr.mxu0 0.0
        %8205 = vmatpush2.msra.mxu0 0.0
        %8206 = vmatprep.subr.mxu0 0.0
        %8207 = vmatpush2.msra.mxu0 0.0
        %8208 = vmatprep.subr.mxu0 0.0
        %8209 = vmatpush2.msra.mxu0 0.0
        %8210 = vmatprep.subr.mxu0 0.0
        %8211 = vmatpush2.msra.mxu0 0.0
        %8212 = vmatprep.subr.mxu0 0.0
        %8213 = vmatpush2.msra.mxu0 0.0
        %8214 = vmatprep.subr.mxu0 0.0
        %8215 = vmatpush2.msra.mxu0 0.0
        %8216 = vmatprep.subr.mxu0 0.0
        %8217 = vmatpush2.msra.mxu0 0.0
        %8218 = vmatprep.subr.mxu0 0.0
        %8219 = vmatpush2.msra.mxu0 0.0
        %8220 = vmatprep.subr.mxu0 0.0
        %8221 = vmatpush2.msra.mxu0 0.0
        %8222 = vmatprep.subr.mxu0 0.0
        %8223 = vmatpush2.msra.mxu0 0.0
        %8224 = vmatprep.subr.mxu0 0.0
        %8225 = vmatpush2.msra.mxu0 0.0
        %8226 = vmatprep.subr.mxu0 0.0
        %8227 = vmatpush2.msra.mxu0 0.0
        %8228 = vmatprep.subr.mxu0 0.0
        %8229 = vmatpush2.msra.mxu0 0.0
        %8230 = vmatprep.subr.mxu0 0.0
        %8231 = vmatpush2.msra.mxu0 0.0
        %8232 = vmatprep.subr.mxu0 0.0
        %8233 = vmatpush2.msra.mxu0 0.0
        %8234 = vmatprep.mubr.f32.mxu0 0.0
        %8235 = vmatmul.mubr.f32.gmra.mxu0 %v8164
        %v8236 = vpop.f32.mrf.mxu0
        %v8237 = vadd.f32 0.0, %v8236
        %v8238 = vpop.f32.mrf.mxu0
        %8239 = vmatprep.mubr.f32.mxu0 0.0
        %8240 = vmatmul.mubr.f32.gmra.mxu0 %v8166
        %v8241 = vpop.f32.mrf.mxu0
        %v8242 = vadd.f32 0.0, %v8241
        %v8243 = vpop.f32.mrf.mxu0
        %8244 = vmatprep.mubr.f32.mxu0 0.0
        %8245 = vmatmul.mubr.f32.gmra.mxu0 %v8168
        %v8246 = vpop.f32.mrf.mxu0
        %v8247 = vadd.f32 0.0, %v8246
        %v8248 = vpop.f32.mrf.mxu0
        %8249 = vdwg.mxu0
        %v8250 = vsel %vm8163, %v8139, 0
        %v8252 = vsel %vm8163, %v8140, 0
        %v8254 = vsel %vm8163, %v8141, 0
        %8256 = vmatprep.subr.mxu0 0.0
        %8257 = vmatpush1.msra.mxu0 0.0
        %8258 = vmatprep.subr.mxu0 0.0
        %8259 = vmatpush1.msra.mxu0 0.0
        %8260 = vmatprep.subr.mxu0 0.0
        %8261 = vmatpush1.msra.mxu0 0.0
        %8262 = vmatprep.subr.mxu0 0.0
        %8263 = vmatpush1.msra.mxu0 0.0
        %8264 = vmatprep.subr.mxu0 0.0
        %8265 = vmatpush1.msra.mxu0 0.0
        %8266 = vmatprep.subr.mxu0 0.0
        %8267 = vmatpush1.msra.mxu0 0.0
        %8268 = vmatprep.subr.mxu0 0.0
        %8269 = vmatpush1.msra.mxu0 0.0
        %8270 = vmatprep.subr.mxu0 0.0
        %8271 = vmatpush1.msra.mxu0 0.0
        %8272 = vmatprep.subr.mxu0 0.0
        %8273 = vmatpush1.msra.mxu0 0.0
        %8274 = vmatprep.subr.mxu0 0.0
        %8275 = vmatpush1.msra.mxu0 0.0
        %8276 = vmatprep.subr.mxu0 0.0
        %8277 = vmatpush1.msra.mxu0 0.0
        %8278 = vmatprep.subr.mxu0 0.0
        %8279 = vmatpush1.msra.mxu0 0.0
        %8280 = vmatprep.subr.mxu0 0.0
        %8281 = vmatpush1.msra.mxu0 %v8149
        %8282 = vmatprep.subr.mxu0 0.0
        %8283 = vmatpush1.msra.mxu0 %v8148
        %8284 = vmatprep.subr.mxu0 0.0
        %8285 = vmatpush1.msra.mxu0 %v8147
        %8286 = vmatprep.subr.mxu0 0.0
        %8287 = vmatpush1.msra.mxu0 %v8146
        %8288 = vmatprep.subr.mxu0 0.0
        %8289 = vmatpush2.msra.mxu0 0.0
        %8290 = vmatprep.subr.mxu0 0.0
        %8291 = vmatpush2.msra.mxu0 0.0
        %8292 = vmatprep.subr.mxu0 0.0
        %8293 = vmatpush2.msra.mxu0 0.0
        %8294 = vmatprep.subr.mxu0 0.0
        %8295 = vmatpush2.msra.mxu0 0.0
        %8296 = vmatprep.subr.mxu0 0.0
        %8297 = vmatpush2.msra.mxu0 0.0
        %8298 = vmatprep.subr.mxu0 0.0
        %8299 = vmatpush2.msra.mxu0 0.0
        %8300 = vmatprep.subr.mxu0 0.0
        %8301 = vmatpush2.msra.mxu0 0.0
        %8302 = vmatprep.subr.mxu0 0.0
        %8303 = vmatpush2.msra.mxu0 0.0
        %8304 = vmatprep.subr.mxu0 0.0
        %8305 = vmatpush2.msra.mxu0 0.0
        %8306 = vmatprep.subr.mxu0 0.0
        %8307 = vmatpush2.msra.mxu0 0.0
        %8308 = vmatprep.subr.mxu0 0.0
        %8309 = vmatpush2.msra.mxu0 0.0
        %8310 = vmatprep.subr.mxu0 0.0
        %8311 = vmatpush2.msra.mxu0 0.0
        %8312 = vmatprep.subr.mxu0 0.0
        %8313 = vmatpush2.msra.mxu0 0.0
        %8314 = vmatprep.subr.mxu0 0.0
        %8315 = vmatpush2.msra.mxu0 0.0
        %8316 = vmatprep.subr.mxu0 0.0
        %8317 = vmatpush2.msra.mxu0 0.0
        %8318 = vmatprep.subr.mxu0 0.0
        %8319 = vmatpush2.msra.mxu0 0.0
        %8320 = vmatprep.mubr.f32.mxu0 0.0
        %8321 = vmatmul.mubr.f32.gmra.mxu0 %v8250
        %v8322 = vpop.f32.mrf.mxu0
        %v8323 = vadd.f32 %v8237, %v8322
        %v8324 = vpop.f32.mrf.mxu0
        %8325 = vmatprep.mubr.f32.mxu0 0.0
        %8326 = vmatmul.mubr.f32.gmra.mxu0 %v8252
        %v8327 = vpop.f32.mrf.mxu0
        %v8328 = vadd.f32 %v8242, %v8327
        %v8329 = vpop.f32.mrf.mxu0
        %8330 = vmatprep.mubr.f32.mxu0 0.0
        %8331 = vmatmul.mubr.f32.gmra.mxu0 %v8254
        %v8332 = vpop.f32.mrf.mxu0
        %v8333 = vadd.f32 %v8247, %v8332
        %v8334 = vpop.f32.mrf.mxu0
        %8335 = vdwg.mxu0
        %s8336 = scalar_lea.vmem %s6, 64
        %v8337 = vld [vmem:[%s8336] sm:$0xff]
        %v8338 = vld [vmem:[%s8336 + $0x8] sm:$0xff]
        %v8339 = vld [vmem:[%s8336 + $0x10] sm:$0xff]
        %v8340 = vld [vmem:[%s8336 + $0x18] sm:$0xff]
        %v8341 = vrot.slane %v8139, 2
        %v8342 = vrot.slane %v8140, 2
        %v8343 = vsel %vm1509, %v8341, %v8342
        %v8344 = vrot.slane %v8141, 2
        %v8345 = vsel %vm1509, %v8342, %v8344
        %v8346 = vsel %vm8163, %v8343, 0
        %v8348 = vsel %vm8163, %v8345, 0
        %v8350 = vsel %vm8163, %v8344, 0
        %8352 = vmatprep.subr.mxu0 0.0
        %8353 = vmatpush1.msra.mxu0 0.0
        %8354 = vmatprep.subr.mxu0 0.0
        %8355 = vmatpush1.msra.mxu0 0.0
        %8356 = vmatprep.subr.mxu0 0.0
        %8357 = vmatpush1.msra.mxu0 0.0
        %8358 = vmatprep.subr.mxu0 0.0
        %8359 = vmatpush1.msra.mxu0 0.0
        %8360 = vmatprep.subr.mxu0 0.0
        %8361 = vmatpush1.msra.mxu0 0.0
        %8362 = vmatprep.subr.mxu0 0.0
        %8363 = vmatpush1.msra.mxu0 0.0
        %8364 = vmatprep.subr.mxu0 0.0
        %8365 = vmatpush1.msra.mxu0 0.0
        %8366 = vmatprep.subr.mxu0 0.0
        %8367 = vmatpush1.msra.mxu0 0.0
        %8368 = vmatprep.subr.mxu0 0.0
        %8369 = vmatpush1.msra.mxu0 0.0
        %8370 = vmatprep.subr.mxu0 0.0
        %8371 = vmatpush1.msra.mxu0 0.0
        %8372 = vmatprep.subr.mxu0 0.0
        %8373 = vmatpush1.msra.mxu0 0.0
        %8374 = vmatprep.subr.mxu0 0.0
        %8375 = vmatpush1.msra.mxu0 0.0
        %8376 = vmatprep.subr.mxu0 0.0
        %8377 = vmatpush1.msra.mxu0 %v8340
        %8378 = vmatprep.subr.mxu0 0.0
        %8379 = vmatpush1.msra.mxu0 %v8339
        %8380 = vmatprep.subr.mxu0 0.0
        %8381 = vmatpush1.msra.mxu0 %v8338
        %8382 = vmatprep.subr.mxu0 0.0
        %8383 = vmatpush1.msra.mxu0 %v8337
        %8384 = vmatprep.subr.mxu0 0.0
        %8385 = vmatpush2.msra.mxu0 0.0
        %8386 = vmatprep.subr.mxu0 0.0
        %8387 = vmatpush2.msra.mxu0 0.0
        %8388 = vmatprep.subr.mxu0 0.0
        %8389 = vmatpush2.msra.mxu0 0.0
        %8390 = vmatprep.subr.mxu0 0.0
        %8391 = vmatpush2.msra.mxu0 0.0
        %8392 = vmatprep.subr.mxu0 0.0
        %8393 = vmatpush2.msra.mxu0 0.0
        %8394 = vmatprep.subr.mxu0 0.0
        %8395 = vmatpush2.msra.mxu0 0.0
        %8396 = vmatprep.subr.mxu0 0.0
        %8397 = vmatpush2.msra.mxu0 0.0
        %8398 = vmatprep.subr.mxu0 0.0
        %8399 = vmatpush2.msra.mxu0 0.0
        %8400 = vmatprep.subr.mxu0 0.0
        %8401 = vmatpush2.msra.mxu0 0.0
        %8402 = vmatprep.subr.mxu0 0.0
        %8403 = vmatpush2.msra.mxu0 0.0
        %8404 = vmatprep.subr.mxu0 0.0
        %8405 = vmatpush2.msra.mxu0 0.0
        %8406 = vmatprep.subr.mxu0 0.0
        %8407 = vmatpush2.msra.mxu0 0.0
        %8408 = vmatprep.subr.mxu0 0.0
        %8409 = vmatpush2.msra.mxu0 0.0
        %8410 = vmatprep.subr.mxu0 0.0
        %8411 = vmatpush2.msra.mxu0 0.0
        %8412 = vmatprep.subr.mxu0 0.0
        %8413 = vmatpush2.msra.mxu0 0.0
        %8414 = vmatprep.subr.mxu0 0.0
        %8415 = vmatpush2.msra.mxu0 0.0
        %8416 = vmatprep.mubr.f32.mxu0 0.0
        %8417 = vmatmul.mubr.f32.gmra.mxu0 %v8346
        %v8418 = vpop.f32.mrf.mxu0
        %v8419 = vadd.f32 0.0, %v8418
        %v8420 = vpop.f32.mrf.mxu0
        %8421 = vmatprep.mubr.f32.mxu0 0.0
        %8422 = vmatmul.mubr.f32.gmra.mxu0 %v8348
        %v8423 = vpop.f32.mrf.mxu0
        %v8424 = vadd.f32 0.0, %v8423
        %v8425 = vpop.f32.mrf.mxu0
        %8426 = vmatprep.mubr.f32.mxu0 0.0
        %8427 = vmatmul.mubr.f32.gmra.mxu0 %v8350
        %v8428 = vpop.f32.mrf.mxu0
        %v8429 = vadd.f32 0.0, %v8428
        %v8430 = vpop.f32.mrf.mxu0
        %8431 = vdwg.mxu0
        %v8432 = vadd.f32 %v8323, %v8419
        %v8433 = vadd.f32 %v8328, %v8424
        %v8434 = vadd.f32 %v8333, %v8429
        %s8435 = scalar_lea.vmem %s6, 96
        %v8436 = vld [vmem:[%s8435] sm:$0xff]
        %v8437 = vld [vmem:[%s8435 + $0x8] sm:$0xff]
        %v8438 = vld [vmem:[%s8435 + $0x10] sm:$0xff]
        %v8439 = vld [vmem:[%s8435 + $0x18] sm:$0xff]
        %v8440 = vrot.slane %v8139, 3
        %v8441 = vrot.slane %v8140, 3
        %v8442 = vsel %vm1867, %v8440, %v8441
        %v8443 = vrot.slane %v8141, 3
        %v8444 = vsel %vm1867, %v8441, %v8443
        %v8445 = vsel %vm8163, %v8442, 0
        %v8447 = vsel %vm8163, %v8444, 0
        %v8449 = vsel %vm8163, %v8443, 0
        %8451 = vmatprep.subr.mxu0 0.0
        %8452 = vmatpush1.msra.mxu0 0.0
        %8453 = vmatprep.subr.mxu0 0.0
        %8454 = vmatpush1.msra.mxu0 0.0
        %8455 = vmatprep.subr.mxu0 0.0
        %8456 = vmatpush1.msra.mxu0 0.0
        %8457 = vmatprep.subr.mxu0 0.0
        %8458 = vmatpush1.msra.mxu0 0.0
        %8459 = vmatprep.subr.mxu0 0.0
        %8460 = vmatpush1.msra.mxu0 0.0
        %8461 = vmatprep.subr.mxu0 0.0
        %8462 = vmatpush1.msra.mxu0 0.0
        %8463 = vmatprep.subr.mxu0 0.0
        %8464 = vmatpush1.msra.mxu0 0.0
        %8465 = vmatprep.subr.mxu0 0.0
        %8466 = vmatpush1.msra.mxu0 0.0
        %8467 = vmatprep.subr.mxu0 0.0
        %8468 = vmatpush1.msra.mxu0 0.0
        %8469 = vmatprep.subr.mxu0 0.0
        %8470 = vmatpush1.msra.mxu0 0.0
        %8471 = vmatprep.subr.mxu0 0.0
        %8472 = vmatpush1.msra.mxu0 0.0
        %8473 = vmatprep.subr.mxu0 0.0
        %8474 = vmatpush1.msra.mxu0 0.0
        %8475 = vmatprep.subr.mxu0 0.0
        %8476 = vmatpush1.msra.mxu0 %v8439
        %8477 = vmatprep.subr.mxu0 0.0
        %8478 = vmatpush1.msra.mxu0 %v8438
        %8479 = vmatprep.subr.mxu0 0.0
        %8480 = vmatpush1.msra.mxu0 %v8437
        %8481 = vmatprep.subr.mxu0 0.0
        %8482 = vmatpush1.msra.mxu0 %v8436
        %8483 = vmatprep.subr.mxu0 0.0
        %8484 = vmatpush2.msra.mxu0 0.0
        %8485 = vmatprep.subr.mxu0 0.0
        %8486 = vmatpush2.msra.mxu0 0.0
        %8487 = vmatprep.subr.mxu0 0.0
        %8488 = vmatpush2.msra.mxu0 0.0
        %8489 = vmatprep.subr.mxu0 0.0
        %8490 = vmatpush2.msra.mxu0 0.0
        %8491 = vmatprep.subr.mxu0 0.0
        %8492 = vmatpush2.msra.mxu0 0.0
        %8493 = vmatprep.subr.mxu0 0.0
        %8494 = vmatpush2.msra.mxu0 0.0
        %8495 = vmatprep.subr.mxu0 0.0
        %8496 = vmatpush2.msra.mxu0 0.0
        %8497 = vmatprep.subr.mxu0 0.0
        %8498 = vmatpush2.msra.mxu0 0.0
        %8499 = vmatprep.subr.mxu0 0.0
        %8500 = vmatpush2.msra.mxu0 0.0
        %8501 = vmatprep.subr.mxu0 0.0
        %8502 = vmatpush2.msra.mxu0 0.0
        %8503 = vmatprep.subr.mxu0 0.0
        %8504 = vmatpush2.msra.mxu0 0.0
        %8505 = vmatprep.subr.mxu0 0.0
        %8506 = vmatpush2.msra.mxu0 0.0
        %8507 = vmatprep.subr.mxu0 0.0
        %8508 = vmatpush2.msra.mxu0 0.0
        %8509 = vmatprep.subr.mxu0 0.0
        %8510 = vmatpush2.msra.mxu0 0.0
        %8511 = vmatprep.subr.mxu0 0.0
        %8512 = vmatpush2.msra.mxu0 0.0
        %8513 = vmatprep.subr.mxu0 0.0
        %8514 = vmatpush2.msra.mxu0 0.0
        %8515 = vmatprep.mubr.f32.mxu0 0.0
        %8516 = vmatmul.mubr.f32.gmra.mxu0 %v8445
        %v8517 = vpop.f32.mrf.mxu0
        %v8518 = vadd.f32 0.0, %v8517
        %v8519 = vpop.f32.mrf.mxu0
        %8520 = vmatprep.mubr.f32.mxu0 0.0
        %8521 = vmatmul.mubr.f32.gmra.mxu0 %v8447
        %v8522 = vpop.f32.mrf.mxu0
        %v8523 = vadd.f32 0.0, %v8522
        %v8524 = vpop.f32.mrf.mxu0
        %8525 = vmatprep.mubr.f32.mxu0 0.0
        %8526 = vmatmul.mubr.f32.gmra.mxu0 %v8449
        %v8527 = vpop.f32.mrf.mxu0
        %v8528 = vadd.f32 0.0, %v8527
        %v8529 = vpop.f32.mrf.mxu0
        %8530 = vdwg.mxu0
        %v8531 = vadd.f32 %v8432, %v8518
        %v8532 = vadd.f32 %v8433, %v8523
        %v8533 = vadd.f32 %v8434, %v8528
        %s8534 = scalar_lea.vmem %s6, 128
        %v8535 = vld [vmem:[%s8534] sm:$0xff]
        %v8536 = vld [vmem:[%s8534 + $0x8] sm:$0xff]
        %v8537 = vld [vmem:[%s8534 + $0x10] sm:$0xff]
        %v8538 = vld [vmem:[%s8534 + $0x18] sm:$0xff]
        %v8539 = vrot.slane %v8139, 4
        %v8540 = vrot.slane %v8140, 4
        %v8541 = vsel %vm2226, %v8539, %v8540
        %v8542 = vrot.slane %v8141, 4
        %v8543 = vsel %vm2226, %v8540, %v8542
        %v8544 = vsel %vm8163, %v8541, 0
        %v8546 = vsel %vm8163, %v8543, 0
        %v8548 = vsel %vm8163, %v8542, 0
        %8550 = vmatprep.subr.mxu0 0.0
        %8551 = vmatpush1.msra.mxu0 0.0
        %8552 = vmatprep.subr.mxu0 0.0
        %8553 = vmatpush1.msra.mxu0 0.0
        %8554 = vmatprep.subr.mxu0 0.0
        %8555 = vmatpush1.msra.mxu0 0.0
        %8556 = vmatprep.subr.mxu0 0.0
        %8557 = vmatpush1.msra.mxu0 0.0
        %8558 = vmatprep.subr.mxu0 0.0
        %8559 = vmatpush1.msra.mxu0 0.0
        %8560 = vmatprep.subr.mxu0 0.0
        %8561 = vmatpush1.msra.mxu0 0.0
        %8562 = vmatprep.subr.mxu0 0.0
        %8563 = vmatpush1.msra.mxu0 0.0
        %8564 = vmatprep.subr.mxu0 0.0
        %8565 = vmatpush1.msra.mxu0 0.0
        %8566 = vmatprep.subr.mxu0 0.0
        %8567 = vmatpush1.msra.mxu0 0.0
        %8568 = vmatprep.subr.mxu0 0.0
        %8569 = vmatpush1.msra.mxu0 0.0
        %8570 = vmatprep.subr.mxu0 0.0
        %8571 = vmatpush1.msra.mxu0 0.0
        %8572 = vmatprep.subr.mxu0 0.0
        %8573 = vmatpush1.msra.mxu0 0.0
        %8574 = vmatprep.subr.mxu0 0.0
        %8575 = vmatpush1.msra.mxu0 %v8538
        %8576 = vmatprep.subr.mxu0 0.0
        %8577 = vmatpush1.msra.mxu0 %v8537
        %8578 = vmatprep.subr.mxu0 0.0
        %8579 = vmatpush1.msra.mxu0 %v8536
        %8580 = vmatprep.subr.mxu0 0.0
        %8581 = vmatpush1.msra.mxu0 %v8535
        %8582 = vmatprep.subr.mxu0 0.0
        %8583 = vmatpush2.msra.mxu0 0.0
        %8584 = vmatprep.subr.mxu0 0.0
        %8585 = vmatpush2.msra.mxu0 0.0
        %8586 = vmatprep.subr.mxu0 0.0
        %8587 = vmatpush2.msra.mxu0 0.0
        %8588 = vmatprep.subr.mxu0 0.0
        %8589 = vmatpush2.msra.mxu0 0.0
        %8590 = vmatprep.subr.mxu0 0.0
        %8591 = vmatpush2.msra.mxu0 0.0
        %8592 = vmatprep.subr.mxu0 0.0
        %8593 = vmatpush2.msra.mxu0 0.0
        %8594 = vmatprep.subr.mxu0 0.0
        %8595 = vmatpush2.msra.mxu0 0.0
        %8596 = vmatprep.subr.mxu0 0.0
        %8597 = vmatpush2.msra.mxu0 0.0
        %8598 = vmatprep.subr.mxu0 0.0
        %8599 = vmatpush2.msra.mxu0 0.0
        %8600 = vmatprep.subr.mxu0 0.0
        %8601 = vmatpush2.msra.mxu0 0.0
        %8602 = vmatprep.subr.mxu0 0.0
        %8603 = vmatpush2.msra.mxu0 0.0
        %8604 = vmatprep.subr.mxu0 0.0
        %8605 = vmatpush2.msra.mxu0 0.0
        %8606 = vmatprep.subr.mxu0 0.0
        %8607 = vmatpush2.msra.mxu0 0.0
        %8608 = vmatprep.subr.mxu0 0.0
        %8609 = vmatpush2.msra.mxu0 0.0
        %8610 = vmatprep.subr.mxu0 0.0
        %8611 = vmatpush2.msra.mxu0 0.0
        %8612 = vmatprep.subr.mxu0 0.0
        %8613 = vmatpush2.msra.mxu0 0.0
        %8614 = vmatprep.mubr.f32.mxu0 0.0
        %8615 = vmatmul.mubr.f32.gmra.mxu0 %v8544
        %v8616 = vpop.f32.mrf.mxu0
        %v8617 = vadd.f32 0.0, %v8616
        %v8618 = vpop.f32.mrf.mxu0
        %8619 = vmatprep.mubr.f32.mxu0 0.0
        %8620 = vmatmul.mubr.f32.gmra.mxu0 %v8546
        %v8621 = vpop.f32.mrf.mxu0
        %v8622 = vadd.f32 0.0, %v8621
        %v8623 = vpop.f32.mrf.mxu0
        %8624 = vmatprep.mubr.f32.mxu0 0.0
        %8625 = vmatmul.mubr.f32.gmra.mxu0 %v8548
        %v8626 = vpop.f32.mrf.mxu0
        %v8627 = vadd.f32 0.0, %v8626
        %v8628 = vpop.f32.mrf.mxu0
        %8629 = vdwg.mxu0
        %v8630 = vadd.f32 %v8531, %v8617
        %v8631 = vadd.f32 %v8532, %v8622
        %v8632 = vadd.f32 %v8533, %v8627
        %s8633 = scalar_lea.vmem %s6, 160
        %v8634 = vld [vmem:[%s8633] sm:$0xff]
        %v8635 = vld [vmem:[%s8633 + $0x8] sm:$0xff]
        %v8636 = vld [vmem:[%s8633 + $0x10] sm:$0xff]
        %v8637 = vld [vmem:[%s8633 + $0x18] sm:$0xff]
        %v8638 = vrot.slane %v8139, 7
        %v8639 = vrot.slane %v8140, 7
        %v8640 = vsel %vm4813, %v8638, %v8639
        %v8641 = vrot.slane %v8141, 7
        %v8642 = vsel %vm4813, %v8639, %v8641
        %v8643 = vsel %vm8163, %v8640, 0
        %v8645 = vsel %vm8163, %v8642, 0
        %v8647 = vsel %vm8163, %v8641, 0
        %8649 = vmatprep.subr.mxu0 0.0
        %8650 = vmatpush1.msra.mxu0 0.0
        %8651 = vmatprep.subr.mxu0 0.0
        %8652 = vmatpush1.msra.mxu0 0.0
        %8653 = vmatprep.subr.mxu0 0.0
        %8654 = vmatpush1.msra.mxu0 0.0
        %8655 = vmatprep.subr.mxu0 0.0
        %8656 = vmatpush1.msra.mxu0 0.0
        %8657 = vmatprep.subr.mxu0 0.0
        %8658 = vmatpush1.msra.mxu0 0.0
        %8659 = vmatprep.subr.mxu0 0.0
        %8660 = vmatpush1.msra.mxu0 0.0
        %8661 = vmatprep.subr.mxu0 0.0
        %8662 = vmatpush1.msra.mxu0 0.0
        %8663 = vmatprep.subr.mxu0 0.0
        %8664 = vmatpush1.msra.mxu0 0.0
        %8665 = vmatprep.subr.mxu0 0.0
        %8666 = vmatpush1.msra.mxu0 0.0
        %8667 = vmatprep.subr.mxu0 0.0
        %8668 = vmatpush1.msra.mxu0 0.0
        %8669 = vmatprep.subr.mxu0 0.0
        %8670 = vmatpush1.msra.mxu0 0.0
        %8671 = vmatprep.subr.mxu0 0.0
        %8672 = vmatpush1.msra.mxu0 0.0
        %8673 = vmatprep.subr.mxu0 0.0
        %8674 = vmatpush1.msra.mxu0 %v8637
        %8675 = vmatprep.subr.mxu0 0.0
        %8676 = vmatpush1.msra.mxu0 %v8636
        %8677 = vmatprep.subr.mxu0 0.0
        %8678 = vmatpush1.msra.mxu0 %v8635
        %8679 = vmatprep.subr.mxu0 0.0
        %8680 = vmatpush1.msra.mxu0 %v8634
        %8681 = vmatprep.subr.mxu0 0.0
        %8682 = vmatpush2.msra.mxu0 0.0
        %8683 = vmatprep.subr.mxu0 0.0
        %8684 = vmatpush2.msra.mxu0 0.0
        %8685 = vmatprep.subr.mxu0 0.0
        %8686 = vmatpush2.msra.mxu0 0.0
        %8687 = vmatprep.subr.mxu0 0.0
        %8688 = vmatpush2.msra.mxu0 0.0
        %8689 = vmatprep.subr.mxu0 0.0
        %8690 = vmatpush2.msra.mxu0 0.0
        %8691 = vmatprep.subr.mxu0 0.0
        %8692 = vmatpush2.msra.mxu0 0.0
        %8693 = vmatprep.subr.mxu0 0.0
        %8694 = vmatpush2.msra.mxu0 0.0
        %8695 = vmatprep.subr.mxu0 0.0
        %8696 = vmatpush2.msra.mxu0 0.0
        %8697 = vmatprep.subr.mxu0 0.0
        %8698 = vmatpush2.msra.mxu0 0.0
        %8699 = vmatprep.subr.mxu0 0.0
        %8700 = vmatpush2.msra.mxu0 0.0
        %8701 = vmatprep.subr.mxu0 0.0
        %8702 = vmatpush2.msra.mxu0 0.0
        %8703 = vmatprep.subr.mxu0 0.0
        %8704 = vmatpush2.msra.mxu0 0.0
        %8705 = vmatprep.subr.mxu0 0.0
        %8706 = vmatpush2.msra.mxu0 0.0
        %8707 = vmatprep.subr.mxu0 0.0
        %8708 = vmatpush2.msra.mxu0 0.0
        %8709 = vmatprep.subr.mxu0 0.0
        %8710 = vmatpush2.msra.mxu0 0.0
        %8711 = vmatprep.subr.mxu0 0.0
        %8712 = vmatpush2.msra.mxu0 0.0
        %8713 = vmatprep.mubr.f32.mxu0 0.0
        %8714 = vmatmul.mubr.f32.gmra.mxu0 %v8643
        %v8715 = vpop.f32.mrf.mxu0
        %v8716 = vadd.f32 0.0, %v8715
        %v8717 = vpop.f32.mrf.mxu0
        %8718 = vmatprep.mubr.f32.mxu0 0.0
        %8719 = vmatmul.mubr.f32.gmra.mxu0 %v8645
        %v8720 = vpop.f32.mrf.mxu0
        %v8721 = vadd.f32 0.0, %v8720
        %v8722 = vpop.f32.mrf.mxu0
        %8723 = vmatprep.mubr.f32.mxu0 0.0
        %8724 = vmatmul.mubr.f32.gmra.mxu0 %v8647
        %v8725 = vpop.f32.mrf.mxu0
        %v8726 = vadd.f32 0.0, %v8725
        %v8727 = vpop.f32.mrf.mxu0
        %8728 = vdwg.mxu0
        %v8729 = vadd.f32 %v8630, %v8716
        %v8730 = vadd.f32 %v8631, %v8721
        %v8731 = vadd.f32 %v8632, %v8726
        %s8732 = scalar_lea.vmem %s6, 192
        %v8733 = vld [vmem:[%s8732] sm:$0xff]
        %v8734 = vld [vmem:[%s8732 + $0x8] sm:$0xff]
        %v8735 = vld [vmem:[%s8732 + $0x10] sm:$0xff]
        %v8736 = vld [vmem:[%s8732 + $0x18] sm:$0xff]
        %v8738 = vsel %vm8163, %v8142, 0
        %8740 = vmatprep.subr.mxu0 0.0
        %8741 = vmatpush1.msra.mxu0 0.0
        %8742 = vmatprep.subr.mxu0 0.0
        %8743 = vmatpush1.msra.mxu0 0.0
        %8744 = vmatprep.subr.mxu0 0.0
        %8745 = vmatpush1.msra.mxu0 0.0
        %8746 = vmatprep.subr.mxu0 0.0
        %8747 = vmatpush1.msra.mxu0 0.0
        %8748 = vmatprep.subr.mxu0 0.0
        %8749 = vmatpush1.msra.mxu0 0.0
        %8750 = vmatprep.subr.mxu0 0.0
        %8751 = vmatpush1.msra.mxu0 0.0
        %8752 = vmatprep.subr.mxu0 0.0
        %8753 = vmatpush1.msra.mxu0 0.0
        %8754 = vmatprep.subr.mxu0 0.0
        %8755 = vmatpush1.msra.mxu0 0.0
        %8756 = vmatprep.subr.mxu0 0.0
        %8757 = vmatpush1.msra.mxu0 0.0
        %8758 = vmatprep.subr.mxu0 0.0
        %8759 = vmatpush1.msra.mxu0 0.0
        %8760 = vmatprep.subr.mxu0 0.0
        %8761 = vmatpush1.msra.mxu0 0.0
        %8762 = vmatprep.subr.mxu0 0.0
        %8763 = vmatpush1.msra.mxu0 0.0
        %8764 = vmatprep.subr.mxu0 0.0
        %8765 = vmatpush1.msra.mxu0 %v8736
        %8766 = vmatprep.subr.mxu0 0.0
        %8767 = vmatpush1.msra.mxu0 %v8735
        %8768 = vmatprep.subr.mxu0 0.0
        %8769 = vmatpush1.msra.mxu0 %v8734
        %8770 = vmatprep.subr.mxu0 0.0
        %8771 = vmatpush1.msra.mxu0 %v8733
        %8772 = vmatprep.subr.mxu0 0.0
        %8773 = vmatpush2.msra.mxu0 0.0
        %8774 = vmatprep.subr.mxu0 0.0
        %8775 = vmatpush2.msra.mxu0 0.0
        %8776 = vmatprep.subr.mxu0 0.0
        %8777 = vmatpush2.msra.mxu0 0.0
        %8778 = vmatprep.subr.mxu0 0.0
        %8779 = vmatpush2.msra.mxu0 0.0
        %8780 = vmatprep.subr.mxu0 0.0
        %8781 = vmatpush2.msra.mxu0 0.0
        %8782 = vmatprep.subr.mxu0 0.0
        %8783 = vmatpush2.msra.mxu0 0.0
        %8784 = vmatprep.subr.mxu0 0.0
        %8785 = vmatpush2.msra.mxu0 0.0
        %8786 = vmatprep.subr.mxu0 0.0
        %8787 = vmatpush2.msra.mxu0 0.0
        %8788 = vmatprep.subr.mxu0 0.0
        %8789 = vmatpush2.msra.mxu0 0.0
        %8790 = vmatprep.subr.mxu0 0.0
        %8791 = vmatpush2.msra.mxu0 0.0
        %8792 = vmatprep.subr.mxu0 0.0
        %8793 = vmatpush2.msra.mxu0 0.0
        %8794 = vmatprep.subr.mxu0 0.0
        %8795 = vmatpush2.msra.mxu0 0.0
        %8796 = vmatprep.subr.mxu0 0.0
        %8797 = vmatpush2.msra.mxu0 0.0
        %8798 = vmatprep.subr.mxu0 0.0
        %8799 = vmatpush2.msra.mxu0 0.0
        %8800 = vmatprep.subr.mxu0 0.0
        %8801 = vmatpush2.msra.mxu0 0.0
        %8802 = vmatprep.subr.mxu0 0.0
        %8803 = vmatpush2.msra.mxu0 0.0
        %8804 = vmatprep.mubr.f32.mxu0 0.0
        %8805 = vmatmul.mubr.f32.gmra.mxu0 %v8252
        %v8806 = vpop.f32.mrf.mxu0
        %v8807 = vadd.f32 0.0, %v8806
        %v8808 = vpop.f32.mrf.mxu0
        %8809 = vmatprep.mubr.f32.mxu0 0.0
        %8810 = vmatmul.mubr.f32.gmra.mxu0 %v8254
        %v8811 = vpop.f32.mrf.mxu0
        %v8812 = vadd.f32 0.0, %v8811
        %v8813 = vpop.f32.mrf.mxu0
        %8814 = vmatprep.mubr.f32.mxu0 0.0
        %8815 = vmatmul.mubr.f32.gmra.mxu0 %v8738
        %v8816 = vpop.f32.mrf.mxu0
        %v8817 = vadd.f32 0.0, %v8816
        %v8818 = vpop.f32.mrf.mxu0
        %8819 = vdwg.mxu0
        %v8820 = vadd.f32 %v8729, %v8807
        %v8821 = vadd.f32 %v8730, %v8812
        %v8822 = vadd.f32 %v8731, %v8817
        %s8823 = scalar_lea.vmem %s6, 224
        %v8824 = vld [vmem:[%s8823] sm:$0xff]
        %v8825 = vld [vmem:[%s8823 + $0x8] sm:$0xff]
        %v8826 = vld [vmem:[%s8823 + $0x10] sm:$0xff]
        %v8827 = vld [vmem:[%s8823 + $0x18] sm:$0xff]
        %v8828 = vrot.slane %v8142, 1
        %v8829 = vsel %vm911, %v8161, %v8828
        %v8830 = vsel %vm8163, %v8829, 0
        %v8832 = vsel %vm8163, %v8828, 0
        %8834 = vmatprep.subr.mxu0 0.0
        %8835 = vmatpush1.msra.mxu0 0.0
        %8836 = vmatprep.subr.mxu0 0.0
        %8837 = vmatpush1.msra.mxu0 0.0
        %8838 = vmatprep.subr.mxu0 0.0
        %8839 = vmatpush1.msra.mxu0 0.0
        %8840 = vmatprep.subr.mxu0 0.0
        %8841 = vmatpush1.msra.mxu0 0.0
        %8842 = vmatprep.subr.mxu0 0.0
        %8843 = vmatpush1.msra.mxu0 0.0
        %8844 = vmatprep.subr.mxu0 0.0
        %8845 = vmatpush1.msra.mxu0 0.0
        %8846 = vmatprep.subr.mxu0 0.0
        %8847 = vmatpush1.msra.mxu0 0.0
        %8848 = vmatprep.subr.mxu0 0.0
        %8849 = vmatpush1.msra.mxu0 0.0
        %8850 = vmatprep.subr.mxu0 0.0
        %8851 = vmatpush1.msra.mxu0 0.0
        %8852 = vmatprep.subr.mxu0 0.0
        %8853 = vmatpush1.msra.mxu0 0.0
        %8854 = vmatprep.subr.mxu0 0.0
        %8855 = vmatpush1.msra.mxu0 0.0
        %8856 = vmatprep.subr.mxu0 0.0
        %8857 = vmatpush1.msra.mxu0 0.0
        %8858 = vmatprep.subr.mxu0 0.0
        %8859 = vmatpush1.msra.mxu0 %v8827
        %8860 = vmatprep.subr.mxu0 0.0
        %8861 = vmatpush1.msra.mxu0 %v8826
        %8862 = vmatprep.subr.mxu0 0.0
        %8863 = vmatpush1.msra.mxu0 %v8825
        %8864 = vmatprep.subr.mxu0 0.0
        %8865 = vmatpush1.msra.mxu0 %v8824
        %8866 = vmatprep.subr.mxu0 0.0
        %8867 = vmatpush2.msra.mxu0 0.0
        %8868 = vmatprep.subr.mxu0 0.0
        %8869 = vmatpush2.msra.mxu0 0.0
        %8870 = vmatprep.subr.mxu0 0.0
        %8871 = vmatpush2.msra.mxu0 0.0
        %8872 = vmatprep.subr.mxu0 0.0
        %8873 = vmatpush2.msra.mxu0 0.0
        %8874 = vmatprep.subr.mxu0 0.0
        %8875 = vmatpush2.msra.mxu0 0.0
        %8876 = vmatprep.subr.mxu0 0.0
        %8877 = vmatpush2.msra.mxu0 0.0
        %8878 = vmatprep.subr.mxu0 0.0
        %8879 = vmatpush2.msra.mxu0 0.0
        %8880 = vmatprep.subr.mxu0 0.0
        %8881 = vmatpush2.msra.mxu0 0.0
        %8882 = vmatprep.subr.mxu0 0.0
        %8883 = vmatpush2.msra.mxu0 0.0
        %8884 = vmatprep.subr.mxu0 0.0
        %8885 = vmatpush2.msra.mxu0 0.0
        %8886 = vmatprep.subr.mxu0 0.0
        %8887 = vmatpush2.msra.mxu0 0.0
        %8888 = vmatprep.subr.mxu0 0.0
        %8889 = vmatpush2.msra.mxu0 0.0
        %8890 = vmatprep.subr.mxu0 0.0
        %8891 = vmatpush2.msra.mxu0 0.0
        %8892 = vmatprep.subr.mxu0 0.0
        %8893 = vmatpush2.msra.mxu0 0.0
        %8894 = vmatprep.subr.mxu0 0.0
        %8895 = vmatpush2.msra.mxu0 0.0
        %8896 = vmatprep.subr.mxu0 0.0
        %8897 = vmatpush2.msra.mxu0 0.0
        %8898 = vmatprep.mubr.f32.mxu0 0.0
        %8899 = vmatmul.mubr.f32.gmra.mxu0 %v8166
        %v8900 = vpop.f32.mrf.mxu0
        %v8901 = vadd.f32 0.0, %v8900
        %v8902 = vpop.f32.mrf.mxu0
        %8903 = vmatprep.mubr.f32.mxu0 0.0
        %8904 = vmatmul.mubr.f32.gmra.mxu0 %v8830
        %v8905 = vpop.f32.mrf.mxu0
        %v8906 = vadd.f32 0.0, %v8905
        %v8907 = vpop.f32.mrf.mxu0
        %8908 = vmatprep.mubr.f32.mxu0 0.0
        %8909 = vmatmul.mubr.f32.gmra.mxu0 %v8832
        %v8910 = vpop.f32.mrf.mxu0
        %v8911 = vadd.f32 0.0, %v8910
        %v8912 = vpop.f32.mrf.mxu0
        %8913 = vdwg.mxu0
        %v8914 = vadd.f32 %v8820, %v8901
        %v8915 = vadd.f32 %v8821, %v8906
        %v8916 = vadd.f32 %v8822, %v8911
        %s8917 = scalar_lea.vmem %s6, 256
        %v8918 = vld [vmem:[%s8917] sm:$0xff]
        %v8919 = vld [vmem:[%s8917 + $0x8] sm:$0xff]
        %v8920 = vld [vmem:[%s8917 + $0x10] sm:$0xff]
        %v8921 = vld [vmem:[%s8917 + $0x18] sm:$0xff]
        %v8922 = vrot.slane %v8142, 2
        %v8923 = vsel %vm1509, %v8344, %v8922
        %v8924 = vsel %vm8163, %v8923, 0
        %v8926 = vsel %vm8163, %v8922, 0
        %8928 = vmatprep.subr.mxu0 0.0
        %8929 = vmatpush1.msra.mxu0 0.0
        %8930 = vmatprep.subr.mxu0 0.0
        %8931 = vmatpush1.msra.mxu0 0.0
        %8932 = vmatprep.subr.mxu0 0.0
        %8933 = vmatpush1.msra.mxu0 0.0
        %8934 = vmatprep.subr.mxu0 0.0
        %8935 = vmatpush1.msra.mxu0 0.0
        %8936 = vmatprep.subr.mxu0 0.0
        %8937 = vmatpush1.msra.mxu0 0.0
        %8938 = vmatprep.subr.mxu0 0.0
        %8939 = vmatpush1.msra.mxu0 0.0
        %8940 = vmatprep.subr.mxu0 0.0
        %8941 = vmatpush1.msra.mxu0 0.0
        %8942 = vmatprep.subr.mxu0 0.0
        %8943 = vmatpush1.msra.mxu0 0.0
        %8944 = vmatprep.subr.mxu0 0.0
        %8945 = vmatpush1.msra.mxu0 0.0
        %8946 = vmatprep.subr.mxu0 0.0
        %8947 = vmatpush1.msra.mxu0 0.0
        %8948 = vmatprep.subr.mxu0 0.0
        %8949 = vmatpush1.msra.mxu0 0.0
        %8950 = vmatprep.subr.mxu0 0.0
        %8951 = vmatpush1.msra.mxu0 0.0
        %8952 = vmatprep.subr.mxu0 0.0
        %8953 = vmatpush1.msra.mxu0 %v8921
        %8954 = vmatprep.subr.mxu0 0.0
        %8955 = vmatpush1.msra.mxu0 %v8920
        %8956 = vmatprep.subr.mxu0 0.0
        %8957 = vmatpush1.msra.mxu0 %v8919
        %8958 = vmatprep.subr.mxu0 0.0
        %8959 = vmatpush1.msra.mxu0 %v8918
        %8960 = vmatprep.subr.mxu0 0.0
        %8961 = vmatpush2.msra.mxu0 0.0
        %8962 = vmatprep.subr.mxu0 0.0
        %8963 = vmatpush2.msra.mxu0 0.0
        %8964 = vmatprep.subr.mxu0 0.0
        %8965 = vmatpush2.msra.mxu0 0.0
        %8966 = vmatprep.subr.mxu0 0.0
        %8967 = vmatpush2.msra.mxu0 0.0
        %8968 = vmatprep.subr.mxu0 0.0
        %8969 = vmatpush2.msra.mxu0 0.0
        %8970 = vmatprep.subr.mxu0 0.0
        %8971 = vmatpush2.msra.mxu0 0.0
        %8972 = vmatprep.subr.mxu0 0.0
        %8973 = vmatpush2.msra.mxu0 0.0
        %8974 = vmatprep.subr.mxu0 0.0
        %8975 = vmatpush2.msra.mxu0 0.0
        %8976 = vmatprep.subr.mxu0 0.0
        %8977 = vmatpush2.msra.mxu0 0.0
        %8978 = vmatprep.subr.mxu0 0.0
        %8979 = vmatpush2.msra.mxu0 0.0
        %8980 = vmatprep.subr.mxu0 0.0
        %8981 = vmatpush2.msra.mxu0 0.0
        %8982 = vmatprep.subr.mxu0 0.0
        %8983 = vmatpush2.msra.mxu0 0.0
        %8984 = vmatprep.subr.mxu0 0.0
        %8985 = vmatpush2.msra.mxu0 0.0
        %8986 = vmatprep.subr.mxu0 0.0
        %8987 = vmatpush2.msra.mxu0 0.0
        %8988 = vmatprep.subr.mxu0 0.0
        %8989 = vmatpush2.msra.mxu0 0.0
        %8990 = vmatprep.subr.mxu0 0.0
        %8991 = vmatpush2.msra.mxu0 0.0
        %8992 = vmatprep.mubr.f32.mxu0 0.0
        %8993 = vmatmul.mubr.f32.gmra.mxu0 %v8348
        %v8994 = vpop.f32.mrf.mxu0
        %v8995 = vadd.f32 0.0, %v8994
        %v8996 = vpop.f32.mrf.mxu0
        %8997 = vmatprep.mubr.f32.mxu0 0.0
        %8998 = vmatmul.mubr.f32.gmra.mxu0 %v8924
        %v8999 = vpop.f32.mrf.mxu0
        %v9000 = vadd.f32 0.0, %v8999
        %v9001 = vpop.f32.mrf.mxu0
        %9002 = vmatprep.mubr.f32.mxu0 0.0
        %9003 = vmatmul.mubr.f32.gmra.mxu0 %v8926
        %v9004 = vpop.f32.mrf.mxu0
        %v9005 = vadd.f32 0.0, %v9004
        %v9006 = vpop.f32.mrf.mxu0
        %9007 = vdwg.mxu0
        %v9008 = vadd.f32 %v8914, %v8995
        %v9009 = vadd.f32 %v8915, %v9000
        %v9010 = vadd.f32 %v8916, %v9005
        %s9011 = scalar_lea.vmem %s6, 288
        %v9012 = vld [vmem:[%s9011] sm:$0xff]
        %v9013 = vld [vmem:[%s9011 + $0x8] sm:$0xff]
        %v9014 = vld [vmem:[%s9011 + $0x10] sm:$0xff]
        %v9015 = vld [vmem:[%s9011 + $0x18] sm:$0xff]
        %v9016 = vrot.slane %v8142, 3
        %v9017 = vsel %vm1867, %v8443, %v9016
        %v9018 = vsel %vm8163, %v9017, 0
        %v9020 = vsel %vm8163, %v9016, 0
        %9022 = vmatprep.subr.mxu0 0.0
        %9023 = vmatpush1.msra.mxu0 0.0
        %9024 = vmatprep.subr.mxu0 0.0
        %9025 = vmatpush1.msra.mxu0 0.0
        %9026 = vmatprep.subr.mxu0 0.0
        %9027 = vmatpush1.msra.mxu0 0.0
        %9028 = vmatprep.subr.mxu0 0.0
        %9029 = vmatpush1.msra.mxu0 0.0
        %9030 = vmatprep.subr.mxu0 0.0
        %9031 = vmatpush1.msra.mxu0 0.0
        %9032 = vmatprep.subr.mxu0 0.0
        %9033 = vmatpush1.msra.mxu0 0.0
        %9034 = vmatprep.subr.mxu0 0.0
        %9035 = vmatpush1.msra.mxu0 0.0
        %9036 = vmatprep.subr.mxu0 0.0
        %9037 = vmatpush1.msra.mxu0 0.0
        %9038 = vmatprep.subr.mxu0 0.0
        %9039 = vmatpush1.msra.mxu0 0.0
        %9040 = vmatprep.subr.mxu0 0.0
        %9041 = vmatpush1.msra.mxu0 0.0
        %9042 = vmatprep.subr.mxu0 0.0
        %9043 = vmatpush1.msra.mxu0 0.0
        %9044 = vmatprep.subr.mxu0 0.0
        %9045 = vmatpush1.msra.mxu0 0.0
        %9046 = vmatprep.subr.mxu0 0.0
        %9047 = vmatpush1.msra.mxu0 %v9015
        %9048 = vmatprep.subr.mxu0 0.0
        %9049 = vmatpush1.msra.mxu0 %v9014
        %9050 = vmatprep.subr.mxu0 0.0
        %9051 = vmatpush1.msra.mxu0 %v9013
        %9052 = vmatprep.subr.mxu0 0.0
        %9053 = vmatpush1.msra.mxu0 %v9012
        %9054 = vmatprep.subr.mxu0 0.0
        %9055 = vmatpush2.msra.mxu0 0.0
        %9056 = vmatprep.subr.mxu0 0.0
        %9057 = vmatpush2.msra.mxu0 0.0
        %9058 = vmatprep.subr.mxu0 0.0
        %9059 = vmatpush2.msra.mxu0 0.0
        %9060 = vmatprep.subr.mxu0 0.0
        %9061 = vmatpush2.msra.mxu0 0.0
        %9062 = vmatprep.subr.mxu0 0.0
        %9063 = vmatpush2.msra.mxu0 0.0
        %9064 = vmatprep.subr.mxu0 0.0
        %9065 = vmatpush2.msra.mxu0 0.0
        %9066 = vmatprep.subr.mxu0 0.0
        %9067 = vmatpush2.msra.mxu0 0.0
        %9068 = vmatprep.subr.mxu0 0.0
        %9069 = vmatpush2.msra.mxu0 0.0
        %9070 = vmatprep.subr.mxu0 0.0
        %9071 = vmatpush2.msra.mxu0 0.0
        %9072 = vmatprep.subr.mxu0 0.0
        %9073 = vmatpush2.msra.mxu0 0.0
        %9074 = vmatprep.subr.mxu0 0.0
        %9075 = vmatpush2.msra.mxu0 0.0
        %9076 = vmatprep.subr.mxu0 0.0
        %9077 = vmatpush2.msra.mxu0 0.0
        %9078 = vmatprep.subr.mxu0 0.0
        %9079 = vmatpush2.msra.mxu0 0.0
        %9080 = vmatprep.subr.mxu0 0.0
        %9081 = vmatpush2.msra.mxu0 0.0
        %9082 = vmatprep.subr.mxu0 0.0
        %9083 = vmatpush2.msra.mxu0 0.0
        %9084 = vmatprep.subr.mxu0 0.0
        %9085 = vmatpush2.msra.mxu0 0.0
        %9086 = vmatprep.mubr.f32.mxu0 0.0
        %9087 = vmatmul.mubr.f32.gmra.mxu0 %v8447
        %v9088 = vpop.f32.mrf.mxu0
        %v9089 = vadd.f32 0.0, %v9088
        %v9090 = vpop.f32.mrf.mxu0
        %9091 = vmatprep.mubr.f32.mxu0 0.0
        %9092 = vmatmul.mubr.f32.gmra.mxu0 %v9018
        %v9093 = vpop.f32.mrf.mxu0
        %v9094 = vadd.f32 0.0, %v9093
        %v9095 = vpop.f32.mrf.mxu0
        %9096 = vmatprep.mubr.f32.mxu0 0.0
        %9097 = vmatmul.mubr.f32.gmra.mxu0 %v9020
        %v9098 = vpop.f32.mrf.mxu0
        %v9099 = vadd.f32 0.0, %v9098
        %v9100 = vpop.f32.mrf.mxu0
        %9101 = vdwg.mxu0
        %v9102 = vadd.f32 %v9008, %v9089
        %v9103 = vadd.f32 %v9009, %v9094
        %v9104 = vadd.f32 %v9010, %v9099
        %s9105 = scalar_lea.vmem %s6, 320
        %v9106 = vld [vmem:[%s9105] sm:$0xff]
        %v9107 = vld [vmem:[%s9105 + $0x8] sm:$0xff]
        %v9108 = vld [vmem:[%s9105 + $0x10] sm:$0xff]
        %v9109 = vld [vmem:[%s9105 + $0x18] sm:$0xff]
        %v9110 = vrot.slane %v8140, 6
        %v9111 = vrot.slane %v8141, 6
        %v9112 = vsel %vm3701, %v9110, %v9111
        %v9113 = vrot.slane %v8142, 6
        %v9114 = vsel %vm3701, %v9111, %v9113
        %v9115 = vsel %vm8163, %v9112, 0
        %v9117 = vsel %vm8163, %v9114, 0
        %v9119 = vsel %vm8163, %v9113, 0
        %9121 = vmatprep.subr.mxu0 0.0
        %9122 = vmatpush1.msra.mxu0 0.0
        %9123 = vmatprep.subr.mxu0 0.0
        %9124 = vmatpush1.msra.mxu0 0.0
        %9125 = vmatprep.subr.mxu0 0.0
        %9126 = vmatpush1.msra.mxu0 0.0
        %9127 = vmatprep.subr.mxu0 0.0
        %9128 = vmatpush1.msra.mxu0 0.0
        %9129 = vmatprep.subr.mxu0 0.0
        %9130 = vmatpush1.msra.mxu0 0.0
        %9131 = vmatprep.subr.mxu0 0.0
        %9132 = vmatpush1.msra.mxu0 0.0
        %9133 = vmatprep.subr.mxu0 0.0
        %9134 = vmatpush1.msra.mxu0 0.0
        %9135 = vmatprep.subr.mxu0 0.0
        %9136 = vmatpush1.msra.mxu0 0.0
        %9137 = vmatprep.subr.mxu0 0.0
        %9138 = vmatpush1.msra.mxu0 0.0
        %9139 = vmatprep.subr.mxu0 0.0
        %9140 = vmatpush1.msra.mxu0 0.0
        %9141 = vmatprep.subr.mxu0 0.0
        %9142 = vmatpush1.msra.mxu0 0.0
        %9143 = vmatprep.subr.mxu0 0.0
        %9144 = vmatpush1.msra.mxu0 0.0
        %9145 = vmatprep.subr.mxu0 0.0
        %9146 = vmatpush1.msra.mxu0 %v9109
        %9147 = vmatprep.subr.mxu0 0.0
        %9148 = vmatpush1.msra.mxu0 %v9108
        %9149 = vmatprep.subr.mxu0 0.0
        %9150 = vmatpush1.msra.mxu0 %v9107
        %9151 = vmatprep.subr.mxu0 0.0
        %9152 = vmatpush1.msra.mxu0 %v9106
        %9153 = vmatprep.subr.mxu0 0.0
        %9154 = vmatpush2.msra.mxu0 0.0
        %9155 = vmatprep.subr.mxu0 0.0
        %9156 = vmatpush2.msra.mxu0 0.0
        %9157 = vmatprep.subr.mxu0 0.0
        %9158 = vmatpush2.msra.mxu0 0.0
        %9159 = vmatprep.subr.mxu0 0.0
        %9160 = vmatpush2.msra.mxu0 0.0
        %9161 = vmatprep.subr.mxu0 0.0
        %9162 = vmatpush2.msra.mxu0 0.0
        %9163 = vmatprep.subr.mxu0 0.0
        %9164 = vmatpush2.msra.mxu0 0.0
        %9165 = vmatprep.subr.mxu0 0.0
        %9166 = vmatpush2.msra.mxu0 0.0
        %9167 = vmatprep.subr.mxu0 0.0
        %9168 = vmatpush2.msra.mxu0 0.0
        %9169 = vmatprep.subr.mxu0 0.0
        %9170 = vmatpush2.msra.mxu0 0.0
        %9171 = vmatprep.subr.mxu0 0.0
        %9172 = vmatpush2.msra.mxu0 0.0
        %9173 = vmatprep.subr.mxu0 0.0
        %9174 = vmatpush2.msra.mxu0 0.0
        %9175 = vmatprep.subr.mxu0 0.0
        %9176 = vmatpush2.msra.mxu0 0.0
        %9177 = vmatprep.subr.mxu0 0.0
        %9178 = vmatpush2.msra.mxu0 0.0
        %9179 = vmatprep.subr.mxu0 0.0
        %9180 = vmatpush2.msra.mxu0 0.0
        %9181 = vmatprep.subr.mxu0 0.0
        %9182 = vmatpush2.msra.mxu0 0.0
        %9183 = vmatprep.subr.mxu0 0.0
        %9184 = vmatpush2.msra.mxu0 0.0
        %9185 = vmatprep.mubr.f32.mxu0 0.0
        %9186 = vmatmul.mubr.f32.gmra.mxu0 %v9115
        %v9187 = vpop.f32.mrf.mxu0
        %v9188 = vadd.f32 0.0, %v9187
        %v9189 = vpop.f32.mrf.mxu0
        %9190 = vmatprep.mubr.f32.mxu0 0.0
        %9191 = vmatmul.mubr.f32.gmra.mxu0 %v9117
        %v9192 = vpop.f32.mrf.mxu0
        %v9193 = vadd.f32 0.0, %v9192
        %v9194 = vpop.f32.mrf.mxu0
        %9195 = vmatprep.mubr.f32.mxu0 0.0
        %9196 = vmatmul.mubr.f32.gmra.mxu0 %v9119
        %v9197 = vpop.f32.mrf.mxu0
        %v9198 = vadd.f32 0.0, %v9197
        %v9199 = vpop.f32.mrf.mxu0
        %9200 = vdwg.mxu0
        %v9201 = vadd.f32 %v9102, %v9188
        %v9202 = vadd.f32 %v9103, %v9193
        %v9203 = vadd.f32 %v9104, %v9198
        %s9204 = scalar_lea.vmem %s6, 352
        %v9205 = vld [vmem:[%s9204] sm:$0xff]
        %v9206 = vld [vmem:[%s9204 + $0x8] sm:$0xff]
        %v9207 = vld [vmem:[%s9204 + $0x10] sm:$0xff]
        %v9208 = vld [vmem:[%s9204 + $0x18] sm:$0xff]
        %v9209 = vrot.slane %v8142, 7
        %v9210 = vsel %vm4813, %v8641, %v9209
        %v9211 = vsel %vm8163, %v9210, 0
        %v9213 = vsel %vm8163, %v9209, 0
        %9215 = vmatprep.subr.mxu0 0.0
        %9216 = vmatpush1.msra.mxu0 0.0
        %9217 = vmatprep.subr.mxu0 0.0
        %9218 = vmatpush1.msra.mxu0 0.0
        %9219 = vmatprep.subr.mxu0 0.0
        %9220 = vmatpush1.msra.mxu0 0.0
        %9221 = vmatprep.subr.mxu0 0.0
        %9222 = vmatpush1.msra.mxu0 0.0
        %9223 = vmatprep.subr.mxu0 0.0
        %9224 = vmatpush1.msra.mxu0 0.0
        %9225 = vmatprep.subr.mxu0 0.0
        %9226 = vmatpush1.msra.mxu0 0.0
        %9227 = vmatprep.subr.mxu0 0.0
        %9228 = vmatpush1.msra.mxu0 0.0
        %9229 = vmatprep.subr.mxu0 0.0
        %9230 = vmatpush1.msra.mxu0 0.0
        %9231 = vmatprep.subr.mxu0 0.0
        %9232 = vmatpush1.msra.mxu0 0.0
        %9233 = vmatprep.subr.mxu0 0.0
        %9234 = vmatpush1.msra.mxu0 0.0
        %9235 = vmatprep.subr.mxu0 0.0
        %9236 = vmatpush1.msra.mxu0 0.0
        %9237 = vmatprep.subr.mxu0 0.0
        %9238 = vmatpush1.msra.mxu0 0.0
        %9239 = vmatprep.subr.mxu0 0.0
        %9240 = vmatpush1.msra.mxu0 %v9208
        %9241 = vmatprep.subr.mxu0 0.0
        %9242 = vmatpush1.msra.mxu0 %v9207
        %9243 = vmatprep.subr.mxu0 0.0
        %9244 = vmatpush1.msra.mxu0 %v9206
        %9245 = vmatprep.subr.mxu0 0.0
        %9246 = vmatpush1.msra.mxu0 %v9205
        %9247 = vmatprep.subr.mxu0 0.0
        %9248 = vmatpush2.msra.mxu0 0.0
        %9249 = vmatprep.subr.mxu0 0.0
        %9250 = vmatpush2.msra.mxu0 0.0
        %9251 = vmatprep.subr.mxu0 0.0
        %9252 = vmatpush2.msra.mxu0 0.0
        %9253 = vmatprep.subr.mxu0 0.0
        %9254 = vmatpush2.msra.mxu0 0.0
        %9255 = vmatprep.subr.mxu0 0.0
        %9256 = vmatpush2.msra.mxu0 0.0
        %9257 = vmatprep.subr.mxu0 0.0
        %9258 = vmatpush2.msra.mxu0 0.0
        %9259 = vmatprep.subr.mxu0 0.0
        %9260 = vmatpush2.msra.mxu0 0.0
        %9261 = vmatprep.subr.mxu0 0.0
        %9262 = vmatpush2.msra.mxu0 0.0
        %9263 = vmatprep.subr.mxu0 0.0
        %9264 = vmatpush2.msra.mxu0 0.0
        %9265 = vmatprep.subr.mxu0 0.0
        %9266 = vmatpush2.msra.mxu0 0.0
        %9267 = vmatprep.subr.mxu0 0.0
        %9268 = vmatpush2.msra.mxu0 0.0
        %9269 = vmatprep.subr.mxu0 0.0
        %9270 = vmatpush2.msra.mxu0 0.0
        %9271 = vmatprep.subr.mxu0 0.0
        %9272 = vmatpush2.msra.mxu0 0.0
        %9273 = vmatprep.subr.mxu0 0.0
        %9274 = vmatpush2.msra.mxu0 0.0
        %9275 = vmatprep.subr.mxu0 0.0
        %9276 = vmatpush2.msra.mxu0 0.0
        %9277 = vmatprep.subr.mxu0 0.0
        %9278 = vmatpush2.msra.mxu0 0.0
        %9279 = vmatprep.mubr.f32.mxu0 0.0
        %9280 = vmatmul.mubr.f32.gmra.mxu0 %v8645
        %v9281 = vpop.f32.mrf.mxu0
        %v9282 = vadd.f32 0.0, %v9281
        %v9283 = vpop.f32.mrf.mxu0
        %9284 = vmatprep.mubr.f32.mxu0 0.0
        %9285 = vmatmul.mubr.f32.gmra.mxu0 %v9211
        %v9286 = vpop.f32.mrf.mxu0
        %v9287 = vadd.f32 0.0, %v9286
        %v9288 = vpop.f32.mrf.mxu0
        %9289 = vmatprep.mubr.f32.mxu0 0.0
        %9290 = vmatmul.mubr.f32.gmra.mxu0 %v9213
        %v9291 = vpop.f32.mrf.mxu0
        %v9292 = vadd.f32 0.0, %v9291
        %v9293 = vpop.f32.mrf.mxu0
        %9294 = vdwg.mxu0
        %v9295 = vadd.f32 %v9201, %v9282
        %v9296 = vadd.f32 %v9202, %v9287
        %v9297 = vadd.f32 %v9203, %v9292
        %s9298 = scalar_lea.vmem %s6, 384
        %v9299 = vld [vmem:[%s9298] sm:$0xff]
        %v9300 = vld [vmem:[%s9298 + $0x8] sm:$0xff]
        %v9301 = vld [vmem:[%s9298 + $0x10] sm:$0xff]
        %v9302 = vld [vmem:[%s9298 + $0x18] sm:$0xff]
        %v9304 = vsel %vm8163, %v8143, 0
        %9306 = vmatprep.subr.mxu0 0.0
        %9307 = vmatpush1.msra.mxu0 0.0
        %9308 = vmatprep.subr.mxu0 0.0
        %9309 = vmatpush1.msra.mxu0 0.0
        %9310 = vmatprep.subr.mxu0 0.0
        %9311 = vmatpush1.msra.mxu0 0.0
        %9312 = vmatprep.subr.mxu0 0.0
        %9313 = vmatpush1.msra.mxu0 0.0
        %9314 = vmatprep.subr.mxu0 0.0
        %9315 = vmatpush1.msra.mxu0 0.0
        %9316 = vmatprep.subr.mxu0 0.0
        %9317 = vmatpush1.msra.mxu0 0.0
        %9318 = vmatprep.subr.mxu0 0.0
        %9319 = vmatpush1.msra.mxu0 0.0
        %9320 = vmatprep.subr.mxu0 0.0
        %9321 = vmatpush1.msra.mxu0 0.0
        %9322 = vmatprep.subr.mxu0 0.0
        %9323 = vmatpush1.msra.mxu0 0.0
        %9324 = vmatprep.subr.mxu0 0.0
        %9325 = vmatpush1.msra.mxu0 0.0
        %9326 = vmatprep.subr.mxu0 0.0
        %9327 = vmatpush1.msra.mxu0 0.0
        %9328 = vmatprep.subr.mxu0 0.0
        %9329 = vmatpush1.msra.mxu0 0.0
        %9330 = vmatprep.subr.mxu0 0.0
        %9331 = vmatpush1.msra.mxu0 %v9302
        %9332 = vmatprep.subr.mxu0 0.0
        %9333 = vmatpush1.msra.mxu0 %v9301
        %9334 = vmatprep.subr.mxu0 0.0
        %9335 = vmatpush1.msra.mxu0 %v9300
        %9336 = vmatprep.subr.mxu0 0.0
        %9337 = vmatpush1.msra.mxu0 %v9299
        %9338 = vmatprep.subr.mxu0 0.0
        %9339 = vmatpush2.msra.mxu0 0.0
        %9340 = vmatprep.subr.mxu0 0.0
        %9341 = vmatpush2.msra.mxu0 0.0
        %9342 = vmatprep.subr.mxu0 0.0
        %9343 = vmatpush2.msra.mxu0 0.0
        %9344 = vmatprep.subr.mxu0 0.0
        %9345 = vmatpush2.msra.mxu0 0.0
        %9346 = vmatprep.subr.mxu0 0.0
        %9347 = vmatpush2.msra.mxu0 0.0
        %9348 = vmatprep.subr.mxu0 0.0
        %9349 = vmatpush2.msra.mxu0 0.0
        %9350 = vmatprep.subr.mxu0 0.0
        %9351 = vmatpush2.msra.mxu0 0.0
        %9352 = vmatprep.subr.mxu0 0.0
        %9353 = vmatpush2.msra.mxu0 0.0
        %9354 = vmatprep.subr.mxu0 0.0
        %9355 = vmatpush2.msra.mxu0 0.0
        %9356 = vmatprep.subr.mxu0 0.0
        %9357 = vmatpush2.msra.mxu0 0.0
        %9358 = vmatprep.subr.mxu0 0.0
        %9359 = vmatpush2.msra.mxu0 0.0
        %9360 = vmatprep.subr.mxu0 0.0
        %9361 = vmatpush2.msra.mxu0 0.0
        %9362 = vmatprep.subr.mxu0 0.0
        %9363 = vmatpush2.msra.mxu0 0.0
        %9364 = vmatprep.subr.mxu0 0.0
        %9365 = vmatpush2.msra.mxu0 0.0
        %9366 = vmatprep.subr.mxu0 0.0
        %9367 = vmatpush2.msra.mxu0 0.0
        %9368 = vmatprep.subr.mxu0 0.0
        %9369 = vmatpush2.msra.mxu0 0.0
        %9370 = vmatprep.mubr.f32.mxu0 0.0
        %9371 = vmatmul.mubr.f32.gmra.mxu0 %v8254
        %v9372 = vpop.f32.mrf.mxu0
        %v9373 = vadd.f32 0.0, %v9372
        %v9374 = vpop.f32.mrf.mxu0
        %9375 = vmatprep.mubr.f32.mxu0 0.0
        %9376 = vmatmul.mubr.f32.gmra.mxu0 %v8738
        %v9377 = vpop.f32.mrf.mxu0
        %v9378 = vadd.f32 0.0, %v9377
        %v9379 = vpop.f32.mrf.mxu0
        %9380 = vmatprep.mubr.f32.mxu0 0.0
        %9381 = vmatmul.mubr.f32.gmra.mxu0 %v9304
        %v9382 = vpop.f32.mrf.mxu0
        %v9383 = vadd.f32 0.0, %v9382
        %v9384 = vpop.f32.mrf.mxu0
        %9385 = vdwg.mxu0
        %v9386 = vadd.f32 %v9295, %v9373
        %v9387 = vadd.f32 %v9296, %v9378
        %v9388 = vadd.f32 %v9297, %v9383
        %s9389 = scalar_lea.vmem %s6, 416
        %v9390 = vld [vmem:[%s9389] sm:$0xff]
        %v9391 = vld [vmem:[%s9389 + $0x8] sm:$0xff]
        %v9392 = vld [vmem:[%s9389 + $0x10] sm:$0xff]
        %v9393 = vld [vmem:[%s9389 + $0x18] sm:$0xff]
        %v9394 = vrot.slane %v8143, 1
        %v9395 = vsel %vm911, %v8828, %v9394
        %v9396 = vsel %vm8163, %v9395, 0
        %v9398 = vsel %vm8163, %v9394, 0
        %9400 = vmatprep.subr.mxu0 0.0
        %9401 = vmatpush1.msra.mxu0 0.0
        %9402 = vmatprep.subr.mxu0 0.0
        %9403 = vmatpush1.msra.mxu0 0.0
        %9404 = vmatprep.subr.mxu0 0.0
        %9405 = vmatpush1.msra.mxu0 0.0
        %9406 = vmatprep.subr.mxu0 0.0
        %9407 = vmatpush1.msra.mxu0 0.0
        %9408 = vmatprep.subr.mxu0 0.0
        %9409 = vmatpush1.msra.mxu0 0.0
        %9410 = vmatprep.subr.mxu0 0.0
        %9411 = vmatpush1.msra.mxu0 0.0
        %9412 = vmatprep.subr.mxu0 0.0
        %9413 = vmatpush1.msra.mxu0 0.0
        %9414 = vmatprep.subr.mxu0 0.0
        %9415 = vmatpush1.msra.mxu0 0.0
        %9416 = vmatprep.subr.mxu0 0.0
        %9417 = vmatpush1.msra.mxu0 0.0
        %9418 = vmatprep.subr.mxu0 0.0
        %9419 = vmatpush1.msra.mxu0 0.0
        %9420 = vmatprep.subr.mxu0 0.0
        %9421 = vmatpush1.msra.mxu0 0.0
        %9422 = vmatprep.subr.mxu0 0.0
        %9423 = vmatpush1.msra.mxu0 0.0
        %9424 = vmatprep.subr.mxu0 0.0
        %9425 = vmatpush1.msra.mxu0 %v9393
        %9426 = vmatprep.subr.mxu0 0.0
        %9427 = vmatpush1.msra.mxu0 %v9392
        %9428 = vmatprep.subr.mxu0 0.0
        %9429 = vmatpush1.msra.mxu0 %v9391
        %9430 = vmatprep.subr.mxu0 0.0
        %9431 = vmatpush1.msra.mxu0 %v9390
        %9432 = vmatprep.subr.mxu0 0.0
        %9433 = vmatpush2.msra.mxu0 0.0
        %9434 = vmatprep.subr.mxu0 0.0
        %9435 = vmatpush2.msra.mxu0 0.0
        %9436 = vmatprep.subr.mxu0 0.0
        %9437 = vmatpush2.msra.mxu0 0.0
        %9438 = vmatprep.subr.mxu0 0.0
        %9439 = vmatpush2.msra.mxu0 0.0
        %9440 = vmatprep.subr.mxu0 0.0
        %9441 = vmatpush2.msra.mxu0 0.0
        %9442 = vmatprep.subr.mxu0 0.0
        %9443 = vmatpush2.msra.mxu0 0.0
        %9444 = vmatprep.subr.mxu0 0.0
        %9445 = vmatpush2.msra.mxu0 0.0
        %9446 = vmatprep.subr.mxu0 0.0
        %9447 = vmatpush2.msra.mxu0 0.0
        %9448 = vmatprep.subr.mxu0 0.0
        %9449 = vmatpush2.msra.mxu0 0.0
        %9450 = vmatprep.subr.mxu0 0.0
        %9451 = vmatpush2.msra.mxu0 0.0
        %9452 = vmatprep.subr.mxu0 0.0
        %9453 = vmatpush2.msra.mxu0 0.0
        %9454 = vmatprep.subr.mxu0 0.0
        %9455 = vmatpush2.msra.mxu0 0.0
        %9456 = vmatprep.subr.mxu0 0.0
        %9457 = vmatpush2.msra.mxu0 0.0
        %9458 = vmatprep.subr.mxu0 0.0
        %9459 = vmatpush2.msra.mxu0 0.0
        %9460 = vmatprep.subr.mxu0 0.0
        %9461 = vmatpush2.msra.mxu0 0.0
        %9462 = vmatprep.subr.mxu0 0.0
        %9463 = vmatpush2.msra.mxu0 0.0
        %9464 = vmatprep.mubr.f32.mxu0 0.0
        %9465 = vmatmul.mubr.f32.gmra.mxu0 %v8830
        %v9466 = vpop.f32.mrf.mxu0
        %v9467 = vadd.f32 0.0, %v9466
        %v9468 = vpop.f32.mrf.mxu0
        %9469 = vmatprep.mubr.f32.mxu0 0.0
        %9470 = vmatmul.mubr.f32.gmra.mxu0 %v9396
        %v9471 = vpop.f32.mrf.mxu0
        %v9472 = vadd.f32 0.0, %v9471
        %v9473 = vpop.f32.mrf.mxu0
        %9474 = vmatprep.mubr.f32.mxu0 0.0
        %9475 = vmatmul.mubr.f32.gmra.mxu0 %v9398
        %v9476 = vpop.f32.mrf.mxu0
        %v9477 = vadd.f32 0.0, %v9476
        %v9478 = vpop.f32.mrf.mxu0
        %9479 = vdwg.mxu0
        %v9480 = vadd.f32 %v9386, %v9467
        %v9481 = vadd.f32 %v9387, %v9472
        %v9482 = vadd.f32 %v9388, %v9477
        %s9483 = scalar_lea.vmem %s6, 448
        %v9484 = vld [vmem:[%s9483] sm:$0xff]
        %v9485 = vld [vmem:[%s9483 + $0x8] sm:$0xff]
        %v9486 = vld [vmem:[%s9483 + $0x10] sm:$0xff]
        %v9487 = vld [vmem:[%s9483 + $0x18] sm:$0xff]
        %v9488 = vrot.slane %v8143, 2
        %v9489 = vsel %vm1509, %v8922, %v9488
        %v9490 = vsel %vm8163, %v9489, 0
        %v9492 = vsel %vm8163, %v9488, 0
        %9494 = vmatprep.subr.mxu0 0.0
        %9495 = vmatpush1.msra.mxu0 0.0
        %9496 = vmatprep.subr.mxu0 0.0
        %9497 = vmatpush1.msra.mxu0 0.0
        %9498 = vmatprep.subr.mxu0 0.0
        %9499 = vmatpush1.msra.mxu0 0.0
        %9500 = vmatprep.subr.mxu0 0.0
        %9501 = vmatpush1.msra.mxu0 0.0
        %9502 = vmatprep.subr.mxu0 0.0
        %9503 = vmatpush1.msra.mxu0 0.0
        %9504 = vmatprep.subr.mxu0 0.0
        %9505 = vmatpush1.msra.mxu0 0.0
        %9506 = vmatprep.subr.mxu0 0.0
        %9507 = vmatpush1.msra.mxu0 0.0
        %9508 = vmatprep.subr.mxu0 0.0
        %9509 = vmatpush1.msra.mxu0 0.0
        %9510 = vmatprep.subr.mxu0 0.0
        %9511 = vmatpush1.msra.mxu0 0.0
        %9512 = vmatprep.subr.mxu0 0.0
        %9513 = vmatpush1.msra.mxu0 0.0
        %9514 = vmatprep.subr.mxu0 0.0
        %9515 = vmatpush1.msra.mxu0 0.0
        %9516 = vmatprep.subr.mxu0 0.0
        %9517 = vmatpush1.msra.mxu0 0.0
        %9518 = vmatprep.subr.mxu0 0.0
        %9519 = vmatpush1.msra.mxu0 %v9487
        %9520 = vmatprep.subr.mxu0 0.0
        %9521 = vmatpush1.msra.mxu0 %v9486
        %9522 = vmatprep.subr.mxu0 0.0
        %9523 = vmatpush1.msra.mxu0 %v9485
        %9524 = vmatprep.subr.mxu0 0.0
        %9525 = vmatpush1.msra.mxu0 %v9484
        %9526 = vmatprep.subr.mxu0 0.0
        %9527 = vmatpush2.msra.mxu0 0.0
        %9528 = vmatprep.subr.mxu0 0.0
        %9529 = vmatpush2.msra.mxu0 0.0
        %9530 = vmatprep.subr.mxu0 0.0
        %9531 = vmatpush2.msra.mxu0 0.0
        %9532 = vmatprep.subr.mxu0 0.0
        %9533 = vmatpush2.msra.mxu0 0.0
        %9534 = vmatprep.subr.mxu0 0.0
        %9535 = vmatpush2.msra.mxu0 0.0
        %9536 = vmatprep.subr.mxu0 0.0
        %9537 = vmatpush2.msra.mxu0 0.0
        %9538 = vmatprep.subr.mxu0 0.0
        %9539 = vmatpush2.msra.mxu0 0.0
        %9540 = vmatprep.subr.mxu0 0.0
        %9541 = vmatpush2.msra.mxu0 0.0
        %9542 = vmatprep.subr.mxu0 0.0
        %9543 = vmatpush2.msra.mxu0 0.0
        %9544 = vmatprep.subr.mxu0 0.0
        %9545 = vmatpush2.msra.mxu0 0.0
        %9546 = vmatprep.subr.mxu0 0.0
        %9547 = vmatpush2.msra.mxu0 0.0
        %9548 = vmatprep.subr.mxu0 0.0
        %9549 = vmatpush2.msra.mxu0 0.0
        %9550 = vmatprep.subr.mxu0 0.0
        %9551 = vmatpush2.msra.mxu0 0.0
        %9552 = vmatprep.subr.mxu0 0.0
        %9553 = vmatpush2.msra.mxu0 0.0
        %9554 = vmatprep.subr.mxu0 0.0
        %9555 = vmatpush2.msra.mxu0 0.0
        %9556 = vmatprep.subr.mxu0 0.0
        %9557 = vmatpush2.msra.mxu0 0.0
        %9558 = vmatprep.mubr.f32.mxu0 0.0
        %9559 = vmatmul.mubr.f32.gmra.mxu0 %v8924
        %v9560 = vpop.f32.mrf.mxu0
        %v9561 = vadd.f32 0.0, %v9560
        %v9562 = vpop.f32.mrf.mxu0
        %9563 = vmatprep.mubr.f32.mxu0 0.0
        %9564 = vmatmul.mubr.f32.gmra.mxu0 %v9490
        %v9565 = vpop.f32.mrf.mxu0
        %v9566 = vadd.f32 0.0, %v9565
        %v9567 = vpop.f32.mrf.mxu0
        %9568 = vmatprep.mubr.f32.mxu0 0.0
        %9569 = vmatmul.mubr.f32.gmra.mxu0 %v9492
        %v9570 = vpop.f32.mrf.mxu0
        %v9571 = vadd.f32 0.0, %v9570
        %v9572 = vpop.f32.mrf.mxu0
        %9573 = vdwg.mxu0
        %v9574 = vadd.f32 %v9480, %v9561
        %v9575 = vadd.f32 %v9481, %v9566
        %v9576 = vadd.f32 %v9482, %v9571
        %s9577 = scalar_lea.vmem %s6, 480
        %v9578 = vld [vmem:[%s9577] sm:$0xff]
        %v9579 = vld [vmem:[%s9577 + $0x8] sm:$0xff]
        %v9580 = vld [vmem:[%s9577 + $0x10] sm:$0xff]
        %v9581 = vld [vmem:[%s9577 + $0x18] sm:$0xff]
        %v9582 = vrot.slane %v8141, 5
        %v9583 = vrot.slane %v8142, 5
        %v9584 = vsel %vm566, %v9582, %v9583
        %v9585 = vrot.slane %v8143, 5
        %v9586 = vsel %vm566, %v9583, %v9585
        %v9587 = vsel %vm8163, %v9584, 0
        %v9589 = vsel %vm8163, %v9586, 0
        %v9591 = vsel %vm8163, %v9585, 0
        %9593 = vmatprep.subr.mxu0 0.0
        %9594 = vmatpush1.msra.mxu0 0.0
        %9595 = vmatprep.subr.mxu0 0.0
        %9596 = vmatpush1.msra.mxu0 0.0
        %9597 = vmatprep.subr.mxu0 0.0
        %9598 = vmatpush1.msra.mxu0 0.0
        %9599 = vmatprep.subr.mxu0 0.0
        %9600 = vmatpush1.msra.mxu0 0.0
        %9601 = vmatprep.subr.mxu0 0.0
        %9602 = vmatpush1.msra.mxu0 0.0
        %9603 = vmatprep.subr.mxu0 0.0
        %9604 = vmatpush1.msra.mxu0 0.0
        %9605 = vmatprep.subr.mxu0 0.0
        %9606 = vmatpush1.msra.mxu0 0.0
        %9607 = vmatprep.subr.mxu0 0.0
        %9608 = vmatpush1.msra.mxu0 0.0
        %9609 = vmatprep.subr.mxu0 0.0
        %9610 = vmatpush1.msra.mxu0 0.0
        %9611 = vmatprep.subr.mxu0 0.0
        %9612 = vmatpush1.msra.mxu0 0.0
        %9613 = vmatprep.subr.mxu0 0.0
        %9614 = vmatpush1.msra.mxu0 0.0
        %9615 = vmatprep.subr.mxu0 0.0
        %9616 = vmatpush1.msra.mxu0 0.0
        %9617 = vmatprep.subr.mxu0 0.0
        %9618 = vmatpush1.msra.mxu0 %v9581
        %9619 = vmatprep.subr.mxu0 0.0
        %9620 = vmatpush1.msra.mxu0 %v9580
        %9621 = vmatprep.subr.mxu0 0.0
        %9622 = vmatpush1.msra.mxu0 %v9579
        %9623 = vmatprep.subr.mxu0 0.0
        %9624 = vmatpush1.msra.mxu0 %v9578
        %9625 = vmatprep.subr.mxu0 0.0
        %9626 = vmatpush2.msra.mxu0 0.0
        %9627 = vmatprep.subr.mxu0 0.0
        %9628 = vmatpush2.msra.mxu0 0.0
        %9629 = vmatprep.subr.mxu0 0.0
        %9630 = vmatpush2.msra.mxu0 0.0
        %9631 = vmatprep.subr.mxu0 0.0
        %9632 = vmatpush2.msra.mxu0 0.0
        %9633 = vmatprep.subr.mxu0 0.0
        %9634 = vmatpush2.msra.mxu0 0.0
        %9635 = vmatprep.subr.mxu0 0.0
        %9636 = vmatpush2.msra.mxu0 0.0
        %9637 = vmatprep.subr.mxu0 0.0
        %9638 = vmatpush2.msra.mxu0 0.0
        %9639 = vmatprep.subr.mxu0 0.0
        %9640 = vmatpush2.msra.mxu0 0.0
        %9641 = vmatprep.subr.mxu0 0.0
        %9642 = vmatpush2.msra.mxu0 0.0
        %9643 = vmatprep.subr.mxu0 0.0
        %9644 = vmatpush2.msra.mxu0 0.0
        %9645 = vmatprep.subr.mxu0 0.0
        %9646 = vmatpush2.msra.mxu0 0.0
        %9647 = vmatprep.subr.mxu0 0.0
        %9648 = vmatpush2.msra.mxu0 0.0
        %9649 = vmatprep.subr.mxu0 0.0
        %9650 = vmatpush2.msra.mxu0 0.0
        %9651 = vmatprep.subr.mxu0 0.0
        %9652 = vmatpush2.msra.mxu0 0.0
        %9653 = vmatprep.subr.mxu0 0.0
        %9654 = vmatpush2.msra.mxu0 0.0
        %9655 = vmatprep.subr.mxu0 0.0
        %9656 = vmatpush2.msra.mxu0 0.0
        %9657 = vmatprep.mubr.f32.mxu0 0.0
        %9658 = vmatmul.mubr.f32.gmra.mxu0 %v9587
        %v9659 = vpop.f32.mrf.mxu0
        %v9660 = vadd.f32 0.0, %v9659
        %v9661 = vpop.f32.mrf.mxu0
        %9662 = vmatprep.mubr.f32.mxu0 0.0
        %9663 = vmatmul.mubr.f32.gmra.mxu0 %v9589
        %v9664 = vpop.f32.mrf.mxu0
        %v9665 = vadd.f32 0.0, %v9664
        %v9666 = vpop.f32.mrf.mxu0
        %9667 = vmatprep.mubr.f32.mxu0 0.0
        %9668 = vmatmul.mubr.f32.gmra.mxu0 %v9591
        %v9669 = vpop.f32.mrf.mxu0
        %v9670 = vadd.f32 0.0, %v9669
        %v9671 = vpop.f32.mrf.mxu0
        %9672 = vdwg.mxu0
        %v9673 = vadd.f32 %v9574, %v9660
        %v9674 = vadd.f32 %v9575, %v9665
        %v9675 = vadd.f32 %v9576, %v9670
        %s9676 = scalar_lea.vmem %s6, 512
        %v9677 = vld [vmem:[%s9676] sm:$0xff]
        %v9678 = vld [vmem:[%s9676 + $0x8] sm:$0xff]
        %v9679 = vld [vmem:[%s9676 + $0x10] sm:$0xff]
        %v9680 = vld [vmem:[%s9676 + $0x18] sm:$0xff]
        %v9681 = vrot.slane %v8143, 6
        %v9682 = vsel %vm3701, %v9113, %v9681
        %v9683 = vsel %vm8163, %v9682, 0
        %v9685 = vsel %vm8163, %v9681, 0
        %9687 = vmatprep.subr.mxu0 0.0
        %9688 = vmatpush1.msra.mxu0 0.0
        %9689 = vmatprep.subr.mxu0 0.0
        %9690 = vmatpush1.msra.mxu0 0.0
        %9691 = vmatprep.subr.mxu0 0.0
        %9692 = vmatpush1.msra.mxu0 0.0
        %9693 = vmatprep.subr.mxu0 0.0
        %9694 = vmatpush1.msra.mxu0 0.0
        %9695 = vmatprep.subr.mxu0 0.0
        %9696 = vmatpush1.msra.mxu0 0.0
        %9697 = vmatprep.subr.mxu0 0.0
        %9698 = vmatpush1.msra.mxu0 0.0
        %9699 = vmatprep.subr.mxu0 0.0
        %9700 = vmatpush1.msra.mxu0 0.0
        %9701 = vmatprep.subr.mxu0 0.0
        %9702 = vmatpush1.msra.mxu0 0.0
        %9703 = vmatprep.subr.mxu0 0.0
        %9704 = vmatpush1.msra.mxu0 0.0
        %9705 = vmatprep.subr.mxu0 0.0
        %9706 = vmatpush1.msra.mxu0 0.0
        %9707 = vmatprep.subr.mxu0 0.0
        %9708 = vmatpush1.msra.mxu0 0.0
        %9709 = vmatprep.subr.mxu0 0.0
        %9710 = vmatpush1.msra.mxu0 0.0
        %9711 = vmatprep.subr.mxu0 0.0
        %9712 = vmatpush1.msra.mxu0 %v9680
        %9713 = vmatprep.subr.mxu0 0.0
        %9714 = vmatpush1.msra.mxu0 %v9679
        %9715 = vmatprep.subr.mxu0 0.0
        %9716 = vmatpush1.msra.mxu0 %v9678
        %9717 = vmatprep.subr.mxu0 0.0
        %9718 = vmatpush1.msra.mxu0 %v9677
        %9719 = vmatprep.subr.mxu0 0.0
        %9720 = vmatpush2.msra.mxu0 0.0
        %9721 = vmatprep.subr.mxu0 0.0
        %9722 = vmatpush2.msra.mxu0 0.0
        %9723 = vmatprep.subr.mxu0 0.0
        %9724 = vmatpush2.msra.mxu0 0.0
        %9725 = vmatprep.subr.mxu0 0.0
        %9726 = vmatpush2.msra.mxu0 0.0
        %9727 = vmatprep.subr.mxu0 0.0
        %9728 = vmatpush2.msra.mxu0 0.0
        %9729 = vmatprep.subr.mxu0 0.0
        %9730 = vmatpush2.msra.mxu0 0.0
        %9731 = vmatprep.subr.mxu0 0.0
        %9732 = vmatpush2.msra.mxu0 0.0
        %9733 = vmatprep.subr.mxu0 0.0
        %9734 = vmatpush2.msra.mxu0 0.0
        %9735 = vmatprep.subr.mxu0 0.0
        %9736 = vmatpush2.msra.mxu0 0.0
        %9737 = vmatprep.subr.mxu0 0.0
        %9738 = vmatpush2.msra.mxu0 0.0
        %9739 = vmatprep.subr.mxu0 0.0
        %9740 = vmatpush2.msra.mxu0 0.0
        %9741 = vmatprep.subr.mxu0 0.0
        %9742 = vmatpush2.msra.mxu0 0.0
        %9743 = vmatprep.subr.mxu0 0.0
        %9744 = vmatpush2.msra.mxu0 0.0
        %9745 = vmatprep.subr.mxu0 0.0
        %9746 = vmatpush2.msra.mxu0 0.0
        %9747 = vmatprep.subr.mxu0 0.0
        %9748 = vmatpush2.msra.mxu0 0.0
        %9749 = vmatprep.subr.mxu0 0.0
        %9750 = vmatpush2.msra.mxu0 0.0
        %9751 = vmatprep.mubr.f32.mxu0 0.0
        %9752 = vmatmul.mubr.f32.gmra.mxu0 %v9117
        %v9753 = vpop.f32.mrf.mxu0
        %v9754 = vadd.f32 0.0, %v9753
        %v9755 = vpop.f32.mrf.mxu0
        %9756 = vmatprep.mubr.f32.mxu0 0.0
        %9757 = vmatmul.mubr.f32.gmra.mxu0 %v9683
        %v9758 = vpop.f32.mrf.mxu0
        %v9759 = vadd.f32 0.0, %v9758
        %v9760 = vpop.f32.mrf.mxu0
        %9761 = vmatprep.mubr.f32.mxu0 0.0
        %9762 = vmatmul.mubr.f32.gmra.mxu0 %v9685
        %v9763 = vpop.f32.mrf.mxu0
        %v9764 = vadd.f32 0.0, %v9763
        %v9765 = vpop.f32.mrf.mxu0
        %9766 = vdwg.mxu0
        %v9767 = vadd.f32 %v9673, %v9754
        %v9768 = vadd.f32 %v9674, %v9759
        %v9769 = vadd.f32 %v9675, %v9764
        %s9770 = scalar_lea.vmem %s6, 544
        %v9771 = vld [vmem:[%s9770] sm:$0xff]
        %v9772 = vld [vmem:[%s9770 + $0x8] sm:$0xff]
        %v9773 = vld [vmem:[%s9770 + $0x10] sm:$0xff]
        %v9774 = vld [vmem:[%s9770 + $0x18] sm:$0xff]
        %v9775 = vrot.slane %v8143, 7
        %v9776 = vsel %vm4813, %v9209, %v9775
        %v9777 = vsel %vm8163, %v9776, 0
        %v9779 = vsel %vm8163, %v9775, 0
        %9781 = vmatprep.subr.mxu0 0.0
        %9782 = vmatpush1.msra.mxu0 0.0
        %9783 = vmatprep.subr.mxu0 0.0
        %9784 = vmatpush1.msra.mxu0 0.0
        %9785 = vmatprep.subr.mxu0 0.0
        %9786 = vmatpush1.msra.mxu0 0.0
        %9787 = vmatprep.subr.mxu0 0.0
        %9788 = vmatpush1.msra.mxu0 0.0
        %9789 = vmatprep.subr.mxu0 0.0
        %9790 = vmatpush1.msra.mxu0 0.0
        %9791 = vmatprep.subr.mxu0 0.0
        %9792 = vmatpush1.msra.mxu0 0.0
        %9793 = vmatprep.subr.mxu0 0.0
        %9794 = vmatpush1.msra.mxu0 0.0
        %9795 = vmatprep.subr.mxu0 0.0
        %9796 = vmatpush1.msra.mxu0 0.0
        %9797 = vmatprep.subr.mxu0 0.0
        %9798 = vmatpush1.msra.mxu0 0.0
        %9799 = vmatprep.subr.mxu0 0.0
        %9800 = vmatpush1.msra.mxu0 0.0
        %9801 = vmatprep.subr.mxu0 0.0
        %9802 = vmatpush1.msra.mxu0 0.0
        %9803 = vmatprep.subr.mxu0 0.0
        %9804 = vmatpush1.msra.mxu0 0.0
        %9805 = vmatprep.subr.mxu0 0.0
        %9806 = vmatpush1.msra.mxu0 %v9774
        %9807 = vmatprep.subr.mxu0 0.0
        %9808 = vmatpush1.msra.mxu0 %v9773
        %9809 = vmatprep.subr.mxu0 0.0
        %9810 = vmatpush1.msra.mxu0 %v9772
        %9811 = vmatprep.subr.mxu0 0.0
        %9812 = vmatpush1.msra.mxu0 %v9771
        %9813 = vmatprep.subr.mxu0 0.0
        %9814 = vmatpush2.msra.mxu0 0.0
        %9815 = vmatprep.subr.mxu0 0.0
        %9816 = vmatpush2.msra.mxu0 0.0
        %9817 = vmatprep.subr.mxu0 0.0
        %9818 = vmatpush2.msra.mxu0 0.0
        %9819 = vmatprep.subr.mxu0 0.0
        %9820 = vmatpush2.msra.mxu0 0.0
        %9821 = vmatprep.subr.mxu0 0.0
        %9822 = vmatpush2.msra.mxu0 0.0
        %9823 = vmatprep.subr.mxu0 0.0
        %9824 = vmatpush2.msra.mxu0 0.0
        %9825 = vmatprep.subr.mxu0 0.0
        %9826 = vmatpush2.msra.mxu0 0.0
        %9827 = vmatprep.subr.mxu0 0.0
        %9828 = vmatpush2.msra.mxu0 0.0
        %9829 = vmatprep.subr.mxu0 0.0
        %9830 = vmatpush2.msra.mxu0 0.0
        %9831 = vmatprep.subr.mxu0 0.0
        %9832 = vmatpush2.msra.mxu0 0.0
        %9833 = vmatprep.subr.mxu0 0.0
        %9834 = vmatpush2.msra.mxu0 0.0
        %9835 = vmatprep.subr.mxu0 0.0
        %9836 = vmatpush2.msra.mxu0 0.0
        %9837 = vmatprep.subr.mxu0 0.0
        %9838 = vmatpush2.msra.mxu0 0.0
        %9839 = vmatprep.subr.mxu0 0.0
        %9840 = vmatpush2.msra.mxu0 0.0
        %9841 = vmatprep.subr.mxu0 0.0
        %9842 = vmatpush2.msra.mxu0 0.0
        %9843 = vmatprep.subr.mxu0 0.0
        %9844 = vmatpush2.msra.mxu0 0.0
        %9845 = vmatprep.mubr.f32.mxu0 0.0
        %9846 = vmatmul.mubr.f32.gmra.mxu0 %v9211
        %v9847 = vpop.f32.mrf.mxu0
        %v9848 = vadd.f32 0.0, %v9847
        %v9849 = vpop.f32.mrf.mxu0
        %9850 = vmatprep.mubr.f32.mxu0 0.0
        %9851 = vmatmul.mubr.f32.gmra.mxu0 %v9777
        %v9852 = vpop.f32.mrf.mxu0
        %v9853 = vadd.f32 0.0, %v9852
        %v9854 = vpop.f32.mrf.mxu0
        %9855 = vmatprep.mubr.f32.mxu0 0.0
        %9856 = vmatmul.mubr.f32.gmra.mxu0 %v9779
        %v9857 = vpop.f32.mrf.mxu0
        %v9858 = vadd.f32 0.0, %v9857
        %v9859 = vpop.f32.mrf.mxu0
        %9860 = vdwg.mxu0
        %v9861 = vadd.f32 %v9767, %v9848
        %v9862 = vadd.f32 %v9768, %v9853
        %v9863 = vadd.f32 %v9769, %v9858
        %s9864 = scalar_lea.vmem %s6, 576
        %v9865 = vld [vmem:[%s9864] sm:$0xff]
        %v9866 = vld [vmem:[%s9864 + $0x8] sm:$0xff]
        %v9867 = vld [vmem:[%s9864 + $0x10] sm:$0xff]
        %v9868 = vld [vmem:[%s9864 + $0x18] sm:$0xff]
        %v9870 = vsel %vm8163, %v8144, 0
        %9872 = vmatprep.subr.mxu0 0.0
        %9873 = vmatpush1.msra.mxu0 0.0
        %9874 = vmatprep.subr.mxu0 0.0
        %9875 = vmatpush1.msra.mxu0 0.0
        %9876 = vmatprep.subr.mxu0 0.0
        %9877 = vmatpush1.msra.mxu0 0.0
        %9878 = vmatprep.subr.mxu0 0.0
        %9879 = vmatpush1.msra.mxu0 0.0
        %9880 = vmatprep.subr.mxu0 0.0
        %9881 = vmatpush1.msra.mxu0 0.0
        %9882 = vmatprep.subr.mxu0 0.0
        %9883 = vmatpush1.msra.mxu0 0.0
        %9884 = vmatprep.subr.mxu0 0.0
        %9885 = vmatpush1.msra.mxu0 0.0
        %9886 = vmatprep.subr.mxu0 0.0
        %9887 = vmatpush1.msra.mxu0 0.0
        %9888 = vmatprep.subr.mxu0 0.0
        %9889 = vmatpush1.msra.mxu0 0.0
        %9890 = vmatprep.subr.mxu0 0.0
        %9891 = vmatpush1.msra.mxu0 0.0
        %9892 = vmatprep.subr.mxu0 0.0
        %9893 = vmatpush1.msra.mxu0 0.0
        %9894 = vmatprep.subr.mxu0 0.0
        %9895 = vmatpush1.msra.mxu0 0.0
        %9896 = vmatprep.subr.mxu0 0.0
        %9897 = vmatpush1.msra.mxu0 %v9868
        %9898 = vmatprep.subr.mxu0 0.0
        %9899 = vmatpush1.msra.mxu0 %v9867
        %9900 = vmatprep.subr.mxu0 0.0
        %9901 = vmatpush1.msra.mxu0 %v9866
        %9902 = vmatprep.subr.mxu0 0.0
        %9903 = vmatpush1.msra.mxu0 %v9865
        %9904 = vmatprep.subr.mxu0 0.0
        %9905 = vmatpush2.msra.mxu0 0.0
        %9906 = vmatprep.subr.mxu0 0.0
        %9907 = vmatpush2.msra.mxu0 0.0
        %9908 = vmatprep.subr.mxu0 0.0
        %9909 = vmatpush2.msra.mxu0 0.0
        %9910 = vmatprep.subr.mxu0 0.0
        %9911 = vmatpush2.msra.mxu0 0.0
        %9912 = vmatprep.subr.mxu0 0.0
        %9913 = vmatpush2.msra.mxu0 0.0
        %9914 = vmatprep.subr.mxu0 0.0
        %9915 = vmatpush2.msra.mxu0 0.0
        %9916 = vmatprep.subr.mxu0 0.0
        %9917 = vmatpush2.msra.mxu0 0.0
        %9918 = vmatprep.subr.mxu0 0.0
        %9919 = vmatpush2.msra.mxu0 0.0
        %9920 = vmatprep.subr.mxu0 0.0
        %9921 = vmatpush2.msra.mxu0 0.0
        %9922 = vmatprep.subr.mxu0 0.0
        %9923 = vmatpush2.msra.mxu0 0.0
        %9924 = vmatprep.subr.mxu0 0.0
        %9925 = vmatpush2.msra.mxu0 0.0
        %9926 = vmatprep.subr.mxu0 0.0
        %9927 = vmatpush2.msra.mxu0 0.0
        %9928 = vmatprep.subr.mxu0 0.0
        %9929 = vmatpush2.msra.mxu0 0.0
        %9930 = vmatprep.subr.mxu0 0.0
        %9931 = vmatpush2.msra.mxu0 0.0
        %9932 = vmatprep.subr.mxu0 0.0
        %9933 = vmatpush2.msra.mxu0 0.0
        %9934 = vmatprep.subr.mxu0 0.0
        %9935 = vmatpush2.msra.mxu0 0.0
        %9936 = vmatprep.mubr.f32.mxu0 0.0
        %9937 = vmatmul.mubr.f32.gmra.mxu0 %v8738
        %v9938 = vpop.f32.mrf.mxu0
        %v9939 = vadd.f32 0.0, %v9938
        %v9940 = vpop.f32.mrf.mxu0
        %9941 = vmatprep.mubr.f32.mxu0 0.0
        %9942 = vmatmul.mubr.f32.gmra.mxu0 %v9304
        %v9943 = vpop.f32.mrf.mxu0
        %v9944 = vadd.f32 0.0, %v9943
        %v9945 = vpop.f32.mrf.mxu0
        %9946 = vmatprep.mubr.f32.mxu0 0.0
        %9947 = vmatmul.mubr.f32.gmra.mxu0 %v9870
        %v9948 = vpop.f32.mrf.mxu0
        %v9949 = vadd.f32 0.0, %v9948
        %v9950 = vpop.f32.mrf.mxu0
        %9951 = vdwg.mxu0
        %v9952 = vadd.f32 %v9861, %v9939
        %v9953 = vadd.f32 %v9862, %v9944
        %v9954 = vadd.f32 %v9863, %v9949
        %s9955 = scalar_lea.vmem %s6, 608
        %v9956 = vld [vmem:[%s9955] sm:$0xff]
        %v9957 = vld [vmem:[%s9955 + $0x8] sm:$0xff]
        %v9958 = vld [vmem:[%s9955 + $0x10] sm:$0xff]
        %v9959 = vld [vmem:[%s9955 + $0x18] sm:$0xff]
        %v9960 = vrot.slane %v8144, 1
        %v9961 = vsel %vm911, %v9394, %v9960
        %v9962 = vsel %vm8163, %v9961, 0
        %v9964 = vsel %vm8163, %v9960, 0
        %9966 = vmatprep.subr.mxu0 0.0
        %9967 = vmatpush1.msra.mxu0 0.0
        %9968 = vmatprep.subr.mxu0 0.0
        %9969 = vmatpush1.msra.mxu0 0.0
        %9970 = vmatprep.subr.mxu0 0.0
        %9971 = vmatpush1.msra.mxu0 0.0
        %9972 = vmatprep.subr.mxu0 0.0
        %9973 = vmatpush1.msra.mxu0 0.0
        %9974 = vmatprep.subr.mxu0 0.0
        %9975 = vmatpush1.msra.mxu0 0.0
        %9976 = vmatprep.subr.mxu0 0.0
        %9977 = vmatpush1.msra.mxu0 0.0
        %9978 = vmatprep.subr.mxu0 0.0
        %9979 = vmatpush1.msra.mxu0 0.0
        %9980 = vmatprep.subr.mxu0 0.0
        %9981 = vmatpush1.msra.mxu0 0.0
        %9982 = vmatprep.subr.mxu0 0.0
        %9983 = vmatpush1.msra.mxu0 0.0
        %9984 = vmatprep.subr.mxu0 0.0
        %9985 = vmatpush1.msra.mxu0 0.0
        %9986 = vmatprep.subr.mxu0 0.0
        %9987 = vmatpush1.msra.mxu0 0.0
        %9988 = vmatprep.subr.mxu0 0.0
        %9989 = vmatpush1.msra.mxu0 0.0
        %9990 = vmatprep.subr.mxu0 0.0
        %9991 = vmatpush1.msra.mxu0 %v9959
        %9992 = vmatprep.subr.mxu0 0.0
        %9993 = vmatpush1.msra.mxu0 %v9958
        %9994 = vmatprep.subr.mxu0 0.0
        %9995 = vmatpush1.msra.mxu0 %v9957
        %9996 = vmatprep.subr.mxu0 0.0
        %9997 = vmatpush1.msra.mxu0 %v9956
        %9998 = vmatprep.subr.mxu0 0.0
        %9999 = vmatpush2.msra.mxu0 0.0
        %10000 = vmatprep.subr.mxu0 0.0
        %10001 = vmatpush2.msra.mxu0 0.0
        %10002 = vmatprep.subr.mxu0 0.0
        %10003 = vmatpush2.msra.mxu0 0.0
        %10004 = vmatprep.subr.mxu0 0.0
        %10005 = vmatpush2.msra.mxu0 0.0
        %10006 = vmatprep.subr.mxu0 0.0
        %10007 = vmatpush2.msra.mxu0 0.0
        %10008 = vmatprep.subr.mxu0 0.0
        %10009 = vmatpush2.msra.mxu0 0.0
        %10010 = vmatprep.subr.mxu0 0.0
        %10011 = vmatpush2.msra.mxu0 0.0
        %10012 = vmatprep.subr.mxu0 0.0
        %10013 = vmatpush2.msra.mxu0 0.0
        %10014 = vmatprep.subr.mxu0 0.0
        %10015 = vmatpush2.msra.mxu0 0.0
        %10016 = vmatprep.subr.mxu0 0.0
        %10017 = vmatpush2.msra.mxu0 0.0
        %10018 = vmatprep.subr.mxu0 0.0
        %10019 = vmatpush2.msra.mxu0 0.0
        %10020 = vmatprep.subr.mxu0 0.0
        %10021 = vmatpush2.msra.mxu0 0.0
        %10022 = vmatprep.subr.mxu0 0.0
        %10023 = vmatpush2.msra.mxu0 0.0
        %10024 = vmatprep.subr.mxu0 0.0
        %10025 = vmatpush2.msra.mxu0 0.0
        %10026 = vmatprep.subr.mxu0 0.0
        %10027 = vmatpush2.msra.mxu0 0.0
        %10028 = vmatprep.subr.mxu0 0.0
        %10029 = vmatpush2.msra.mxu0 0.0
        %10030 = vmatprep.mubr.f32.mxu0 0.0
        %10031 = vmatmul.mubr.f32.gmra.mxu0 %v9396
        %v10032 = vpop.f32.mrf.mxu0
        %v10033 = vadd.f32 0.0, %v10032
        %v10034 = vpop.f32.mrf.mxu0
        %10035 = vmatprep.mubr.f32.mxu0 0.0
        %10036 = vmatmul.mubr.f32.gmra.mxu0 %v9962
        %v10037 = vpop.f32.mrf.mxu0
        %v10038 = vadd.f32 0.0, %v10037
        %v10039 = vpop.f32.mrf.mxu0
        %10040 = vmatprep.mubr.f32.mxu0 0.0
        %10041 = vmatmul.mubr.f32.gmra.mxu0 %v9964
        %v10042 = vpop.f32.mrf.mxu0
        %v10043 = vadd.f32 0.0, %v10042
        %v10044 = vpop.f32.mrf.mxu0
        %10045 = vdwg.mxu0
        %v10046 = vadd.f32 %v9952, %v10033
        %v10047 = vadd.f32 %v9953, %v10038
        %v10048 = vadd.f32 %v9954, %v10043
        %s10049 = scalar_lea.vmem %s6, 640
        %v10050 = vld [vmem:[%s10049] sm:$0xff]
        %v10051 = vld [vmem:[%s10049 + $0x8] sm:$0xff]
        %v10052 = vld [vmem:[%s10049 + $0x10] sm:$0xff]
        %v10053 = vld [vmem:[%s10049 + $0x18] sm:$0xff]
        %v10054 = vrot.slane %v8142, 4
        %v10055 = vrot.slane %v8143, 4
        %v10056 = vsel %vm2226, %v10054, %v10055
        %v10057 = vrot.slane %v8144, 4
        %v10058 = vsel %vm2226, %v10055, %v10057
        %v10059 = vsel %vm8163, %v10056, 0
        %v10061 = vsel %vm8163, %v10058, 0
        %v10063 = vsel %vm8163, %v10057, 0
        %10065 = vmatprep.subr.mxu0 0.0
        %10066 = vmatpush1.msra.mxu0 0.0
        %10067 = vmatprep.subr.mxu0 0.0
        %10068 = vmatpush1.msra.mxu0 0.0
        %10069 = vmatprep.subr.mxu0 0.0
        %10070 = vmatpush1.msra.mxu0 0.0
        %10071 = vmatprep.subr.mxu0 0.0
        %10072 = vmatpush1.msra.mxu0 0.0
        %10073 = vmatprep.subr.mxu0 0.0
        %10074 = vmatpush1.msra.mxu0 0.0
        %10075 = vmatprep.subr.mxu0 0.0
        %10076 = vmatpush1.msra.mxu0 0.0
        %10077 = vmatprep.subr.mxu0 0.0
        %10078 = vmatpush1.msra.mxu0 0.0
        %10079 = vmatprep.subr.mxu0 0.0
        %10080 = vmatpush1.msra.mxu0 0.0
        %10081 = vmatprep.subr.mxu0 0.0
        %10082 = vmatpush1.msra.mxu0 0.0
        %10083 = vmatprep.subr.mxu0 0.0
        %10084 = vmatpush1.msra.mxu0 0.0
        %10085 = vmatprep.subr.mxu0 0.0
        %10086 = vmatpush1.msra.mxu0 0.0
        %10087 = vmatprep.subr.mxu0 0.0
        %10088 = vmatpush1.msra.mxu0 0.0
        %10089 = vmatprep.subr.mxu0 0.0
        %10090 = vmatpush1.msra.mxu0 %v10053
        %10091 = vmatprep.subr.mxu0 0.0
        %10092 = vmatpush1.msra.mxu0 %v10052
        %10093 = vmatprep.subr.mxu0 0.0
        %10094 = vmatpush1.msra.mxu0 %v10051
        %10095 = vmatprep.subr.mxu0 0.0
        %10096 = vmatpush1.msra.mxu0 %v10050
        %10097 = vmatprep.subr.mxu0 0.0
        %10098 = vmatpush2.msra.mxu0 0.0
        %10099 = vmatprep.subr.mxu0 0.0
        %10100 = vmatpush2.msra.mxu0 0.0
        %10101 = vmatprep.subr.mxu0 0.0
        %10102 = vmatpush2.msra.mxu0 0.0
        %10103 = vmatprep.subr.mxu0 0.0
        %10104 = vmatpush2.msra.mxu0 0.0
        %10105 = vmatprep.subr.mxu0 0.0
        %10106 = vmatpush2.msra.mxu0 0.0
        %10107 = vmatprep.subr.mxu0 0.0
        %10108 = vmatpush2.msra.mxu0 0.0
        %10109 = vmatprep.subr.mxu0 0.0
        %10110 = vmatpush2.msra.mxu0 0.0
        %10111 = vmatprep.subr.mxu0 0.0
        %10112 = vmatpush2.msra.mxu0 0.0
        %10113 = vmatprep.subr.mxu0 0.0
        %10114 = vmatpush2.msra.mxu0 0.0
        %10115 = vmatprep.subr.mxu0 0.0
        %10116 = vmatpush2.msra.mxu0 0.0
        %10117 = vmatprep.subr.mxu0 0.0
        %10118 = vmatpush2.msra.mxu0 0.0
        %10119 = vmatprep.subr.mxu0 0.0
        %10120 = vmatpush2.msra.mxu0 0.0
        %10121 = vmatprep.subr.mxu0 0.0
        %10122 = vmatpush2.msra.mxu0 0.0
        %10123 = vmatprep.subr.mxu0 0.0
        %10124 = vmatpush2.msra.mxu0 0.0
        %10125 = vmatprep.subr.mxu0 0.0
        %10126 = vmatpush2.msra.mxu0 0.0
        %10127 = vmatprep.subr.mxu0 0.0
        %10128 = vmatpush2.msra.mxu0 0.0
        %10129 = vmatprep.mubr.f32.mxu0 0.0
        %10130 = vmatmul.mubr.f32.gmra.mxu0 %v10059
        %v10131 = vpop.f32.mrf.mxu0
        %v10132 = vadd.f32 0.0, %v10131
        %v10133 = vpop.f32.mrf.mxu0
        %10134 = vmatprep.mubr.f32.mxu0 0.0
        %10135 = vmatmul.mubr.f32.gmra.mxu0 %v10061
        %v10136 = vpop.f32.mrf.mxu0
        %v10137 = vadd.f32 0.0, %v10136
        %v10138 = vpop.f32.mrf.mxu0
        %10139 = vmatprep.mubr.f32.mxu0 0.0
        %10140 = vmatmul.mubr.f32.gmra.mxu0 %v10063
        %v10141 = vpop.f32.mrf.mxu0
        %v10142 = vadd.f32 0.0, %v10141
        %v10143 = vpop.f32.mrf.mxu0
        %10144 = vdwg.mxu0
        %v10145 = vadd.f32 %v10046, %v10132
        %v10146 = vadd.f32 %v10047, %v10137
        %v10147 = vadd.f32 %v10048, %v10142
        %s10148 = scalar_lea.vmem %s6, 672
        %v10149 = vld [vmem:[%s10148] sm:$0xff]
        %v10150 = vld [vmem:[%s10148 + $0x8] sm:$0xff]
        %v10151 = vld [vmem:[%s10148 + $0x10] sm:$0xff]
        %v10152 = vld [vmem:[%s10148 + $0x18] sm:$0xff]
        %v10153 = vrot.slane %v8144, 5
        %v10154 = vsel %vm566, %v9585, %v10153
        %v10155 = vsel %vm8163, %v10154, 0
        %v10157 = vsel %vm8163, %v10153, 0
        %10159 = vmatprep.subr.mxu0 0.0
        %10160 = vmatpush1.msra.mxu0 0.0
        %10161 = vmatprep.subr.mxu0 0.0
        %10162 = vmatpush1.msra.mxu0 0.0
        %10163 = vmatprep.subr.mxu0 0.0
        %10164 = vmatpush1.msra.mxu0 0.0
        %10165 = vmatprep.subr.mxu0 0.0
        %10166 = vmatpush1.msra.mxu0 0.0
        %10167 = vmatprep.subr.mxu0 0.0
        %10168 = vmatpush1.msra.mxu0 0.0
        %10169 = vmatprep.subr.mxu0 0.0
        %10170 = vmatpush1.msra.mxu0 0.0
        %10171 = vmatprep.subr.mxu0 0.0
        %10172 = vmatpush1.msra.mxu0 0.0
        %10173 = vmatprep.subr.mxu0 0.0
        %10174 = vmatpush1.msra.mxu0 0.0
        %10175 = vmatprep.subr.mxu0 0.0
        %10176 = vmatpush1.msra.mxu0 0.0
        %10177 = vmatprep.subr.mxu0 0.0
        %10178 = vmatpush1.msra.mxu0 0.0
        %10179 = vmatprep.subr.mxu0 0.0
        %10180 = vmatpush1.msra.mxu0 0.0
        %10181 = vmatprep.subr.mxu0 0.0
        %10182 = vmatpush1.msra.mxu0 0.0
        %10183 = vmatprep.subr.mxu0 0.0
        %10184 = vmatpush1.msra.mxu0 %v10152
        %10185 = vmatprep.subr.mxu0 0.0
        %10186 = vmatpush1.msra.mxu0 %v10151
        %10187 = vmatprep.subr.mxu0 0.0
        %10188 = vmatpush1.msra.mxu0 %v10150
        %10189 = vmatprep.subr.mxu0 0.0
        %10190 = vmatpush1.msra.mxu0 %v10149
        %10191 = vmatprep.subr.mxu0 0.0
        %10192 = vmatpush2.msra.mxu0 0.0
        %10193 = vmatprep.subr.mxu0 0.0
        %10194 = vmatpush2.msra.mxu0 0.0
        %10195 = vmatprep.subr.mxu0 0.0
        %10196 = vmatpush2.msra.mxu0 0.0
        %10197 = vmatprep.subr.mxu0 0.0
        %10198 = vmatpush2.msra.mxu0 0.0
        %10199 = vmatprep.subr.mxu0 0.0
        %10200 = vmatpush2.msra.mxu0 0.0
        %10201 = vmatprep.subr.mxu0 0.0
        %10202 = vmatpush2.msra.mxu0 0.0
        %10203 = vmatprep.subr.mxu0 0.0
        %10204 = vmatpush2.msra.mxu0 0.0
        %10205 = vmatprep.subr.mxu0 0.0
        %10206 = vmatpush2.msra.mxu0 0.0
        %10207 = vmatprep.subr.mxu0 0.0
        %10208 = vmatpush2.msra.mxu0 0.0
        %10209 = vmatprep.subr.mxu0 0.0
        %10210 = vmatpush2.msra.mxu0 0.0
        %10211 = vmatprep.subr.mxu0 0.0
        %10212 = vmatpush2.msra.mxu0 0.0
        %10213 = vmatprep.subr.mxu0 0.0
        %10214 = vmatpush2.msra.mxu0 0.0
        %10215 = vmatprep.subr.mxu0 0.0
        %10216 = vmatpush2.msra.mxu0 0.0
        %10217 = vmatprep.subr.mxu0 0.0
        %10218 = vmatpush2.msra.mxu0 0.0
        %10219 = vmatprep.subr.mxu0 0.0
        %10220 = vmatpush2.msra.mxu0 0.0
        %10221 = vmatprep.subr.mxu0 0.0
        %10222 = vmatpush2.msra.mxu0 0.0
        %10223 = vmatprep.mubr.f32.mxu0 0.0
        %10224 = vmatmul.mubr.f32.gmra.mxu0 %v9589
        %v10225 = vpop.f32.mrf.mxu0
        %v10226 = vadd.f32 0.0, %v10225
        %v10227 = vpop.f32.mrf.mxu0
        %10228 = vmatprep.mubr.f32.mxu0 0.0
        %10229 = vmatmul.mubr.f32.gmra.mxu0 %v10155
        %v10230 = vpop.f32.mrf.mxu0
        %v10231 = vadd.f32 0.0, %v10230
        %v10232 = vpop.f32.mrf.mxu0
        %10233 = vmatprep.mubr.f32.mxu0 0.0
        %10234 = vmatmul.mubr.f32.gmra.mxu0 %v10157
        %v10235 = vpop.f32.mrf.mxu0
        %v10236 = vadd.f32 0.0, %v10235
        %v10237 = vpop.f32.mrf.mxu0
        %10238 = vdwg.mxu0
        %v10239 = vadd.f32 %v10145, %v10226
        %v10240 = vadd.f32 %v10146, %v10231
        %v10241 = vadd.f32 %v10147, %v10236
        %s10242 = scalar_lea.vmem %s6, 704
        %v10243 = vld [vmem:[%s10242] sm:$0xff]
        %v10244 = vld [vmem:[%s10242 + $0x8] sm:$0xff]
        %v10245 = vld [vmem:[%s10242 + $0x10] sm:$0xff]
        %v10246 = vld [vmem:[%s10242 + $0x18] sm:$0xff]
        %v10247 = vrot.slane %v8144, 6
        %v10248 = vsel %vm3701, %v9681, %v10247
        %v10249 = vsel %vm8163, %v10248, 0
        %v10251 = vsel %vm8163, %v10247, 0
        %10253 = vmatprep.subr.mxu0 0.0
        %10254 = vmatpush1.msra.mxu0 0.0
        %10255 = vmatprep.subr.mxu0 0.0
        %10256 = vmatpush1.msra.mxu0 0.0
        %10257 = vmatprep.subr.mxu0 0.0
        %10258 = vmatpush1.msra.mxu0 0.0
        %10259 = vmatprep.subr.mxu0 0.0
        %10260 = vmatpush1.msra.mxu0 0.0
        %10261 = vmatprep.subr.mxu0 0.0
        %10262 = vmatpush1.msra.mxu0 0.0
        %10263 = vmatprep.subr.mxu0 0.0
        %10264 = vmatpush1.msra.mxu0 0.0
        %10265 = vmatprep.subr.mxu0 0.0
        %10266 = vmatpush1.msra.mxu0 0.0
        %10267 = vmatprep.subr.mxu0 0.0
        %10268 = vmatpush1.msra.mxu0 0.0
        %10269 = vmatprep.subr.mxu0 0.0
        %10270 = vmatpush1.msra.mxu0 0.0
        %10271 = vmatprep.subr.mxu0 0.0
        %10272 = vmatpush1.msra.mxu0 0.0
        %10273 = vmatprep.subr.mxu0 0.0
        %10274 = vmatpush1.msra.mxu0 0.0
        %10275 = vmatprep.subr.mxu0 0.0
        %10276 = vmatpush1.msra.mxu0 0.0
        %10277 = vmatprep.subr.mxu0 0.0
        %10278 = vmatpush1.msra.mxu0 %v10246
        %10279 = vmatprep.subr.mxu0 0.0
        %10280 = vmatpush1.msra.mxu0 %v10245
        %10281 = vmatprep.subr.mxu0 0.0
        %10282 = vmatpush1.msra.mxu0 %v10244
        %10283 = vmatprep.subr.mxu0 0.0
        %10284 = vmatpush1.msra.mxu0 %v10243
        %10285 = vmatprep.subr.mxu0 0.0
        %10286 = vmatpush2.msra.mxu0 0.0
        %10287 = vmatprep.subr.mxu0 0.0
        %10288 = vmatpush2.msra.mxu0 0.0
        %10289 = vmatprep.subr.mxu0 0.0
        %10290 = vmatpush2.msra.mxu0 0.0
        %10291 = vmatprep.subr.mxu0 0.0
        %10292 = vmatpush2.msra.mxu0 0.0
        %10293 = vmatprep.subr.mxu0 0.0
        %10294 = vmatpush2.msra.mxu0 0.0
        %10295 = vmatprep.subr.mxu0 0.0
        %10296 = vmatpush2.msra.mxu0 0.0
        %10297 = vmatprep.subr.mxu0 0.0
        %10298 = vmatpush2.msra.mxu0 0.0
        %10299 = vmatprep.subr.mxu0 0.0
        %10300 = vmatpush2.msra.mxu0 0.0
        %10301 = vmatprep.subr.mxu0 0.0
        %10302 = vmatpush2.msra.mxu0 0.0
        %10303 = vmatprep.subr.mxu0 0.0
        %10304 = vmatpush2.msra.mxu0 0.0
        %10305 = vmatprep.subr.mxu0 0.0
        %10306 = vmatpush2.msra.mxu0 0.0
        %10307 = vmatprep.subr.mxu0 0.0
        %10308 = vmatpush2.msra.mxu0 0.0
        %10309 = vmatprep.subr.mxu0 0.0
        %10310 = vmatpush2.msra.mxu0 0.0
        %10311 = vmatprep.subr.mxu0 0.0
        %10312 = vmatpush2.msra.mxu0 0.0
        %10313 = vmatprep.subr.mxu0 0.0
        %10314 = vmatpush2.msra.mxu0 0.0
        %10315 = vmatprep.subr.mxu0 0.0
        %10316 = vmatpush2.msra.mxu0 0.0
        %10317 = vmatprep.mubr.f32.mxu0 0.0
        %10318 = vmatmul.mubr.f32.gmra.mxu0 %v9683
        %v10319 = vpop.f32.mrf.mxu0
        %v10320 = vadd.f32 0.0, %v10319
        %v10321 = vpop.f32.mrf.mxu0
        %10322 = vmatprep.mubr.f32.mxu0 0.0
        %10323 = vmatmul.mubr.f32.gmra.mxu0 %v10249
        %v10324 = vpop.f32.mrf.mxu0
        %v10325 = vadd.f32 0.0, %v10324
        %v10326 = vpop.f32.mrf.mxu0
        %10327 = vmatprep.mubr.f32.mxu0 0.0
        %10328 = vmatmul.mubr.f32.gmra.mxu0 %v10251
        %v10329 = vpop.f32.mrf.mxu0
        %v10330 = vadd.f32 0.0, %v10329
        %v10331 = vpop.f32.mrf.mxu0
        %10332 = vdwg.mxu0
        %v10333 = vadd.f32 %v10239, %v10320
        %v10334 = vadd.f32 %v10240, %v10325
        %v10335 = vadd.f32 %v10241, %v10330
        %s10336 = scalar_lea.vmem %s6, 736
        %v10337 = vld [vmem:[%s10336] sm:$0xff]
        %v10338 = vld [vmem:[%s10336 + $0x8] sm:$0xff]
        %v10339 = vld [vmem:[%s10336 + $0x10] sm:$0xff]
        %v10340 = vld [vmem:[%s10336 + $0x18] sm:$0xff]
        %v10341 = vrot.slane %v8144, 7
        %v10342 = vsel %vm4813, %v9775, %v10341
        %v10343 = vsel %vm8163, %v10342, 0
        %v10345 = vsel %vm8163, %v10341, 0
        %10347 = vmatprep.subr.mxu0 0.0
        %10348 = vmatpush1.msra.mxu0 0.0
        %10349 = vmatprep.subr.mxu0 0.0
        %10350 = vmatpush1.msra.mxu0 0.0
        %10351 = vmatprep.subr.mxu0 0.0
        %10352 = vmatpush1.msra.mxu0 0.0
        %10353 = vmatprep.subr.mxu0 0.0
        %10354 = vmatpush1.msra.mxu0 0.0
        %10355 = vmatprep.subr.mxu0 0.0
        %10356 = vmatpush1.msra.mxu0 0.0
        %10357 = vmatprep.subr.mxu0 0.0
        %10358 = vmatpush1.msra.mxu0 0.0
        %10359 = vmatprep.subr.mxu0 0.0
        %10360 = vmatpush1.msra.mxu0 0.0
        %10361 = vmatprep.subr.mxu0 0.0
        %10362 = vmatpush1.msra.mxu0 0.0
        %10363 = vmatprep.subr.mxu0 0.0
        %10364 = vmatpush1.msra.mxu0 0.0
        %10365 = vmatprep.subr.mxu0 0.0
        %10366 = vmatpush1.msra.mxu0 0.0
        %10367 = vmatprep.subr.mxu0 0.0
        %10368 = vmatpush1.msra.mxu0 0.0
        %10369 = vmatprep.subr.mxu0 0.0
        %10370 = vmatpush1.msra.mxu0 0.0
        %10371 = vmatprep.subr.mxu0 0.0
        %10372 = vmatpush1.msra.mxu0 %v10340
        %10373 = vmatprep.subr.mxu0 0.0
        %10374 = vmatpush1.msra.mxu0 %v10339
        %10375 = vmatprep.subr.mxu0 0.0
        %10376 = vmatpush1.msra.mxu0 %v10338
        %10377 = vmatprep.subr.mxu0 0.0
        %10378 = vmatpush1.msra.mxu0 %v10337
        %10379 = vmatprep.subr.mxu0 0.0
        %10380 = vmatpush2.msra.mxu0 0.0
        %10381 = vmatprep.subr.mxu0 0.0
        %10382 = vmatpush2.msra.mxu0 0.0
        %10383 = vmatprep.subr.mxu0 0.0
        %10384 = vmatpush2.msra.mxu0 0.0
        %10385 = vmatprep.subr.mxu0 0.0
        %10386 = vmatpush2.msra.mxu0 0.0
        %10387 = vmatprep.subr.mxu0 0.0
        %10388 = vmatpush2.msra.mxu0 0.0
        %10389 = vmatprep.subr.mxu0 0.0
        %10390 = vmatpush2.msra.mxu0 0.0
        %10391 = vmatprep.subr.mxu0 0.0
        %10392 = vmatpush2.msra.mxu0 0.0
        %10393 = vmatprep.subr.mxu0 0.0
        %10394 = vmatpush2.msra.mxu0 0.0
        %10395 = vmatprep.subr.mxu0 0.0
        %10396 = vmatpush2.msra.mxu0 0.0
        %10397 = vmatprep.subr.mxu0 0.0
        %10398 = vmatpush2.msra.mxu0 0.0
        %10399 = vmatprep.subr.mxu0 0.0
        %10400 = vmatpush2.msra.mxu0 0.0
        %10401 = vmatprep.subr.mxu0 0.0
        %10402 = vmatpush2.msra.mxu0 0.0
        %10403 = vmatprep.subr.mxu0 0.0
        %10404 = vmatpush2.msra.mxu0 0.0
        %10405 = vmatprep.subr.mxu0 0.0
        %10406 = vmatpush2.msra.mxu0 0.0
        %10407 = vmatprep.subr.mxu0 0.0
        %10408 = vmatpush2.msra.mxu0 0.0
        %10409 = vmatprep.subr.mxu0 0.0
        %10410 = vmatpush2.msra.mxu0 0.0
        %10411 = vmatprep.mubr.f32.mxu0 0.0
        %10412 = vmatmul.mubr.f32.gmra.mxu0 %v9777
        %v10413 = vpop.f32.mrf.mxu0
        %v10414 = vadd.f32 0.0, %v10413
        %v10415 = vpop.f32.mrf.mxu0
        %10416 = vmatprep.mubr.f32.mxu0 0.0
        %10417 = vmatmul.mubr.f32.gmra.mxu0 %v10343
        %v10418 = vpop.f32.mrf.mxu0
        %v10419 = vadd.f32 0.0, %v10418
        %v10420 = vpop.f32.mrf.mxu0
        %10421 = vmatprep.mubr.f32.mxu0 0.0
        %10422 = vmatmul.mubr.f32.gmra.mxu0 %v10345
        %v10423 = vpop.f32.mrf.mxu0
        %v10424 = vadd.f32 0.0, %v10423
        %v10425 = vpop.f32.mrf.mxu0
        %10426 = vdwg.mxu0
        %v10427 = vadd.f32 %v10333, %v10414
        %v10428 = vadd.f32 %v10334, %v10419
        %v10429 = vadd.f32 %v10335, %v10424
        %s10430 = scalar_lea.vmem %s6, 768
        %v10431 = vld [vmem:[%s10430] sm:$0xff]
        %v10432 = vld [vmem:[%s10430 + $0x8] sm:$0xff]
        %v10433 = vld [vmem:[%s10430 + $0x10] sm:$0xff]
        %v10434 = vld [vmem:[%s10430 + $0x18] sm:$0xff]
        %v10436 = vsel %vm8163, %v8145, 0
        %10438 = vmatprep.subr.mxu0 0.0
        %10439 = vmatpush1.msra.mxu0 0.0
        %10440 = vmatprep.subr.mxu0 0.0
        %10441 = vmatpush1.msra.mxu0 0.0
        %10442 = vmatprep.subr.mxu0 0.0
        %10443 = vmatpush1.msra.mxu0 0.0
        %10444 = vmatprep.subr.mxu0 0.0
        %10445 = vmatpush1.msra.mxu0 0.0
        %10446 = vmatprep.subr.mxu0 0.0
        %10447 = vmatpush1.msra.mxu0 0.0
        %10448 = vmatprep.subr.mxu0 0.0
        %10449 = vmatpush1.msra.mxu0 0.0
        %10450 = vmatprep.subr.mxu0 0.0
        %10451 = vmatpush1.msra.mxu0 0.0
        %10452 = vmatprep.subr.mxu0 0.0
        %10453 = vmatpush1.msra.mxu0 0.0
        %10454 = vmatprep.subr.mxu0 0.0
        %10455 = vmatpush1.msra.mxu0 0.0
        %10456 = vmatprep.subr.mxu0 0.0
        %10457 = vmatpush1.msra.mxu0 0.0
        %10458 = vmatprep.subr.mxu0 0.0
        %10459 = vmatpush1.msra.mxu0 0.0
        %10460 = vmatprep.subr.mxu0 0.0
        %10461 = vmatpush1.msra.mxu0 0.0
        %10462 = vmatprep.subr.mxu0 0.0
        %10463 = vmatpush1.msra.mxu0 %v10434
        %10464 = vmatprep.subr.mxu0 0.0
        %10465 = vmatpush1.msra.mxu0 %v10433
        %10466 = vmatprep.subr.mxu0 0.0
        %10467 = vmatpush1.msra.mxu0 %v10432
        %10468 = vmatprep.subr.mxu0 0.0
        %10469 = vmatpush1.msra.mxu0 %v10431
        %10470 = vmatprep.subr.mxu0 0.0
        %10471 = vmatpush2.msra.mxu0 0.0
        %10472 = vmatprep.subr.mxu0 0.0
        %10473 = vmatpush2.msra.mxu0 0.0
        %10474 = vmatprep.subr.mxu0 0.0
        %10475 = vmatpush2.msra.mxu0 0.0
        %10476 = vmatprep.subr.mxu0 0.0
        %10477 = vmatpush2.msra.mxu0 0.0
        %10478 = vmatprep.subr.mxu0 0.0
        %10479 = vmatpush2.msra.mxu0 0.0
        %10480 = vmatprep.subr.mxu0 0.0
        %10481 = vmatpush2.msra.mxu0 0.0
        %10482 = vmatprep.subr.mxu0 0.0
        %10483 = vmatpush2.msra.mxu0 0.0
        %10484 = vmatprep.subr.mxu0 0.0
        %10485 = vmatpush2.msra.mxu0 0.0
        %10486 = vmatprep.subr.mxu0 0.0
        %10487 = vmatpush2.msra.mxu0 0.0
        %10488 = vmatprep.subr.mxu0 0.0
        %10489 = vmatpush2.msra.mxu0 0.0
        %10490 = vmatprep.subr.mxu0 0.0
        %10491 = vmatpush2.msra.mxu0 0.0
        %10492 = vmatprep.subr.mxu0 0.0
        %10493 = vmatpush2.msra.mxu0 0.0
        %10494 = vmatprep.subr.mxu0 0.0
        %10495 = vmatpush2.msra.mxu0 0.0
        %10496 = vmatprep.subr.mxu0 0.0
        %10497 = vmatpush2.msra.mxu0 0.0
        %10498 = vmatprep.subr.mxu0 0.0
        %10499 = vmatpush2.msra.mxu0 0.0
        %10500 = vmatprep.subr.mxu0 0.0
        %10501 = vmatpush2.msra.mxu0 0.0
        %10502 = vmatprep.mubr.f32.mxu0 0.0
        %10503 = vmatmul.mubr.f32.gmra.mxu0 %v9304
        %v10504 = vpop.f32.mrf.mxu0
        %v10505 = vadd.f32 0.0, %v10504
        %v10506 = vpop.f32.mrf.mxu0
        %10507 = vmatprep.mubr.f32.mxu0 0.0
        %10508 = vmatmul.mubr.f32.gmra.mxu0 %v9870
        %v10509 = vpop.f32.mrf.mxu0
        %v10510 = vadd.f32 0.0, %v10509
        %v10511 = vpop.f32.mrf.mxu0
        %10512 = vmatprep.mubr.f32.mxu0 0.0
        %10513 = vmatmul.mubr.f32.gmra.mxu0 %v10436
        %v10514 = vpop.f32.mrf.mxu0
        %v10515 = vadd.f32 0.0, %v10514
        %v10516 = vpop.f32.mrf.mxu0
        %10517 = vdwg.mxu0
        %v10518 = vadd.f32 %v10427, %v10505
        %v10519 = vadd.f32 %v10428, %v10510
        %v10520 = vadd.f32 %v10429, %v10515
        %v10521 = vld [vmem:[%s8] sm:$0xf]
        %v10522 = vld [vmem:[%s7] sm:$0x1]
        %v10524 = vlaneseq
        %v10525 = vshrl.u32 %v10524, 7
        %v10526 = vsub.s32 0, %v10525
        %v10527 = vrot.slane %v10522, %v10526
        %vm10529 = vcmask 138240
        %v10531 = vsel %vm10529, %v10521, 0
        %v10534 = vsel %vm4813, %v10520, 0
        %10536 = vmatprep.subr.mxu0 0.0
        %10537 = vmatpush1.msra.mxu0 0.0
        %10538 = vmatprep.subr.mxu0 0.0
        %10539 = vmatpush1.msra.mxu0 0.0
        %10540 = vmatprep.subr.mxu0 0.0
        %10541 = vmatpush1.msra.mxu0 0.0
        %10542 = vmatprep.subr.mxu0 0.0
        %10543 = vmatpush1.msra.mxu0 0.0
        %10544 = vmatprep.subr.mxu0 0.0
        %10545 = vmatpush1.msra.mxu0 0.0
        %10546 = vmatprep.subr.mxu0 0.0
        %10547 = vmatpush1.msra.mxu0 0.0
        %10548 = vmatprep.subr.mxu0 0.0
        %10549 = vmatpush1.msra.mxu0 0.0
        %10550 = vmatprep.subr.mxu0 0.0
        %10551 = vmatpush1.msra.mxu0 0.0
        %10552 = vmatprep.subr.mxu0 0.0
        %10553 = vmatpush1.msra.mxu0 0.0
        %10554 = vmatprep.subr.mxu0 0.0
        %10555 = vmatpush1.msra.mxu0 0.0
        %10556 = vmatprep.subr.mxu0 0.0
        %10557 = vmatpush1.msra.mxu0 0.0
        %10558 = vmatprep.subr.mxu0 0.0
        %10559 = vmatpush1.msra.mxu0 0.0
        %10560 = vmatprep.subr.mxu0 0.0
        %10561 = vmatpush1.msra.mxu0 0.0
        %10562 = vmatprep.subr.mxu0 0.0
        %10563 = vmatpush1.msra.mxu0 %v10534
        %10564 = vmatprep.subr.mxu0 0.0
        %10565 = vmatpush1.msra.mxu0 %v10519
        %10566 = vmatprep.subr.mxu0 0.0
        %10567 = vmatpush1.msra.mxu0 %v10518
        %10568 = vmatprep.subr.mxu0 0.0
        %10569 = vmatpush2.msra.mxu0 0.0
        %10570 = vmatprep.subr.mxu0 0.0
        %10571 = vmatpush2.msra.mxu0 0.0
        %10572 = vmatprep.subr.mxu0 0.0
        %10573 = vmatpush2.msra.mxu0 0.0
        %10574 = vmatprep.subr.mxu0 0.0
        %10575 = vmatpush2.msra.mxu0 0.0
        %10576 = vmatprep.subr.mxu0 0.0
        %10577 = vmatpush2.msra.mxu0 0.0
        %10578 = vmatprep.subr.mxu0 0.0
        %10579 = vmatpush2.msra.mxu0 0.0
        %10580 = vmatprep.subr.mxu0 0.0
        %10581 = vmatpush2.msra.mxu0 0.0
        %10582 = vmatprep.subr.mxu0 0.0
        %10583 = vmatpush2.msra.mxu0 0.0
        %10584 = vmatprep.subr.mxu0 0.0
        %10585 = vmatpush2.msra.mxu0 0.0
        %10586 = vmatprep.subr.mxu0 0.0
        %10587 = vmatpush2.msra.mxu0 0.0
        %10588 = vmatprep.subr.mxu0 0.0
        %10589 = vmatpush2.msra.mxu0 0.0
        %10590 = vmatprep.subr.mxu0 0.0
        %10591 = vmatpush2.msra.mxu0 0.0
        %10592 = vmatprep.subr.mxu0 0.0
        %10593 = vmatpush2.msra.mxu0 0.0
        %10594 = vmatprep.subr.mxu0 0.0
        %10595 = vmatpush2.msra.mxu0 0.0
        %10596 = vmatprep.subr.mxu0 0.0
        %10597 = vmatpush2.msra.mxu0 0.0
        %10598 = vmatprep.subr.mxu0 0.0
        %10599 = vmatpush2.msra.mxu0 0.0
        %10600 = vmatprep.mubr.f32.mxu0 0.0
        %10601 = vmatmul.mubr.f32.gmra.mxu0 %v10531
        %v10602 = vpop.f32.mrf.mxu0
        %v10603 = vadd.f32 %v10527, %v10602
        %v10604 = vpop.f32.mrf.mxu0
        %10605 = vdwg.mxu0
        %v10606 = vmax.f32 %v10603, 0.0
        %v10607 = vld [vmem:[%s10] sm:$0x1]
        %v10608 = vld [vmem:[%s9] sm:$0xff]
        %v10609 = vld [vmem:[%s9 + $0x8] sm:$0xff]
        %v10610 = vld [vmem:[%s9 + $0x10] sm:$0xff]
        %v10611 = vld [vmem:[%s9 + $0x18] sm:$0xff]
        %v10613 = vsel %vm8163, %v10606, 0
        %10615 = vmatprep.subr.mxu0 0.0
        %10616 = vmatpush1.msra.mxu0 0.0
        %10617 = vmatprep.subr.mxu0 0.0
        %10618 = vmatpush1.msra.mxu0 0.0
        %10619 = vmatprep.subr.mxu0 0.0
        %10620 = vmatpush1.msra.mxu0 0.0
        %10621 = vmatprep.subr.mxu0 0.0
        %10622 = vmatpush1.msra.mxu0 0.0
        %10623 = vmatprep.subr.mxu0 0.0
        %10624 = vmatpush1.msra.mxu0 0.0
        %10625 = vmatprep.subr.mxu0 0.0
        %10626 = vmatpush1.msra.mxu0 0.0
        %10627 = vmatprep.subr.mxu0 0.0
        %10628 = vmatpush1.msra.mxu0 0.0
        %10629 = vmatprep.subr.mxu0 0.0
        %10630 = vmatpush1.msra.mxu0 0.0
        %10631 = vmatprep.subr.mxu0 0.0
        %10632 = vmatpush1.msra.mxu0 0.0
        %10633 = vmatprep.subr.mxu0 0.0
        %10634 = vmatpush1.msra.mxu0 0.0
        %10635 = vmatprep.subr.mxu0 0.0
        %10636 = vmatpush1.msra.mxu0 0.0
        %10637 = vmatprep.subr.mxu0 0.0
        %10638 = vmatpush1.msra.mxu0 0.0
        %10639 = vmatprep.subr.mxu0 0.0
        %10640 = vmatpush1.msra.mxu0 %v10611
        %10641 = vmatprep.subr.mxu0 0.0
        %10642 = vmatpush1.msra.mxu0 %v10610
        %10643 = vmatprep.subr.mxu0 0.0
        %10644 = vmatpush1.msra.mxu0 %v10609
        %10645 = vmatprep.subr.mxu0 0.0
        %10646 = vmatpush1.msra.mxu0 %v10608
        %10647 = vmatprep.subr.mxu0 0.0
        %10648 = vmatpush2.msra.mxu0 0.0
        %10649 = vmatprep.subr.mxu0 0.0
        %10650 = vmatpush2.msra.mxu0 0.0
        %10651 = vmatprep.subr.mxu0 0.0
        %10652 = vmatpush2.msra.mxu0 0.0
        %10653 = vmatprep.subr.mxu0 0.0
        %10654 = vmatpush2.msra.mxu0 0.0
        %10655 = vmatprep.subr.mxu0 0.0
        %10656 = vmatpush2.msra.mxu0 0.0
        %10657 = vmatprep.subr.mxu0 0.0
        %10658 = vmatpush2.msra.mxu0 0.0
        %10659 = vmatprep.subr.mxu0 0.0
        %10660 = vmatpush2.msra.mxu0 0.0
        %10661 = vmatprep.subr.mxu0 0.0
        %10662 = vmatpush2.msra.mxu0 0.0
        %10663 = vmatprep.subr.mxu0 0.0
        %10664 = vmatpush2.msra.mxu0 0.0
        %10665 = vmatprep.subr.mxu0 0.0
        %10666 = vmatpush2.msra.mxu0 0.0
        %10667 = vmatprep.subr.mxu0 0.0
        %10668 = vmatpush2.msra.mxu0 0.0
        %10669 = vmatprep.subr.mxu0 0.0
        %10670 = vmatpush2.msra.mxu0 0.0
        %10671 = vmatprep.subr.mxu0 0.0
        %10672 = vmatpush2.msra.mxu0 0.0
        %10673 = vmatprep.subr.mxu0 0.0
        %10674 = vmatpush2.msra.mxu0 0.0
        %10675 = vmatprep.subr.mxu0 0.0
        %10676 = vmatpush2.msra.mxu0 0.0
        %10677 = vmatprep.subr.mxu0 0.0
        %10678 = vmatpush2.msra.mxu0 0.0
        %10679 = vmatprep.mubr.f32.mxu0 0.0
        %10680 = vmatmul.mubr.f32.gmra.mxu0 %v10613
        %v10681 = vpop.f32.mrf.mxu0
        %v10682 = vadd.f32 0.0, %v10681
        %v10683 = vpop.f32.mrf.mxu0
        %10684 = vdwg.mxu0
        %v10685 = vadd.f32 %v10607, %v10682
        %s10686 = scalar_lea.vmem %s9, 32
        %v10687 = vld [vmem:[%s10686] sm:$0xff]
        %v10688 = vld [vmem:[%s10686 + $0x8] sm:$0xff]
        %v10689 = vld [vmem:[%s10686 + $0x10] sm:$0xff]
        %v10690 = vld [vmem:[%s10686 + $0x18] sm:$0xff]
        %v10691 = vrot.slane %v10606, 1
        %v10692 = vsel %vm8163, %v10691, 0
        %10694 = vmatprep.subr.mxu0 0.0
        %10695 = vmatpush1.msra.mxu0 0.0
        %10696 = vmatprep.subr.mxu0 0.0
        %10697 = vmatpush1.msra.mxu0 0.0
        %10698 = vmatprep.subr.mxu0 0.0
        %10699 = vmatpush1.msra.mxu0 0.0
        %10700 = vmatprep.subr.mxu0 0.0
        %10701 = vmatpush1.msra.mxu0 0.0
        %10702 = vmatprep.subr.mxu0 0.0
        %10703 = vmatpush1.msra.mxu0 0.0
        %10704 = vmatprep.subr.mxu0 0.0
        %10705 = vmatpush1.msra.mxu0 0.0
        %10706 = vmatprep.subr.mxu0 0.0
        %10707 = vmatpush1.msra.mxu0 0.0
        %10708 = vmatprep.subr.mxu0 0.0
        %10709 = vmatpush1.msra.mxu0 0.0
        %10710 = vmatprep.subr.mxu0 0.0
        %10711 = vmatpush1.msra.mxu0 0.0
        %10712 = vmatprep.subr.mxu0 0.0
        %10713 = vmatpush1.msra.mxu0 0.0
        %10714 = vmatprep.subr.mxu0 0.0
        %10715 = vmatpush1.msra.mxu0 0.0
        %10716 = vmatprep.subr.mxu0 0.0
        %10717 = vmatpush1.msra.mxu0 0.0
        %10718 = vmatprep.subr.mxu0 0.0
        %10719 = vmatpush1.msra.mxu0 %v10690
        %10720 = vmatprep.subr.mxu0 0.0
        %10721 = vmatpush1.msra.mxu0 %v10689
        %10722 = vmatprep.subr.mxu0 0.0
        %10723 = vmatpush1.msra.mxu0 %v10688
        %10724 = vmatprep.subr.mxu0 0.0
        %10725 = vmatpush1.msra.mxu0 %v10687
        %10726 = vmatprep.subr.mxu0 0.0
        %10727 = vmatpush2.msra.mxu0 0.0
        %10728 = vmatprep.subr.mxu0 0.0
        %10729 = vmatpush2.msra.mxu0 0.0
        %10730 = vmatprep.subr.mxu0 0.0
        %10731 = vmatpush2.msra.mxu0 0.0
        %10732 = vmatprep.subr.mxu0 0.0
        %10733 = vmatpush2.msra.mxu0 0.0
        %10734 = vmatprep.subr.mxu0 0.0
        %10735 = vmatpush2.msra.mxu0 0.0
        %10736 = vmatprep.subr.mxu0 0.0
        %10737 = vmatpush2.msra.mxu0 0.0
        %10738 = vmatprep.subr.mxu0 0.0
        %10739 = vmatpush2.msra.mxu0 0.0
        %10740 = vmatprep.subr.mxu0 0.0
        %10741 = vmatpush2.msra.mxu0 0.0
        %10742 = vmatprep.subr.mxu0 0.0
        %10743 = vmatpush2.msra.mxu0 0.0
        %10744 = vmatprep.subr.mxu0 0.0
        %10745 = vmatpush2.msra.mxu0 0.0
        %10746 = vmatprep.subr.mxu0 0.0
        %10747 = vmatpush2.msra.mxu0 0.0
        %10748 = vmatprep.subr.mxu0 0.0
        %10749 = vmatpush2.msra.mxu0 0.0
        %10750 = vmatprep.subr.mxu0 0.0
        %10751 = vmatpush2.msra.mxu0 0.0
        %10752 = vmatprep.subr.mxu0 0.0
        %10753 = vmatpush2.msra.mxu0 0.0
        %10754 = vmatprep.subr.mxu0 0.0
        %10755 = vmatpush2.msra.mxu0 0.0
        %10756 = vmatprep.subr.mxu0 0.0
        %10757 = vmatpush2.msra.mxu0 0.0
        %10758 = vmatprep.mubr.f32.mxu0 0.0
        %10759 = vmatmul.mubr.f32.gmra.mxu0 %v10692
        %v10760 = vpop.f32.mrf.mxu0
        %v10761 = vadd.f32 0.0, %v10760
        %v10762 = vpop.f32.mrf.mxu0
        %10763 = vdwg.mxu0
        %v10764 = vadd.f32 %v10685, %v10761
        %s10765 = scalar_lea.vmem %s9, 64
        %v10766 = vld [vmem:[%s10765] sm:$0xff]
        %v10767 = vld [vmem:[%s10765 + $0x8] sm:$0xff]
        %v10768 = vld [vmem:[%s10765 + $0x10] sm:$0xff]
        %v10769 = vld [vmem:[%s10765 + $0x18] sm:$0xff]
        %v10770 = vrot.slane %v10606, 2
        %v10771 = vsel %vm8163, %v10770, 0
        %10773 = vmatprep.subr.mxu0 0.0
        %10774 = vmatpush1.msra.mxu0 0.0
        %10775 = vmatprep.subr.mxu0 0.0
        %10776 = vmatpush1.msra.mxu0 0.0
        %10777 = vmatprep.subr.mxu0 0.0
        %10778 = vmatpush1.msra.mxu0 0.0
        %10779 = vmatprep.subr.mxu0 0.0
        %10780 = vmatpush1.msra.mxu0 0.0
        %10781 = vmatprep.subr.mxu0 0.0
        %10782 = vmatpush1.msra.mxu0 0.0
        %10783 = vmatprep.subr.mxu0 0.0
        %10784 = vmatpush1.msra.mxu0 0.0
        %10785 = vmatprep.subr.mxu0 0.0
        %10786 = vmatpush1.msra.mxu0 0.0
        %10787 = vmatprep.subr.mxu0 0.0
        %10788 = vmatpush1.msra.mxu0 0.0
        %10789 = vmatprep.subr.mxu0 0.0
        %10790 = vmatpush1.msra.mxu0 0.0
        %10791 = vmatprep.subr.mxu0 0.0
        %10792 = vmatpush1.msra.mxu0 0.0
        %10793 = vmatprep.subr.mxu0 0.0
        %10794 = vmatpush1.msra.mxu0 0.0
        %10795 = vmatprep.subr.mxu0 0.0
        %10796 = vmatpush1.msra.mxu0 0.0
        %10797 = vmatprep.subr.mxu0 0.0
        %10798 = vmatpush1.msra.mxu0 %v10769
        %10799 = vmatprep.subr.mxu0 0.0
        %10800 = vmatpush1.msra.mxu0 %v10768
        %10801 = vmatprep.subr.mxu0 0.0
        %10802 = vmatpush1.msra.mxu0 %v10767
        %10803 = vmatprep.subr.mxu0 0.0
        %10804 = vmatpush1.msra.mxu0 %v10766
        %10805 = vmatprep.subr.mxu0 0.0
        %10806 = vmatpush2.msra.mxu0 0.0
        %10807 = vmatprep.subr.mxu0 0.0
        %10808 = vmatpush2.msra.mxu0 0.0
        %10809 = vmatprep.subr.mxu0 0.0
        %10810 = vmatpush2.msra.mxu0 0.0
        %10811 = vmatprep.subr.mxu0 0.0
        %10812 = vmatpush2.msra.mxu0 0.0
        %10813 = vmatprep.subr.mxu0 0.0
        %10814 = vmatpush2.msra.mxu0 0.0
        %10815 = vmatprep.subr.mxu0 0.0
        %10816 = vmatpush2.msra.mxu0 0.0
        %10817 = vmatprep.subr.mxu0 0.0
        %10818 = vmatpush2.msra.mxu0 0.0
        %10819 = vmatprep.subr.mxu0 0.0
        %10820 = vmatpush2.msra.mxu0 0.0
        %10821 = vmatprep.subr.mxu0 0.0
        %10822 = vmatpush2.msra.mxu0 0.0
        %10823 = vmatprep.subr.mxu0 0.0
        %10824 = vmatpush2.msra.mxu0 0.0
        %10825 = vmatprep.subr.mxu0 0.0
        %10826 = vmatpush2.msra.mxu0 0.0
        %10827 = vmatprep.subr.mxu0 0.0
        %10828 = vmatpush2.msra.mxu0 0.0
        %10829 = vmatprep.subr.mxu0 0.0
        %10830 = vmatpush2.msra.mxu0 0.0
        %10831 = vmatprep.subr.mxu0 0.0
        %10832 = vmatpush2.msra.mxu0 0.0
        %10833 = vmatprep.subr.mxu0 0.0
        %10834 = vmatpush2.msra.mxu0 0.0
        %10835 = vmatprep.subr.mxu0 0.0
        %10836 = vmatpush2.msra.mxu0 0.0
        %10837 = vmatprep.mubr.f32.mxu0 0.0
        %10838 = vmatmul.mubr.f32.gmra.mxu0 %v10771
        %v10839 = vpop.f32.mrf.mxu0
        %v10840 = vadd.f32 0.0, %v10839
        %v10841 = vpop.f32.mrf.mxu0
        %10842 = vdwg.mxu0
        %v10843 = vadd.f32 %v10764, %v10840
        %s10844 = scalar_lea.vmem %s9, 96
        %v10845 = vld [vmem:[%s10844] sm:$0xff]
        %v10846 = vld [vmem:[%s10844 + $0x8] sm:$0xff]
        %v10847 = vld [vmem:[%s10844 + $0x10] sm:$0xff]
        %v10848 = vld [vmem:[%s10844 + $0x18] sm:$0xff]
        %v10849 = vrot.slane %v10606, 3
        %v10850 = vsel %vm8163, %v10849, 0
        %10852 = vmatprep.subr.mxu0 0.0
        %10853 = vmatpush1.msra.mxu0 0.0
        %10854 = vmatprep.subr.mxu0 0.0
        %10855 = vmatpush1.msra.mxu0 0.0
        %10856 = vmatprep.subr.mxu0 0.0
        %10857 = vmatpush1.msra.mxu0 0.0
        %10858 = vmatprep.subr.mxu0 0.0
        %10859 = vmatpush1.msra.mxu0 0.0
        %10860 = vmatprep.subr.mxu0 0.0
        %10861 = vmatpush1.msra.mxu0 0.0
        %10862 = vmatprep.subr.mxu0 0.0
        %10863 = vmatpush1.msra.mxu0 0.0
        %10864 = vmatprep.subr.mxu0 0.0
        %10865 = vmatpush1.msra.mxu0 0.0
        %10866 = vmatprep.subr.mxu0 0.0
        %10867 = vmatpush1.msra.mxu0 0.0
        %10868 = vmatprep.subr.mxu0 0.0
        %10869 = vmatpush1.msra.mxu0 0.0
        %10870 = vmatprep.subr.mxu0 0.0
        %10871 = vmatpush1.msra.mxu0 0.0
        %10872 = vmatprep.subr.mxu0 0.0
        %10873 = vmatpush1.msra.mxu0 0.0
        %10874 = vmatprep.subr.mxu0 0.0
        %10875 = vmatpush1.msra.mxu0 0.0
        %10876 = vmatprep.subr.mxu0 0.0
        %10877 = vmatpush1.msra.mxu0 %v10848
        %10878 = vmatprep.subr.mxu0 0.0
        %10879 = vmatpush1.msra.mxu0 %v10847
        %10880 = vmatprep.subr.mxu0 0.0
        %10881 = vmatpush1.msra.mxu0 %v10846
        %10882 = vmatprep.subr.mxu0 0.0
        %10883 = vmatpush1.msra.mxu0 %v10845
        %10884 = vmatprep.subr.mxu0 0.0
        %10885 = vmatpush2.msra.mxu0 0.0
        %10886 = vmatprep.subr.mxu0 0.0
        %10887 = vmatpush2.msra.mxu0 0.0
        %10888 = vmatprep.subr.mxu0 0.0
        %10889 = vmatpush2.msra.mxu0 0.0
        %10890 = vmatprep.subr.mxu0 0.0
        %10891 = vmatpush2.msra.mxu0 0.0
        %10892 = vmatprep.subr.mxu0 0.0
        %10893 = vmatpush2.msra.mxu0 0.0
        %10894 = vmatprep.subr.mxu0 0.0
        %10895 = vmatpush2.msra.mxu0 0.0
        %10896 = vmatprep.subr.mxu0 0.0
        %10897 = vmatpush2.msra.mxu0 0.0
        %10898 = vmatprep.subr.mxu0 0.0
        %10899 = vmatpush2.msra.mxu0 0.0
        %10900 = vmatprep.subr.mxu0 0.0
        %10901 = vmatpush2.msra.mxu0 0.0
        %10902 = vmatprep.subr.mxu0 0.0
        %10903 = vmatpush2.msra.mxu0 0.0
        %10904 = vmatprep.subr.mxu0 0.0
        %10905 = vmatpush2.msra.mxu0 0.0
        %10906 = vmatprep.subr.mxu0 0.0
        %10907 = vmatpush2.msra.mxu0 0.0
        %10908 = vmatprep.subr.mxu0 0.0
        %10909 = vmatpush2.msra.mxu0 0.0
        %10910 = vmatprep.subr.mxu0 0.0
        %10911 = vmatpush2.msra.mxu0 0.0
        %10912 = vmatprep.subr.mxu0 0.0
        %10913 = vmatpush2.msra.mxu0 0.0
        %10914 = vmatprep.subr.mxu0 0.0
        %10915 = vmatpush2.msra.mxu0 0.0
        %10916 = vmatprep.mubr.f32.mxu0 0.0
        %10917 = vmatmul.mubr.f32.gmra.mxu0 %v10850
        %v10918 = vpop.f32.mrf.mxu0
        %v10919 = vadd.f32 0.0, %v10918
        %v10920 = vpop.f32.mrf.mxu0
        %10921 = vdwg.mxu0
        %v10922 = vadd.f32 %v10843, %v10919
        %vm10923 = vcmask 16384
        %10924 = vst.msk [vmem:[%s378] sm:$0x1] %vm10923, %v10922
        %s10925 = sand.u32 %s269, 1
        %s10926 = scalar_lea.sflag [#allocation3], %s10925
        %s10927 = sand.u32 %s269, 1
        %s10928 = scalar_lea.vmem [#allocation2], %s10927
        // Predicated region
        $region65: #{dqn_forward.1} parent=63 // pred_check
          %p10929 = pneg %p279
        $region66: #{dqn_forward.1} parent=63 // pred_check_branch
          %10931 = sbr.rel (%p10929) target = $region68
        $region67: #{dqn_forward.1} parent=63 // pred_region
          %s10933 = ssub.s32 16, 16
          %10934 = vsyncadd %s10926, %s10933
          %s10935 = smul.addr %s25, 16
          %s10936 = scalar_lea.hbm %s11, %s10935
          %s10938 = sshll.u32 %s10928, 4
          %s10939 = int_to_ptr.vmem [resolvable:$true] %s10938
          %10941 = dma.vmem_to_hbm [thread:$0]  %s10939, 16, %s10936, %s10926
        $region68: #{dqn_forward.1} parent=63 // pred_fallthru
          _
      $region64: #{dqn_forward.1} parent=5 // pred_fallthru
        _
      %p10942 = scmp.le.s32.totalorder 2, %s20
      // Predicated region
      $region69: #{dqn_forward.1} parent=5 // pred_check
        %p10943 = pneg %p10942
      $region70: #{dqn_forward.1} parent=5 // pred_check_branch
        %10945 = sbr.rel (%p10943) target = $region72
      $region71: #{dqn_forward.1} parent=5 // pred_region
        %s10946 = ssub.s32 %s20, 2
        // Predicated region
        $region73: #{dqn_forward.1} parent=71 // pred_check
          %p10947 = pneg %p285
        $region74: #{dqn_forward.1} parent=71 // pred_check_branch
          %10949 = sbr.rel (%p10947) target = $region76
        $region75: #{dqn_forward.1} parent=71 // pred_region
          %s10950 = sand.u32 %s270, 1
          %s10951 = scalar_lea.sflag [#allocation3], %s10950
          %s10952 = sand.u32 %s270, 1
          %s10953 = scalar_lea.vmem [#allocation2], %s10952
          %10954 = dma.done %s10951, 16
        $region76: #{dqn_forward.1} parent=71 // pred_fallthru
          _
      $region72: #{dqn_forward.1} parent=5 // pred_fallthru
        _
    $region6: #{dqn_forward.1} parent=1 // loop_footer
      %s24 = sadd.s32 1, %s20
    $region7: #{dqn_forward.1} parent=1 // loop_footer_branch
      %19 = sbr.rel target = $region3
    $region8: #{dqn_forward.1} parent=1 // loop_exit
      _
    %10955 = vsyncpa [#allocation3], 1
    %s10956 = scalar_lea.sflag [#allocation3], 1
    %10957 = vsyncpa %s10956, 1

</llo_original>
